<compile_context>
chip_gen: v7x
topology: tpu7x:2x2x1
jax: 0.10.0
libtpu: 0.0.40
codegen_flags: <defaults>
</compile_context>

<pallas_src>
import math
import functools

import jax
import jax.numpy as jnp
from jax.experimental import pallas as pl
from jax.experimental.pallas import tpu as pltpu


# ------------------------------ in-kernel helpers (traced inside the kernel) -------------------

def _linear(x, w, b, relu=False):
    """x:(T,Din) f32, w:(Din,Dout) bf16, b:(1,Dout) f32 -> (T,Dout) f32 (bf16 MXU, f32 accumulate)."""
    y = jnp.dot(x.astype(jnp.bfloat16), w, preferred_element_type=jnp.float32) + b
    return jnp.maximum(y, 0.0) if relu else y


def _layernorm(x, g, b, eps):
    mu = jnp.mean(x, axis=-1, keepdims=True)
    xc = x - mu
    var = jnp.mean(xc * xc, axis=-1, keepdims=True)
    return xc * jax.lax.rsqrt(var + eps) * g + b


def _mha_core(q, k, v, N, Sq, Sk, nhead, D):
    """q:(N*Sq,D), k/v:(N*Sk,D) f32 -> (N*Sq,D) f32. All batches/heads inside one kernel call."""
    dh = D // nhead
    # fold 1/sqrt(dh) into q; cast to bf16 once (outside the head loop)
    q = (q * (1.0 / math.sqrt(dh))).astype(jnp.bfloat16).reshape(N, Sq, D)
    k = k.astype(jnp.bfloat16).reshape(N, Sk, D)
    v = v.astype(jnp.bfloat16).reshape(N, Sk, D)
    heads = []
    for h in range(nhead):                              # static loop over heads
        sl = slice(h * dh, (h + 1) * dh)
        s = jnp.einsum("bqd,bkd->bqk", q[:, :, sl], k[:, :, sl],
                       preferred_element_type=jnp.float32)
        m = jnp.max(s, axis=-1, keepdims=True)
        p = jnp.exp(s - m)
        p = p * pl.reciprocal(jnp.sum(p, axis=-1, keepdims=True), approx=True)
        heads.append(jnp.einsum("bqk,bkd->bqd", p.astype(jnp.bfloat16), v[:, :, sl],
                                preferred_element_type=jnp.float32))
    return jnp.concatenate(heads, axis=-1).reshape(N * Sq, D)


def _self_attention(x2, wqkv, bqkv, wo, bo, N, S, nhead, D):
    qkv = _linear(x2, wqkv, bqkv)                       # one packed QKV matmul: (T, 3D)
    o = _mha_core(qkv[:, :D], qkv[:, D:2 * D], qkv[:, 2 * D:], N, S, S, nhead, D)
    return _linear(o, wo, bo)


def _cross_attention(x2, mem2, wqkv, bqkv, wo, bo, N, Sq, Sk, nhead, D):
    q = _linear(x2, wqkv[:, :D], bqkv[:, :D])           # q from target
    kv = _linear(mem2, wqkv[:, D:], bqkv[:, D:])        # packed K/V from encoder memory
    o = _mha_core(q, kv[:, :D], kv[:, D:], N, Sq, Sk, nhead, D)
    return _linear(o, wo, bo)


def _ffn(x2, w1, b1, w2, b2):
    # bias + relu + second matmul fused: the (T, dim_feedforward) hidden never leaves VMEM
    return _linear(_linear(x2, w1, b1, relu=True), w2, b2)


# ------------------------------ the fused encoder+decoder kernel -------------------------------

def _transformer_kernel(x0_ref,
                        e_wqkv, e_bqkv, e_wo, e_bo, e_ln1g, e_ln1b,
                        e_w1, e_b1, e_w2, e_b2, e_ln2g, e_ln2b,
                        e_fng, e_fnb,
                        d_sa_wqkv, d_sa_bqkv, d_sa_wo, d_sa_bo, d_ln1g, d_ln1b,
                        d_ca_wqkv, d_ca_bqkv, d_ca_wo, d_ca_bo, d_ln2g, d_ln2b,
                        d_w1, d_b1, d_w2, d_b2, d_ln3g, d_ln3b,
                        d_fng, d_fnb, head_w, head_b,
                        out_ref,
                        x_scr, mem_scr,
                        *, N, S, nhead, L_enc, L_dec, eps):
    """grid=(L_enc+L_dec,): one step per layer; activation + encoder memory live in VMEM scratch."""
    l = pl.program_id(0)
    D = x_scr.shape[-1]

    # (re)seed the carried activation at the start of the encoder and decoder phases
    @pl.when(jnp.logical_or(l == 0, l == L_enc))
    def _seed():
        x_scr[...] = x0_ref[...]

    x = x_scr[...]                                      # (T, D) f32, resident in VMEM

    @pl.when(l < L_enc)
    def _encoder_layer():
        a = _self_attention(x, e_wqkv[0], e_bqkv[0], e_wo[0], e_bo[0], N, S, nhead, D)
        y = _layernorm(x + a, e_ln1g[0], e_ln1b[0], eps)
        f = _ffn(y, e_w1[0], e_b1[0], e_w2[0], e_b2[0])
        y = _layernorm(y + f, e_ln2g[0], e_ln2b[0], eps)

        @pl.when(l < L_enc - 1)                         # carry only if another encoder layer follows
        def _carry():
            x_scr[...] = y

        @pl.when(l == L_enc - 1)                        # fused final encoder LN -> memory scratch
        def _finish_encoder():
            mem_scr[...] = _layernorm(y, e_fng[...], e_fnb[...], eps)

    @pl.when(l >= L_enc)
    def _decoder_layer():
        mem = mem_scr[...]                              # encoder output, never left VMEM
        a = _self_attention(x, d_sa_wqkv[0], d_sa_bqkv[0], d_sa_wo[0], d_sa_bo[0],
                            N, S, nhead, D)
        y = _layernorm(x + a, d_ln1g[0], d_ln1b[0], eps)
        c = _cross_attention(y, mem, d_ca_wqkv[0], d_ca_bqkv[0], d_ca_wo[0], d_ca_bo[0],
                             N, S, S, nhead, D)
        y = _layernorm(y + c, d_ln2g[0], d_ln2b[0], eps)
        f = _ffn(y, d_w1[0], d_b1[0], d_w2[0], d_b2[0])
        y = _layernorm(y + f, d_ln3g[0], d_ln3b[0], eps)

        @pl.when(l < L_enc + L_dec - 1)                 # carry only if another decoder layer follows
        def _carry():
            x_scr[...] = y

        @pl.when(l == L_enc + L_dec - 1)                # fused final decoder LN + lane-dense head
        def _final():
            z = _layernorm(y, d_fng[...], d_fnb[...], eps)
            out_ref[...] = _linear(z, head_w[...], head_b[...])


# ------------------------------ pallas_call wrapper ---------------------------------------------

_ENC_KEYS = ("wqkv", "bqkv", "wo", "bo", "ln1g", "ln1b",
             "w1", "b1", "w2", "b2", "ln2g", "ln2b")
_DEC_KEYS = ("sa_wqkv", "sa_bqkv", "sa_wo", "sa_bo", "ln1g", "ln1b",
             "ca_wqkv", "ca_bqkv", "ca_wo", "ca_bo", "ln2g", "ln2b",
             "w1", "b1", "w2", "b2", "ln3g", "ln3b")


def _const_spec(arr):
    """Full array, same block every step -> DMA'd once, resident in VMEM."""
    nd = arr.ndim

    def index_map(l):
        return (0,) * nd

    return pl.BlockSpec(tuple(arr.shape), index_map)


def _enc_layer_spec(arr, num_enc_layers):
    """(L_enc, ...) weight -> layer slice per step; clamps to the last encoder layer afterwards."""
    rest = tuple(arr.shape[1:])
    zeros = (0,) * len(rest)

    def index_map(l):
        return (jnp.minimum(l, num_enc_layers - 1),) + zeros

    return pl.BlockSpec((1,) + rest, index_map)


def _dec_layer_spec(arr, num_enc_layers):
    """(L_dec, ...) weight -> layer slice per step; clamps to decoder layer 0 during the encoder."""
    rest = tuple(arr.shape[1:])
    zeros = (0,) * len(rest)

    def index_map(l):
        return (jnp.maximum(l - num_enc_layers, 0),) + zeros

    return pl.BlockSpec((1,) + rest, index_map)


def _nbytes(a):
    return int(a.size) * jnp.dtype(a.dtype).itemsize


def _vmem_budget(x0, enc_stacked, dec_stacked, consts, out_bytes, scratch_bytes):
    """Explicit VMEM budget: 2x (double-buffered) per-layer weights + resident carries/consts/IO."""
    per_layer = (sum(_nbytes(a) // a.shape[0] for a in enc_stacked)
                 + sum(_nbytes(a) // a.shape[0] for a in dec_stacked))
    resident = (2 * _nbytes(x0) + 2 * sum(_nbytes(a) for a in consts)
                + 2 * out_bytes + scratch_bytes)
    budget = 2 * (2 * per_layer + resident) + (4 << 20)         # generous headroom
    return int(min(max(budget, 32 << 20), 96 << 20))


def run_transformer(x0, params, *, N, S, nhead, eps=1e-5):
    """x0: PE-added source, token-major (N*S, D). Returns (N*S, OUT_PAD) f32."""
    T, D = x0.shape
    ep, dp = params["enc"], params["dec"]
    L_enc = int(ep["wqkv"].shape[0])
    L_dec = int(dp["sa_wqkv"].shape[0])
    out_pad = params["dec_w"].shape[1]

    enc_stacked = [ep[k] for k in _ENC_KEYS]
    dec_stacked = [dp[k] for k in _DEC_KEYS]
    enc_consts = [params["enc_norm_g"], params["enc_norm_b"]]
    dec_consts = [params["dec_norm_g"], params["dec_norm_b"],
                  params["dec_w"], params["dec_b"]]

    ins = [x0] + enc_stacked + enc_consts + dec_stacked + dec_consts
    in_specs = ([_const_spec(x0)]
                + [_enc_layer_spec(a, L_enc) for a in enc_stacked]
                + [_const_spec(a) for a in enc_consts]
                + [_dec_layer_spec(a, L_enc) for a in dec_stacked]
                + [_const_spec(a) for a in dec_consts])

    out_bytes = T * out_pad * 4
    scratch_bytes = 2 * T * D * 4
    vmem_bytes = _vmem_budget(x0, enc_stacked, dec_stacked,
                              enc_consts + dec_consts, out_bytes, scratch_bytes)

    kernel = functools.partial(_transformer_kernel, N=N, S=S, nhead=nhead,
                               L_enc=L_enc, L_dec=L_dec, eps=eps)
    return pl.pallas_call(
        kernel,
        out_shape=jax.ShapeDtypeStruct((T, out_pad), jnp.float32),
        grid=(L_enc + L_dec,),
        in_specs=in_specs,
        out_specs=pl.BlockSpec((T, out_pad), lambda l: (0, 0)),
        scratch_shapes=[pltpu.VMEM((T, D), jnp.float32),     # carried activation
                        pltpu.VMEM((T, D), jnp.float32)],    # encoder memory
        compiler_params=pltpu.CompilerParams(
            dimension_semantics=("arbitrary",),
            vmem_limit_bytes=vmem_bytes),
    )(*ins)


def transformer_model_forward(src, params, *, nhead, input_dim):
    """src: (S, N, d_model) float32, PyTorch seq-first layout -> (S, N, input_dim)."""
    S, N, D = src.shape
    # PositionalEncoding done in the wrapper; faithful to the reference's pe[:, :src.size(1)]
    # which indexes the *batch* dimension.
    x0 = src + params["pe"][None, :N, :]
    x0 = jnp.transpose(x0, (1, 0, 2)).reshape(N * S, D)   # token-major (T, D) for the kernel
    out = run_transformer(x0, params, N=N, S=S, nhead=nhead)          # (T, OUT_PAD)
    out = out[:, :input_dim].reshape(N, S, input_dim)
    return jnp.transpose(out, (1, 0, 2))                  # back to (S, N, input_dim)


# ------------------------------ deterministic parameter init -----------------------------------
# NOTE: weights are stored (in, out) and QKV packed (D, 3D); importing a PyTorch checkpoint would
# need a transpose / slice of in_proj_weight. Matmul weights live in bf16, norms/biases in f32.

def init_params(key, input_dim, d_model, nhead, num_encoder_layers, num_decoder_layers,
                dim_feedforward, max_len=5000, lane_pad=128):
    D, F = d_model, dim_feedforward
    keys = iter(jax.random.split(key, 64))

    def w(shape, scale=0.02):
        return (scale * jax.random.normal(next(keys), shape, jnp.float32)).astype(jnp.bfloat16)

    def zeros(shape):
        return jnp.zeros(shape, jnp.float32)

    def ones(shape):
        return jnp.ones(shape, jnp.float32)

    def enc_stack(L):
        return {"wqkv": w((L, D, 3 * D)), "bqkv": zeros((L, 1, 3 * D)),
                "wo": w((L, D, D)), "bo": zeros((L, 1, D)),
                "ln1g": ones((L, 1, D)), "ln1b": zeros((L, 1, D)),
                "w1": w((L, D, F)), "b1": zeros((L, 1, F)),
                "w2": w((L, F, D)), "b2": zeros((L, 1, D)),
                "ln2g": ones((L, 1, D)), "ln2b": zeros((L, 1, D))}

    def dec_stack(L):
        return {"sa_wqkv": w((L, D, 3 * D)), "sa_bqkv": zeros((L, 1, 3 * D)),
                "sa_wo": w((L, D, D)), "sa_bo": zeros((L, 1, D)),
                "ln1g": ones((L, 1, D)), "ln1b": zeros((L, 1, D)),
                "ca_wqkv": w((L, D, 3 * D)), "ca_bqkv": zeros((L, 1, 3 * D)),
                "ca_wo": w((L, D, D)), "ca_bo": zeros((L, 1, D)),
                "ln2g": ones((L, 1, D)), "ln2b": zeros((L, 1, D)),
                "w1": w((L, D, F)), "b1": zeros((L, 1, F)),
                "w2": w((L, F, D)), "b2": zeros((L, 1, D)),
                "ln3g": ones((L, 1, D)), "ln3b": zeros((L, 1, D))}

    # PositionalEncoding buffer (same construction as the PyTorch module)
    pos = jnp.arange(max_len, dtype=jnp.float32)[:, None]
    div = jnp.exp(jnp.arange(0, D, 2, dtype=jnp.float32) * (-math.log(10000.0) / D))
    pe = jnp.zeros((max_len, D), jnp.float32)
    pe = pe.at[:, 0::2].set(jnp.sin(pos * div))
    pe = pe.at[:, 1::2].set(jnp.cos(pos * div))

    # final decoder Linear: weight ~ U(-0.1, 0.1), bias = 0 (matches init_weights()); zero-padded
    # to a 128-lane multiple so the kernel's output store is lane-dense (unmasked).
    out_pad = ((input_dim + lane_pad - 1) // lane_pad) * lane_pad
    dec_w_real = jax.random.uniform(next(keys), (D, input_dim), jnp.float32, -0.1, 0.1)
    dec_w = (jnp.zeros((D, out_pad), jnp.float32)
             .at[:, :input_dim].set(dec_w_real).astype(jnp.bfloat16))

    return {"pe": pe,
            "enc": enc_stack(num_encoder_layers),
            "dec": dec_stack(num_decoder_layers),
            "enc_norm_g": ones((1, D)), "enc_norm_b": zeros((1, D)),
            "dec_norm_g": ones((1, D)), "dec_norm_b": zeros((1, D)),
            "dec_w": dec_w, "dec_b": zeros((1, out_pad))}


# ------------------------------ demo -------------------------------------------------------------

if __name__ == "__main__":
    # Module hyper-params (small, consistent with the PyTorch constructor).
    input_dim, d_model, nhead, num_layers = 16, 32, 4, 2
    dim_feedforward = 2048      # nn.Transformer default
    num_decoder_layers = 6      # nn.Transformer default (constructor only overrides encoder layers)
    S, N = 8, 2                 # (seq_len, batch) — seq-first like PyTorch

    key = jax.random.PRNGKey(0)
    pkey, xkey = jax.random.split(key)
    params = init_params(pkey, input_dim, d_model, nhead,
                         num_layers, num_decoder_layers, dim_feedforward)
    src = jax.random.normal(xkey, (S, N, d_model), jnp.float32)

    fwd = jax.jit(functools.partial(transformer_model_forward,
                                    nhead=nhead, input_dim=input_dim))
    out = fwd(src, params)
    jax.block_until_ready(out)

    assert out.shape == (S, N, input_dim), out.shape
    assert bool(jnp.all(jnp.isfinite(out)))
    print("KERNEL_OK")
</pallas_src>

<mosaic_0001>
module attributes {stable_mosaic.version = 11 : i64} {
  func.func @_transformer_kernel(%arg0: i32, %arg1: memref<16x32xf32, #tpu.memory_space<vmem>>, %arg2: memref<1x32x96xbf16, #tpu.memory_space<vmem>>, %arg3: memref<1x1x96xf32, #tpu.memory_space<vmem>>, %arg4: memref<1x32x32xbf16, #tpu.memory_space<vmem>>, %arg5: memref<1x1x32xf32, #tpu.memory_space<vmem>>, %arg6: memref<1x1x32xf32, #tpu.memory_space<vmem>>, %arg7: memref<1x1x32xf32, #tpu.memory_space<vmem>>, %arg8: memref<1x32x2048xbf16, #tpu.memory_space<vmem>>, %arg9: memref<1x1x2048xf32, #tpu.memory_space<vmem>>, %arg10: memref<1x2048x32xbf16, #tpu.memory_space<vmem>>, %arg11: memref<1x1x32xf32, #tpu.memory_space<vmem>>, %arg12: memref<1x1x32xf32, #tpu.memory_space<vmem>>, %arg13: memref<1x1x32xf32, #tpu.memory_space<vmem>>, %arg14: memref<1x32xf32, #tpu.memory_space<vmem>>, %arg15: memref<1x32xf32, #tpu.memory_space<vmem>>, %arg16: memref<1x32x96xbf16, #tpu.memory_space<vmem>>, %arg17: memref<1x1x96xf32, #tpu.memory_space<vmem>>, %arg18: memref<1x32x32xbf16, #tpu.memory_space<vmem>>, %arg19: memref<1x1x32xf32, #tpu.memory_space<vmem>>, %arg20: memref<1x1x32xf32, #tpu.memory_space<vmem>>, %arg21: memref<1x1x32xf32, #tpu.memory_space<vmem>>, %arg22: memref<1x32x96xbf16, #tpu.memory_space<vmem>>, %arg23: memref<1x1x96xf32, #tpu.memory_space<vmem>>, %arg24: memref<1x32x32xbf16, #tpu.memory_space<vmem>>, %arg25: memref<1x1x32xf32, #tpu.memory_space<vmem>>, %arg26: memref<1x1x32xf32, #tpu.memory_space<vmem>>, %arg27: memref<1x1x32xf32, #tpu.memory_space<vmem>>, %arg28: memref<1x32x2048xbf16, #tpu.memory_space<vmem>>, %arg29: memref<1x1x2048xf32, #tpu.memory_space<vmem>>, %arg30: memref<1x2048x32xbf16, #tpu.memory_space<vmem>>, %arg31: memref<1x1x32xf32, #tpu.memory_space<vmem>>, %arg32: memref<1x1x32xf32, #tpu.memory_space<vmem>>, %arg33: memref<1x1x32xf32, #tpu.memory_space<vmem>>, %arg34: memref<1x32xf32, #tpu.memory_space<vmem>>, %arg35: memref<1x32xf32, #tpu.memory_space<vmem>>, %arg36: memref<32x128xbf16, #tpu.memory_space<vmem>>, %arg37: memref<1x128xf32, #tpu.memory_space<vmem>>, %arg38: memref<16x128xf32, #tpu.memory_space<vmem>>, %arg39: memref<16x32xf32, #tpu.memory_space<vmem>>, %arg40: memref<16x32xf32, #tpu.memory_space<vmem>>) attributes {dimension_semantics = [#tpu.dimension_semantics<arbitrary>], iteration_bounds = array<i64: 8>, scalar_prefetch = 0 : i64, scratch_operands = 2 : i64, tpu.core_type = #tpu.core_type<tc>, window_params = [{pipeline_mode = #tpu.pipeline_mode<synchronous>, transform_indices = @transform_0, window_bounds = array<i64: 16, 32>}, {transform_indices = @transform_1, window_bounds = array<i64: 1, 32, 96>}, {transform_indices = @transform_2, window_bounds = array<i64: 1, 1, 96>}, {transform_indices = @transform_3, window_bounds = array<i64: 1, 32, 32>}, {transform_indices = @transform_4, window_bounds = array<i64: 1, 1, 32>}, {transform_indices = @transform_5, window_bounds = array<i64: 1, 1, 32>}, {transform_indices = @transform_6, window_bounds = array<i64: 1, 1, 32>}, {transform_indices = @transform_7, window_bounds = array<i64: 1, 32, 2048>}, {transform_indices = @transform_8, window_bounds = array<i64: 1, 1, 2048>}, {transform_indices = @transform_9, window_bounds = array<i64: 1, 2048, 32>}, {transform_indices = @transform_10, window_bounds = array<i64: 1, 1, 32>}, {transform_indices = @transform_11, window_bounds = array<i64: 1, 1, 32>}, {transform_indices = @transform_12, window_bounds = array<i64: 1, 1, 32>}, {pipeline_mode = #tpu.pipeline_mode<synchronous>, transform_indices = @transform_13, window_bounds = array<i64: 1, 32>}, {pipeline_mode = #tpu.pipeline_mode<synchronous>, transform_indices = @transform_14, window_bounds = array<i64: 1, 32>}, {transform_indices = @transform_15, window_bounds = array<i64: 1, 32, 96>}, {transform_indices = @transform_16, window_bounds = array<i64: 1, 1, 96>}, {transform_indices = @transform_17, window_bounds = array<i64: 1, 32, 32>}, {transform_indices = @transform_18, window_bounds = array<i64: 1, 1, 32>}, {transform_indices = @transform_19, window_bounds = array<i64: 1, 1, 32>}, {transform_indices = @transform_20, window_bounds = array<i64: 1, 1, 32>}, {transform_indices = @transform_21, window_bounds = array<i64: 1, 32, 96>}, {transform_indices = @transform_22, window_bounds = array<i64: 1, 1, 96>}, {transform_indices = @transform_23, window_bounds = array<i64: 1, 32, 32>}, {transform_indices = @transform_24, window_bounds = array<i64: 1, 1, 32>}, {transform_indices = @transform_25, window_bounds = array<i64: 1, 1, 32>}, {transform_indices = @transform_26, window_bounds = array<i64: 1, 1, 32>}, {transform_indices = @transform_27, window_bounds = array<i64: 1, 32, 2048>}, {transform_indices = @transform_28, window_bounds = array<i64: 1, 1, 2048>}, {transform_indices = @transform_29, window_bounds = array<i64: 1, 2048, 32>}, {transform_indices = @transform_30, window_bounds = array<i64: 1, 1, 32>}, {transform_indices = @transform_31, window_bounds = array<i64: 1, 1, 32>}, {transform_indices = @transform_32, window_bounds = array<i64: 1, 1, 32>}, {pipeline_mode = #tpu.pipeline_mode<synchronous>, transform_indices = @transform_33, window_bounds = array<i64: 1, 32>}, {pipeline_mode = #tpu.pipeline_mode<synchronous>, transform_indices = @transform_34, window_bounds = array<i64: 1, 32>}, {pipeline_mode = #tpu.pipeline_mode<synchronous>, transform_indices = @transform_35, window_bounds = array<i64: 32, 128>}, {pipeline_mode = #tpu.pipeline_mode<synchronous>, transform_indices = @transform_36, window_bounds = array<i64: 1, 128>}, {pipeline_mode = #tpu.pipeline_mode<synchronous>, transform_indices = @transform_37, window_bounds = array<i64: 16, 128>}]} {
    %c0_i32 = arith.constant 0 : i32
    %0 = arith.cmpi eq, %arg0, %c0_i32 : i32
    %c2_i32 = arith.constant 2 : i32
    %1 = arith.cmpi eq, %arg0, %c2_i32 : i32
    %2 = arith.ori %0, %1 : i1
    %3 = arith.extui %2 : i1 to i32
    %c0_i32_0 = arith.constant 0 : i32
    %4 = arith.cmpi ne, %3, %c0_i32_0 : i32
    scf.if %4 {
      %c0_6 = arith.constant 0 : index
      %c0_7 = arith.constant 0 : index
      %12 = vector.load %arg1[%c0_6, %c0_7] : memref<16x32xf32, #tpu.memory_space<vmem>>, vector<16x32xf32>
      %c0_8 = arith.constant 0 : index
      %c0_9 = arith.constant 0 : index
      %13 = vector.load %arg39[%c0_8, %c0_9] : memref<16x32xf32, #tpu.memory_space<vmem>>, vector<16x32xf32>
      tpu.vector_store %arg39[%c0_8, %c0_9], %12 {strides = array<i32>} : memref<16x32xf32, #tpu.memory_space<vmem>>, vector<16x32xf32>,
    } else {
    }
    %c0 = arith.constant 0 : index
    %c0_1 = arith.constant 0 : index
    %5 = vector.load %arg39[%c0, %c0_1] : memref<16x32xf32, #tpu.memory_space<vmem>>, vector<16x32xf32>
    %c2_i32_2 = arith.constant 2 : i32
    %6 = arith.cmpi slt, %arg0, %c2_i32_2 : i32
    %7 = arith.extui %6 : i1 to i32
    %c0_i32_3 = arith.constant 0 : i32
    %8 = arith.cmpi ne, %7, %c0_i32_3 : i32
    scf.if %8 {
      %c0_6 = arith.constant 0 : index
      %c0_7 = arith.constant 0 : index
      %c0_8 = arith.constant 0 : index
      %12 = vector.load %arg2[%c0_6, %c0_7, %c0_8] : memref<1x32x96xbf16, #tpu.memory_space<vmem>>, vector<1x32x96xbf16>
      %13 = vector.shape_cast %12 : vector<1x32x96xbf16> to vector<32x96xbf16>
      %c0_9 = arith.constant 0 : index
      %c0_10 = arith.constant 0 : index
      %c0_11 = arith.constant 0 : index
      %14 = vector.load %arg3[%c0_9, %c0_10, %c0_11] : memref<1x1x96xf32, #tpu.memory_space<vmem>>, vector<1x1x96xf32>
      %15 = vector.shape_cast %14 : vector<1x1x96xf32> to vector<1x96xf32>
      %c0_12 = arith.constant 0 : index
      %c0_13 = arith.constant 0 : index
      %c0_14 = arith.constant 0 : index
      %16 = vector.load %arg4[%c0_12, %c0_13, %c0_14] : memref<1x32x32xbf16, #tpu.memory_space<vmem>>, vector<1x32x32xbf16>
      %17 = vector.shape_cast %16 : vector<1x32x32xbf16> to vector<32x32xbf16>
      %c0_15 = arith.constant 0 : index
      %c0_16 = arith.constant 0 : index
      %c0_17 = arith.constant 0 : index
      %18 = vector.load %arg5[%c0_15, %c0_16, %c0_17] : memref<1x1x32xf32, #tpu.memory_space<vmem>>, vector<1x1x32xf32>
      %19 = vector.shape_cast %18 : vector<1x1x32xf32> to vector<1x32xf32>
      %20 = arith.truncf %5 : vector<16x32xf32> to vector<16x32xbf16>
      %cst = arith.constant dense<0.000000e+00> : vector<16x96xf32>
      %21 = tpu.matmul %20, %13, %cst {dimension_numbers = #tpu.dot_dimension_numbers<[1], [0], [0], [1], [0, 0, 1, 1], [], []>} : vector<16x32xbf16>, vector<32x96xbf16>, vector<16x96xf32> -> vector<16x96xf32>
      %22 = vector.broadcast %15 : vector<1x96xf32> to vector<16x96xf32>
      %23 = arith.addf %21, %22 : vector<16x96xf32>
      %24 = vector.extract_strided_slice %23 {offsets = [0, 0], sizes = [16, 32], strides = [1, 1]} : vector<16x96xf32> to vector<16x32xf32>
      %25 = vector.extract_strided_slice %23 {offsets = [0, 32], sizes = [16, 32], strides = [1, 1]} : vector<16x96xf32> to vector<16x32xf32>
      %26 = vector.extract_strided_slice %23 {offsets = [0, 64], sizes = [16, 32], strides = [1, 1]} : vector<16x96xf32> to vector<16x32xf32>
      %cst_18 = arith.constant 0.353553385 : f32
      %27 = vector.broadcast %cst_18 : f32 to vector<16x32xf32>
      %28 = arith.mulf %24, %27 : vector<16x32xf32>
      %29 = arith.truncf %28 : vector<16x32xf32> to vector<16x32xbf16>
      %30 = vector.shape_cast %29 : vector<16x32xbf16> to vector<2x8x32xbf16>
      %31 = arith.truncf %25 : vector<16x32xf32> to vector<16x32xbf16>
      %32 = vector.shape_cast %31 : vector<16x32xbf16> to vector<2x8x32xbf16>
      %33 = arith.truncf %26 : vector<16x32xf32> to vector<16x32xbf16>
      %34 = vector.shape_cast %33 : vector<16x32xbf16> to vector<2x8x32xbf16>
      %35 = vector.extract_strided_slice %30 {offsets = [0, 0, 0], sizes = [2, 8, 8], strides = [1, 1, 1]} : vector<2x8x32xbf16> to vector<2x8x8xbf16>
      %36 = vector.extract_strided_slice %32 {offsets = [0, 0, 0], sizes = [2, 8, 8], strides = [1, 1, 1]} : vector<2x8x32xbf16> to vector<2x8x8xbf16>
      "tpu.trace_start"() <{level = 10 : i32, message = "bqd,bkd->bqk"}> : () -> ()
      %cst_19 = arith.constant dense<0.000000e+00> : vector<2x8x8xf32>
      %37 = tpu.matmul %35, %36, %cst_19 {dimension_numbers = #tpu.dot_dimension_numbers<[2], [2], [1], [1], [0, 0, 0, 1, 1, 1], [0], [0]>} : vector<2x8x8xbf16>, vector<2x8x8xbf16>, vector<2x8x8xf32> -> vector<2x8x8xf32>
      "tpu.trace_stop"() : () -> ()
      %cst_20 = arith.constant dense<0xFF800000> : vector<2x8xf32>
      %38 = vector.multi_reduction <maximumf>, %37, %cst_20 [2] : vector<2x8x8xf32> to vector<2x8xf32>
      %39 = vector.shape_cast %38 : vector<2x8xf32> to vector<2x8x1xf32>
      %40 = vector.broadcast %39 : vector<2x8x1xf32> to vector<2x8x8xf32>
      %41 = arith.subf %37, %40 : vector<2x8x8xf32>
      %42 = math.exp %41 : vector<2x8x8xf32>
      %cst_21 = arith.constant dense<0.000000e+00> : vector<2x8xf32>
      %43 = vector.multi_reduction <add>, %42, %cst_21 [2] : vector<2x8x8xf32> to vector<2x8xf32>
      %44 = vector.shape_cast %43 : vector<2x8xf32> to vector<2x8x1xf32>
      %45 = tpu.reciprocal %44 {approx = true} : vector<2x8x1xf32> -> vector<2x8x1xf32>
      %46 = vector.broadcast %45 : vector<2x8x1xf32> to vector<2x8x8xf32>
      %47 = arith.mulf %42, %46 : vector<2x8x8xf32>
      %48 = arith.truncf %47 : vector<2x8x8xf32> to vector<2x8x8xbf16>
      %49 = vector.extract_strided_slice %34 {offsets = [0, 0, 0], sizes = [2, 8, 8], strides = [1, 1, 1]} : vector<2x8x32xbf16> to vector<2x8x8xbf16>
      "tpu.trace_start"() <{level = 10 : i32, message = "bqk,bkd->bqd"}> : () -> ()
      %cst_22 = arith.constant dense<0.000000e+00> : vector<2x8x8xf32>
      %50 = tpu.matmul %48, %49, %cst_22 {dimension_numbers = #tpu.dot_dimension_numbers<[2], [1], [1], [2], [0, 0, 0, 1, 1, 2], [0], [0]>} : vector<2x8x8xbf16>, vector<2x8x8xbf16>, vector<2x8x8xf32> -> vector<2x8x8xf32>
      "tpu.trace_stop"() : () -> ()
      %51 = vector.extract_strided_slice %30 {offsets = [0, 0, 8], sizes = [2, 8, 8], strides = [1, 1, 1]} : vector<2x8x32xbf16> to vector<2x8x8xbf16>
      %52 = vector.extract_strided_slice %32 {offsets = [0, 0, 8], sizes = [2, 8, 8], strides = [1, 1, 1]} : vector<2x8x32xbf16> to vector<2x8x8xbf16>
      "tpu.trace_start"() <{level = 10 : i32, message = "bqd,bkd->bqk"}> : () -> ()
      %cst_23 = arith.constant dense<0.000000e+00> : vector<2x8x8xf32>
      %53 = tpu.matmul %51, %52, %cst_23 {dimension_numbers = #tpu.dot_dimension_numbers<[2], [2], [1], [1], [0, 0, 0, 1, 1, 1], [0], [0]>} : vector<2x8x8xbf16>, vector<2x8x8xbf16>, vector<2x8x8xf32> -> vector<2x8x8xf32>
      "tpu.trace_stop"() : () -> ()
      %cst_24 = arith.constant dense<0xFF800000> : vector<2x8xf32>
      %54 = vector.multi_reduction <maximumf>, %53, %cst_24 [2] : vector<2x8x8xf32> to vector<2x8xf32>
      %55 = vector.shape_cast %54 : vector<2x8xf32> to vector<2x8x1xf32>
      %56 = vector.broadcast %55 : vector<2x8x1xf32> to vector<2x8x8xf32>
      %57 = arith.subf %53, %56 : vector<2x8x8xf32>
      %58 = math.exp %57 : vector<2x8x8xf32>
      %cst_25 = arith.constant dense<0.000000e+00> : vector<2x8xf32>
      %59 = vector.multi_reduction <add>, %58, %cst_25 [2] : vector<2x8x8xf32> to vector<2x8xf32>
      %60 = vector.shape_cast %59 : vector<2x8xf32> to vector<2x8x1xf32>
      %61 = tpu.reciprocal %60 {approx = true} : vector<2x8x1xf32> -> vector<2x8x1xf32>
      %62 = vector.broadcast %61 : vector<2x8x1xf32> to vector<2x8x8xf32>
      %63 = arith.mulf %58, %62 : vector<2x8x8xf32>
      %64 = arith.truncf %63 : vector<2x8x8xf32> to vector<2x8x8xbf16>
      %65 = vector.extract_strided_slice %34 {offsets = [0, 0, 8], sizes = [2, 8, 8], strides = [1, 1, 1]} : vector<2x8x32xbf16> to vector<2x8x8xbf16>
      "tpu.trace_start"() <{level = 10 : i32, message = "bqk,bkd->bqd"}> : () -> ()
      %cst_26 = arith.constant dense<0.000000e+00> : vector<2x8x8xf32>
      %66 = tpu.matmul %64, %65, %cst_26 {dimension_numbers = #tpu.dot_dimension_numbers<[2], [1], [1], [2], [0, 0, 0, 1, 1, 2], [0], [0]>} : vector<2x8x8xbf16>, vector<2x8x8xbf16>, vector<2x8x8xf32> -> vector<2x8x8xf32>
      "tpu.trace_stop"() : () -> ()
      %67 = vector.extract_strided_slice %30 {offsets = [0, 0, 16], sizes = [2, 8, 8], strides = [1, 1, 1]} : vector<2x8x32xbf16> to vector<2x8x8xbf16>
      %68 = vector.extract_strided_slice %32 {offsets = [0, 0, 16], sizes = [2, 8, 8], strides = [1, 1, 1]} : vector<2x8x32xbf16> to vector<2x8x8xbf16>
      "tpu.trace_start"() <{level = 10 : i32, message = "bqd,bkd->bqk"}> : () -> ()
      %cst_27 = arith.constant dense<0.000000e+00> : vector<2x8x8xf32>
      %69 = tpu.matmul %67, %68, %cst_27 {dimension_numbers = #tpu.dot_dimension_numbers<[2], [2], [1], [1], [0, 0, 0, 1, 1, 1], [0], [0]>} : vector<2x8x8xbf16>, vector<2x8x8xbf16>, vector<2x8x8xf32> -> vector<2x8x8xf32>
      "tpu.trace_stop"() : () -> ()
      %cst_28 = arith.constant dense<0xFF800000> : vector<2x8xf32>
      %70 = vector.multi_reduction <maximumf>, %69, %cst_28 [2] : vector<2x8x8xf32> to vector<2x8xf32>
      %71 = vector.shape_cast %70 : vector<2x8xf32> to vector<2x8x1xf32>
      %72 = vector.broadcast %71 : vector<2x8x1xf32> to vector<2x8x8xf32>
      %73 = arith.subf %69, %72 : vector<2x8x8xf32>
      %74 = math.exp %73 : vector<2x8x8xf32>
      %cst_29 = arith.constant dense<0.000000e+00> : vector<2x8xf32>
      %75 = vector.multi_reduction <add>, %74, %cst_29 [2] : vector<2x8x8xf32> to vector<2x8xf32>
      %76 = vector.shape_cast %75 : vector<2x8xf32> to vector<2x8x1xf32>
      %77 = tpu.reciprocal %76 {approx = true} : vector<2x8x1xf32> -> vector<2x8x1xf32>
      %78 = vector.broadcast %77 : vector<2x8x1xf32> to vector<2x8x8xf32>
      %79 = arith.mulf %74, %78 : vector<2x8x8xf32>
      %80 = arith.truncf %79 : vector<2x8x8xf32> to vector<2x8x8xbf16>
      %81 = vector.extract_strided_slice %34 {offsets = [0, 0, 16], sizes = [2, 8, 8], strides = [1, 1, 1]} : vector<2x8x32xbf16> to vector<2x8x8xbf16>
      "tpu.trace_start"() <{level = 10 : i32, message = "bqk,bkd->bqd"}> : () -> ()
      %cst_30 = arith.constant dense<0.000000e+00> : vector<2x8x8xf32>
      %82 = tpu.matmul %80, %81, %cst_30 {dimension_numbers = #tpu.dot_dimension_numbers<[2], [1], [1], [2], [0, 0, 0, 1, 1, 2], [0], [0]>} : vector<2x8x8xbf16>, vector<2x8x8xbf16>, vector<2x8x8xf32> -> vector<2x8x8xf32>
      "tpu.trace_stop"() : () -> ()
      %83 = vector.extract_strided_slice %30 {offsets = [0, 0, 24], sizes = [2, 8, 8], strides = [1, 1, 1]} : vector<2x8x32xbf16> to vector<2x8x8xbf16>
      %84 = vector.extract_strided_slice %32 {offsets = [0, 0, 24], sizes = [2, 8, 8], strides = [1, 1, 1]} : vector<2x8x32xbf16> to vector<2x8x8xbf16>
      "tpu.trace_start"() <{level = 10 : i32, message = "bqd,bkd->bqk"}> : () -> ()
      %cst_31 = arith.constant dense<0.000000e+00> : vector<2x8x8xf32>
      %85 = tpu.matmul %83, %84, %cst_31 {dimension_numbers = #tpu.dot_dimension_numbers<[2], [2], [1], [1], [0, 0, 0, 1, 1, 1], [0], [0]>} : vector<2x8x8xbf16>, vector<2x8x8xbf16>, vector<2x8x8xf32> -> vector<2x8x8xf32>
      "tpu.trace_stop"() : () -> ()
      %cst_32 = arith.constant dense<0xFF800000> : vector<2x8xf32>
      %86 = vector.multi_reduction <maximumf>, %85, %cst_32 [2] : vector<2x8x8xf32> to vector<2x8xf32>
      %87 = vector.shape_cast %86 : vector<2x8xf32> to vector<2x8x1xf32>
      %88 = vector.broadcast %87 : vector<2x8x1xf32> to vector<2x8x8xf32>
      %89 = arith.subf %85, %88 : vector<2x8x8xf32>
      %90 = math.exp %89 : vector<2x8x8xf32>
      %cst_33 = arith.constant dense<0.000000e+00> : vector<2x8xf32>
      %91 = vector.multi_reduction <add>, %90, %cst_33 [2] : vector<2x8x8xf32> to vector<2x8xf32>
      %92 = vector.shape_cast %91 : vector<2x8xf32> to vector<2x8x1xf32>
      %93 = tpu.reciprocal %92 {approx = true} : vector<2x8x1xf32> -> vector<2x8x1xf32>
      %94 = vector.broadcast %93 : vector<2x8x1xf32> to vector<2x8x8xf32>
      %95 = arith.mulf %90, %94 : vector<2x8x8xf32>
      %96 = arith.truncf %95 : vector<2x8x8xf32> to vector<2x8x8xbf16>
      %97 = vector.extract_strided_slice %34 {offsets = [0, 0, 24], sizes = [2, 8, 8], strides = [1, 1, 1]} : vector<2x8x32xbf16> to vector<2x8x8xbf16>
      "tpu.trace_start"() <{level = 10 : i32, message = "bqk,bkd->bqd"}> : () -> ()
      %cst_34 = arith.constant dense<0.000000e+00> : vector<2x8x8xf32>
      %98 = tpu.matmul %96, %97, %cst_34 {dimension_numbers = #tpu.dot_dimension_numbers<[2], [1], [1], [2], [0, 0, 0, 1, 1, 2], [0], [0]>} : vector<2x8x8xbf16>, vector<2x8x8xbf16>, vector<2x8x8xf32> -> vector<2x8x8xf32>
      "tpu.trace_stop"() : () -> ()
      %99 = tpu.concatenate %50, %66, %82, %98 in 2 : vector<2x8x8xf32>, vector<2x8x8xf32>, vector<2x8x8xf32>, vector<2x8x8xf32> -> vector<2x8x32xf32>
      %100 = vector.shape_cast %99 : vector<2x8x32xf32> to vector<16x32xf32>
      %101 = arith.truncf %100 : vector<16x32xf32> to vector<16x32xbf16>
      %cst_35 = arith.constant dense<0.000000e+00> : vector<16x32xf32>
      %102 = tpu.matmul %101, %17, %cst_35 {dimension_numbers = #tpu.dot_dimension_numbers<[1], [0], [0], [1], [0, 0, 1, 1], [], []>} : vector<16x32xbf16>, vector<32x32xbf16>, vector<16x32xf32> -> vector<16x32xf32>
      %103 = vector.broadcast %19 : vector<1x32xf32> to vector<16x32xf32>
      %104 = arith.addf %102, %103 : vector<16x32xf32>
      %105 = arith.addf %5, %104 : vector<16x32xf32>
      %c0_36 = arith.constant 0 : index
      %c0_37 = arith.constant 0 : index
      %c0_38 = arith.constant 0 : index
      %106 = vector.load %arg6[%c0_36, %c0_37, %c0_38] : memref<1x1x32xf32, #tpu.memory_space<vmem>>, vector<1x1x32xf32>
      %107 = vector.shape_cast %106 : vector<1x1x32xf32> to vector<1x32xf32>
      %c0_39 = arith.constant 0 : index
      %c0_40 = arith.constant 0 : index
      %c0_41 = arith.constant 0 : index
      %108 = vector.load %arg7[%c0_39, %c0_40, %c0_41] : memref<1x1x32xf32, #tpu.memory_space<vmem>>, vector<1x1x32xf32>
      %109 = vector.shape_cast %108 : vector<1x1x32xf32> to vector<1x32xf32>
      %cst_42 = arith.constant dense<0.000000e+00> : vector<16xf32>
      %110 = vector.multi_reduction <add>, %105, %cst_42 [1] : vector<16x32xf32> to vector<16xf32>
      %111 = vector.shape_cast %110 : vector<16xf32> to vector<16x1xf32>
      %cst_43 = arith.constant 3.200000e+01 : f32
      %112 = vector.broadcast %cst_43 : f32 to vector<16x1xf32>
      %113 = arith.divf %111, %112 : vector<16x1xf32>
      %114 = vector.broadcast %113 : vector<16x1xf32> to vector<16x32xf32>
      %115 = arith.subf %105, %114 : vector<16x32xf32>
      %116 = arith.mulf %115, %115 : vector<16x32xf32>
      %cst_44 = arith.constant dense<0.000000e+00> : vector<16xf32>
      %117 = vector.multi_reduction <add>, %116, %cst_44 [1] : vector<16x32xf32> to vector<16xf32>
      %118 = vector.shape_cast %117 : vector<16xf32> to vector<16x1xf32>
      %cst_45 = arith.constant 3.200000e+01 : f32
      %119 = vector.broadcast %cst_45 : f32 to vector<16x1xf32>
      %120 = arith.divf %118, %119 : vector<16x1xf32>
      %cst_46 = arith.constant 9.99999974E-6 : f32
      %121 = vector.broadcast %cst_46 : f32 to vector<16x1xf32>
      %122 = arith.addf %120, %121 : vector<16x1xf32>
      %123 = math.rsqrt %122 : vector<16x1xf32>
      %124 = vector.broadcast %123 : vector<16x1xf32> to vector<16x32xf32>
      %125 = arith.mulf %115, %124 : vector<16x32xf32>
      %126 = vector.broadcast %107 : vector<1x32xf32> to vector<16x32xf32>
      %127 = arith.mulf %125, %126 : vector<16x32xf32>
      %128 = vector.broadcast %109 : vector<1x32xf32> to vector<16x32xf32>
      %129 = arith.addf %127, %128 : vector<16x32xf32>
      %c0_47 = arith.constant 0 : index
      %c0_48 = arith.constant 0 : index
      %c0_49 = arith.constant 0 : index
      %130 = vector.load %arg8[%c0_47, %c0_48, %c0_49] : memref<1x32x2048xbf16, #tpu.memory_space<vmem>>, vector<1x32x2048xbf16>
      %131 = vector.shape_cast %130 : vector<1x32x2048xbf16> to vector<32x2048xbf16>
      %c0_50 = arith.constant 0 : index
      %c0_51 = arith.constant 0 : index
      %c0_52 = arith.constant 0 : index
      %132 = vector.load %arg9[%c0_50, %c0_51, %c0_52] : memref<1x1x2048xf32, #tpu.memory_space<vmem>>, vector<1x1x2048xf32>
      %133 = vector.shape_cast %132 : vector<1x1x2048xf32> to vector<1x2048xf32>
      %c0_53 = arith.constant 0 : index
      %c0_54 = arith.constant 0 : index
      %c0_55 = arith.constant 0 : index
      %134 = vector.load %arg10[%c0_53, %c0_54, %c0_55] : memref<1x2048x32xbf16, #tpu.memory_space<vmem>>, vector<1x2048x32xbf16>
      %135 = vector.shape_cast %134 : vector<1x2048x32xbf16> to vector<2048x32xbf16>
      %c0_56 = arith.constant 0 : index
      %c0_57 = arith.constant 0 : index
      %c0_58 = arith.constant 0 : index
      %136 = vector.load %arg11[%c0_56, %c0_57, %c0_58] : memref<1x1x32xf32, #tpu.memory_space<vmem>>, vector<1x1x32xf32>
      %137 = vector.shape_cast %136 : vector<1x1x32xf32> to vector<1x32xf32>
      %138 = arith.truncf %129 : vector<16x32xf32> to vector<16x32xbf16>
      %cst_59 = arith.constant dense<0.000000e+00> : vector<16x2048xf32>
      %139 = tpu.matmul %138, %131, %cst_59 {dimension_numbers = #tpu.dot_dimension_numbers<[1], [0], [0], [1], [0, 0, 1, 1], [], []>} : vector<16x32xbf16>, vector<32x2048xbf16>, vector<16x2048xf32> -> vector<16x2048xf32>
      %140 = vector.broadcast %133 : vector<1x2048xf32> to vector<16x2048xf32>
      %141 = arith.addf %139, %140 : vector<16x2048xf32>
      %cst_60 = arith.constant 0.000000e+00 : f32
      %142 = vector.broadcast %cst_60 : f32 to vector<16x2048xf32>
      %143 = arith.maximumf %141, %142 : vector<16x2048xf32>
      %144 = arith.truncf %143 : vector<16x2048xf32> to vector<16x2048xbf16>
      %cst_61 = arith.constant dense<0.000000e+00> : vector<16x32xf32>
      %145 = tpu.matmul %144, %135, %cst_61 {dimension_numbers = #tpu.dot_dimension_numbers<[1], [0], [0], [1], [0, 0, 1, 1], [], []>} : vector<16x2048xbf16>, vector<2048x32xbf16>, vector<16x32xf32> -> vector<16x32xf32>
      %146 = vector.broadcast %137 : vector<1x32xf32> to vector<16x32xf32>
      %147 = arith.addf %145, %146 : vector<16x32xf32>
      %148 = arith.addf %129, %147 : vector<16x32xf32>
      %c0_62 = arith.constant 0 : index
      %c0_63 = arith.constant 0 : index
      %c0_64 = arith.constant 0 : index
      %149 = vector.load %arg12[%c0_62, %c0_63, %c0_64] : memref<1x1x32xf32, #tpu.memory_space<vmem>>, vector<1x1x32xf32>
      %150 = vector.shape_cast %149 : vector<1x1x32xf32> to vector<1x32xf32>
      %c0_65 = arith.constant 0 : index
      %c0_66 = arith.constant 0 : index
      %c0_67 = arith.constant 0 : index
      %151 = vector.load %arg13[%c0_65, %c0_66, %c0_67] : memref<1x1x32xf32, #tpu.memory_space<vmem>>, vector<1x1x32xf32>
      %152 = vector.shape_cast %151 : vector<1x1x32xf32> to vector<1x32xf32>
      %cst_68 = arith.constant dense<0.000000e+00> : vector<16xf32>
      %153 = vector.multi_reduction <add>, %148, %cst_68 [1] : vector<16x32xf32> to vector<16xf32>
      %154 = vector.shape_cast %153 : vector<16xf32> to vector<16x1xf32>
      %cst_69 = arith.constant 3.200000e+01 : f32
      %155 = vector.broadcast %cst_69 : f32 to vector<16x1xf32>
      %156 = arith.divf %154, %155 : vector<16x1xf32>
      %157 = vector.broadcast %156 : vector<16x1xf32> to vector<16x32xf32>
      %158 = arith.subf %148, %157 : vector<16x32xf32>
      %159 = arith.mulf %158, %158 : vector<16x32xf32>
      %cst_70 = arith.constant dense<0.000000e+00> : vector<16xf32>
      %160 = vector.multi_reduction <add>, %159, %cst_70 [1] : vector<16x32xf32> to vector<16xf32>
      %161 = vector.shape_cast %160 : vector<16xf32> to vector<16x1xf32>
      %cst_71 = arith.constant 3.200000e+01 : f32
      %162 = vector.broadcast %cst_71 : f32 to vector<16x1xf32>
      %163 = arith.divf %161, %162 : vector<16x1xf32>
      %cst_72 = arith.constant 9.99999974E-6 : f32
      %164 = vector.broadcast %cst_72 : f32 to vector<16x1xf32>
      %165 = arith.addf %163, %164 : vector<16x1xf32>
      %166 = math.rsqrt %165 : vector<16x1xf32>
      %167 = vector.broadcast %166 : vector<16x1xf32> to vector<16x32xf32>
      %168 = arith.mulf %158, %167 : vector<16x32xf32>
      %169 = vector.broadcast %150 : vector<1x32xf32> to vector<16x32xf32>
      %170 = arith.mulf %168, %169 : vector<16x32xf32>
      %171 = vector.broadcast %152 : vector<1x32xf32> to vector<16x32xf32>
      %172 = arith.addf %170, %171 : vector<16x32xf32>
      %c1_i32 = arith.constant 1 : i32
      %173 = arith.cmpi slt, %arg0, %c1_i32 : i32
      %174 = arith.extui %173 : i1 to i32
      %c0_i32_73 = arith.constant 0 : i32
      %175 = arith.cmpi ne, %174, %c0_i32_73 : i32
      scf.if %175 {
        %c0_76 = arith.constant 0 : index
        %c0_77 = arith.constant 0 : index
        %179 = vector.load %arg39[%c0_76, %c0_77] : memref<16x32xf32, #tpu.memory_space<vmem>>, vector<16x32xf32>
        tpu.vector_store %arg39[%c0_76, %c0_77], %172 {strides = array<i32>} : memref<16x32xf32, #tpu.memory_space<vmem>>, vector<16x32xf32>,
      } else {
      }
      %c1_i32_74 = arith.constant 1 : i32
      %176 = arith.cmpi eq, %arg0, %c1_i32_74 : i32
      %177 = arith.extui %176 : i1 to i32
      %c0_i32_75 = arith.constant 0 : i32
      %178 = arith.cmpi ne, %177, %c0_i32_75 : i32
      scf.if %178 {
        %c0_76 = arith.constant 0 : index
        %c0_77 = arith.constant 0 : index
        %179 = vector.load %arg14[%c0_76, %c0_77] : memref<1x32xf32, #tpu.memory_space<vmem>>, vector<1x32xf32>
        %c0_78 = arith.constant 0 : index
        %c0_79 = arith.constant 0 : index
        %180 = vector.load %arg15[%c0_78, %c0_79] : memref<1x32xf32, #tpu.memory_space<vmem>>, vector<1x32xf32>
        %cst_80 = arith.constant dense<0.000000e+00> : vector<16xf32>
        %181 = vector.multi_reduction <add>, %172, %cst_80 [1] : vector<16x32xf32> to vector<16xf32>
        %182 = vector.shape_cast %181 : vector<16xf32> to vector<16x1xf32>
        %cst_81 = arith.constant 3.200000e+01 : f32
        %183 = vector.broadcast %cst_81 : f32 to vector<16x1xf32>
        %184 = arith.divf %182, %183 : vector<16x1xf32>
        %185 = vector.broadcast %184 : vector<16x1xf32> to vector<16x32xf32>
        %186 = arith.subf %172, %185 : vector<16x32xf32>
        %187 = arith.mulf %186, %186 : vector<16x32xf32>
        %cst_82 = arith.constant dense<0.000000e+00> : vector<16xf32>
        %188 = vector.multi_reduction <add>, %187, %cst_82 [1] : vector<16x32xf32> to vector<16xf32>
        %189 = vector.shape_cast %188 : vector<16xf32> to vector<16x1xf32>
        %cst_83 = arith.constant 3.200000e+01 : f32
        %190 = vector.broadcast %cst_83 : f32 to vector<16x1xf32>
        %191 = arith.divf %189, %190 : vector<16x1xf32>
        %cst_84 = arith.constant 9.99999974E-6 : f32
        %192 = vector.broadcast %cst_84 : f32 to vector<16x1xf32>
        %193 = arith.addf %191, %192 : vector<16x1xf32>
        %194 = math.rsqrt %193 : vector<16x1xf32>
        %195 = vector.broadcast %194 : vector<16x1xf32> to vector<16x32xf32>
        %196 = arith.mulf %186, %195 : vector<16x32xf32>
        %197 = vector.broadcast %179 : vector<1x32xf32> to vector<16x32xf32>
        %198 = arith.mulf %196, %197 : vector<16x32xf32>
        %199 = vector.broadcast %180 : vector<1x32xf32> to vector<16x32xf32>
        %200 = arith.addf %198, %199 : vector<16x32xf32>
        %c0_85 = arith.constant 0 : index
        %c0_86 = arith.constant 0 : index
        %201 = vector.load %arg40[%c0_85, %c0_86] : memref<16x32xf32, #tpu.memory_space<vmem>>, vector<16x32xf32>
        tpu.vector_store %arg40[%c0_85, %c0_86], %200 {strides = array<i32>} : memref<16x32xf32, #tpu.memory_space<vmem>>, vector<16x32xf32>,
      } else {
      }
    } else {
    }
    %c2_i32_4 = arith.constant 2 : i32
    %9 = arith.cmpi sge, %arg0, %c2_i32_4 : i32
    %10 = arith.extui %9 : i1 to i32
    %c0_i32_5 = arith.constant 0 : i32
    %11 = arith.cmpi ne, %10, %c0_i32_5 : i32
    scf.if %11 {
      %c0_6 = arith.constant 0 : index
      %c0_7 = arith.constant 0 : index
      %12 = vector.load %arg40[%c0_6, %c0_7] : memref<16x32xf32, #tpu.memory_space<vmem>>, vector<16x32xf32>
      %c0_8 = arith.constant 0 : index
      %c0_9 = arith.constant 0 : index
      %c0_10 = arith.constant 0 : index
      %13 = vector.load %arg16[%c0_8, %c0_9, %c0_10] : memref<1x32x96xbf16, #tpu.memory_space<vmem>>, vector<1x32x96xbf16>
      %14 = vector.shape_cast %13 : vector<1x32x96xbf16> to vector<32x96xbf16>
      %c0_11 = arith.constant 0 : index
      %c0_12 = arith.constant 0 : index
      %c0_13 = arith.constant 0 : index
      %15 = vector.load %arg17[%c0_11, %c0_12, %c0_13] : memref<1x1x96xf32, #tpu.memory_space<vmem>>, vector<1x1x96xf32>
      %16 = vector.shape_cast %15 : vector<1x1x96xf32> to vector<1x96xf32>
      %c0_14 = arith.constant 0 : index
      %c0_15 = arith.constant 0 : index
      %c0_16 = arith.constant 0 : index
      %17 = vector.load %arg18[%c0_14, %c0_15, %c0_16] : memref<1x32x32xbf16, #tpu.memory_space<vmem>>, vector<1x32x32xbf16>
      %18 = vector.shape_cast %17 : vector<1x32x32xbf16> to vector<32x32xbf16>
      %c0_17 = arith.constant 0 : index
      %c0_18 = arith.constant 0 : index
      %c0_19 = arith.constant 0 : index
      %19 = vector.load %arg19[%c0_17, %c0_18, %c0_19] : memref<1x1x32xf32, #tpu.memory_space<vmem>>, vector<1x1x32xf32>
      %20 = vector.shape_cast %19 : vector<1x1x32xf32> to vector<1x32xf32>
      %21 = arith.truncf %5 : vector<16x32xf32> to vector<16x32xbf16>
      %cst = arith.constant dense<0.000000e+00> : vector<16x96xf32>
      %22 = tpu.matmul %21, %14, %cst {dimension_numbers = #tpu.dot_dimension_numbers<[1], [0], [0], [1], [0, 0, 1, 1], [], []>} : vector<16x32xbf16>, vector<32x96xbf16>, vector<16x96xf32> -> vector<16x96xf32>
      %23 = vector.broadcast %16 : vector<1x96xf32> to vector<16x96xf32>
      %24 = arith.addf %22, %23 : vector<16x96xf32>
      %25 = vector.extract_strided_slice %24 {offsets = [0, 0], sizes = [16, 32], strides = [1, 1]} : vector<16x96xf32> to vector<16x32xf32>
      %26 = vector.extract_strided_slice %24 {offsets = [0, 32], sizes = [16, 32], strides = [1, 1]} : vector<16x96xf32> to vector<16x32xf32>
      %27 = vector.extract_strided_slice %24 {offsets = [0, 64], sizes = [16, 32], strides = [1, 1]} : vector<16x96xf32> to vector<16x32xf32>
      %cst_20 = arith.constant 0.353553385 : f32
      %28 = vector.broadcast %cst_20 : f32 to vector<16x32xf32>
      %29 = arith.mulf %25, %28 : vector<16x32xf32>
      %30 = arith.truncf %29 : vector<16x32xf32> to vector<16x32xbf16>
      %31 = vector.shape_cast %30 : vector<16x32xbf16> to vector<2x8x32xbf16>
      %32 = arith.truncf %26 : vector<16x32xf32> to vector<16x32xbf16>
      %33 = vector.shape_cast %32 : vector<16x32xbf16> to vector<2x8x32xbf16>
      %34 = arith.truncf %27 : vector<16x32xf32> to vector<16x32xbf16>
      %35 = vector.shape_cast %34 : vector<16x32xbf16> to vector<2x8x32xbf16>
      %36 = vector.extract_strided_slice %31 {offsets = [0, 0, 0], sizes = [2, 8, 8], strides = [1, 1, 1]} : vector<2x8x32xbf16> to vector<2x8x8xbf16>
      %37 = vector.extract_strided_slice %33 {offsets = [0, 0, 0], sizes = [2, 8, 8], strides = [1, 1, 1]} : vector<2x8x32xbf16> to vector<2x8x8xbf16>
      "tpu.trace_start"() <{level = 10 : i32, message = "bqd,bkd->bqk"}> : () -> ()
      %cst_21 = arith.constant dense<0.000000e+00> : vector<2x8x8xf32>
      %38 = tpu.matmul %36, %37, %cst_21 {dimension_numbers = #tpu.dot_dimension_numbers<[2], [2], [1], [1], [0, 0, 0, 1, 1, 1], [0], [0]>} : vector<2x8x8xbf16>, vector<2x8x8xbf16>, vector<2x8x8xf32> -> vector<2x8x8xf32>
      "tpu.trace_stop"() : () -> ()
      %cst_22 = arith.constant dense<0xFF800000> : vector<2x8xf32>
      %39 = vector.multi_reduction <maximumf>, %38, %cst_22 [2] : vector<2x8x8xf32> to vector<2x8xf32>
      %40 = vector.shape_cast %39 : vector<2x8xf32> to vector<2x8x1xf32>
      %41 = vector.broadcast %40 : vector<2x8x1xf32> to vector<2x8x8xf32>
      %42 = arith.subf %38, %41 : vector<2x8x8xf32>
      %43 = math.exp %42 : vector<2x8x8xf32>
      %cst_23 = arith.constant dense<0.000000e+00> : vector<2x8xf32>
      %44 = vector.multi_reduction <add>, %43, %cst_23 [2] : vector<2x8x8xf32> to vector<2x8xf32>
      %45 = vector.shape_cast %44 : vector<2x8xf32> to vector<2x8x1xf32>
      %46 = tpu.reciprocal %45 {approx = true} : vector<2x8x1xf32> -> vector<2x8x1xf32>
      %47 = vector.broadcast %46 : vector<2x8x1xf32> to vector<2x8x8xf32>
      %48 = arith.mulf %43, %47 : vector<2x8x8xf32>
      %49 = arith.truncf %48 : vector<2x8x8xf32> to vector<2x8x8xbf16>
      %50 = vector.extract_strided_slice %35 {offsets = [0, 0, 0], sizes = [2, 8, 8], strides = [1, 1, 1]} : vector<2x8x32xbf16> to vector<2x8x8xbf16>
      "tpu.trace_start"() <{level = 10 : i32, message = "bqk,bkd->bqd"}> : () -> ()
      %cst_24 = arith.constant dense<0.000000e+00> : vector<2x8x8xf32>
      %51 = tpu.matmul %49, %50, %cst_24 {dimension_numbers = #tpu.dot_dimension_numbers<[2], [1], [1], [2], [0, 0, 0, 1, 1, 2], [0], [0]>} : vector<2x8x8xbf16>, vector<2x8x8xbf16>, vector<2x8x8xf32> -> vector<2x8x8xf32>
      "tpu.trace_stop"() : () -> ()
      %52 = vector.extract_strided_slice %31 {offsets = [0, 0, 8], sizes = [2, 8, 8], strides = [1, 1, 1]} : vector<2x8x32xbf16> to vector<2x8x8xbf16>
      %53 = vector.extract_strided_slice %33 {offsets = [0, 0, 8], sizes = [2, 8, 8], strides = [1, 1, 1]} : vector<2x8x32xbf16> to vector<2x8x8xbf16>
      "tpu.trace_start"() <{level = 10 : i32, message = "bqd,bkd->bqk"}> : () -> ()
      %cst_25 = arith.constant dense<0.000000e+00> : vector<2x8x8xf32>
      %54 = tpu.matmul %52, %53, %cst_25 {dimension_numbers = #tpu.dot_dimension_numbers<[2], [2], [1], [1], [0, 0, 0, 1, 1, 1], [0], [0]>} : vector<2x8x8xbf16>, vector<2x8x8xbf16>, vector<2x8x8xf32> -> vector<2x8x8xf32>
      "tpu.trace_stop"() : () -> ()
      %cst_26 = arith.constant dense<0xFF800000> : vector<2x8xf32>
      %55 = vector.multi_reduction <maximumf>, %54, %cst_26 [2] : vector<2x8x8xf32> to vector<2x8xf32>
      %56 = vector.shape_cast %55 : vector<2x8xf32> to vector<2x8x1xf32>
      %57 = vector.broadcast %56 : vector<2x8x1xf32> to vector<2x8x8xf32>
      %58 = arith.subf %54, %57 : vector<2x8x8xf32>
      %59 = math.exp %58 : vector<2x8x8xf32>
      %cst_27 = arith.constant dense<0.000000e+00> : vector<2x8xf32>
      %60 = vector.multi_reduction <add>, %59, %cst_27 [2] : vector<2x8x8xf32> to vector<2x8xf32>
      %61 = vector.shape_cast %60 : vector<2x8xf32> to vector<2x8x1xf32>
      %62 = tpu.reciprocal %61 {approx = true} : vector<2x8x1xf32> -> vector<2x8x1xf32>
      %63 = vector.broadcast %62 : vector<2x8x1xf32> to vector<2x8x8xf32>
      %64 = arith.mulf %59, %63 : vector<2x8x8xf32>
      %65 = arith.truncf %64 : vector<2x8x8xf32> to vector<2x8x8xbf16>
      %66 = vector.extract_strided_slice %35 {offsets = [0, 0, 8], sizes = [2, 8, 8], strides = [1, 1, 1]} : vector<2x8x32xbf16> to vector<2x8x8xbf16>
      "tpu.trace_start"() <{level = 10 : i32, message = "bqk,bkd->bqd"}> : () -> ()
      %cst_28 = arith.constant dense<0.000000e+00> : vector<2x8x8xf32>
      %67 = tpu.matmul %65, %66, %cst_28 {dimension_numbers = #tpu.dot_dimension_numbers<[2], [1], [1], [2], [0, 0, 0, 1, 1, 2], [0], [0]>} : vector<2x8x8xbf16>, vector<2x8x8xbf16>, vector<2x8x8xf32> -> vector<2x8x8xf32>
      "tpu.trace_stop"() : () -> ()
      %68 = vector.extract_strided_slice %31 {offsets = [0, 0, 16], sizes = [2, 8, 8], strides = [1, 1, 1]} : vector<2x8x32xbf16> to vector<2x8x8xbf16>
      %69 = vector.extract_strided_slice %33 {offsets = [0, 0, 16], sizes = [2, 8, 8], strides = [1, 1, 1]} : vector<2x8x32xbf16> to vector<2x8x8xbf16>
      "tpu.trace_start"() <{level = 10 : i32, message = "bqd,bkd->bqk"}> : () -> ()
      %cst_29 = arith.constant dense<0.000000e+00> : vector<2x8x8xf32>
      %70 = tpu.matmul %68, %69, %cst_29 {dimension_numbers = #tpu.dot_dimension_numbers<[2], [2], [1], [1], [0, 0, 0, 1, 1, 1], [0], [0]>} : vector<2x8x8xbf16>, vector<2x8x8xbf16>, vector<2x8x8xf32> -> vector<2x8x8xf32>
      "tpu.trace_stop"() : () -> ()
      %cst_30 = arith.constant dense<0xFF800000> : vector<2x8xf32>
      %71 = vector.multi_reduction <maximumf>, %70, %cst_30 [2] : vector<2x8x8xf32> to vector<2x8xf32>
      %72 = vector.shape_cast %71 : vector<2x8xf32> to vector<2x8x1xf32>
      %73 = vector.broadcast %72 : vector<2x8x1xf32> to vector<2x8x8xf32>
      %74 = arith.subf %70, %73 : vector<2x8x8xf32>
      %75 = math.exp %74 : vector<2x8x8xf32>
      %cst_31 = arith.constant dense<0.000000e+00> : vector<2x8xf32>
      %76 = vector.multi_reduction <add>, %75, %cst_31 [2] : vector<2x8x8xf32> to vector<2x8xf32>
      %77 = vector.shape_cast %76 : vector<2x8xf32> to vector<2x8x1xf32>
      %78 = tpu.reciprocal %77 {approx = true} : vector<2x8x1xf32> -> vector<2x8x1xf32>
      %79 = vector.broadcast %78 : vector<2x8x1xf32> to vector<2x8x8xf32>
      %80 = arith.mulf %75, %79 : vector<2x8x8xf32>
      %81 = arith.truncf %80 : vector<2x8x8xf32> to vector<2x8x8xbf16>
      %82 = vector.extract_strided_slice %35 {offsets = [0, 0, 16], sizes = [2, 8, 8], strides = [1, 1, 1]} : vector<2x8x32xbf16> to vector<2x8x8xbf16>
      "tpu.trace_start"() <{level = 10 : i32, message = "bqk,bkd->bqd"}> : () -> ()
      %cst_32 = arith.constant dense<0.000000e+00> : vector<2x8x8xf32>
      %83 = tpu.matmul %81, %82, %cst_32 {dimension_numbers = #tpu.dot_dimension_numbers<[2], [1], [1], [2], [0, 0, 0, 1, 1, 2], [0], [0]>} : vector<2x8x8xbf16>, vector<2x8x8xbf16>, vector<2x8x8xf32> -> vector<2x8x8xf32>
      "tpu.trace_stop"() : () -> ()
      %84 = vector.extract_strided_slice %31 {offsets = [0, 0, 24], sizes = [2, 8, 8], strides = [1, 1, 1]} : vector<2x8x32xbf16> to vector<2x8x8xbf16>
      %85 = vector.extract_strided_slice %33 {offsets = [0, 0, 24], sizes = [2, 8, 8], strides = [1, 1, 1]} : vector<2x8x32xbf16> to vector<2x8x8xbf16>
      "tpu.trace_start"() <{level = 10 : i32, message = "bqd,bkd->bqk"}> : () -> ()
      %cst_33 = arith.constant dense<0.000000e+00> : vector<2x8x8xf32>
      %86 = tpu.matmul %84, %85, %cst_33 {dimension_numbers = #tpu.dot_dimension_numbers<[2], [2], [1], [1], [0, 0, 0, 1, 1, 1], [0], [0]>} : vector<2x8x8xbf16>, vector<2x8x8xbf16>, vector<2x8x8xf32> -> vector<2x8x8xf32>
      "tpu.trace_stop"() : () -> ()
      %cst_34 = arith.constant dense<0xFF800000> : vector<2x8xf32>
      %87 = vector.multi_reduction <maximumf>, %86, %cst_34 [2] : vector<2x8x8xf32> to vector<2x8xf32>
      %88 = vector.shape_cast %87 : vector<2x8xf32> to vector<2x8x1xf32>
      %89 = vector.broadcast %88 : vector<2x8x1xf32> to vector<2x8x8xf32>
      %90 = arith.subf %86, %89 : vector<2x8x8xf32>
      %91 = math.exp %90 : vector<2x8x8xf32>
      %cst_35 = arith.constant dense<0.000000e+00> : vector<2x8xf32>
      %92 = vector.multi_reduction <add>, %91, %cst_35 [2] : vector<2x8x8xf32> to vector<2x8xf32>
      %93 = vector.shape_cast %92 : vector<2x8xf32> to vector<2x8x1xf32>
      %94 = tpu.reciprocal %93 {approx = true} : vector<2x8x1xf32> -> vector<2x8x1xf32>
      %95 = vector.broadcast %94 : vector<2x8x1xf32> to vector<2x8x8xf32>
      %96 = arith.mulf %91, %95 : vector<2x8x8xf32>
      %97 = arith.truncf %96 : vector<2x8x8xf32> to vector<2x8x8xbf16>
      %98 = vector.extract_strided_slice %35 {offsets = [0, 0, 24], sizes = [2, 8, 8], strides = [1, 1, 1]} : vector<2x8x32xbf16> to vector<2x8x8xbf16>
      "tpu.trace_start"() <{level = 10 : i32, message = "bqk,bkd->bqd"}> : () -> ()
      %cst_36 = arith.constant dense<0.000000e+00> : vector<2x8x8xf32>
      %99 = tpu.matmul %97, %98, %cst_36 {dimension_numbers = #tpu.dot_dimension_numbers<[2], [1], [1], [2], [0, 0, 0, 1, 1, 2], [0], [0]>} : vector<2x8x8xbf16>, vector<2x8x8xbf16>, vector<2x8x8xf32> -> vector<2x8x8xf32>
      "tpu.trace_stop"() : () -> ()
      %100 = tpu.concatenate %51, %67, %83, %99 in 2 : vector<2x8x8xf32>, vector<2x8x8xf32>, vector<2x8x8xf32>, vector<2x8x8xf32> -> vector<2x8x32xf32>
      %101 = vector.shape_cast %100 : vector<2x8x32xf32> to vector<16x32xf32>
      %102 = arith.truncf %101 : vector<16x32xf32> to vector<16x32xbf16>
      %cst_37 = arith.constant dense<0.000000e+00> : vector<16x32xf32>
      %103 = tpu.matmul %102, %18, %cst_37 {dimension_numbers = #tpu.dot_dimension_numbers<[1], [0], [0], [1], [0, 0, 1, 1], [], []>} : vector<16x32xbf16>, vector<32x32xbf16>, vector<16x32xf32> -> vector<16x32xf32>
      %104 = vector.broadcast %20 : vector<1x32xf32> to vector<16x32xf32>
      %105 = arith.addf %103, %104 : vector<16x32xf32>
      %106 = arith.addf %5, %105 : vector<16x32xf32>
      %c0_38 = arith.constant 0 : index
      %c0_39 = arith.constant 0 : index
      %c0_40 = arith.constant 0 : index
      %107 = vector.load %arg20[%c0_38, %c0_39, %c0_40] : memref<1x1x32xf32, #tpu.memory_space<vmem>>, vector<1x1x32xf32>
      %108 = vector.shape_cast %107 : vector<1x1x32xf32> to vector<1x32xf32>
      %c0_41 = arith.constant 0 : index
      %c0_42 = arith.constant 0 : index
      %c0_43 = arith.constant 0 : index
      %109 = vector.load %arg21[%c0_41, %c0_42, %c0_43] : memref<1x1x32xf32, #tpu.memory_space<vmem>>, vector<1x1x32xf32>
      %110 = vector.shape_cast %109 : vector<1x1x32xf32> to vector<1x32xf32>
      %cst_44 = arith.constant dense<0.000000e+00> : vector<16xf32>
      %111 = vector.multi_reduction <add>, %106, %cst_44 [1] : vector<16x32xf32> to vector<16xf32>
      %112 = vector.shape_cast %111 : vector<16xf32> to vector<16x1xf32>
      %cst_45 = arith.constant 3.200000e+01 : f32
      %113 = vector.broadcast %cst_45 : f32 to vector<16x1xf32>
      %114 = arith.divf %112, %113 : vector<16x1xf32>
      %115 = vector.broadcast %114 : vector<16x1xf32> to vector<16x32xf32>
      %116 = arith.subf %106, %115 : vector<16x32xf32>
      %117 = arith.mulf %116, %116 : vector<16x32xf32>
      %cst_46 = arith.constant dense<0.000000e+00> : vector<16xf32>
      %118 = vector.multi_reduction <add>, %117, %cst_46 [1] : vector<16x32xf32> to vector<16xf32>
      %119 = vector.shape_cast %118 : vector<16xf32> to vector<16x1xf32>
      %cst_47 = arith.constant 3.200000e+01 : f32
      %120 = vector.broadcast %cst_47 : f32 to vector<16x1xf32>
      %121 = arith.divf %119, %120 : vector<16x1xf32>
      %cst_48 = arith.constant 9.99999974E-6 : f32
      %122 = vector.broadcast %cst_48 : f32 to vector<16x1xf32>
      %123 = arith.addf %121, %122 : vector<16x1xf32>
      %124 = math.rsqrt %123 : vector<16x1xf32>
      %125 = vector.broadcast %124 : vector<16x1xf32> to vector<16x32xf32>
      %126 = arith.mulf %116, %125 : vector<16x32xf32>
      %127 = vector.broadcast %108 : vector<1x32xf32> to vector<16x32xf32>
      %128 = arith.mulf %126, %127 : vector<16x32xf32>
      %129 = vector.broadcast %110 : vector<1x32xf32> to vector<16x32xf32>
      %130 = arith.addf %128, %129 : vector<16x32xf32>
      %c0_49 = arith.constant 0 : index
      %c0_50 = arith.constant 0 : index
      %c0_51 = arith.constant 0 : index
      %131 = vector.load %arg22[%c0_49, %c0_50, %c0_51] : memref<1x32x96xbf16, #tpu.memory_space<vmem>>, vector<1x32x96xbf16>
      %132 = vector.shape_cast %131 : vector<1x32x96xbf16> to vector<32x96xbf16>
      %c0_52 = arith.constant 0 : index
      %c0_53 = arith.constant 0 : index
      %c0_54 = arith.constant 0 : index
      %133 = vector.load %arg23[%c0_52, %c0_53, %c0_54] : memref<1x1x96xf32, #tpu.memory_space<vmem>>, vector<1x1x96xf32>
      %134 = vector.shape_cast %133 : vector<1x1x96xf32> to vector<1x96xf32>
      %c0_55 = arith.constant 0 : index
      %c0_56 = arith.constant 0 : index
      %c0_57 = arith.constant 0 : index
      %135 = vector.load %arg24[%c0_55, %c0_56, %c0_57] : memref<1x32x32xbf16, #tpu.memory_space<vmem>>, vector<1x32x32xbf16>
      %136 = vector.shape_cast %135 : vector<1x32x32xbf16> to vector<32x32xbf16>
      %c0_58 = arith.constant 0 : index
      %c0_59 = arith.constant 0 : index
      %c0_60 = arith.constant 0 : index
      %137 = vector.load %arg25[%c0_58, %c0_59, %c0_60] : memref<1x1x32xf32, #tpu.memory_space<vmem>>, vector<1x1x32xf32>
      %138 = vector.shape_cast %137 : vector<1x1x32xf32> to vector<1x32xf32>
      %139 = vector.extract_strided_slice %132 {offsets = [0, 0], sizes = [32, 32], strides = [1, 1]} : vector<32x96xbf16> to vector<32x32xbf16>
      %140 = vector.extract_strided_slice %134 {offsets = [0, 0], sizes = [1, 32], strides = [1, 1]} : vector<1x96xf32> to vector<1x32xf32>
      %141 = arith.truncf %130 : vector<16x32xf32> to vector<16x32xbf16>
      %cst_61 = arith.constant dense<0.000000e+00> : vector<16x32xf32>
      %142 = tpu.matmul %141, %139, %cst_61 {dimension_numbers = #tpu.dot_dimension_numbers<[1], [0], [0], [1], [0, 0, 1, 1], [], []>} : vector<16x32xbf16>, vector<32x32xbf16>, vector<16x32xf32> -> vector<16x32xf32>
      %143 = vector.broadcast %140 : vector<1x32xf32> to vector<16x32xf32>
      %144 = arith.addf %142, %143 : vector<16x32xf32>
      %145 = vector.extract_strided_slice %132 {offsets = [0, 32], sizes = [32, 64], strides = [1, 1]} : vector<32x96xbf16> to vector<32x64xbf16>
      %146 = vector.extract_strided_slice %134 {offsets = [0, 32], sizes = [1, 64], strides = [1, 1]} : vector<1x96xf32> to vector<1x64xf32>
      %147 = arith.truncf %12 : vector<16x32xf32> to vector<16x32xbf16>
      %cst_62 = arith.constant dense<0.000000e+00> : vector<16x64xf32>
      %148 = tpu.matmul %147, %145, %cst_62 {dimension_numbers = #tpu.dot_dimension_numbers<[1], [0], [0], [1], [0, 0, 1, 1], [], []>} : vector<16x32xbf16>, vector<32x64xbf16>, vector<16x64xf32> -> vector<16x64xf32>
      %149 = vector.broadcast %146 : vector<1x64xf32> to vector<16x64xf32>
      %150 = arith.addf %148, %149 : vector<16x64xf32>
      %151 = vector.extract_strided_slice %150 {offsets = [0, 0], sizes = [16, 32], strides = [1, 1]} : vector<16x64xf32> to vector<16x32xf32>
      %152 = vector.extract_strided_slice %150 {offsets = [0, 32], sizes = [16, 32], strides = [1, 1]} : vector<16x64xf32> to vector<16x32xf32>
      %cst_63 = arith.constant 0.353553385 : f32
      %153 = vector.broadcast %cst_63 : f32 to vector<16x32xf32>
      %154 = arith.mulf %144, %153 : vector<16x32xf32>
      %155 = arith.truncf %154 : vector<16x32xf32> to vector<16x32xbf16>
      %156 = vector.shape_cast %155 : vector<16x32xbf16> to vector<2x8x32xbf16>
      %157 = arith.truncf %151 : vector<16x32xf32> to vector<16x32xbf16>
      %158 = vector.shape_cast %157 : vector<16x32xbf16> to vector<2x8x32xbf16>
      %159 = arith.truncf %152 : vector<16x32xf32> to vector<16x32xbf16>
      %160 = vector.shape_cast %159 : vector<16x32xbf16> to vector<2x8x32xbf16>
      %161 = vector.extract_strided_slice %156 {offsets = [0, 0, 0], sizes = [2, 8, 8], strides = [1, 1, 1]} : vector<2x8x32xbf16> to vector<2x8x8xbf16>
      %162 = vector.extract_strided_slice %158 {offsets = [0, 0, 0], sizes = [2, 8, 8], strides = [1, 1, 1]} : vector<2x8x32xbf16> to vector<2x8x8xbf16>
      "tpu.trace_start"() <{level = 10 : i32, message = "bqd,bkd->bqk"}> : () -> ()
      %cst_64 = arith.constant dense<0.000000e+00> : vector<2x8x8xf32>
      %163 = tpu.matmul %161, %162, %cst_64 {dimension_numbers = #tpu.dot_dimension_numbers<[2], [2], [1], [1], [0, 0, 0, 1, 1, 1], [0], [0]>} : vector<2x8x8xbf16>, vector<2x8x8xbf16>, vector<2x8x8xf32> -> vector<2x8x8xf32>
      "tpu.trace_stop"() : () -> ()
      %cst_65 = arith.constant dense<0xFF800000> : vector<2x8xf32>
      %164 = vector.multi_reduction <maximumf>, %163, %cst_65 [2] : vector<2x8x8xf32> to vector<2x8xf32>
      %165 = vector.shape_cast %164 : vector<2x8xf32> to vector<2x8x1xf32>
      %166 = vector.broadcast %165 : vector<2x8x1xf32> to vector<2x8x8xf32>
      %167 = arith.subf %163, %166 : vector<2x8x8xf32>
      %168 = math.exp %167 : vector<2x8x8xf32>
      %cst_66 = arith.constant dense<0.000000e+00> : vector<2x8xf32>
      %169 = vector.multi_reduction <add>, %168, %cst_66 [2] : vector<2x8x8xf32> to vector<2x8xf32>
      %170 = vector.shape_cast %169 : vector<2x8xf32> to vector<2x8x1xf32>
      %171 = tpu.reciprocal %170 {approx = true} : vector<2x8x1xf32> -> vector<2x8x1xf32>
      %172 = vector.broadcast %171 : vector<2x8x1xf32> to vector<2x8x8xf32>
      %173 = arith.mulf %168, %172 : vector<2x8x8xf32>
      %174 = arith.truncf %173 : vector<2x8x8xf32> to vector<2x8x8xbf16>
      %175 = vector.extract_strided_slice %160 {offsets = [0, 0, 0], sizes = [2, 8, 8], strides = [1, 1, 1]} : vector<2x8x32xbf16> to vector<2x8x8xbf16>
      "tpu.trace_start"() <{level = 10 : i32, message = "bqk,bkd->bqd"}> : () -> ()
      %cst_67 = arith.constant dense<0.000000e+00> : vector<2x8x8xf32>
      %176 = tpu.matmul %174, %175, %cst_67 {dimension_numbers = #tpu.dot_dimension_numbers<[2], [1], [1], [2], [0, 0, 0, 1, 1, 2], [0], [0]>} : vector<2x8x8xbf16>, vector<2x8x8xbf16>, vector<2x8x8xf32> -> vector<2x8x8xf32>
      "tpu.trace_stop"() : () -> ()
      %177 = vector.extract_strided_slice %156 {offsets = [0, 0, 8], sizes = [2, 8, 8], strides = [1, 1, 1]} : vector<2x8x32xbf16> to vector<2x8x8xbf16>
      %178 = vector.extract_strided_slice %158 {offsets = [0, 0, 8], sizes = [2, 8, 8], strides = [1, 1, 1]} : vector<2x8x32xbf16> to vector<2x8x8xbf16>
      "tpu.trace_start"() <{level = 10 : i32, message = "bqd,bkd->bqk"}> : () -> ()
      %cst_68 = arith.constant dense<0.000000e+00> : vector<2x8x8xf32>
      %179 = tpu.matmul %177, %178, %cst_68 {dimension_numbers = #tpu.dot_dimension_numbers<[2], [2], [1], [1], [0, 0, 0, 1, 1, 1], [0], [0]>} : vector<2x8x8xbf16>, vector<2x8x8xbf16>, vector<2x8x8xf32> -> vector<2x8x8xf32>
      "tpu.trace_stop"() : () -> ()
      %cst_69 = arith.constant dense<0xFF800000> : vector<2x8xf32>
      %180 = vector.multi_reduction <maximumf>, %179, %cst_69 [2] : vector<2x8x8xf32> to vector<2x8xf32>
      %181 = vector.shape_cast %180 : vector<2x8xf32> to vector<2x8x1xf32>
      %182 = vector.broadcast %181 : vector<2x8x1xf32> to vector<2x8x8xf32>
      %183 = arith.subf %179, %182 : vector<2x8x8xf32>
      %184 = math.exp %183 : vector<2x8x8xf32>
      %cst_70 = arith.constant dense<0.000000e+00> : vector<2x8xf32>
      %185 = vector.multi_reduction <add>, %184, %cst_70 [2] : vector<2x8x8xf32> to vector<2x8xf32>
      %186 = vector.shape_cast %185 : vector<2x8xf32> to vector<2x8x1xf32>
      %187 = tpu.reciprocal %186 {approx = true} : vector<2x8x1xf32> -> vector<2x8x1xf32>
      %188 = vector.broadcast %187 : vector<2x8x1xf32> to vector<2x8x8xf32>
      %189 = arith.mulf %184, %188 : vector<2x8x8xf32>
      %190 = arith.truncf %189 : vector<2x8x8xf32> to vector<2x8x8xbf16>
      %191 = vector.extract_strided_slice %160 {offsets = [0, 0, 8], sizes = [2, 8, 8], strides = [1, 1, 1]} : vector<2x8x32xbf16> to vector<2x8x8xbf16>
      "tpu.trace_start"() <{level = 10 : i32, message = "bqk,bkd->bqd"}> : () -> ()
      %cst_71 = arith.constant dense<0.000000e+00> : vector<2x8x8xf32>
      %192 = tpu.matmul %190, %191, %cst_71 {dimension_numbers = #tpu.dot_dimension_numbers<[2], [1], [1], [2], [0, 0, 0, 1, 1, 2], [0], [0]>} : vector<2x8x8xbf16>, vector<2x8x8xbf16>, vector<2x8x8xf32> -> vector<2x8x8xf32>
      "tpu.trace_stop"() : () -> ()
      %193 = vector.extract_strided_slice %156 {offsets = [0, 0, 16], sizes = [2, 8, 8], strides = [1, 1, 1]} : vector<2x8x32xbf16> to vector<2x8x8xbf16>
      %194 = vector.extract_strided_slice %158 {offsets = [0, 0, 16], sizes = [2, 8, 8], strides = [1, 1, 1]} : vector<2x8x32xbf16> to vector<2x8x8xbf16>
      "tpu.trace_start"() <{level = 10 : i32, message = "bqd,bkd->bqk"}> : () -> ()
      %cst_72 = arith.constant dense<0.000000e+00> : vector<2x8x8xf32>
      %195 = tpu.matmul %193, %194, %cst_72 {dimension_numbers = #tpu.dot_dimension_numbers<[2], [2], [1], [1], [0, 0, 0, 1, 1, 1], [0], [0]>} : vector<2x8x8xbf16>, vector<2x8x8xbf16>, vector<2x8x8xf32> -> vector<2x8x8xf32>
      "tpu.trace_stop"() : () -> ()
      %cst_73 = arith.constant dense<0xFF800000> : vector<2x8xf32>
      %196 = vector.multi_reduction <maximumf>, %195, %cst_73 [2] : vector<2x8x8xf32> to vector<2x8xf32>
      %197 = vector.shape_cast %196 : vector<2x8xf32> to vector<2x8x1xf32>
      %198 = vector.broadcast %197 : vector<2x8x1xf32> to vector<2x8x8xf32>
      %199 = arith.subf %195, %198 : vector<2x8x8xf32>
      %200 = math.exp %199 : vector<2x8x8xf32>
      %cst_74 = arith.constant dense<0.000000e+00> : vector<2x8xf32>
      %201 = vector.multi_reduction <add>, %200, %cst_74 [2] : vector<2x8x8xf32> to vector<2x8xf32>
      %202 = vector.shape_cast %201 : vector<2x8xf32> to vector<2x8x1xf32>
      %203 = tpu.reciprocal %202 {approx = true} : vector<2x8x1xf32> -> vector<2x8x1xf32>
      %204 = vector.broadcast %203 : vector<2x8x1xf32> to vector<2x8x8xf32>
      %205 = arith.mulf %200, %204 : vector<2x8x8xf32>
      %206 = arith.truncf %205 : vector<2x8x8xf32> to vector<2x8x8xbf16>
      %207 = vector.extract_strided_slice %160 {offsets = [0, 0, 16], sizes = [2, 8, 8], strides = [1, 1, 1]} : vector<2x8x32xbf16> to vector<2x8x8xbf16>
      "tpu.trace_start"() <{level = 10 : i32, message = "bqk,bkd->bqd"}> : () -> ()
      %cst_75 = arith.constant dense<0.000000e+00> : vector<2x8x8xf32>
      %208 = tpu.matmul %206, %207, %cst_75 {dimension_numbers = #tpu.dot_dimension_numbers<[2], [1], [1], [2], [0, 0, 0, 1, 1, 2], [0], [0]>} : vector<2x8x8xbf16>, vector<2x8x8xbf16>, vector<2x8x8xf32> -> vector<2x8x8xf32>
      "tpu.trace_stop"() : () -> ()
      %209 = vector.extract_strided_slice %156 {offsets = [0, 0, 24], sizes = [2, 8, 8], strides = [1, 1, 1]} : vector<2x8x32xbf16> to vector<2x8x8xbf16>
      %210 = vector.extract_strided_slice %158 {offsets = [0, 0, 24], sizes = [2, 8, 8], strides = [1, 1, 1]} : vector<2x8x32xbf16> to vector<2x8x8xbf16>
      "tpu.trace_start"() <{level = 10 : i32, message = "bqd,bkd->bqk"}> : () -> ()
      %cst_76 = arith.constant dense<0.000000e+00> : vector<2x8x8xf32>
      %211 = tpu.matmul %209, %210, %cst_76 {dimension_numbers = #tpu.dot_dimension_numbers<[2], [2], [1], [1], [0, 0, 0, 1, 1, 1], [0], [0]>} : vector<2x8x8xbf16>, vector<2x8x8xbf16>, vector<2x8x8xf32> -> vector<2x8x8xf32>
      "tpu.trace_stop"() : () -> ()
      %cst_77 = arith.constant dense<0xFF800000> : vector<2x8xf32>
      %212 = vector.multi_reduction <maximumf>, %211, %cst_77 [2] : vector<2x8x8xf32> to vector<2x8xf32>
      %213 = vector.shape_cast %212 : vector<2x8xf32> to vector<2x8x1xf32>
      %214 = vector.broadcast %213 : vector<2x8x1xf32> to vector<2x8x8xf32>
      %215 = arith.subf %211, %214 : vector<2x8x8xf32>
      %216 = math.exp %215 : vector<2x8x8xf32>
      %cst_78 = arith.constant dense<0.000000e+00> : vector<2x8xf32>
      %217 = vector.multi_reduction <add>, %216, %cst_78 [2] : vector<2x8x8xf32> to vector<2x8xf32>
      %218 = vector.shape_cast %217 : vector<2x8xf32> to vector<2x8x1xf32>
      %219 = tpu.reciprocal %218 {approx = true} : vector<2x8x1xf32> -> vector<2x8x1xf32>
      %220 = vector.broadcast %219 : vector<2x8x1xf32> to vector<2x8x8xf32>
      %221 = arith.mulf %216, %220 : vector<2x8x8xf32>
      %222 = arith.truncf %221 : vector<2x8x8xf32> to vector<2x8x8xbf16>
      %223 = vector.extract_strided_slice %160 {offsets = [0, 0, 24], sizes = [2, 8, 8], strides = [1, 1, 1]} : vector<2x8x32xbf16> to vector<2x8x8xbf16>
      "tpu.trace_start"() <{level = 10 : i32, message = "bqk,bkd->bqd"}> : () -> ()
      %cst_79 = arith.constant dense<0.000000e+00> : vector<2x8x8xf32>
      %224 = tpu.matmul %222, %223, %cst_79 {dimension_numbers = #tpu.dot_dimension_numbers<[2], [1], [1], [2], [0, 0, 0, 1, 1, 2], [0], [0]>} : vector<2x8x8xbf16>, vector<2x8x8xbf16>, vector<2x8x8xf32> -> vector<2x8x8xf32>
      "tpu.trace_stop"() : () -> ()
      %225 = tpu.concatenate %176, %192, %208, %224 in 2 : vector<2x8x8xf32>, vector<2x8x8xf32>, vector<2x8x8xf32>, vector<2x8x8xf32> -> vector<2x8x32xf32>
      %226 = vector.shape_cast %225 : vector<2x8x32xf32> to vector<16x32xf32>
      %227 = arith.truncf %226 : vector<16x32xf32> to vector<16x32xbf16>
      %cst_80 = arith.constant dense<0.000000e+00> : vector<16x32xf32>
      %228 = tpu.matmul %227, %136, %cst_80 {dimension_numbers = #tpu.dot_dimension_numbers<[1], [0], [0], [1], [0, 0, 1, 1], [], []>} : vector<16x32xbf16>, vector<32x32xbf16>, vector<16x32xf32> -> vector<16x32xf32>
      %229 = vector.broadcast %138 : vector<1x32xf32> to vector<16x32xf32>
      %230 = arith.addf %228, %229 : vector<16x32xf32>
      %231 = arith.addf %130, %230 : vector<16x32xf32>
      %c0_81 = arith.constant 0 : index
      %c0_82 = arith.constant 0 : index
      %c0_83 = arith.constant 0 : index
      %232 = vector.load %arg26[%c0_81, %c0_82, %c0_83] : memref<1x1x32xf32, #tpu.memory_space<vmem>>, vector<1x1x32xf32>
      %233 = vector.shape_cast %232 : vector<1x1x32xf32> to vector<1x32xf32>
      %c0_84 = arith.constant 0 : index
      %c0_85 = arith.constant 0 : index
      %c0_86 = arith.constant 0 : index
      %234 = vector.load %arg27[%c0_84, %c0_85, %c0_86] : memref<1x1x32xf32, #tpu.memory_space<vmem>>, vector<1x1x32xf32>
      %235 = vector.shape_cast %234 : vector<1x1x32xf32> to vector<1x32xf32>
      %cst_87 = arith.constant dense<0.000000e+00> : vector<16xf32>
      %236 = vector.multi_reduction <add>, %231, %cst_87 [1] : vector<16x32xf32> to vector<16xf32>
      %237 = vector.shape_cast %236 : vector<16xf32> to vector<16x1xf32>
      %cst_88 = arith.constant 3.200000e+01 : f32
      %238 = vector.broadcast %cst_88 : f32 to vector<16x1xf32>
      %239 = arith.divf %237, %238 : vector<16x1xf32>
      %240 = vector.broadcast %239 : vector<16x1xf32> to vector<16x32xf32>
      %241 = arith.subf %231, %240 : vector<16x32xf32>
      %242 = arith.mulf %241, %241 : vector<16x32xf32>
      %cst_89 = arith.constant dense<0.000000e+00> : vector<16xf32>
      %243 = vector.multi_reduction <add>, %242, %cst_89 [1] : vector<16x32xf32> to vector<16xf32>
      %244 = vector.shape_cast %243 : vector<16xf32> to vector<16x1xf32>
      %cst_90 = arith.constant 3.200000e+01 : f32
      %245 = vector.broadcast %cst_90 : f32 to vector<16x1xf32>
      %246 = arith.divf %244, %245 : vector<16x1xf32>
      %cst_91 = arith.constant 9.99999974E-6 : f32
      %247 = vector.broadcast %cst_91 : f32 to vector<16x1xf32>
      %248 = arith.addf %246, %247 : vector<16x1xf32>
      %249 = math.rsqrt %248 : vector<16x1xf32>
      %250 = vector.broadcast %249 : vector<16x1xf32> to vector<16x32xf32>
      %251 = arith.mulf %241, %250 : vector<16x32xf32>
      %252 = vector.broadcast %233 : vector<1x32xf32> to vector<16x32xf32>
      %253 = arith.mulf %251, %252 : vector<16x32xf32>
      %254 = vector.broadcast %235 : vector<1x32xf32> to vector<16x32xf32>
      %255 = arith.addf %253, %254 : vector<16x32xf32>
      %c0_92 = arith.constant 0 : index
      %c0_93 = arith.constant 0 : index
      %c0_94 = arith.constant 0 : index
      %256 = vector.load %arg28[%c0_92, %c0_93, %c0_94] : memref<1x32x2048xbf16, #tpu.memory_space<vmem>>, vector<1x32x2048xbf16>
      %257 = vector.shape_cast %256 : vector<1x32x2048xbf16> to vector<32x2048xbf16>
      %c0_95 = arith.constant 0 : index
      %c0_96 = arith.constant 0 : index
      %c0_97 = arith.constant 0 : index
      %258 = vector.load %arg29[%c0_95, %c0_96, %c0_97] : memref<1x1x2048xf32, #tpu.memory_space<vmem>>, vector<1x1x2048xf32>
      %259 = vector.shape_cast %258 : vector<1x1x2048xf32> to vector<1x2048xf32>
      %c0_98 = arith.constant 0 : index
      %c0_99 = arith.constant 0 : index
      %c0_100 = arith.constant 0 : index
      %260 = vector.load %arg30[%c0_98, %c0_99, %c0_100] : memref<1x2048x32xbf16, #tpu.memory_space<vmem>>, vector<1x2048x32xbf16>
      %261 = vector.shape_cast %260 : vector<1x2048x32xbf16> to vector<2048x32xbf16>
      %c0_101 = arith.constant 0 : index
      %c0_102 = arith.constant 0 : index
      %c0_103 = arith.constant 0 : index
      %262 = vector.load %arg31[%c0_101, %c0_102, %c0_103] : memref<1x1x32xf32, #tpu.memory_space<vmem>>, vector<1x1x32xf32>
      %263 = vector.shape_cast %262 : vector<1x1x32xf32> to vector<1x32xf32>
      %264 = arith.truncf %255 : vector<16x32xf32> to vector<16x32xbf16>
      %cst_104 = arith.constant dense<0.000000e+00> : vector<16x2048xf32>
      %265 = tpu.matmul %264, %257, %cst_104 {dimension_numbers = #tpu.dot_dimension_numbers<[1], [0], [0], [1], [0, 0, 1, 1], [], []>} : vector<16x32xbf16>, vector<32x2048xbf16>, vector<16x2048xf32> -> vector<16x2048xf32>
      %266 = vector.broadcast %259 : vector<1x2048xf32> to vector<16x2048xf32>
      %267 = arith.addf %265, %266 : vector<16x2048xf32>
      %cst_105 = arith.constant 0.000000e+00 : f32
      %268 = vector.broadcast %cst_105 : f32 to vector<16x2048xf32>
      %269 = arith.maximumf %267, %268 : vector<16x2048xf32>
      %270 = arith.truncf %269 : vector<16x2048xf32> to vector<16x2048xbf16>
      %cst_106 = arith.constant dense<0.000000e+00> : vector<16x32xf32>
      %271 = tpu.matmul %270, %261, %cst_106 {dimension_numbers = #tpu.dot_dimension_numbers<[1], [0], [0], [1], [0, 0, 1, 1], [], []>} : vector<16x2048xbf16>, vector<2048x32xbf16>, vector<16x32xf32> -> vector<16x32xf32>
      %272 = vector.broadcast %263 : vector<1x32xf32> to vector<16x32xf32>
      %273 = arith.addf %271, %272 : vector<16x32xf32>
      %274 = arith.addf %255, %273 : vector<16x32xf32>
      %c0_107 = arith.constant 0 : index
      %c0_108 = arith.constant 0 : index
      %c0_109 = arith.constant 0 : index
      %275 = vector.load %arg32[%c0_107, %c0_108, %c0_109] : memref<1x1x32xf32, #tpu.memory_space<vmem>>, vector<1x1x32xf32>
      %276 = vector.shape_cast %275 : vector<1x1x32xf32> to vector<1x32xf32>
      %c0_110 = arith.constant 0 : index
      %c0_111 = arith.constant 0 : index
      %c0_112 = arith.constant 0 : index
      %277 = vector.load %arg33[%c0_110, %c0_111, %c0_112] : memref<1x1x32xf32, #tpu.memory_space<vmem>>, vector<1x1x32xf32>
      %278 = vector.shape_cast %277 : vector<1x1x32xf32> to vector<1x32xf32>
      %cst_113 = arith.constant dense<0.000000e+00> : vector<16xf32>
      %279 = vector.multi_reduction <add>, %274, %cst_113 [1] : vector<16x32xf32> to vector<16xf32>
      %280 = vector.shape_cast %279 : vector<16xf32> to vector<16x1xf32>
      %cst_114 = arith.constant 3.200000e+01 : f32
      %281 = vector.broadcast %cst_114 : f32 to vector<16x1xf32>
      %282 = arith.divf %280, %281 : vector<16x1xf32>
      %283 = vector.broadcast %282 : vector<16x1xf32> to vector<16x32xf32>
      %284 = arith.subf %274, %283 : vector<16x32xf32>
      %285 = arith.mulf %284, %284 : vector<16x32xf32>
      %cst_115 = arith.constant dense<0.000000e+00> : vector<16xf32>
      %286 = vector.multi_reduction <add>, %285, %cst_115 [1] : vector<16x32xf32> to vector<16xf32>
      %287 = vector.shape_cast %286 : vector<16xf32> to vector<16x1xf32>
      %cst_116 = arith.constant 3.200000e+01 : f32
      %288 = vector.broadcast %cst_116 : f32 to vector<16x1xf32>
      %289 = arith.divf %287, %288 : vector<16x1xf32>
      %cst_117 = arith.constant 9.99999974E-6 : f32
      %290 = vector.broadcast %cst_117 : f32 to vector<16x1xf32>
      %291 = arith.addf %289, %290 : vector<16x1xf32>
      %292 = math.rsqrt %291 : vector<16x1xf32>
      %293 = vector.broadcast %292 : vector<16x1xf32> to vector<16x32xf32>
      %294 = arith.mulf %284, %293 : vector<16x32xf32>
      %295 = vector.broadcast %276 : vector<1x32xf32> to vector<16x32xf32>
      %296 = arith.mulf %294, %295 : vector<16x32xf32>
      %297 = vector.broadcast %278 : vector<1x32xf32> to vector<16x32xf32>
      %298 = arith.addf %296, %297 : vector<16x32xf32>
      %c7_i32 = arith.constant 7 : i32
      %299 = arith.cmpi slt, %arg0, %c7_i32 : i32
      %300 = arith.extui %299 : i1 to i32
      %c0_i32_118 = arith.constant 0 : i32
      %301 = arith.cmpi ne, %300, %c0_i32_118 : i32
      scf.if %301 {
        %c0_121 = arith.constant 0 : index
        %c0_122 = arith.constant 0 : index
        %305 = vector.load %arg39[%c0_121, %c0_122] : memref<16x32xf32, #tpu.memory_space<vmem>>, vector<16x32xf32>
        tpu.vector_store %arg39[%c0_121, %c0_122], %298 {strides = array<i32>} : memref<16x32xf32, #tpu.memory_space<vmem>>, vector<16x32xf32>,
      } else {
      }
      %c7_i32_119 = arith.constant 7 : i32
      %302 = arith.cmpi eq, %arg0, %c7_i32_119 : i32
      %303 = arith.extui %302 : i1 to i32
      %c0_i32_120 = arith.constant 0 : i32
      %304 = arith.cmpi ne, %303, %c0_i32_120 : i32
      scf.if %304 {
        %c0_121 = arith.constant 0 : index
        %c0_122 = arith.constant 0 : index
        %305 = vector.load %arg34[%c0_121, %c0_122] : memref<1x32xf32, #tpu.memory_space<vmem>>, vector<1x32xf32>
        %c0_123 = arith.constant 0 : index
        %c0_124 = arith.constant 0 : index
        %306 = vector.load %arg35[%c0_123, %c0_124] : memref<1x32xf32, #tpu.memory_space<vmem>>, vector<1x32xf32>
        %cst_125 = arith.constant dense<0.000000e+00> : vector<16xf32>
        %307 = vector.multi_reduction <add>, %298, %cst_125 [1] : vector<16x32xf32> to vector<16xf32>
        %308 = vector.shape_cast %307 : vector<16xf32> to vector<16x1xf32>
        %cst_126 = arith.constant 3.200000e+01 : f32
        %309 = vector.broadcast %cst_126 : f32 to vector<16x1xf32>
        %310 = arith.divf %308, %309 : vector<16x1xf32>
        %311 = vector.broadcast %310 : vector<16x1xf32> to vector<16x32xf32>
        %312 = arith.subf %298, %311 : vector<16x32xf32>
        %313 = arith.mulf %312, %312 : vector<16x32xf32>
        %cst_127 = arith.constant dense<0.000000e+00> : vector<16xf32>
        %314 = vector.multi_reduction <add>, %313, %cst_127 [1] : vector<16x32xf32> to vector<16xf32>
        %315 = vector.shape_cast %314 : vector<16xf32> to vector<16x1xf32>
        %cst_128 = arith.constant 3.200000e+01 : f32
        %316 = vector.broadcast %cst_128 : f32 to vector<16x1xf32>
        %317 = arith.divf %315, %316 : vector<16x1xf32>
        %cst_129 = arith.constant 9.99999974E-6 : f32
        %318 = vector.broadcast %cst_129 : f32 to vector<16x1xf32>
        %319 = arith.addf %317, %318 : vector<16x1xf32>
        %320 = math.rsqrt %319 : vector<16x1xf32>
        %321 = vector.broadcast %320 : vector<16x1xf32> to vector<16x32xf32>
        %322 = arith.mulf %312, %321 : vector<16x32xf32>
        %323 = vector.broadcast %305 : vector<1x32xf32> to vector<16x32xf32>
        %324 = arith.mulf %322, %323 : vector<16x32xf32>
        %325 = vector.broadcast %306 : vector<1x32xf32> to vector<16x32xf32>
        %326 = arith.addf %324, %325 : vector<16x32xf32>
        %c0_130 = arith.constant 0 : index
        %c0_131 = arith.constant 0 : index
        %327 = vector.load %arg36[%c0_130, %c0_131] : memref<32x128xbf16, #tpu.memory_space<vmem>>, vector<32x128xbf16>
        %c0_132 = arith.constant 0 : index
        %c0_133 = arith.constant 0 : index
        %328 = vector.load %arg37[%c0_132, %c0_133] : memref<1x128xf32, #tpu.memory_space<vmem>>, vector<1x128xf32>
        %329 = arith.truncf %326 : vector<16x32xf32> to vector<16x32xbf16>
        %cst_134 = arith.constant dense<0.000000e+00> : vector<16x128xf32>
        %330 = tpu.matmul %329, %327, %cst_134 {dimension_numbers = #tpu.dot_dimension_numbers<[1], [0], [0], [1], [0, 0, 1, 1], [], []>} : vector<16x32xbf16>, vector<32x128xbf16>, vector<16x128xf32> -> vector<16x128xf32>
        %331 = vector.broadcast %328 : vector<1x128xf32> to vector<16x128xf32>
        %332 = arith.addf %330, %331 : vector<16x128xf32>
        %c0_135 = arith.constant 0 : index
        %c0_136 = arith.constant 0 : index
        %333 = vector.load %arg38[%c0_135, %c0_136] : memref<16x128xf32, #tpu.memory_space<vmem>>, vector<16x128xf32>
        tpu.vector_store %arg38[%c0_135, %c0_136], %332 {strides = array<i32>} : memref<16x128xf32, #tpu.memory_space<vmem>>, vector<16x128xf32>,
      } else {
      }
    } else {
    }
    return
  }
  func.func @transform_0(%arg0: i32) -> (i32, i32) {
    %c0_i32 = arith.constant 0 : i32
    %c0_i32_0 = arith.constant 0 : i32
    %c0_i32_1 = arith.constant 0 : i32
    return %c0_i32, %c0_i32_0 : i32, i32
  }
  func.func @transform_1(%arg0: i32) -> (i32, i32, i32) {
    %c1_i32 = arith.constant 1 : i32
    %0 = arith.minsi %arg0, %c1_i32 : i32
    %c0_i32 = arith.constant 0 : i32
    %c0_i32_0 = arith.constant 0 : i32
    %c0_i32_1 = arith.constant 0 : i32
    return %0, %c0_i32, %c0_i32_0 : i32, i32, i32
  }
  func.func @transform_2(%arg0: i32) -> (i32, i32, i32) {
    %c1_i32 = arith.constant 1 : i32
    %0 = arith.minsi %arg0, %c1_i32 : i32
    %c0_i32 = arith.constant 0 : i32
    %c0_i32_0 = arith.constant 0 : i32
    %c0_i32_1 = arith.constant 0 : i32
    return %0, %c0_i32, %c0_i32_0 : i32, i32, i32
  }
  func.func @transform_3(%arg0: i32) -> (i32, i32, i32) {
    %c1_i32 = arith.constant 1 : i32
    %0 = arith.minsi %arg0, %c1_i32 : i32
    %c0_i32 = arith.constant 0 : i32
    %c0_i32_0 = arith.constant 0 : i32
    %c0_i32_1 = arith.constant 0 : i32
    return %0, %c0_i32, %c0_i32_0 : i32, i32, i32
  }
  func.func @transform_4(%arg0: i32) -> (i32, i32, i32) {
    %c1_i32 = arith.constant 1 : i32
    %0 = arith.minsi %arg0, %c1_i32 : i32
    %c0_i32 = arith.constant 0 : i32
    %c0_i32_0 = arith.constant 0 : i32
    %c0_i32_1 = arith.constant 0 : i32
    return %0, %c0_i32, %c0_i32_0 : i32, i32, i32
  }
  func.func @transform_5(%arg0: i32) -> (i32, i32, i32) {
    %c1_i32 = arith.constant 1 : i32
    %0 = arith.minsi %arg0, %c1_i32 : i32
    %c0_i32 = arith.constant 0 : i32
    %c0_i32_0 = arith.constant 0 : i32
    %c0_i32_1 = arith.constant 0 : i32
    return %0, %c0_i32, %c0_i32_0 : i32, i32, i32
  }
  func.func @transform_6(%arg0: i32) -> (i32, i32, i32) {
    %c1_i32 = arith.constant 1 : i32
    %0 = arith.minsi %arg0, %c1_i32 : i32
    %c0_i32 = arith.constant 0 : i32
    %c0_i32_0 = arith.constant 0 : i32
    %c0_i32_1 = arith.constant 0 : i32
    return %0, %c0_i32, %c0_i32_0 : i32, i32, i32
  }
  func.func @transform_7(%arg0: i32) -> (i32, i32, i32) {
    %c1_i32 = arith.constant 1 : i32
    %0 = arith.minsi %arg0, %c1_i32 : i32
    %c0_i32 = arith.constant 0 : i32
    %c0_i32_0 = arith.constant 0 : i32
    %c0_i32_1 = arith.constant 0 : i32
    return %0, %c0_i32, %c0_i32_0 : i32, i32, i32
  }
  func.func @transform_8(%arg0: i32) -> (i32, i32, i32) {
    %c1_i32 = arith.constant 1 : i32
    %0 = arith.minsi %arg0, %c1_i32 : i32
    %c0_i32 = arith.constant 0 : i32
    %c0_i32_0 = arith.constant 0 : i32
    %c0_i32_1 = arith.constant 0 : i32
    return %0, %c0_i32, %c0_i32_0 : i32, i32, i32
  }
  func.func @transform_9(%arg0: i32) -> (i32, i32, i32) {
    %c1_i32 = arith.constant 1 : i32
    %0 = arith.minsi %arg0, %c1_i32 : i32
    %c0_i32 = arith.constant 0 : i32
    %c0_i32_0 = arith.constant 0 : i32
    %c0_i32_1 = arith.constant 0 : i32
    return %0, %c0_i32, %c0_i32_0 : i32, i32, i32
  }
  func.func @transform_10(%arg0: i32) -> (i32, i32, i32) {
    %c1_i32 = arith.constant 1 : i32
    %0 = arith.minsi %arg0, %c1_i32 : i32
    %c0_i32 = arith.constant 0 : i32
    %c0_i32_0 = arith.constant 0 : i32
    %c0_i32_1 = arith.constant 0 : i32
    return %0, %c0_i32, %c0_i32_0 : i32, i32, i32
  }
  func.func @transform_11(%arg0: i32) -> (i32, i32, i32) {
    %c1_i32 = arith.constant 1 : i32
    %0 = arith.minsi %arg0, %c1_i32 : i32
    %c0_i32 = arith.constant 0 : i32
    %c0_i32_0 = arith.constant 0 : i32
    %c0_i32_1 = arith.constant 0 : i32
    return %0, %c0_i32, %c0_i32_0 : i32, i32, i32
  }
  func.func @transform_12(%arg0: i32) -> (i32, i32, i32) {
    %c1_i32 = arith.constant 1 : i32
    %0 = arith.minsi %arg0, %c1_i32 : i32
    %c0_i32 = arith.constant 0 : i32
    %c0_i32_0 = arith.constant 0 : i32
    %c0_i32_1 = arith.constant 0 : i32
    return %0, %c0_i32, %c0_i32_0 : i32, i32, i32
  }
  func.func @transform_13(%arg0: i32) -> (i32, i32) {
    %c0_i32 = arith.constant 0 : i32
    %c0_i32_0 = arith.constant 0 : i32
    %c0_i32_1 = arith.constant 0 : i32
    return %c0_i32, %c0_i32_0 : i32, i32
  }
  func.func @transform_14(%arg0: i32) -> (i32, i32) {
    %c0_i32 = arith.constant 0 : i32
    %c0_i32_0 = arith.constant 0 : i32
    %c0_i32_1 = arith.constant 0 : i32
    return %c0_i32, %c0_i32_0 : i32, i32
  }
  func.func @transform_15(%arg0: i32) -> (i32, i32, i32) {
    %c2_i32 = arith.constant 2 : i32
    %0 = arith.subi %arg0, %c2_i32 : i32
    %c0_i32 = arith.constant 0 : i32
    %1 = arith.maxsi %0, %c0_i32 : i32
    %c0_i32_0 = arith.constant 0 : i32
    %c0_i32_1 = arith.constant 0 : i32
    %c0_i32_2 = arith.constant 0 : i32
    return %1, %c0_i32_0, %c0_i32_1 : i32, i32, i32
  }
  func.func @transform_16(%arg0: i32) -> (i32, i32, i32) {
    %c2_i32 = arith.constant 2 : i32
    %0 = arith.subi %arg0, %c2_i32 : i32
    %c0_i32 = arith.constant 0 : i32
    %1 = arith.maxsi %0, %c0_i32 : i32
    %c0_i32_0 = arith.constant 0 : i32
    %c0_i32_1 = arith.constant 0 : i32
    %c0_i32_2 = arith.constant 0 : i32
    return %1, %c0_i32_0, %c0_i32_1 : i32, i32, i32
  }
  func.func @transform_17(%arg0: i32) -> (i32, i32, i32) {
    %c2_i32 = arith.constant 2 : i32
    %0 = arith.subi %arg0, %c2_i32 : i32
    %c0_i32 = arith.constant 0 : i32
    %1 = arith.maxsi %0, %c0_i32 : i32
    %c0_i32_0 = arith.constant 0 : i32
    %c0_i32_1 = arith.constant 0 : i32
    %c0_i32_2 = arith.constant 0 : i32
    return %1, %c0_i32_0, %c0_i32_1 : i32, i32, i32
  }
  func.func @transform_18(%arg0: i32) -> (i32, i32, i32) {
    %c2_i32 = arith.constant 2 : i32
    %0 = arith.subi %arg0, %c2_i32 : i32
    %c0_i32 = arith.constant 0 : i32
    %1 = arith.maxsi %0, %c0_i32 : i32
    %c0_i32_0 = arith.constant 0 : i32
    %c0_i32_1 = arith.constant 0 : i32
    %c0_i32_2 = arith.constant 0 : i32
    return %1, %c0_i32_0, %c0_i32_1 : i32, i32, i32
  }
  func.func @transform_19(%arg0: i32) -> (i32, i32, i32) {
    %c2_i32 = arith.constant 2 : i32
    %0 = arith.subi %arg0, %c2_i32 : i32
    %c0_i32 = arith.constant 0 : i32
    %1 = arith.maxsi %0, %c0_i32 : i32
    %c0_i32_0 = arith.constant 0 : i32
    %c0_i32_1 = arith.constant 0 : i32
    %c0_i32_2 = arith.constant 0 : i32
    return %1, %c0_i32_0, %c0_i32_1 : i32, i32, i32
  }
  func.func @transform_20(%arg0: i32) -> (i32, i32, i32) {
    %c2_i32 = arith.constant 2 : i32
    %0 = arith.subi %arg0, %c2_i32 : i32
    %c0_i32 = arith.constant 0 : i32
    %1 = arith.maxsi %0, %c0_i32 : i32
    %c0_i32_0 = arith.constant 0 : i32
    %c0_i32_1 = arith.constant 0 : i32
    %c0_i32_2 = arith.constant 0 : i32
    return %1, %c0_i32_0, %c0_i32_1 : i32, i32, i32
  }
  func.func @transform_21(%arg0: i32) -> (i32, i32, i32) {
    %c2_i32 = arith.constant 2 : i32
    %0 = arith.subi %arg0, %c2_i32 : i32
    %c0_i32 = arith.constant 0 : i32
    %1 = arith.maxsi %0, %c0_i32 : i32
    %c0_i32_0 = arith.constant 0 : i32
    %c0_i32_1 = arith.constant 0 : i32
    %c0_i32_2 = arith.constant 0 : i32
    return %1, %c0_i32_0, %c0_i32_1 : i32, i32, i32
  }
  func.func @transform_22(%arg0: i32) -> (i32, i32, i32) {
    %c2_i32 = arith.constant 2 : i32
    %0 = arith.subi %arg0, %c2_i32 : i32
    %c0_i32 = arith.constant 0 : i32
    %1 = arith.maxsi %0, %c0_i32 : i32
    %c0_i32_0 = arith.constant 0 : i32
    %c0_i32_1 = arith.constant 0 : i32
    %c0_i32_2 = arith.constant 0 : i32
    return %1, %c0_i32_0, %c0_i32_1 : i32, i32, i32
  }
  func.func @transform_23(%arg0: i32) -> (i32, i32, i32) {
    %c2_i32 = arith.constant 2 : i32
    %0 = arith.subi %arg0, %c2_i32 : i32
    %c0_i32 = arith.constant 0 : i32
    %1 = arith.maxsi %0, %c0_i32 : i32
    %c0_i32_0 = arith.constant 0 : i32
    %c0_i32_1 = arith.constant 0 : i32
    %c0_i32_2 = arith.constant 0 : i32
    return %1, %c0_i32_0, %c0_i32_1 : i32, i32, i32
  }
  func.func @transform_24(%arg0: i32) -> (i32, i32, i32) {
    %c2_i32 = arith.constant 2 : i32
    %0 = arith.subi %arg0, %c2_i32 : i32
    %c0_i32 = arith.constant 0 : i32
    %1 = arith.maxsi %0, %c0_i32 : i32
    %c0_i32_0 = arith.constant 0 : i32
    %c0_i32_1 = arith.constant 0 : i32
    %c0_i32_2 = arith.constant 0 : i32
    return %1, %c0_i32_0, %c0_i32_1 : i32, i32, i32
  }
  func.func @transform_25(%arg0: i32) -> (i32, i32, i32) {
    %c2_i32 = arith.constant 2 : i32
    %0 = arith.subi %arg0, %c2_i32 : i32
    %c0_i32 = arith.constant 0 : i32
    %1 = arith.maxsi %0, %c0_i32 : i32
    %c0_i32_0 = arith.constant 0 : i32
    %c0_i32_1 = arith.constant 0 : i32
    %c0_i32_2 = arith.constant 0 : i32
    return %1, %c0_i32_0, %c0_i32_1 : i32, i32, i32
  }
  func.func @transform_26(%arg0: i32) -> (i32, i32, i32) {
    %c2_i32 = arith.constant 2 : i32
    %0 = arith.subi %arg0, %c2_i32 : i32
    %c0_i32 = arith.constant 0 : i32
    %1 = arith.maxsi %0, %c0_i32 : i32
    %c0_i32_0 = arith.constant 0 : i32
    %c0_i32_1 = arith.constant 0 : i32
    %c0_i32_2 = arith.constant 0 : i32
    return %1, %c0_i32_0, %c0_i32_1 : i32, i32, i32
  }
  func.func @transform_27(%arg0: i32) -> (i32, i32, i32) {
    %c2_i32 = arith.constant 2 : i32
    %0 = arith.subi %arg0, %c2_i32 : i32
    %c0_i32 = arith.constant 0 : i32
    %1 = arith.maxsi %0, %c0_i32 : i32
    %c0_i32_0 = arith.constant 0 : i32
    %c0_i32_1 = arith.constant 0 : i32
    %c0_i32_2 = arith.constant 0 : i32
    return %1, %c0_i32_0, %c0_i32_1 : i32, i32, i32
  }
  func.func @transform_28(%arg0: i32) -> (i32, i32, i32) {
    %c2_i32 = arith.constant 2 : i32
    %0 = arith.subi %arg0, %c2_i32 : i32
    %c0_i32 = arith.constant 0 : i32
    %1 = arith.maxsi %0, %c0_i32 : i32
    %c0_i32_0 = arith.constant 0 : i32
    %c0_i32_1 = arith.constant 0 : i32
    %c0_i32_2 = arith.constant 0 : i32
    return %1, %c0_i32_0, %c0_i32_1 : i32, i32, i32
  }
  func.func @transform_29(%arg0: i32) -> (i32, i32, i32) {
    %c2_i32 = arith.constant 2 : i32
    %0 = arith.subi %arg0, %c2_i32 : i32
    %c0_i32 = arith.constant 0 : i32
    %1 = arith.maxsi %0, %c0_i32 : i32
    %c0_i32_0 = arith.constant 0 : i32
    %c0_i32_1 = arith.constant 0 : i32
    %c0_i32_2 = arith.constant 0 : i32
    return %1, %c0_i32_0, %c0_i32_1 : i32, i32, i32
  }
  func.func @transform_30(%arg0: i32) -> (i32, i32, i32) {
    %c2_i32 = arith.constant 2 : i32
    %0 = arith.subi %arg0, %c2_i32 : i32
    %c0_i32 = arith.constant 0 : i32
    %1 = arith.maxsi %0, %c0_i32 : i32
    %c0_i32_0 = arith.constant 0 : i32
    %c0_i32_1 = arith.constant 0 : i32
    %c0_i32_2 = arith.constant 0 : i32
    return %1, %c0_i32_0, %c0_i32_1 : i32, i32, i32
  }
  func.func @transform_31(%arg0: i32) -> (i32, i32, i32) {
    %c2_i32 = arith.constant 2 : i32
    %0 = arith.subi %arg0, %c2_i32 : i32
    %c0_i32 = arith.constant 0 : i32
    %1 = arith.maxsi %0, %c0_i32 : i32
    %c0_i32_0 = arith.constant 0 : i32
    %c0_i32_1 = arith.constant 0 : i32
    %c0_i32_2 = arith.constant 0 : i32
    return %1, %c0_i32_0, %c0_i32_1 : i32, i32, i32
  }
  func.func @transform_32(%arg0: i32) -> (i32, i32, i32) {
    %c2_i32 = arith.constant 2 : i32
    %0 = arith.subi %arg0, %c2_i32 : i32
    %c0_i32 = arith.constant 0 : i32
    %1 = arith.maxsi %0, %c0_i32 : i32
    %c0_i32_0 = arith.constant 0 : i32
    %c0_i32_1 = arith.constant 0 : i32
    %c0_i32_2 = arith.constant 0 : i32
    return %1, %c0_i32_0, %c0_i32_1 : i32, i32, i32
  }
  func.func @transform_33(%arg0: i32) -> (i32, i32) {
    %c0_i32 = arith.constant 0 : i32
    %c0_i32_0 = arith.constant 0 : i32
    %c0_i32_1 = arith.constant 0 : i32
    return %c0_i32, %c0_i32_0 : i32, i32
  }
  func.func @transform_34(%arg0: i32) -> (i32, i32) {
    %c0_i32 = arith.constant 0 : i32
    %c0_i32_0 = arith.constant 0 : i32
    %c0_i32_1 = arith.constant 0 : i32
    return %c0_i32, %c0_i32_0 : i32, i32
  }
  func.func @transform_35(%arg0: i32) -> (i32, i32) {
    %c0_i32 = arith.constant 0 : i32
    %c0_i32_0 = arith.constant 0 : i32
    %c0_i32_1 = arith.constant 0 : i32
    return %c0_i32, %c0_i32_0 : i32, i32
  }
  func.func @transform_36(%arg0: i32) -> (i32, i32) {
    %c0_i32 = arith.constant 0 : i32
    %c0_i32_0 = arith.constant 0 : i32
    %c0_i32_1 = arith.constant 0 : i32
    return %c0_i32, %c0_i32_0 : i32, i32
  }
  func.func @transform_37(%arg0: i32) -> (i32, i32) {
    %c0_i32 = arith.constant 0 : i32
    %c0_i32_0 = arith.constant 0 : i32
    %c0_i32_1 = arith.constant 0 : i32
    return %c0_i32, %c0_i32_0 : i32, i32
  }
}

</mosaic_0001>

<llo_original>
// kernel: transformer_model_forward.1
$region0: #{transformer_model_forward.1}
  #allocation0 [shape = 'u32[]', space=smem, size = 0x4, offset = 0x4, fixed_abs, tag = 'smem constant byte address 0x4 - core index']
  #allocation1 [shape = 'u32[144,128]{1,0:T(1,128)}', space=vmem, size = 0x12000, scoped, tag = 'internal scratch']
  #allocation2 [shape = 'f32[16,32]{1,0:T(8,128)}', space=vmem, size = 0x2000, scoped, tag = 'scratch operand']
  #allocation3 [shape = 'f32[16,32]{1,0:T(8,128)}', space=vmem, size = 0x2000, scoped, tag = 'scratch operand']
  %s0 = inlined_call_operand.smem [shape: u32[38], index: -1, kind: input, shape index: {}]
  %s1 = sld [smem:[%s0]]
  %s2 = scalar_lea.smem %s0, 1
  %s3 = sld [smem:[%s2]]
  %s4 = scalar_lea.smem %s0, 2
  %s5 = sld [smem:[%s4]]
  %s6 = scalar_lea.smem %s0, 3
  %s7 = sld [smem:[%s6]]
  %s8 = scalar_lea.smem %s0, 4
  %s9 = sld [smem:[%s8]]
  %s10 = scalar_lea.smem %s0, 5
  %s11 = sld [smem:[%s10]]
  %s12 = scalar_lea.smem %s0, 6
  %s13 = sld [smem:[%s12]]
  %s14 = scalar_lea.smem %s0, 7
  %s15 = sld [smem:[%s14]]
  %s16 = scalar_lea.smem %s0, 8
  %s17 = sld [smem:[%s16]]
  %s18 = scalar_lea.smem %s0, 9
  %s19 = sld [smem:[%s18]]
  %s20 = scalar_lea.smem %s0, 10
  %s21 = sld [smem:[%s20]]
  %s22 = scalar_lea.smem %s0, 11
  %s23 = sld [smem:[%s22]]
  %s24 = scalar_lea.smem %s0, 12
  %s25 = sld [smem:[%s24]]
  %s26 = scalar_lea.smem %s0, 13
  %s27 = sld [smem:[%s26]]
  %s28 = scalar_lea.smem %s0, 14
  %s29 = sld [smem:[%s28]]
  %s30 = scalar_lea.smem %s0, 15
  %s31 = sld [smem:[%s30]]
  %s32 = scalar_lea.smem %s0, 16
  %s33 = sld [smem:[%s32]]
  %s34 = scalar_lea.smem %s0, 17
  %s35 = sld [smem:[%s34]]
  %s36 = scalar_lea.smem %s0, 18
  %s37 = sld [smem:[%s36]]
  %s38 = scalar_lea.smem %s0, 19
  %s39 = sld [smem:[%s38]]
  %s40 = scalar_lea.smem %s0, 20
  %s41 = sld [smem:[%s40]]
  %s42 = scalar_lea.smem %s0, 21
  %s43 = sld [smem:[%s42]]
  %s44 = scalar_lea.smem %s0, 22
  %s45 = sld [smem:[%s44]]
  %s46 = scalar_lea.smem %s0, 23
  %s47 = sld [smem:[%s46]]
  %s48 = scalar_lea.smem %s0, 24
  %s49 = sld [smem:[%s48]]
  %s50 = scalar_lea.smem %s0, 25
  %s51 = sld [smem:[%s50]]
  %s52 = scalar_lea.smem %s0, 26
  %s53 = sld [smem:[%s52]]
  %s54 = scalar_lea.smem %s0, 27
  %s55 = sld [smem:[%s54]]
  %s56 = scalar_lea.smem %s0, 28
  %s57 = sld [smem:[%s56]]
  %s58 = scalar_lea.smem %s0, 29
  %s59 = sld [smem:[%s58]]
  %s60 = scalar_lea.smem %s0, 30
  %s61 = sld [smem:[%s60]]
  %s62 = scalar_lea.smem %s0, 31
  %s63 = sld [smem:[%s62]]
  %s64 = scalar_lea.smem %s0, 32
  %s65 = sld [smem:[%s64]]
  %s66 = scalar_lea.smem %s0, 33
  %s67 = sld [smem:[%s66]]
  %s68 = scalar_lea.smem %s0, 34
  %s69 = sld [smem:[%s68]]
  %s70 = scalar_lea.smem %s0, 35
  %s71 = sld [smem:[%s70]]
  %s72 = scalar_lea.smem %s0, 36
  %s73 = sld [smem:[%s72]]
  %s74 = scalar_lea.smem %s0, 37
  %s75 = sld [smem:[%s74]]
  %s76 = sld [smem:[#allocation0]]
  $region209: #{transformer_model_forward.1} parent=0
    _
  %s78 = ssub.s32 1, %s76
  %s79 = scalar_select 0, %s78, %s76
  loop: start=0, step=1, limit=10
  $region2: #{transformer_model_forward.1} parent=0 // loop_pre_header
    _
  $region3: #{transformer_model_forward.1} parent=0 // loop_header
    %s81 = sphi 0, %s85
    %p82 = scmp.ge.s32.totalorder %s81, 10
    %s89 = sphi 0, %s89
    %s91 = sphi 0, %s89
    %s92 = sphi 0, %s91
    %s106 = sphi 0, %s92
    %s116 = sphi 0, %s118
    %s119 = sphi 0, %s116
    %s120 = sphi 0, %s119
    %s136 = sphi 0, %s120
    %s146 = sphi 0, %s148
    %s149 = sphi 0, %s146
    %s150 = sphi 0, %s149
    %s166 = sphi 0, %s150
    %s176 = sphi 0, %s178
    %s179 = sphi 0, %s176
    %s180 = sphi 0, %s179
    %s196 = sphi 0, %s180
    %s206 = sphi 0, %s208
    %s209 = sphi 0, %s206
    %s210 = sphi 0, %s209
    %s226 = sphi 0, %s210
    %s236 = sphi 0, %s238
    %s239 = sphi 0, %s236
    %s240 = sphi 0, %s239
    %s256 = sphi 0, %s240
    %s266 = sphi 0, %s268
    %s269 = sphi 0, %s266
    %s270 = sphi 0, %s269
    %s286 = sphi 0, %s270
    %s296 = sphi 0, %s298
    %s299 = sphi 0, %s296
    %s300 = sphi 0, %s299
    %s316 = sphi 0, %s300
    %s326 = sphi 0, %s328
    %s329 = sphi 0, %s326
    %s330 = sphi 0, %s329
    %s346 = sphi 0, %s330
    %s356 = sphi 0, %s358
    %s359 = sphi 0, %s356
    %s360 = sphi 0, %s359
    %s376 = sphi 0, %s360
    %s386 = sphi 0, %s388
    %s389 = sphi 0, %s386
    %s390 = sphi 0, %s389
    %s406 = sphi 0, %s390
    %s416 = sphi 0, %s418
    %s419 = sphi 0, %s416
    %s420 = sphi 0, %s419
    %s436 = sphi 0, %s420
    %s446 = sphi 0, %s448
    %s449 = sphi 0, %s446
    %s450 = sphi 0, %s449
    %s466 = sphi 0, %s450
    %s470 = sphi 0, %s470
    %s472 = sphi 0, %s470
    %s473 = sphi 0, %s472
    %s487 = sphi 0, %s473
    %s491 = sphi 0, %s491
    %s493 = sphi 0, %s491
    %s494 = sphi 0, %s493
    %s508 = sphi 0, %s494
    %s520 = sphi 0, %s522
    %s523 = sphi 0, %s520
    %s524 = sphi 0, %s523
    %s540 = sphi 0, %s524
    %s552 = sphi 0, %s554
    %s555 = sphi 0, %s552
    %s556 = sphi 0, %s555
    %s572 = sphi 0, %s556
    %s584 = sphi 0, %s586
    %s587 = sphi 0, %s584
    %s588 = sphi 0, %s587
    %s604 = sphi 0, %s588
    %s616 = sphi 0, %s618
    %s619 = sphi 0, %s616
    %s620 = sphi 0, %s619
    %s636 = sphi 0, %s620
    %s648 = sphi 0, %s650
    %s651 = sphi 0, %s648
    %s652 = sphi 0, %s651
    %s668 = sphi 0, %s652
    %s680 = sphi 0, %s682
    %s683 = sphi 0, %s680
    %s684 = sphi 0, %s683
    %s700 = sphi 0, %s684
    %s712 = sphi 0, %s714
    %s715 = sphi 0, %s712
    %s716 = sphi 0, %s715
    %s732 = sphi 0, %s716
    %s744 = sphi 0, %s746
    %s747 = sphi 0, %s744
    %s748 = sphi 0, %s747
    %s764 = sphi 0, %s748
    %s776 = sphi 0, %s778
    %s779 = sphi 0, %s776
    %s780 = sphi 0, %s779
    %s796 = sphi 0, %s780
    %s808 = sphi 0, %s810
    %s811 = sphi 0, %s808
    %s812 = sphi 0, %s811
    %s828 = sphi 0, %s812
    %s840 = sphi 0, %s842
    %s843 = sphi 0, %s840
    %s844 = sphi 0, %s843
    %s860 = sphi 0, %s844
    %s872 = sphi 0, %s874
    %s875 = sphi 0, %s872
    %s876 = sphi 0, %s875
    %s892 = sphi 0, %s876
    %s904 = sphi 0, %s906
    %s907 = sphi 0, %s904
    %s908 = sphi 0, %s907
    %s924 = sphi 0, %s908
    %s936 = sphi 0, %s938
    %s939 = sphi 0, %s936
    %s940 = sphi 0, %s939
    %s956 = sphi 0, %s940
    %s968 = sphi 0, %s970
    %s971 = sphi 0, %s968
    %s972 = sphi 0, %s971
    %s988 = sphi 0, %s972
    %s1000 = sphi 0, %s1002
    %s1003 = sphi 0, %s1000
    %s1004 = sphi 0, %s1003
    %s1020 = sphi 0, %s1004
    %s1032 = sphi 0, %s1034
    %s1035 = sphi 0, %s1032
    %s1036 = sphi 0, %s1035
    %s1052 = sphi 0, %s1036
    %s1064 = sphi 0, %s1066
    %s1067 = sphi 0, %s1064
    %s1068 = sphi 0, %s1067
    %s1084 = sphi 0, %s1068
    %s1088 = sphi 0, %s1088
    %s1090 = sphi 0, %s1088
    %s1091 = sphi 0, %s1090
    %s1105 = sphi 0, %s1091
    %s1109 = sphi 0, %s1109
    %s1111 = sphi 0, %s1109
    %s1112 = sphi 0, %s1111
    %s1126 = sphi 0, %s1112
    %s1130 = sphi 0, %s1130
    %s1132 = sphi 0, %s1130
    %s1133 = sphi 0, %s1132
    %s1147 = sphi 0, %s1133
    %s1151 = sphi 0, %s1151
    %s1153 = sphi 0, %s1151
    %s1154 = sphi 0, %s1153
    %s1168 = sphi 0, %s1154
    %s1172 = sphi 0, %s1172
    %s1174 = sphi 0, %s1172
    %s1175 = sphi 0, %s1174
    %s1189 = sphi 0, %s1175
  $region4: #{transformer_model_forward.1} parent=0 // loop_header_branch
    %84 = sbr.rel (%p82) target = $region8
  $region5: #{transformer_model_forward.1} parent=0 // loop_body
    %s86 = ssub.s32 %s81, 1
    %s87 = ssub.s32 %s81, 2
    %s88 = sadd.s32 %s81, 1
    %s90 = sadd.s32 %s89, 1
    %p93 = scmp.eq.s32.totalorder %s81, 7
    %p94 = scmp.ne.s32.totalorder %s89, %s91
    %p95 = scmp.eq.s32.totalorder %s81, 0
    %p96 = por %p94, %p95
    %p97 = scmp.ne.s32.totalorder %s89, %s91
    %p98 = scmp.eq.s32.totalorder %s86, 7
    %p99 = por %p97, %p98
    %p100 = scmp.ne.s32.totalorder %s91, %s92
    %p101 = scmp.eq.s32.totalorder %s86, 0
    %p102 = por %p100, %p101
    %p103 = scmp.ne.s32.totalorder %s91, %s92
    %p104 = scmp.eq.s32.totalorder %s87, 7
    %p105 = por %p103, %p104
    %p107 = scmp.ne.s32.totalorder %s92, %s106
    %p108 = scmp.eq.s32.totalorder %s87, 0
    %p109 = por %p107, %p108
    %p110 = scmp.lt.s32.totalorder %s81, 1
    %s111 = scalar_select %p110, %s81, 1
    %p112 = scmp.lt.s32.totalorder %s88, 1
    %s113 = scalar_select %p112, %s88, 1
    %s114 = ssub.s32 %s111, %s113
    %p115 = scmp.eq.s32.totalorder %s114, 0
    %s117 = sadd.s32 %s116, 1
    %s118 = scalar_select %p115, %s116, %s117
    %p121 = pneg %p115
    %p122 = scmp.eq.s32.totalorder %s81, 7
    %p123 = por %p121, %p122
    %p124 = scmp.ne.s32.totalorder %s116, %s119
    %p125 = scmp.eq.s32.totalorder %s81, 0
    %p126 = por %p124, %p125
    %p127 = scmp.ne.s32.totalorder %s116, %s119
    %p128 = scmp.eq.s32.totalorder %s86, 7
    %p129 = por %p127, %p128
    %p130 = scmp.ne.s32.totalorder %s119, %s120
    %p131 = scmp.eq.s32.totalorder %s86, 0
    %p132 = por %p130, %p131
    %p133 = scmp.ne.s32.totalorder %s119, %s120
    %p134 = scmp.eq.s32.totalorder %s87, 7
    %p135 = por %p133, %p134
    %p137 = scmp.ne.s32.totalorder %s120, %s136
    %p138 = scmp.eq.s32.totalorder %s87, 0
    %p139 = por %p137, %p138
    %p140 = scmp.lt.s32.totalorder %s81, 1
    %s141 = scalar_select %p140, %s81, 1
    %p142 = scmp.lt.s32.totalorder %s88, 1
    %s143 = scalar_select %p142, %s88, 1
    %s144 = ssub.s32 %s141, %s143
    %p145 = scmp.eq.s32.totalorder %s144, 0
    %s147 = sadd.s32 %s146, 1
    %s148 = scalar_select %p145, %s146, %s147
    %p151 = pneg %p145
    %p152 = scmp.eq.s32.totalorder %s81, 7
    %p153 = por %p151, %p152
    %p154 = scmp.ne.s32.totalorder %s146, %s149
    %p155 = scmp.eq.s32.totalorder %s81, 0
    %p156 = por %p154, %p155
    %p157 = scmp.ne.s32.totalorder %s146, %s149
    %p158 = scmp.eq.s32.totalorder %s86, 7
    %p159 = por %p157, %p158
    %p160 = scmp.ne.s32.totalorder %s149, %s150
    %p161 = scmp.eq.s32.totalorder %s86, 0
    %p162 = por %p160, %p161
    %p163 = scmp.ne.s32.totalorder %s149, %s150
    %p164 = scmp.eq.s32.totalorder %s87, 7
    %p165 = por %p163, %p164
    %p167 = scmp.ne.s32.totalorder %s150, %s166
    %p168 = scmp.eq.s32.totalorder %s87, 0
    %p169 = por %p167, %p168
    %p170 = scmp.lt.s32.totalorder %s81, 1
    %s171 = scalar_select %p170, %s81, 1
    %p172 = scmp.lt.s32.totalorder %s88, 1
    %s173 = scalar_select %p172, %s88, 1
    %s174 = ssub.s32 %s171, %s173
    %p175 = scmp.eq.s32.totalorder %s174, 0
    %s177 = sadd.s32 %s176, 1
    %s178 = scalar_select %p175, %s176, %s177
    %p181 = pneg %p175
    %p182 = scmp.eq.s32.totalorder %s81, 7
    %p183 = por %p181, %p182
    %p184 = scmp.ne.s32.totalorder %s176, %s179
    %p185 = scmp.eq.s32.totalorder %s81, 0
    %p186 = por %p184, %p185
    %p187 = scmp.ne.s32.totalorder %s176, %s179
    %p188 = scmp.eq.s32.totalorder %s86, 7
    %p189 = por %p187, %p188
    %p190 = scmp.ne.s32.totalorder %s179, %s180
    %p191 = scmp.eq.s32.totalorder %s86, 0
    %p192 = por %p190, %p191
    %p193 = scmp.ne.s32.totalorder %s179, %s180
    %p194 = scmp.eq.s32.totalorder %s87, 7
    %p195 = por %p193, %p194
    %p197 = scmp.ne.s32.totalorder %s180, %s196
    %p198 = scmp.eq.s32.totalorder %s87, 0
    %p199 = por %p197, %p198
    %p200 = scmp.lt.s32.totalorder %s81, 1
    %s201 = scalar_select %p200, %s81, 1
    %p202 = scmp.lt.s32.totalorder %s88, 1
    %s203 = scalar_select %p202, %s88, 1
    %s204 = ssub.s32 %s201, %s203
    %p205 = scmp.eq.s32.totalorder %s204, 0
    %s207 = sadd.s32 %s206, 1
    %s208 = scalar_select %p205, %s206, %s207
    %p211 = pneg %p205
    %p212 = scmp.eq.s32.totalorder %s81, 7
    %p213 = por %p211, %p212
    %p214 = scmp.ne.s32.totalorder %s206, %s209
    %p215 = scmp.eq.s32.totalorder %s81, 0
    %p216 = por %p214, %p215
    %p217 = scmp.ne.s32.totalorder %s206, %s209
    %p218 = scmp.eq.s32.totalorder %s86, 7
    %p219 = por %p217, %p218
    %p220 = scmp.ne.s32.totalorder %s209, %s210
    %p221 = scmp.eq.s32.totalorder %s86, 0
    %p222 = por %p220, %p221
    %p223 = scmp.ne.s32.totalorder %s209, %s210
    %p224 = scmp.eq.s32.totalorder %s87, 7
    %p225 = por %p223, %p224
    %p227 = scmp.ne.s32.totalorder %s210, %s226
    %p228 = scmp.eq.s32.totalorder %s87, 0
    %p229 = por %p227, %p228
    %p230 = scmp.lt.s32.totalorder %s81, 1
    %s231 = scalar_select %p230, %s81, 1
    %p232 = scmp.lt.s32.totalorder %s88, 1
    %s233 = scalar_select %p232, %s88, 1
    %s234 = ssub.s32 %s231, %s233
    %p235 = scmp.eq.s32.totalorder %s234, 0
    %s237 = sadd.s32 %s236, 1
    %s238 = scalar_select %p235, %s236, %s237
    %p241 = pneg %p235
    %p242 = scmp.eq.s32.totalorder %s81, 7
    %p243 = por %p241, %p242
    %p244 = scmp.ne.s32.totalorder %s236, %s239
    %p245 = scmp.eq.s32.totalorder %s81, 0
    %p246 = por %p244, %p245
    %p247 = scmp.ne.s32.totalorder %s236, %s239
    %p248 = scmp.eq.s32.totalorder %s86, 7
    %p249 = por %p247, %p248
    %p250 = scmp.ne.s32.totalorder %s239, %s240
    %p251 = scmp.eq.s32.totalorder %s86, 0
    %p252 = por %p250, %p251
    %p253 = scmp.ne.s32.totalorder %s239, %s240
    %p254 = scmp.eq.s32.totalorder %s87, 7
    %p255 = por %p253, %p254
    %p257 = scmp.ne.s32.totalorder %s240, %s256
    %p258 = scmp.eq.s32.totalorder %s87, 0
    %p259 = por %p257, %p258
    %p260 = scmp.lt.s32.totalorder %s81, 1
    %s261 = scalar_select %p260, %s81, 1
    %p262 = scmp.lt.s32.totalorder %s88, 1
    %s263 = scalar_select %p262, %s88, 1
    %s264 = ssub.s32 %s261, %s263
    %p265 = scmp.eq.s32.totalorder %s264, 0
    %s267 = sadd.s32 %s266, 1
    %s268 = scalar_select %p265, %s266, %s267
    %p271 = pneg %p265
    %p272 = scmp.eq.s32.totalorder %s81, 7
    %p273 = por %p271, %p272
    %p274 = scmp.ne.s32.totalorder %s266, %s269
    %p275 = scmp.eq.s32.totalorder %s81, 0
    %p276 = por %p274, %p275
    %p277 = scmp.ne.s32.totalorder %s266, %s269
    %p278 = scmp.eq.s32.totalorder %s86, 7
    %p279 = por %p277, %p278
    %p280 = scmp.ne.s32.totalorder %s269, %s270
    %p281 = scmp.eq.s32.totalorder %s86, 0
    %p282 = por %p280, %p281
    %p283 = scmp.ne.s32.totalorder %s269, %s270
    %p284 = scmp.eq.s32.totalorder %s87, 7
    %p285 = por %p283, %p284
    %p287 = scmp.ne.s32.totalorder %s270, %s286
    %p288 = scmp.eq.s32.totalorder %s87, 0
    %p289 = por %p287, %p288
    %p290 = scmp.lt.s32.totalorder %s81, 1
    %s291 = scalar_select %p290, %s81, 1
    %p292 = scmp.lt.s32.totalorder %s88, 1
    %s293 = scalar_select %p292, %s88, 1
    %s294 = ssub.s32 %s291, %s293
    %p295 = scmp.eq.s32.totalorder %s294, 0
    %s297 = sadd.s32 %s296, 1
    %s298 = scalar_select %p295, %s296, %s297
    %p301 = pneg %p295
    %p302 = scmp.eq.s32.totalorder %s81, 7
    %p303 = por %p301, %p302
    %p304 = scmp.ne.s32.totalorder %s296, %s299
    %p305 = scmp.eq.s32.totalorder %s81, 0
    %p306 = por %p304, %p305
    %p307 = scmp.ne.s32.totalorder %s296, %s299
    %p308 = scmp.eq.s32.totalorder %s86, 7
    %p309 = por %p307, %p308
    %p310 = scmp.ne.s32.totalorder %s299, %s300
    %p311 = scmp.eq.s32.totalorder %s86, 0
    %p312 = por %p310, %p311
    %p313 = scmp.ne.s32.totalorder %s299, %s300
    %p314 = scmp.eq.s32.totalorder %s87, 7
    %p315 = por %p313, %p314
    %p317 = scmp.ne.s32.totalorder %s300, %s316
    %p318 = scmp.eq.s32.totalorder %s87, 0
    %p319 = por %p317, %p318
    %p320 = scmp.lt.s32.totalorder %s81, 1
    %s321 = scalar_select %p320, %s81, 1
    %p322 = scmp.lt.s32.totalorder %s88, 1
    %s323 = scalar_select %p322, %s88, 1
    %s324 = ssub.s32 %s321, %s323
    %p325 = scmp.eq.s32.totalorder %s324, 0
    %s327 = sadd.s32 %s326, 1
    %s328 = scalar_select %p325, %s326, %s327
    %p331 = pneg %p325
    %p332 = scmp.eq.s32.totalorder %s81, 7
    %p333 = por %p331, %p332
    %p334 = scmp.ne.s32.totalorder %s326, %s329
    %p335 = scmp.eq.s32.totalorder %s81, 0
    %p336 = por %p334, %p335
    %p337 = scmp.ne.s32.totalorder %s326, %s329
    %p338 = scmp.eq.s32.totalorder %s86, 7
    %p339 = por %p337, %p338
    %p340 = scmp.ne.s32.totalorder %s329, %s330
    %p341 = scmp.eq.s32.totalorder %s86, 0
    %p342 = por %p340, %p341
    %p343 = scmp.ne.s32.totalorder %s329, %s330
    %p344 = scmp.eq.s32.totalorder %s87, 7
    %p345 = por %p343, %p344
    %p347 = scmp.ne.s32.totalorder %s330, %s346
    %p348 = scmp.eq.s32.totalorder %s87, 0
    %p349 = por %p347, %p348
    %p350 = scmp.lt.s32.totalorder %s81, 1
    %s351 = scalar_select %p350, %s81, 1
    %p352 = scmp.lt.s32.totalorder %s88, 1
    %s353 = scalar_select %p352, %s88, 1
    %s354 = ssub.s32 %s351, %s353
    %p355 = scmp.eq.s32.totalorder %s354, 0
    %s357 = sadd.s32 %s356, 1
    %s358 = scalar_select %p355, %s356, %s357
    %p361 = pneg %p355
    %p362 = scmp.eq.s32.totalorder %s81, 7
    %p363 = por %p361, %p362
    %p364 = scmp.ne.s32.totalorder %s356, %s359
    %p365 = scmp.eq.s32.totalorder %s81, 0
    %p366 = por %p364, %p365
    %p367 = scmp.ne.s32.totalorder %s356, %s359
    %p368 = scmp.eq.s32.totalorder %s86, 7
    %p369 = por %p367, %p368
    %p370 = scmp.ne.s32.totalorder %s359, %s360
    %p371 = scmp.eq.s32.totalorder %s86, 0
    %p372 = por %p370, %p371
    %p373 = scmp.ne.s32.totalorder %s359, %s360
    %p374 = scmp.eq.s32.totalorder %s87, 7
    %p375 = por %p373, %p374
    %p377 = scmp.ne.s32.totalorder %s360, %s376
    %p378 = scmp.eq.s32.totalorder %s87, 0
    %p379 = por %p377, %p378
    %p380 = scmp.lt.s32.totalorder %s81, 1
    %s381 = scalar_select %p380, %s81, 1
    %p382 = scmp.lt.s32.totalorder %s88, 1
    %s383 = scalar_select %p382, %s88, 1
    %s384 = ssub.s32 %s381, %s383
    %p385 = scmp.eq.s32.totalorder %s384, 0
    %s387 = sadd.s32 %s386, 1
    %s388 = scalar_select %p385, %s386, %s387
    %p391 = pneg %p385
    %p392 = scmp.eq.s32.totalorder %s81, 7
    %p393 = por %p391, %p392
    %p394 = scmp.ne.s32.totalorder %s386, %s389
    %p395 = scmp.eq.s32.totalorder %s81, 0
    %p396 = por %p394, %p395
    %p397 = scmp.ne.s32.totalorder %s386, %s389
    %p398 = scmp.eq.s32.totalorder %s86, 7
    %p399 = por %p397, %p398
    %p400 = scmp.ne.s32.totalorder %s389, %s390
    %p401 = scmp.eq.s32.totalorder %s86, 0
    %p402 = por %p400, %p401
    %p403 = scmp.ne.s32.totalorder %s389, %s390
    %p404 = scmp.eq.s32.totalorder %s87, 7
    %p405 = por %p403, %p404
    %p407 = scmp.ne.s32.totalorder %s390, %s406
    %p408 = scmp.eq.s32.totalorder %s87, 0
    %p409 = por %p407, %p408
    %p410 = scmp.lt.s32.totalorder %s81, 1
    %s411 = scalar_select %p410, %s81, 1
    %p412 = scmp.lt.s32.totalorder %s88, 1
    %s413 = scalar_select %p412, %s88, 1
    %s414 = ssub.s32 %s411, %s413
    %p415 = scmp.eq.s32.totalorder %s414, 0
    %s417 = sadd.s32 %s416, 1
    %s418 = scalar_select %p415, %s416, %s417
    %p421 = pneg %p415
    %p422 = scmp.eq.s32.totalorder %s81, 7
    %p423 = por %p421, %p422
    %p424 = scmp.ne.s32.totalorder %s416, %s419
    %p425 = scmp.eq.s32.totalorder %s81, 0
    %p426 = por %p424, %p425
    %p427 = scmp.ne.s32.totalorder %s416, %s419
    %p428 = scmp.eq.s32.totalorder %s86, 7
    %p429 = por %p427, %p428
    %p430 = scmp.ne.s32.totalorder %s419, %s420
    %p431 = scmp.eq.s32.totalorder %s86, 0
    %p432 = por %p430, %p431
    %p433 = scmp.ne.s32.totalorder %s419, %s420
    %p434 = scmp.eq.s32.totalorder %s87, 7
    %p435 = por %p433, %p434
    %p437 = scmp.ne.s32.totalorder %s420, %s436
    %p438 = scmp.eq.s32.totalorder %s87, 0
    %p439 = por %p437, %p438
    %p440 = scmp.lt.s32.totalorder %s81, 1
    %s441 = scalar_select %p440, %s81, 1
    %p442 = scmp.lt.s32.totalorder %s88, 1
    %s443 = scalar_select %p442, %s88, 1
    %s444 = ssub.s32 %s441, %s443
    %p445 = scmp.eq.s32.totalorder %s444, 0
    %s447 = sadd.s32 %s446, 1
    %s448 = scalar_select %p445, %s446, %s447
    %p451 = pneg %p445
    %p452 = scmp.eq.s32.totalorder %s81, 7
    %p453 = por %p451, %p452
    %p454 = scmp.ne.s32.totalorder %s446, %s449
    %p455 = scmp.eq.s32.totalorder %s81, 0
    %p456 = por %p454, %p455
    %p457 = scmp.ne.s32.totalorder %s446, %s449
    %p458 = scmp.eq.s32.totalorder %s86, 7
    %p459 = por %p457, %p458
    %p460 = scmp.ne.s32.totalorder %s449, %s450
    %p461 = scmp.eq.s32.totalorder %s86, 0
    %p462 = por %p460, %p461
    %p463 = scmp.ne.s32.totalorder %s449, %s450
    %p464 = scmp.eq.s32.totalorder %s87, 7
    %p465 = por %p463, %p464
    %p467 = scmp.ne.s32.totalorder %s450, %s466
    %p468 = scmp.eq.s32.totalorder %s87, 0
    %p469 = por %p467, %p468
    %s471 = sadd.s32 %s470, 1
    %p474 = scmp.eq.s32.totalorder %s81, 7
    %p475 = scmp.ne.s32.totalorder %s470, %s472
    %p476 = scmp.eq.s32.totalorder %s81, 0
    %p477 = por %p475, %p476
    %p478 = scmp.ne.s32.totalorder %s470, %s472
    %p479 = scmp.eq.s32.totalorder %s86, 7
    %p480 = por %p478, %p479
    %p481 = scmp.ne.s32.totalorder %s472, %s473
    %p482 = scmp.eq.s32.totalorder %s86, 0
    %p483 = por %p481, %p482
    %p484 = scmp.ne.s32.totalorder %s472, %s473
    %p485 = scmp.eq.s32.totalorder %s87, 7
    %p486 = por %p484, %p485
    %p488 = scmp.ne.s32.totalorder %s473, %s487
    %p489 = scmp.eq.s32.totalorder %s87, 0
    %p490 = por %p488, %p489
    %s492 = sadd.s32 %s491, 1
    %p495 = scmp.eq.s32.totalorder %s81, 7
    %p496 = scmp.ne.s32.totalorder %s491, %s493
    %p497 = scmp.eq.s32.totalorder %s81, 0
    %p498 = por %p496, %p497
    %p499 = scmp.ne.s32.totalorder %s491, %s493
    %p500 = scmp.eq.s32.totalorder %s86, 7
    %p501 = por %p499, %p500
    %p502 = scmp.ne.s32.totalorder %s493, %s494
    %p503 = scmp.eq.s32.totalorder %s86, 0
    %p504 = por %p502, %p503
    %p505 = scmp.ne.s32.totalorder %s493, %s494
    %p506 = scmp.eq.s32.totalorder %s87, 7
    %p507 = por %p505, %p506
    %p509 = scmp.ne.s32.totalorder %s494, %s508
    %p510 = scmp.eq.s32.totalorder %s87, 0
    %p511 = por %p509, %p510
    %s512 = ssub.s32 %s81, 2
    %p513 = scmp.gt.s32.totalorder %s512, 0
    %s514 = scalar_select %p513, %s512, 0
    %s515 = ssub.s32 %s88, 2
    %p516 = scmp.gt.s32.totalorder %s515, 0
    %s517 = scalar_select %p516, %s515, 0
    %s518 = ssub.s32 %s514, %s517
    %p519 = scmp.eq.s32.totalorder %s518, 0
    %s521 = sadd.s32 %s520, 1
    %s522 = scalar_select %p519, %s520, %s521
    %p525 = pneg %p519
    %p526 = scmp.eq.s32.totalorder %s81, 7
    %p527 = por %p525, %p526
    %p528 = scmp.ne.s32.totalorder %s520, %s523
    %p529 = scmp.eq.s32.totalorder %s81, 0
    %p530 = por %p528, %p529
    %p531 = scmp.ne.s32.totalorder %s520, %s523
    %p532 = scmp.eq.s32.totalorder %s86, 7
    %p533 = por %p531, %p532
    %p534 = scmp.ne.s32.totalorder %s523, %s524
    %p535 = scmp.eq.s32.totalorder %s86, 0
    %p536 = por %p534, %p535
    %p537 = scmp.ne.s32.totalorder %s523, %s524
    %p538 = scmp.eq.s32.totalorder %s87, 7
    %p539 = por %p537, %p538
    %p541 = scmp.ne.s32.totalorder %s524, %s540
    %p542 = scmp.eq.s32.totalorder %s87, 0
    %p543 = por %p541, %p542
    %s544 = ssub.s32 %s81, 2
    %p545 = scmp.gt.s32.totalorder %s544, 0
    %s546 = scalar_select %p545, %s544, 0
    %s547 = ssub.s32 %s88, 2
    %p548 = scmp.gt.s32.totalorder %s547, 0
    %s549 = scalar_select %p548, %s547, 0
    %s550 = ssub.s32 %s546, %s549
    %p551 = scmp.eq.s32.totalorder %s550, 0
    %s553 = sadd.s32 %s552, 1
    %s554 = scalar_select %p551, %s552, %s553
    %p557 = pneg %p551
    %p558 = scmp.eq.s32.totalorder %s81, 7
    %p559 = por %p557, %p558
    %p560 = scmp.ne.s32.totalorder %s552, %s555
    %p561 = scmp.eq.s32.totalorder %s81, 0
    %p562 = por %p560, %p561
    %p563 = scmp.ne.s32.totalorder %s552, %s555
    %p564 = scmp.eq.s32.totalorder %s86, 7
    %p565 = por %p563, %p564
    %p566 = scmp.ne.s32.totalorder %s555, %s556
    %p567 = scmp.eq.s32.totalorder %s86, 0
    %p568 = por %p566, %p567
    %p569 = scmp.ne.s32.totalorder %s555, %s556
    %p570 = scmp.eq.s32.totalorder %s87, 7
    %p571 = por %p569, %p570
    %p573 = scmp.ne.s32.totalorder %s556, %s572
    %p574 = scmp.eq.s32.totalorder %s87, 0
    %p575 = por %p573, %p574
    %s576 = ssub.s32 %s81, 2
    %p577 = scmp.gt.s32.totalorder %s576, 0
    %s578 = scalar_select %p577, %s576, 0
    %s579 = ssub.s32 %s88, 2
    %p580 = scmp.gt.s32.totalorder %s579, 0
    %s581 = scalar_select %p580, %s579, 0
    %s582 = ssub.s32 %s578, %s581
    %p583 = scmp.eq.s32.totalorder %s582, 0
    %s585 = sadd.s32 %s584, 1
    %s586 = scalar_select %p583, %s584, %s585
    %p589 = pneg %p583
    %p590 = scmp.eq.s32.totalorder %s81, 7
    %p591 = por %p589, %p590
    %p592 = scmp.ne.s32.totalorder %s584, %s587
    %p593 = scmp.eq.s32.totalorder %s81, 0
    %p594 = por %p592, %p593
    %p595 = scmp.ne.s32.totalorder %s584, %s587
    %p596 = scmp.eq.s32.totalorder %s86, 7
    %p597 = por %p595, %p596
    %p598 = scmp.ne.s32.totalorder %s587, %s588
    %p599 = scmp.eq.s32.totalorder %s86, 0
    %p600 = por %p598, %p599
    %p601 = scmp.ne.s32.totalorder %s587, %s588
    %p602 = scmp.eq.s32.totalorder %s87, 7
    %p603 = por %p601, %p602
    %p605 = scmp.ne.s32.totalorder %s588, %s604
    %p606 = scmp.eq.s32.totalorder %s87, 0
    %p607 = por %p605, %p606
    %s608 = ssub.s32 %s81, 2
    %p609 = scmp.gt.s32.totalorder %s608, 0
    %s610 = scalar_select %p609, %s608, 0
    %s611 = ssub.s32 %s88, 2
    %p612 = scmp.gt.s32.totalorder %s611, 0
    %s613 = scalar_select %p612, %s611, 0
    %s614 = ssub.s32 %s610, %s613
    %p615 = scmp.eq.s32.totalorder %s614, 0
    %s617 = sadd.s32 %s616, 1
    %s618 = scalar_select %p615, %s616, %s617
    %p621 = pneg %p615
    %p622 = scmp.eq.s32.totalorder %s81, 7
    %p623 = por %p621, %p622
    %p624 = scmp.ne.s32.totalorder %s616, %s619
    %p625 = scmp.eq.s32.totalorder %s81, 0
    %p626 = por %p624, %p625
    %p627 = scmp.ne.s32.totalorder %s616, %s619
    %p628 = scmp.eq.s32.totalorder %s86, 7
    %p629 = por %p627, %p628
    %p630 = scmp.ne.s32.totalorder %s619, %s620
    %p631 = scmp.eq.s32.totalorder %s86, 0
    %p632 = por %p630, %p631
    %p633 = scmp.ne.s32.totalorder %s619, %s620
    %p634 = scmp.eq.s32.totalorder %s87, 7
    %p635 = por %p633, %p634
    %p637 = scmp.ne.s32.totalorder %s620, %s636
    %p638 = scmp.eq.s32.totalorder %s87, 0
    %p639 = por %p637, %p638
    %s640 = ssub.s32 %s81, 2
    %p641 = scmp.gt.s32.totalorder %s640, 0
    %s642 = scalar_select %p641, %s640, 0
    %s643 = ssub.s32 %s88, 2
    %p644 = scmp.gt.s32.totalorder %s643, 0
    %s645 = scalar_select %p644, %s643, 0
    %s646 = ssub.s32 %s642, %s645
    %p647 = scmp.eq.s32.totalorder %s646, 0
    %s649 = sadd.s32 %s648, 1
    %s650 = scalar_select %p647, %s648, %s649
    %p653 = pneg %p647
    %p654 = scmp.eq.s32.totalorder %s81, 7
    %p655 = por %p653, %p654
    %p656 = scmp.ne.s32.totalorder %s648, %s651
    %p657 = scmp.eq.s32.totalorder %s81, 0
    %p658 = por %p656, %p657
    %p659 = scmp.ne.s32.totalorder %s648, %s651
    %p660 = scmp.eq.s32.totalorder %s86, 7
    %p661 = por %p659, %p660
    %p662 = scmp.ne.s32.totalorder %s651, %s652
    %p663 = scmp.eq.s32.totalorder %s86, 0
    %p664 = por %p662, %p663
    %p665 = scmp.ne.s32.totalorder %s651, %s652
    %p666 = scmp.eq.s32.totalorder %s87, 7
    %p667 = por %p665, %p666
    %p669 = scmp.ne.s32.totalorder %s652, %s668
    %p670 = scmp.eq.s32.totalorder %s87, 0
    %p671 = por %p669, %p670
    %s672 = ssub.s32 %s81, 2
    %p673 = scmp.gt.s32.totalorder %s672, 0
    %s674 = scalar_select %p673, %s672, 0
    %s675 = ssub.s32 %s88, 2
    %p676 = scmp.gt.s32.totalorder %s675, 0
    %s677 = scalar_select %p676, %s675, 0
    %s678 = ssub.s32 %s674, %s677
    %p679 = scmp.eq.s32.totalorder %s678, 0
    %s681 = sadd.s32 %s680, 1
    %s682 = scalar_select %p679, %s680, %s681
    %p685 = pneg %p679
    %p686 = scmp.eq.s32.totalorder %s81, 7
    %p687 = por %p685, %p686
    %p688 = scmp.ne.s32.totalorder %s680, %s683
    %p689 = scmp.eq.s32.totalorder %s81, 0
    %p690 = por %p688, %p689
    %p691 = scmp.ne.s32.totalorder %s680, %s683
    %p692 = scmp.eq.s32.totalorder %s86, 7
    %p693 = por %p691, %p692
    %p694 = scmp.ne.s32.totalorder %s683, %s684
    %p695 = scmp.eq.s32.totalorder %s86, 0
    %p696 = por %p694, %p695
    %p697 = scmp.ne.s32.totalorder %s683, %s684
    %p698 = scmp.eq.s32.totalorder %s87, 7
    %p699 = por %p697, %p698
    %p701 = scmp.ne.s32.totalorder %s684, %s700
    %p702 = scmp.eq.s32.totalorder %s87, 0
    %p703 = por %p701, %p702
    %s704 = ssub.s32 %s81, 2
    %p705 = scmp.gt.s32.totalorder %s704, 0
    %s706 = scalar_select %p705, %s704, 0
    %s707 = ssub.s32 %s88, 2
    %p708 = scmp.gt.s32.totalorder %s707, 0
    %s709 = scalar_select %p708, %s707, 0
    %s710 = ssub.s32 %s706, %s709
    %p711 = scmp.eq.s32.totalorder %s710, 0
    %s713 = sadd.s32 %s712, 1
    %s714 = scalar_select %p711, %s712, %s713
    %p717 = pneg %p711
    %p718 = scmp.eq.s32.totalorder %s81, 7
    %p719 = por %p717, %p718
    %p720 = scmp.ne.s32.totalorder %s712, %s715
    %p721 = scmp.eq.s32.totalorder %s81, 0
    %p722 = por %p720, %p721
    %p723 = scmp.ne.s32.totalorder %s712, %s715
    %p724 = scmp.eq.s32.totalorder %s86, 7
    %p725 = por %p723, %p724
    %p726 = scmp.ne.s32.totalorder %s715, %s716
    %p727 = scmp.eq.s32.totalorder %s86, 0
    %p728 = por %p726, %p727
    %p729 = scmp.ne.s32.totalorder %s715, %s716
    %p730 = scmp.eq.s32.totalorder %s87, 7
    %p731 = por %p729, %p730
    %p733 = scmp.ne.s32.totalorder %s716, %s732
    %p734 = scmp.eq.s32.totalorder %s87, 0
    %p735 = por %p733, %p734
    %s736 = ssub.s32 %s81, 2
    %p737 = scmp.gt.s32.totalorder %s736, 0
    %s738 = scalar_select %p737, %s736, 0
    %s739 = ssub.s32 %s88, 2
    %p740 = scmp.gt.s32.totalorder %s739, 0
    %s741 = scalar_select %p740, %s739, 0
    %s742 = ssub.s32 %s738, %s741
    %p743 = scmp.eq.s32.totalorder %s742, 0
    %s745 = sadd.s32 %s744, 1
    %s746 = scalar_select %p743, %s744, %s745
    %p749 = pneg %p743
    %p750 = scmp.eq.s32.totalorder %s81, 7
    %p751 = por %p749, %p750
    %p752 = scmp.ne.s32.totalorder %s744, %s747
    %p753 = scmp.eq.s32.totalorder %s81, 0
    %p754 = por %p752, %p753
    %p755 = scmp.ne.s32.totalorder %s744, %s747
    %p756 = scmp.eq.s32.totalorder %s86, 7
    %p757 = por %p755, %p756
    %p758 = scmp.ne.s32.totalorder %s747, %s748
    %p759 = scmp.eq.s32.totalorder %s86, 0
    %p760 = por %p758, %p759
    %p761 = scmp.ne.s32.totalorder %s747, %s748
    %p762 = scmp.eq.s32.totalorder %s87, 7
    %p763 = por %p761, %p762
    %p765 = scmp.ne.s32.totalorder %s748, %s764
    %p766 = scmp.eq.s32.totalorder %s87, 0
    %p767 = por %p765, %p766
    %s768 = ssub.s32 %s81, 2
    %p769 = scmp.gt.s32.totalorder %s768, 0
    %s770 = scalar_select %p769, %s768, 0
    %s771 = ssub.s32 %s88, 2
    %p772 = scmp.gt.s32.totalorder %s771, 0
    %s773 = scalar_select %p772, %s771, 0
    %s774 = ssub.s32 %s770, %s773
    %p775 = scmp.eq.s32.totalorder %s774, 0
    %s777 = sadd.s32 %s776, 1
    %s778 = scalar_select %p775, %s776, %s777
    %p781 = pneg %p775
    %p782 = scmp.eq.s32.totalorder %s81, 7
    %p783 = por %p781, %p782
    %p784 = scmp.ne.s32.totalorder %s776, %s779
    %p785 = scmp.eq.s32.totalorder %s81, 0
    %p786 = por %p784, %p785
    %p787 = scmp.ne.s32.totalorder %s776, %s779
    %p788 = scmp.eq.s32.totalorder %s86, 7
    %p789 = por %p787, %p788
    %p790 = scmp.ne.s32.totalorder %s779, %s780
    %p791 = scmp.eq.s32.totalorder %s86, 0
    %p792 = por %p790, %p791
    %p793 = scmp.ne.s32.totalorder %s779, %s780
    %p794 = scmp.eq.s32.totalorder %s87, 7
    %p795 = por %p793, %p794
    %p797 = scmp.ne.s32.totalorder %s780, %s796
    %p798 = scmp.eq.s32.totalorder %s87, 0
    %p799 = por %p797, %p798
    %s800 = ssub.s32 %s81, 2
    %p801 = scmp.gt.s32.totalorder %s800, 0
    %s802 = scalar_select %p801, %s800, 0
    %s803 = ssub.s32 %s88, 2
    %p804 = scmp.gt.s32.totalorder %s803, 0
    %s805 = scalar_select %p804, %s803, 0
    %s806 = ssub.s32 %s802, %s805
    %p807 = scmp.eq.s32.totalorder %s806, 0
    %s809 = sadd.s32 %s808, 1
    %s810 = scalar_select %p807, %s808, %s809
    %p813 = pneg %p807
    %p814 = scmp.eq.s32.totalorder %s81, 7
    %p815 = por %p813, %p814
    %p816 = scmp.ne.s32.totalorder %s808, %s811
    %p817 = scmp.eq.s32.totalorder %s81, 0
    %p818 = por %p816, %p817
    %p819 = scmp.ne.s32.totalorder %s808, %s811
    %p820 = scmp.eq.s32.totalorder %s86, 7
    %p821 = por %p819, %p820
    %p822 = scmp.ne.s32.totalorder %s811, %s812
    %p823 = scmp.eq.s32.totalorder %s86, 0
    %p824 = por %p822, %p823
    %p825 = scmp.ne.s32.totalorder %s811, %s812
    %p826 = scmp.eq.s32.totalorder %s87, 7
    %p827 = por %p825, %p826
    %p829 = scmp.ne.s32.totalorder %s812, %s828
    %p830 = scmp.eq.s32.totalorder %s87, 0
    %p831 = por %p829, %p830
    %s832 = ssub.s32 %s81, 2
    %p833 = scmp.gt.s32.totalorder %s832, 0
    %s834 = scalar_select %p833, %s832, 0
    %s835 = ssub.s32 %s88, 2
    %p836 = scmp.gt.s32.totalorder %s835, 0
    %s837 = scalar_select %p836, %s835, 0
    %s838 = ssub.s32 %s834, %s837
    %p839 = scmp.eq.s32.totalorder %s838, 0
    %s841 = sadd.s32 %s840, 1
    %s842 = scalar_select %p839, %s840, %s841
    %p845 = pneg %p839
    %p846 = scmp.eq.s32.totalorder %s81, 7
    %p847 = por %p845, %p846
    %p848 = scmp.ne.s32.totalorder %s840, %s843
    %p849 = scmp.eq.s32.totalorder %s81, 0
    %p850 = por %p848, %p849
    %p851 = scmp.ne.s32.totalorder %s840, %s843
    %p852 = scmp.eq.s32.totalorder %s86, 7
    %p853 = por %p851, %p852
    %p854 = scmp.ne.s32.totalorder %s843, %s844
    %p855 = scmp.eq.s32.totalorder %s86, 0
    %p856 = por %p854, %p855
    %p857 = scmp.ne.s32.totalorder %s843, %s844
    %p858 = scmp.eq.s32.totalorder %s87, 7
    %p859 = por %p857, %p858
    %p861 = scmp.ne.s32.totalorder %s844, %s860
    %p862 = scmp.eq.s32.totalorder %s87, 0
    %p863 = por %p861, %p862
    %s864 = ssub.s32 %s81, 2
    %p865 = scmp.gt.s32.totalorder %s864, 0
    %s866 = scalar_select %p865, %s864, 0
    %s867 = ssub.s32 %s88, 2
    %p868 = scmp.gt.s32.totalorder %s867, 0
    %s869 = scalar_select %p868, %s867, 0
    %s870 = ssub.s32 %s866, %s869
    %p871 = scmp.eq.s32.totalorder %s870, 0
    %s873 = sadd.s32 %s872, 1
    %s874 = scalar_select %p871, %s872, %s873
    %p877 = pneg %p871
    %p878 = scmp.eq.s32.totalorder %s81, 7
    %p879 = por %p877, %p878
    %p880 = scmp.ne.s32.totalorder %s872, %s875
    %p881 = scmp.eq.s32.totalorder %s81, 0
    %p882 = por %p880, %p881
    %p883 = scmp.ne.s32.totalorder %s872, %s875
    %p884 = scmp.eq.s32.totalorder %s86, 7
    %p885 = por %p883, %p884
    %p886 = scmp.ne.s32.totalorder %s875, %s876
    %p887 = scmp.eq.s32.totalorder %s86, 0
    %p888 = por %p886, %p887
    %p889 = scmp.ne.s32.totalorder %s875, %s876
    %p890 = scmp.eq.s32.totalorder %s87, 7
    %p891 = por %p889, %p890
    %p893 = scmp.ne.s32.totalorder %s876, %s892
    %p894 = scmp.eq.s32.totalorder %s87, 0
    %p895 = por %p893, %p894
    %s896 = ssub.s32 %s81, 2
    %p897 = scmp.gt.s32.totalorder %s896, 0
    %s898 = scalar_select %p897, %s896, 0
    %s899 = ssub.s32 %s88, 2
    %p900 = scmp.gt.s32.totalorder %s899, 0
    %s901 = scalar_select %p900, %s899, 0
    %s902 = ssub.s32 %s898, %s901
    %p903 = scmp.eq.s32.totalorder %s902, 0
    %s905 = sadd.s32 %s904, 1
    %s906 = scalar_select %p903, %s904, %s905
    %p909 = pneg %p903
    %p910 = scmp.eq.s32.totalorder %s81, 7
    %p911 = por %p909, %p910
    %p912 = scmp.ne.s32.totalorder %s904, %s907
    %p913 = scmp.eq.s32.totalorder %s81, 0
    %p914 = por %p912, %p913
    %p915 = scmp.ne.s32.totalorder %s904, %s907
    %p916 = scmp.eq.s32.totalorder %s86, 7
    %p917 = por %p915, %p916
    %p918 = scmp.ne.s32.totalorder %s907, %s908
    %p919 = scmp.eq.s32.totalorder %s86, 0
    %p920 = por %p918, %p919
    %p921 = scmp.ne.s32.totalorder %s907, %s908
    %p922 = scmp.eq.s32.totalorder %s87, 7
    %p923 = por %p921, %p922
    %p925 = scmp.ne.s32.totalorder %s908, %s924
    %p926 = scmp.eq.s32.totalorder %s87, 0
    %p927 = por %p925, %p926
    %s928 = ssub.s32 %s81, 2
    %p929 = scmp.gt.s32.totalorder %s928, 0
    %s930 = scalar_select %p929, %s928, 0
    %s931 = ssub.s32 %s88, 2
    %p932 = scmp.gt.s32.totalorder %s931, 0
    %s933 = scalar_select %p932, %s931, 0
    %s934 = ssub.s32 %s930, %s933
    %p935 = scmp.eq.s32.totalorder %s934, 0
    %s937 = sadd.s32 %s936, 1
    %s938 = scalar_select %p935, %s936, %s937
    %p941 = pneg %p935
    %p942 = scmp.eq.s32.totalorder %s81, 7
    %p943 = por %p941, %p942
    %p944 = scmp.ne.s32.totalorder %s936, %s939
    %p945 = scmp.eq.s32.totalorder %s81, 0
    %p946 = por %p944, %p945
    %p947 = scmp.ne.s32.totalorder %s936, %s939
    %p948 = scmp.eq.s32.totalorder %s86, 7
    %p949 = por %p947, %p948
    %p950 = scmp.ne.s32.totalorder %s939, %s940
    %p951 = scmp.eq.s32.totalorder %s86, 0
    %p952 = por %p950, %p951
    %p953 = scmp.ne.s32.totalorder %s939, %s940
    %p954 = scmp.eq.s32.totalorder %s87, 7
    %p955 = por %p953, %p954
    %p957 = scmp.ne.s32.totalorder %s940, %s956
    %p958 = scmp.eq.s32.totalorder %s87, 0
    %p959 = por %p957, %p958
    %s960 = ssub.s32 %s81, 2
    %p961 = scmp.gt.s32.totalorder %s960, 0
    %s962 = scalar_select %p961, %s960, 0
    %s963 = ssub.s32 %s88, 2
    %p964 = scmp.gt.s32.totalorder %s963, 0
    %s965 = scalar_select %p964, %s963, 0
    %s966 = ssub.s32 %s962, %s965
    %p967 = scmp.eq.s32.totalorder %s966, 0
    %s969 = sadd.s32 %s968, 1
    %s970 = scalar_select %p967, %s968, %s969
    %p973 = pneg %p967
    %p974 = scmp.eq.s32.totalorder %s81, 7
    %p975 = por %p973, %p974
    %p976 = scmp.ne.s32.totalorder %s968, %s971
    %p977 = scmp.eq.s32.totalorder %s81, 0
    %p978 = por %p976, %p977
    %p979 = scmp.ne.s32.totalorder %s968, %s971
    %p980 = scmp.eq.s32.totalorder %s86, 7
    %p981 = por %p979, %p980
    %p982 = scmp.ne.s32.totalorder %s971, %s972
    %p983 = scmp.eq.s32.totalorder %s86, 0
    %p984 = por %p982, %p983
    %p985 = scmp.ne.s32.totalorder %s971, %s972
    %p986 = scmp.eq.s32.totalorder %s87, 7
    %p987 = por %p985, %p986
    %p989 = scmp.ne.s32.totalorder %s972, %s988
    %p990 = scmp.eq.s32.totalorder %s87, 0
    %p991 = por %p989, %p990
    %s992 = ssub.s32 %s81, 2
    %p993 = scmp.gt.s32.totalorder %s992, 0
    %s994 = scalar_select %p993, %s992, 0
    %s995 = ssub.s32 %s88, 2
    %p996 = scmp.gt.s32.totalorder %s995, 0
    %s997 = scalar_select %p996, %s995, 0
    %s998 = ssub.s32 %s994, %s997
    %p999 = scmp.eq.s32.totalorder %s998, 0
    %s1001 = sadd.s32 %s1000, 1
    %s1002 = scalar_select %p999, %s1000, %s1001
    %p1005 = pneg %p999
    %p1006 = scmp.eq.s32.totalorder %s81, 7
    %p1007 = por %p1005, %p1006
    %p1008 = scmp.ne.s32.totalorder %s1000, %s1003
    %p1009 = scmp.eq.s32.totalorder %s81, 0
    %p1010 = por %p1008, %p1009
    %p1011 = scmp.ne.s32.totalorder %s1000, %s1003
    %p1012 = scmp.eq.s32.totalorder %s86, 7
    %p1013 = por %p1011, %p1012
    %p1014 = scmp.ne.s32.totalorder %s1003, %s1004
    %p1015 = scmp.eq.s32.totalorder %s86, 0
    %p1016 = por %p1014, %p1015
    %p1017 = scmp.ne.s32.totalorder %s1003, %s1004
    %p1018 = scmp.eq.s32.totalorder %s87, 7
    %p1019 = por %p1017, %p1018
    %p1021 = scmp.ne.s32.totalorder %s1004, %s1020
    %p1022 = scmp.eq.s32.totalorder %s87, 0
    %p1023 = por %p1021, %p1022
    %s1024 = ssub.s32 %s81, 2
    %p1025 = scmp.gt.s32.totalorder %s1024, 0
    %s1026 = scalar_select %p1025, %s1024, 0
    %s1027 = ssub.s32 %s88, 2
    %p1028 = scmp.gt.s32.totalorder %s1027, 0
    %s1029 = scalar_select %p1028, %s1027, 0
    %s1030 = ssub.s32 %s1026, %s1029
    %p1031 = scmp.eq.s32.totalorder %s1030, 0
    %s1033 = sadd.s32 %s1032, 1
    %s1034 = scalar_select %p1031, %s1032, %s1033
    %p1037 = pneg %p1031
    %p1038 = scmp.eq.s32.totalorder %s81, 7
    %p1039 = por %p1037, %p1038
    %p1040 = scmp.ne.s32.totalorder %s1032, %s1035
    %p1041 = scmp.eq.s32.totalorder %s81, 0
    %p1042 = por %p1040, %p1041
    %p1043 = scmp.ne.s32.totalorder %s1032, %s1035
    %p1044 = scmp.eq.s32.totalorder %s86, 7
    %p1045 = por %p1043, %p1044
    %p1046 = scmp.ne.s32.totalorder %s1035, %s1036
    %p1047 = scmp.eq.s32.totalorder %s86, 0
    %p1048 = por %p1046, %p1047
    %p1049 = scmp.ne.s32.totalorder %s1035, %s1036
    %p1050 = scmp.eq.s32.totalorder %s87, 7
    %p1051 = por %p1049, %p1050
    %p1053 = scmp.ne.s32.totalorder %s1036, %s1052
    %p1054 = scmp.eq.s32.totalorder %s87, 0
    %p1055 = por %p1053, %p1054
    %s1056 = ssub.s32 %s81, 2
    %p1057 = scmp.gt.s32.totalorder %s1056, 0
    %s1058 = scalar_select %p1057, %s1056, 0
    %s1059 = ssub.s32 %s88, 2
    %p1060 = scmp.gt.s32.totalorder %s1059, 0
    %s1061 = scalar_select %p1060, %s1059, 0
    %s1062 = ssub.s32 %s1058, %s1061
    %p1063 = scmp.eq.s32.totalorder %s1062, 0
    %s1065 = sadd.s32 %s1064, 1
    %s1066 = scalar_select %p1063, %s1064, %s1065
    %p1069 = pneg %p1063
    %p1070 = scmp.eq.s32.totalorder %s81, 7
    %p1071 = por %p1069, %p1070
    %p1072 = scmp.ne.s32.totalorder %s1064, %s1067
    %p1073 = scmp.eq.s32.totalorder %s81, 0
    %p1074 = por %p1072, %p1073
    %p1075 = scmp.ne.s32.totalorder %s1064, %s1067
    %p1076 = scmp.eq.s32.totalorder %s86, 7
    %p1077 = por %p1075, %p1076
    %p1078 = scmp.ne.s32.totalorder %s1067, %s1068
    %p1079 = scmp.eq.s32.totalorder %s86, 0
    %p1080 = por %p1078, %p1079
    %p1081 = scmp.ne.s32.totalorder %s1067, %s1068
    %p1082 = scmp.eq.s32.totalorder %s87, 7
    %p1083 = por %p1081, %p1082
    %p1085 = scmp.ne.s32.totalorder %s1068, %s1084
    %p1086 = scmp.eq.s32.totalorder %s87, 0
    %p1087 = por %p1085, %p1086
    %s1089 = sadd.s32 %s1088, 1
    %p1092 = scmp.eq.s32.totalorder %s81, 7
    %p1093 = scmp.ne.s32.totalorder %s1088, %s1090
    %p1094 = scmp.eq.s32.totalorder %s81, 0
    %p1095 = por %p1093, %p1094
    %p1096 = scmp.ne.s32.totalorder %s1088, %s1090
    %p1097 = scmp.eq.s32.totalorder %s86, 7
    %p1098 = por %p1096, %p1097
    %p1099 = scmp.ne.s32.totalorder %s1090, %s1091
    %p1100 = scmp.eq.s32.totalorder %s86, 0
    %p1101 = por %p1099, %p1100
    %p1102 = scmp.ne.s32.totalorder %s1090, %s1091
    %p1103 = scmp.eq.s32.totalorder %s87, 7
    %p1104 = por %p1102, %p1103
    %p1106 = scmp.ne.s32.totalorder %s1091, %s1105
    %p1107 = scmp.eq.s32.totalorder %s87, 0
    %p1108 = por %p1106, %p1107
    %s1110 = sadd.s32 %s1109, 1
    %p1113 = scmp.eq.s32.totalorder %s81, 7
    %p1114 = scmp.ne.s32.totalorder %s1109, %s1111
    %p1115 = scmp.eq.s32.totalorder %s81, 0
    %p1116 = por %p1114, %p1115
    %p1117 = scmp.ne.s32.totalorder %s1109, %s1111
    %p1118 = scmp.eq.s32.totalorder %s86, 7
    %p1119 = por %p1117, %p1118
    %p1120 = scmp.ne.s32.totalorder %s1111, %s1112
    %p1121 = scmp.eq.s32.totalorder %s86, 0
    %p1122 = por %p1120, %p1121
    %p1123 = scmp.ne.s32.totalorder %s1111, %s1112
    %p1124 = scmp.eq.s32.totalorder %s87, 7
    %p1125 = por %p1123, %p1124
    %p1127 = scmp.ne.s32.totalorder %s1112, %s1126
    %p1128 = scmp.eq.s32.totalorder %s87, 0
    %p1129 = por %p1127, %p1128
    %s1131 = sadd.s32 %s1130, 1
    %p1134 = scmp.eq.s32.totalorder %s81, 7
    %p1135 = scmp.ne.s32.totalorder %s1130, %s1132
    %p1136 = scmp.eq.s32.totalorder %s81, 0
    %p1137 = por %p1135, %p1136
    %p1138 = scmp.ne.s32.totalorder %s1130, %s1132
    %p1139 = scmp.eq.s32.totalorder %s86, 7
    %p1140 = por %p1138, %p1139
    %p1141 = scmp.ne.s32.totalorder %s1132, %s1133
    %p1142 = scmp.eq.s32.totalorder %s86, 0
    %p1143 = por %p1141, %p1142
    %p1144 = scmp.ne.s32.totalorder %s1132, %s1133
    %p1145 = scmp.eq.s32.totalorder %s87, 7
    %p1146 = por %p1144, %p1145
    %p1148 = scmp.ne.s32.totalorder %s1133, %s1147
    %p1149 = scmp.eq.s32.totalorder %s87, 0
    %p1150 = por %p1148, %p1149
    %s1152 = sadd.s32 %s1151, 1
    %p1155 = scmp.eq.s32.totalorder %s81, 7
    %p1156 = scmp.ne.s32.totalorder %s1151, %s1153
    %p1157 = scmp.eq.s32.totalorder %s81, 0
    %p1158 = por %p1156, %p1157
    %p1159 = scmp.ne.s32.totalorder %s1151, %s1153
    %p1160 = scmp.eq.s32.totalorder %s86, 7
    %p1161 = por %p1159, %p1160
    %p1162 = scmp.ne.s32.totalorder %s1153, %s1154
    %p1163 = scmp.eq.s32.totalorder %s86, 0
    %p1164 = por %p1162, %p1163
    %p1165 = scmp.ne.s32.totalorder %s1153, %s1154
    %p1166 = scmp.eq.s32.totalorder %s87, 7
    %p1167 = por %p1165, %p1166
    %p1169 = scmp.ne.s32.totalorder %s1154, %s1168
    %p1170 = scmp.eq.s32.totalorder %s87, 0
    %p1171 = por %p1169, %p1170
    %s1173 = sadd.s32 %s1172, 1
    %p1176 = scmp.eq.s32.totalorder %s81, 7
    %p1177 = scmp.ne.s32.totalorder %s1172, %s1174
    %p1178 = scmp.eq.s32.totalorder %s81, 0
    %p1179 = por %p1177, %p1178
    %p1180 = scmp.ne.s32.totalorder %s1172, %s1174
    %p1181 = scmp.eq.s32.totalorder %s86, 7
    %p1182 = por %p1180, %p1181
    %p1183 = scmp.ne.s32.totalorder %s1174, %s1175
    %p1184 = scmp.eq.s32.totalorder %s86, 0
    %p1185 = por %p1183, %p1184
    %p1186 = scmp.ne.s32.totalorder %s1174, %s1175
    %p1187 = scmp.eq.s32.totalorder %s87, 7
    %p1188 = por %p1186, %p1187
    %p1190 = scmp.ne.s32.totalorder %s1175, %s1189
    %p1191 = scmp.eq.s32.totalorder %s87, 0
    %p1192 = por %p1190, %p1191
    %p1193 = scmp.le.s32.totalorder 1, %s81
    %p1194 = scmp.lt.s32.totalorder %s81, 9
    %p1195 = pnand %p1193, %p1194
    %p1196 = pneg %p1195
    // Predicated region
    $region9: #{transformer_model_forward.1} parent=5 // pred_check
      _
    $region10: #{transformer_model_forward.1} parent=5 // pred_check_branch
      %1198 = sbr.rel (%p1195) target = $region12
    $region11: #{transformer_model_forward.1} parent=5 // pred_region
      %s1199 = ssub.s32 %s81, 1
      // Predicated region
      $region13: #{transformer_model_forward.1} parent=11 // pred_check
        %p1200 = pneg %p102
      $region14: #{transformer_model_forward.1} parent=11 // pred_check_branch
        %1202 = sbr.rel (%p1200) target = $region16
      $region15: #{transformer_model_forward.1} parent=11 // pred_region
        _
      $region16: #{transformer_model_forward.1} parent=11 // pred_fallthru
        _
      // Predicated region
      $region17: #{transformer_model_forward.1} parent=11 // pred_check
        %p1203 = pneg %p483
      $region18: #{transformer_model_forward.1} parent=11 // pred_check_branch
        %1205 = sbr.rel (%p1203) target = $region20
      $region19: #{transformer_model_forward.1} parent=11 // pred_region
        _
      $region20: #{transformer_model_forward.1} parent=11 // pred_fallthru
        _
      // Predicated region
      $region21: #{transformer_model_forward.1} parent=11 // pred_check
        %p1206 = pneg %p504
      $region22: #{transformer_model_forward.1} parent=11 // pred_check_branch
        %1208 = sbr.rel (%p1206) target = $region24
      $region23: #{transformer_model_forward.1} parent=11 // pred_region
        _
      $region24: #{transformer_model_forward.1} parent=11 // pred_fallthru
        _
      // Predicated region
      $region25: #{transformer_model_forward.1} parent=11 // pred_check
        %p1209 = pneg %p1101
      $region26: #{transformer_model_forward.1} parent=11 // pred_check_branch
        %1211 = sbr.rel (%p1209) target = $region28
      $region27: #{transformer_model_forward.1} parent=11 // pred_region
        _
      $region28: #{transformer_model_forward.1} parent=11 // pred_fallthru
        _
      // Predicated region
      $region29: #{transformer_model_forward.1} parent=11 // pred_check
        %p1212 = pneg %p1122
      $region30: #{transformer_model_forward.1} parent=11 // pred_check_branch
        %1214 = sbr.rel (%p1212) target = $region32
      $region31: #{transformer_model_forward.1} parent=11 // pred_region
        _
      $region32: #{transformer_model_forward.1} parent=11 // pred_fallthru
        _
      // Predicated region
      $region33: #{transformer_model_forward.1} parent=11 // pred_check
        %p1215 = pneg %p1143
      $region34: #{transformer_model_forward.1} parent=11 // pred_check_branch
        %1217 = sbr.rel (%p1215) target = $region36
      $region35: #{transformer_model_forward.1} parent=11 // pred_region
        _
      $region36: #{transformer_model_forward.1} parent=11 // pred_fallthru
        _
      // Predicated region
      $region37: #{transformer_model_forward.1} parent=11 // pred_check
        %p1218 = pneg %p1164
      $region38: #{transformer_model_forward.1} parent=11 // pred_check_branch
        %1220 = sbr.rel (%p1218) target = $region40
      $region39: #{transformer_model_forward.1} parent=11 // pred_region
        _
      $region40: #{transformer_model_forward.1} parent=11 // pred_fallthru
        _
    $region12: #{transformer_model_forward.1} parent=5 // pred_fallthru
      _
    %p1221 = scmp.lt.s32.totalorder %s81, 8
    // Predicated region
    $region41: #{transformer_model_forward.1} parent=5 // pred_check
      %p1222 = pneg %p1221
    $region42: #{transformer_model_forward.1} parent=5 // pred_check_branch
      %1224 = sbr.rel (%p1222) target = $region44
    $region43: #{transformer_model_forward.1} parent=5 // pred_region
      // Predicated region
      $region45: #{transformer_model_forward.1} parent=43 // pred_check
        %p1225 = pneg %p126
      $region46: #{transformer_model_forward.1} parent=43 // pred_check_branch
        %1227 = sbr.rel (%p1225) target = $region48
      $region47: #{transformer_model_forward.1} parent=43 // pred_region
        %p1228 = scmp.lt.s32.totalorder %s81, 1
        %s1229 = scalar_select %p1228, %s81, 1
        %p1230 = scmp.lt.s32.totalorder %s1229, 1
        %s1231 = scalar_select %p1230, %s1229, 1
        %s1232 = smul.addr %s1231, 4
        %s1233 = smul.addr %s1232, 4
        %s1234 = scalar_lea.vmem %s3, %s1233
        %p1235 = scmp.lt.s32.totalorder %s81, 1
        %s1236 = scalar_select %p1235, %s81, 1
      $region48: #{transformer_model_forward.1} parent=43 // pred_fallthru
        _
      // Predicated region
      $region49: #{transformer_model_forward.1} parent=43 // pred_check
        %p1237 = pneg %p156
      $region50: #{transformer_model_forward.1} parent=43 // pred_check_branch
        %1239 = sbr.rel (%p1237) target = $region52
      $region51: #{transformer_model_forward.1} parent=43 // pred_region
        %p1240 = scmp.lt.s32.totalorder %s81, 1
        %s1241 = scalar_select %p1240, %s81, 1
        %p1242 = scmp.lt.s32.totalorder %s1241, 1
        %s1243 = scalar_select %p1242, %s1241, 1
        %s1244 = scalar_lea.vmem %s5, %s1243
        %p1245 = scmp.lt.s32.totalorder %s81, 1
        %s1246 = scalar_select %p1245, %s81, 1
      $region52: #{transformer_model_forward.1} parent=43 // pred_fallthru
        _
      // Predicated region
      $region53: #{transformer_model_forward.1} parent=43 // pred_check
        %p1247 = pneg %p186
      $region54: #{transformer_model_forward.1} parent=43 // pred_check_branch
        %1249 = sbr.rel (%p1247) target = $region56
      $region55: #{transformer_model_forward.1} parent=43 // pred_region
        %p1250 = scmp.lt.s32.totalorder %s81, 1
        %s1251 = scalar_select %p1250, %s81, 1
        %p1252 = scmp.lt.s32.totalorder %s1251, 1
        %s1253 = scalar_select %p1252, %s1251, 1
        %s1254 = smul.addr %s1253, 4
        %s1255 = smul.addr %s1254, 4
        %s1256 = scalar_lea.vmem %s7, %s1255
        %p1257 = scmp.lt.s32.totalorder %s81, 1
        %s1258 = scalar_select %p1257, %s81, 1
      $region56: #{transformer_model_forward.1} parent=43 // pred_fallthru
        _
      // Predicated region
      $region57: #{transformer_model_forward.1} parent=43 // pred_check
        %p1259 = pneg %p216
      $region58: #{transformer_model_forward.1} parent=43 // pred_check_branch
        %1261 = sbr.rel (%p1259) target = $region60
      $region59: #{transformer_model_forward.1} parent=43 // pred_region
        %p1262 = scmp.lt.s32.totalorder %s81, 1
        %s1263 = scalar_select %p1262, %s81, 1
        %p1264 = scmp.lt.s32.totalorder %s1263, 1
        %s1265 = scalar_select %p1264, %s1263, 1
        %s1266 = scalar_lea.vmem %s9, %s1265
        %p1267 = scmp.lt.s32.totalorder %s81, 1
        %s1268 = scalar_select %p1267, %s81, 1
      $region60: #{transformer_model_forward.1} parent=43 // pred_fallthru
        _
      // Predicated region
      $region61: #{transformer_model_forward.1} parent=43 // pred_check
        %p1269 = pneg %p246
      $region62: #{transformer_model_forward.1} parent=43 // pred_check_branch
        %1271 = sbr.rel (%p1269) target = $region64
      $region63: #{transformer_model_forward.1} parent=43 // pred_region
        %p1272 = scmp.lt.s32.totalorder %s81, 1
        %s1273 = scalar_select %p1272, %s81, 1
        %p1274 = scmp.lt.s32.totalorder %s1273, 1
        %s1275 = scalar_select %p1274, %s1273, 1
        %s1276 = scalar_lea.vmem %s11, %s1275
        %p1277 = scmp.lt.s32.totalorder %s81, 1
        %s1278 = scalar_select %p1277, %s81, 1
      $region64: #{transformer_model_forward.1} parent=43 // pred_fallthru
        _
      // Predicated region
      $region65: #{transformer_model_forward.1} parent=43 // pred_check
        %p1279 = pneg %p276
      $region66: #{transformer_model_forward.1} parent=43 // pred_check_branch
        %1281 = sbr.rel (%p1279) target = $region68
      $region67: #{transformer_model_forward.1} parent=43 // pred_region
        %p1282 = scmp.lt.s32.totalorder %s81, 1
        %s1283 = scalar_select %p1282, %s81, 1
        %p1284 = scmp.lt.s32.totalorder %s1283, 1
        %s1285 = scalar_select %p1284, %s1283, 1
        %s1286 = scalar_lea.vmem %s13, %s1285
        %p1287 = scmp.lt.s32.totalorder %s81, 1
        %s1288 = scalar_select %p1287, %s81, 1
      $region68: #{transformer_model_forward.1} parent=43 // pred_fallthru
        _
      // Predicated region
      $region69: #{transformer_model_forward.1} parent=43 // pred_check
        %p1289 = pneg %p306
      $region70: #{transformer_model_forward.1} parent=43 // pred_check_branch
        %1291 = sbr.rel (%p1289) target = $region72
      $region71: #{transformer_model_forward.1} parent=43 // pred_region
        %p1292 = scmp.lt.s32.totalorder %s81, 1
        %s1293 = scalar_select %p1292, %s81, 1
        %p1294 = scmp.lt.s32.totalorder %s1293, 1
        %s1295 = scalar_select %p1294, %s1293, 1
        %s1296 = smul.addr %s1295, 64
        %s1297 = smul.addr %s1296, 4
        %s1298 = scalar_lea.vmem %s15, %s1297
        %p1299 = scmp.lt.s32.totalorder %s81, 1
        %s1300 = scalar_select %p1299, %s81, 1
      $region72: #{transformer_model_forward.1} parent=43 // pred_fallthru
        _
      // Predicated region
      $region73: #{transformer_model_forward.1} parent=43 // pred_check
        %p1301 = pneg %p336
      $region74: #{transformer_model_forward.1} parent=43 // pred_check_branch
        %1303 = sbr.rel (%p1301) target = $region76
      $region75: #{transformer_model_forward.1} parent=43 // pred_region
        %p1304 = scmp.lt.s32.totalorder %s81, 1
        %s1305 = scalar_select %p1304, %s81, 1
        %p1306 = scmp.lt.s32.totalorder %s1305, 1
        %s1307 = scalar_select %p1306, %s1305, 1
        %s1308 = smul.addr %s1307, 16
        %s1309 = scalar_lea.vmem %s17, %s1308
        %p1310 = scmp.lt.s32.totalorder %s81, 1
        %s1311 = scalar_select %p1310, %s81, 1
      $region76: #{transformer_model_forward.1} parent=43 // pred_fallthru
        _
      // Predicated region
      $region77: #{transformer_model_forward.1} parent=43 // pred_check
        %p1312 = pneg %p366
      $region78: #{transformer_model_forward.1} parent=43 // pred_check_branch
        %1314 = sbr.rel (%p1312) target = $region80
      $region79: #{transformer_model_forward.1} parent=43 // pred_region
        %p1315 = scmp.lt.s32.totalorder %s81, 1
        %s1316 = scalar_select %p1315, %s81, 1
        %p1317 = scmp.lt.s32.totalorder %s1316, 1
        %s1318 = scalar_select %p1317, %s1316, 1
        %s1319 = smul.addr %s1318, 256
        %s1320 = smul.addr %s1319, 4
        %s1321 = scalar_lea.vmem %s19, %s1320
        %p1322 = scmp.lt.s32.totalorder %s81, 1
        %s1323 = scalar_select %p1322, %s81, 1
      $region80: #{transformer_model_forward.1} parent=43 // pred_fallthru
        _
      // Predicated region
      $region81: #{transformer_model_forward.1} parent=43 // pred_check
        %p1324 = pneg %p396
      $region82: #{transformer_model_forward.1} parent=43 // pred_check_branch
        %1326 = sbr.rel (%p1324) target = $region84
      $region83: #{transformer_model_forward.1} parent=43 // pred_region
        %p1327 = scmp.lt.s32.totalorder %s81, 1
        %s1328 = scalar_select %p1327, %s81, 1
        %p1329 = scmp.lt.s32.totalorder %s1328, 1
        %s1330 = scalar_select %p1329, %s1328, 1
        %s1331 = scalar_lea.vmem %s21, %s1330
        %p1332 = scmp.lt.s32.totalorder %s81, 1
        %s1333 = scalar_select %p1332, %s81, 1
      $region84: #{transformer_model_forward.1} parent=43 // pred_fallthru
        _
      // Predicated region
      $region85: #{transformer_model_forward.1} parent=43 // pred_check
        %p1334 = pneg %p426
      $region86: #{transformer_model_forward.1} parent=43 // pred_check_branch
        %1336 = sbr.rel (%p1334) target = $region88
      $region87: #{transformer_model_forward.1} parent=43 // pred_region
        %p1337 = scmp.lt.s32.totalorder %s81, 1
        %s1338 = scalar_select %p1337, %s81, 1
        %p1339 = scmp.lt.s32.totalorder %s1338, 1
        %s1340 = scalar_select %p1339, %s1338, 1
        %s1341 = scalar_lea.vmem %s23, %s1340
        %p1342 = scmp.lt.s32.totalorder %s81, 1
        %s1343 = scalar_select %p1342, %s81, 1
      $region88: #{transformer_model_forward.1} parent=43 // pred_fallthru
        _
      // Predicated region
      $region89: #{transformer_model_forward.1} parent=43 // pred_check
        %p1344 = pneg %p456
      $region90: #{transformer_model_forward.1} parent=43 // pred_check_branch
        %1346 = sbr.rel (%p1344) target = $region92
      $region91: #{transformer_model_forward.1} parent=43 // pred_region
        %p1347 = scmp.lt.s32.totalorder %s81, 1
        %s1348 = scalar_select %p1347, %s81, 1
        %p1349 = scmp.lt.s32.totalorder %s1348, 1
        %s1350 = scalar_select %p1349, %s1348, 1
        %s1351 = scalar_lea.vmem %s25, %s1350
        %p1352 = scmp.lt.s32.totalorder %s81, 1
        %s1353 = scalar_select %p1352, %s81, 1
      $region92: #{transformer_model_forward.1} parent=43 // pred_fallthru
        _
      // Predicated region
      $region93: #{transformer_model_forward.1} parent=43 // pred_check
        %p1354 = pneg %p530
      $region94: #{transformer_model_forward.1} parent=43 // pred_check_branch
        %1356 = sbr.rel (%p1354) target = $region96
      $region95: #{transformer_model_forward.1} parent=43 // pred_region
        %s1357 = ssub.s32 %s81, 2
        %p1358 = scmp.gt.s32.totalorder %s1357, 0
        %s1359 = scalar_select %p1358, %s1357, 0
        %p1360 = scmp.lt.s32.totalorder %s1359, 5
        %s1361 = scalar_select %p1360, %s1359, 5
        %s1362 = smul.addr %s1361, 4
        %s1363 = smul.addr %s1362, 4
        %s1364 = scalar_lea.vmem %s31, %s1363
        %s1365 = ssub.s32 %s81, 2
        %p1366 = scmp.gt.s32.totalorder %s1365, 0
        %s1367 = scalar_select %p1366, %s1365, 0
      $region96: #{transformer_model_forward.1} parent=43 // pred_fallthru
        _
      // Predicated region
      $region97: #{transformer_model_forward.1} parent=43 // pred_check
        %p1368 = pneg %p562
      $region98: #{transformer_model_forward.1} parent=43 // pred_check_branch
        %1370 = sbr.rel (%p1368) target = $region100
      $region99: #{transformer_model_forward.1} parent=43 // pred_region
        %s1371 = ssub.s32 %s81, 2
        %p1372 = scmp.gt.s32.totalorder %s1371, 0
        %s1373 = scalar_select %p1372, %s1371, 0
        %p1374 = scmp.lt.s32.totalorder %s1373, 5
        %s1375 = scalar_select %p1374, %s1373, 5
        %s1376 = scalar_lea.vmem %s33, %s1375
        %s1377 = ssub.s32 %s81, 2
        %p1378 = scmp.gt.s32.totalorder %s1377, 0
        %s1379 = scalar_select %p1378, %s1377, 0
      $region100: #{transformer_model_forward.1} parent=43 // pred_fallthru
        _
      // Predicated region
      $region101: #{transformer_model_forward.1} parent=43 // pred_check
        %p1380 = pneg %p594
      $region102: #{transformer_model_forward.1} parent=43 // pred_check_branch
        %1382 = sbr.rel (%p1380) target = $region104
      $region103: #{transformer_model_forward.1} parent=43 // pred_region
        %s1383 = ssub.s32 %s81, 2
        %p1384 = scmp.gt.s32.totalorder %s1383, 0
        %s1385 = scalar_select %p1384, %s1383, 0
        %p1386 = scmp.lt.s32.totalorder %s1385, 5
        %s1387 = scalar_select %p1386, %s1385, 5
        %s1388 = smul.addr %s1387, 4
        %s1389 = smul.addr %s1388, 4
        %s1390 = scalar_lea.vmem %s35, %s1389
        %s1391 = ssub.s32 %s81, 2
        %p1392 = scmp.gt.s32.totalorder %s1391, 0
        %s1393 = scalar_select %p1392, %s1391, 0
      $region104: #{transformer_model_forward.1} parent=43 // pred_fallthru
        _
      // Predicated region
      $region105: #{transformer_model_forward.1} parent=43 // pred_check
        %p1394 = pneg %p626
      $region106: #{transformer_model_forward.1} parent=43 // pred_check_branch
        %1396 = sbr.rel (%p1394) target = $region108
      $region107: #{transformer_model_forward.1} parent=43 // pred_region
        %s1397 = ssub.s32 %s81, 2
        %p1398 = scmp.gt.s32.totalorder %s1397, 0
        %s1399 = scalar_select %p1398, %s1397, 0
        %p1400 = scmp.lt.s32.totalorder %s1399, 5
        %s1401 = scalar_select %p1400, %s1399, 5
        %s1402 = scalar_lea.vmem %s37, %s1401
        %s1403 = ssub.s32 %s81, 2
        %p1404 = scmp.gt.s32.totalorder %s1403, 0
        %s1405 = scalar_select %p1404, %s1403, 0
      $region108: #{transformer_model_forward.1} parent=43 // pred_fallthru
        _
      // Predicated region
      $region109: #{transformer_model_forward.1} parent=43 // pred_check
        %p1406 = pneg %p658
      $region110: #{transformer_model_forward.1} parent=43 // pred_check_branch
        %1408 = sbr.rel (%p1406) target = $region112
      $region111: #{transformer_model_forward.1} parent=43 // pred_region
        %s1409 = ssub.s32 %s81, 2
        %p1410 = scmp.gt.s32.totalorder %s1409, 0
        %s1411 = scalar_select %p1410, %s1409, 0
        %p1412 = scmp.lt.s32.totalorder %s1411, 5
        %s1413 = scalar_select %p1412, %s1411, 5
        %s1414 = scalar_lea.vmem %s39, %s1413
        %s1415 = ssub.s32 %s81, 2
        %p1416 = scmp.gt.s32.totalorder %s1415, 0
        %s1417 = scalar_select %p1416, %s1415, 0
      $region112: #{transformer_model_forward.1} parent=43 // pred_fallthru
        _
      // Predicated region
      $region113: #{transformer_model_forward.1} parent=43 // pred_check
        %p1418 = pneg %p690
      $region114: #{transformer_model_forward.1} parent=43 // pred_check_branch
        %1420 = sbr.rel (%p1418) target = $region116
      $region115: #{transformer_model_forward.1} parent=43 // pred_region
        %s1421 = ssub.s32 %s81, 2
        %p1422 = scmp.gt.s32.totalorder %s1421, 0
        %s1423 = scalar_select %p1422, %s1421, 0
        %p1424 = scmp.lt.s32.totalorder %s1423, 5
        %s1425 = scalar_select %p1424, %s1423, 5
        %s1426 = scalar_lea.vmem %s41, %s1425
        %s1427 = ssub.s32 %s81, 2
        %p1428 = scmp.gt.s32.totalorder %s1427, 0
        %s1429 = scalar_select %p1428, %s1427, 0
      $region116: #{transformer_model_forward.1} parent=43 // pred_fallthru
        _
      // Predicated region
      $region117: #{transformer_model_forward.1} parent=43 // pred_check
        %p1430 = pneg %p722
      $region118: #{transformer_model_forward.1} parent=43 // pred_check_branch
        %1432 = sbr.rel (%p1430) target = $region120
      $region119: #{transformer_model_forward.1} parent=43 // pred_region
        %s1433 = ssub.s32 %s81, 2
        %p1434 = scmp.gt.s32.totalorder %s1433, 0
        %s1435 = scalar_select %p1434, %s1433, 0
        %p1436 = scmp.lt.s32.totalorder %s1435, 5
        %s1437 = scalar_select %p1436, %s1435, 5
        %s1438 = smul.addr %s1437, 4
        %s1439 = smul.addr %s1438, 4
        %s1440 = scalar_lea.vmem %s43, %s1439
        %s1441 = ssub.s32 %s81, 2
        %p1442 = scmp.gt.s32.totalorder %s1441, 0
        %s1443 = scalar_select %p1442, %s1441, 0
      $region120: #{transformer_model_forward.1} parent=43 // pred_fallthru
        _
      // Predicated region
      $region121: #{transformer_model_forward.1} parent=43 // pred_check
        %p1444 = pneg %p754
      $region122: #{transformer_model_forward.1} parent=43 // pred_check_branch
        %1446 = sbr.rel (%p1444) target = $region124
      $region123: #{transformer_model_forward.1} parent=43 // pred_region
        %s1447 = ssub.s32 %s81, 2
        %p1448 = scmp.gt.s32.totalorder %s1447, 0
        %s1449 = scalar_select %p1448, %s1447, 0
        %p1450 = scmp.lt.s32.totalorder %s1449, 5
        %s1451 = scalar_select %p1450, %s1449, 5
        %s1452 = scalar_lea.vmem %s45, %s1451
        %s1453 = ssub.s32 %s81, 2
        %p1454 = scmp.gt.s32.totalorder %s1453, 0
        %s1455 = scalar_select %p1454, %s1453, 0
      $region124: #{transformer_model_forward.1} parent=43 // pred_fallthru
        _
      // Predicated region
      $region125: #{transformer_model_forward.1} parent=43 // pred_check
        %p1456 = pneg %p786
      $region126: #{transformer_model_forward.1} parent=43 // pred_check_branch
        %1458 = sbr.rel (%p1456) target = $region128
      $region127: #{transformer_model_forward.1} parent=43 // pred_region
        %s1459 = ssub.s32 %s81, 2
        %p1460 = scmp.gt.s32.totalorder %s1459, 0
        %s1461 = scalar_select %p1460, %s1459, 0
        %p1462 = scmp.lt.s32.totalorder %s1461, 5
        %s1463 = scalar_select %p1462, %s1461, 5
        %s1464 = smul.addr %s1463, 4
        %s1465 = smul.addr %s1464, 4
        %s1466 = scalar_lea.vmem %s47, %s1465
        %s1467 = ssub.s32 %s81, 2
        %p1468 = scmp.gt.s32.totalorder %s1467, 0
        %s1469 = scalar_select %p1468, %s1467, 0
      $region128: #{transformer_model_forward.1} parent=43 // pred_fallthru
        _
      // Predicated region
      $region129: #{transformer_model_forward.1} parent=43 // pred_check
        %p1470 = pneg %p818
      $region130: #{transformer_model_forward.1} parent=43 // pred_check_branch
        %1472 = sbr.rel (%p1470) target = $region132
      $region131: #{transformer_model_forward.1} parent=43 // pred_region
        %s1473 = ssub.s32 %s81, 2
        %p1474 = scmp.gt.s32.totalorder %s1473, 0
        %s1475 = scalar_select %p1474, %s1473, 0
        %p1476 = scmp.lt.s32.totalorder %s1475, 5
        %s1477 = scalar_select %p1476, %s1475, 5
        %s1478 = scalar_lea.vmem %s49, %s1477
        %s1479 = ssub.s32 %s81, 2
        %p1480 = scmp.gt.s32.totalorder %s1479, 0
        %s1481 = scalar_select %p1480, %s1479, 0
      $region132: #{transformer_model_forward.1} parent=43 // pred_fallthru
        _
      // Predicated region
      $region133: #{transformer_model_forward.1} parent=43 // pred_check
        %p1482 = pneg %p850
      $region134: #{transformer_model_forward.1} parent=43 // pred_check_branch
        %1484 = sbr.rel (%p1482) target = $region136
      $region135: #{transformer_model_forward.1} parent=43 // pred_region
        %s1485 = ssub.s32 %s81, 2
        %p1486 = scmp.gt.s32.totalorder %s1485, 0
        %s1487 = scalar_select %p1486, %s1485, 0
        %p1488 = scmp.lt.s32.totalorder %s1487, 5
        %s1489 = scalar_select %p1488, %s1487, 5
        %s1490 = scalar_lea.vmem %s51, %s1489
        %s1491 = ssub.s32 %s81, 2
        %p1492 = scmp.gt.s32.totalorder %s1491, 0
        %s1493 = scalar_select %p1492, %s1491, 0
      $region136: #{transformer_model_forward.1} parent=43 // pred_fallthru
        _
      // Predicated region
      $region137: #{transformer_model_forward.1} parent=43 // pred_check
        %p1494 = pneg %p882
      $region138: #{transformer_model_forward.1} parent=43 // pred_check_branch
        %1496 = sbr.rel (%p1494) target = $region140
      $region139: #{transformer_model_forward.1} parent=43 // pred_region
        %s1497 = ssub.s32 %s81, 2
        %p1498 = scmp.gt.s32.totalorder %s1497, 0
        %s1499 = scalar_select %p1498, %s1497, 0
        %p1500 = scmp.lt.s32.totalorder %s1499, 5
        %s1501 = scalar_select %p1500, %s1499, 5
        %s1502 = scalar_lea.vmem %s53, %s1501
        %s1503 = ssub.s32 %s81, 2
        %p1504 = scmp.gt.s32.totalorder %s1503, 0
        %s1505 = scalar_select %p1504, %s1503, 0
      $region140: #{transformer_model_forward.1} parent=43 // pred_fallthru
        _
      // Predicated region
      $region141: #{transformer_model_forward.1} parent=43 // pred_check
        %p1506 = pneg %p914
      $region142: #{transformer_model_forward.1} parent=43 // pred_check_branch
        %1508 = sbr.rel (%p1506) target = $region144
      $region143: #{transformer_model_forward.1} parent=43 // pred_region
        %s1509 = ssub.s32 %s81, 2
        %p1510 = scmp.gt.s32.totalorder %s1509, 0
        %s1511 = scalar_select %p1510, %s1509, 0
        %p1512 = scmp.lt.s32.totalorder %s1511, 5
        %s1513 = scalar_select %p1512, %s1511, 5
        %s1514 = smul.addr %s1513, 64
        %s1515 = smul.addr %s1514, 4
        %s1516 = scalar_lea.vmem %s55, %s1515
        %s1517 = ssub.s32 %s81, 2
        %p1518 = scmp.gt.s32.totalorder %s1517, 0
        %s1519 = scalar_select %p1518, %s1517, 0
      $region144: #{transformer_model_forward.1} parent=43 // pred_fallthru
        _
      // Predicated region
      $region145: #{transformer_model_forward.1} parent=43 // pred_check
        %p1520 = pneg %p946
      $region146: #{transformer_model_forward.1} parent=43 // pred_check_branch
        %1522 = sbr.rel (%p1520) target = $region148
      $region147: #{transformer_model_forward.1} parent=43 // pred_region
        %s1523 = ssub.s32 %s81, 2
        %p1524 = scmp.gt.s32.totalorder %s1523, 0
        %s1525 = scalar_select %p1524, %s1523, 0
        %p1526 = scmp.lt.s32.totalorder %s1525, 5
        %s1527 = scalar_select %p1526, %s1525, 5
        %s1528 = smul.addr %s1527, 16
        %s1529 = scalar_lea.vmem %s57, %s1528
        %s1530 = ssub.s32 %s81, 2
        %p1531 = scmp.gt.s32.totalorder %s1530, 0
        %s1532 = scalar_select %p1531, %s1530, 0
      $region148: #{transformer_model_forward.1} parent=43 // pred_fallthru
        _
      // Predicated region
      $region149: #{transformer_model_forward.1} parent=43 // pred_check
        %p1533 = pneg %p978
      $region150: #{transformer_model_forward.1} parent=43 // pred_check_branch
        %1535 = sbr.rel (%p1533) target = $region152
      $region151: #{transformer_model_forward.1} parent=43 // pred_region
        %s1536 = ssub.s32 %s81, 2
        %p1537 = scmp.gt.s32.totalorder %s1536, 0
        %s1538 = scalar_select %p1537, %s1536, 0
        %p1539 = scmp.lt.s32.totalorder %s1538, 5
        %s1540 = scalar_select %p1539, %s1538, 5
        %s1541 = smul.addr %s1540, 256
        %s1542 = smul.addr %s1541, 4
        %s1543 = scalar_lea.vmem %s59, %s1542
        %s1544 = ssub.s32 %s81, 2
        %p1545 = scmp.gt.s32.totalorder %s1544, 0
        %s1546 = scalar_select %p1545, %s1544, 0
      $region152: #{transformer_model_forward.1} parent=43 // pred_fallthru
        _
      // Predicated region
      $region153: #{transformer_model_forward.1} parent=43 // pred_check
        %p1547 = pneg %p1010
      $region154: #{transformer_model_forward.1} parent=43 // pred_check_branch
        %1549 = sbr.rel (%p1547) target = $region156
      $region155: #{transformer_model_forward.1} parent=43 // pred_region
        %s1550 = ssub.s32 %s81, 2
        %p1551 = scmp.gt.s32.totalorder %s1550, 0
        %s1552 = scalar_select %p1551, %s1550, 0
        %p1553 = scmp.lt.s32.totalorder %s1552, 5
        %s1554 = scalar_select %p1553, %s1552, 5
        %s1555 = scalar_lea.vmem %s61, %s1554
        %s1556 = ssub.s32 %s81, 2
        %p1557 = scmp.gt.s32.totalorder %s1556, 0
        %s1558 = scalar_select %p1557, %s1556, 0
      $region156: #{transformer_model_forward.1} parent=43 // pred_fallthru
        _
      // Predicated region
      $region157: #{transformer_model_forward.1} parent=43 // pred_check
        %p1559 = pneg %p1042
      $region158: #{transformer_model_forward.1} parent=43 // pred_check_branch
        %1561 = sbr.rel (%p1559) target = $region160
      $region159: #{transformer_model_forward.1} parent=43 // pred_region
        %s1562 = ssub.s32 %s81, 2
        %p1563 = scmp.gt.s32.totalorder %s1562, 0
        %s1564 = scalar_select %p1563, %s1562, 0
        %p1565 = scmp.lt.s32.totalorder %s1564, 5
        %s1566 = scalar_select %p1565, %s1564, 5
        %s1567 = scalar_lea.vmem %s63, %s1566
        %s1568 = ssub.s32 %s81, 2
        %p1569 = scmp.gt.s32.totalorder %s1568, 0
        %s1570 = scalar_select %p1569, %s1568, 0
      $region160: #{transformer_model_forward.1} parent=43 // pred_fallthru
        _
      // Predicated region
      $region161: #{transformer_model_forward.1} parent=43 // pred_check
        %p1571 = pneg %p1074
      $region162: #{transformer_model_forward.1} parent=43 // pred_check_branch
        %1573 = sbr.rel (%p1571) target = $region164
      $region163: #{transformer_model_forward.1} parent=43 // pred_region
        %s1574 = ssub.s32 %s81, 2
        %p1575 = scmp.gt.s32.totalorder %s1574, 0
        %s1576 = scalar_select %p1575, %s1574, 0
        %p1577 = scmp.lt.s32.totalorder %s1576, 5
        %s1578 = scalar_select %p1577, %s1576, 5
        %s1579 = scalar_lea.vmem %s65, %s1578
        %s1580 = ssub.s32 %s81, 2
        %p1581 = scmp.gt.s32.totalorder %s1580, 0
        %s1582 = scalar_select %p1581, %s1580, 0
      $region164: #{transformer_model_forward.1} parent=43 // pred_fallthru
        _
    $region44: #{transformer_model_forward.1} parent=5 // pred_fallthru
      _
    %p1583 = scmp.le.s32.totalorder 1, %s81
    %p1584 = scmp.lt.s32.totalorder %s81, 9
    %p1585 = pnand %p1583, %p1584
    %p1586 = pneg %p1585
    // Predicated region
    $region165: #{transformer_model_forward.1} parent=5 // pred_check
      _
    $region166: #{transformer_model_forward.1} parent=5 // pred_check_branch
      %1588 = sbr.rel (%p1585) target = $region168
    $region167: #{transformer_model_forward.1} parent=5 // pred_region
      %s1589 = ssub.s32 %s81, 1
      %p1590 = pneg %p102
      %p1591 = pneg %p99
      %p1592 = scmp.lt.s32.totalorder %s86, 1
      %s1593 = scalar_select %p1592, %s86, 1
      %p1594 = scmp.lt.s32.totalorder %s1593, 1
      %s1595 = scalar_select %p1594, %s1593, 1
      %s1596 = smul.addr %s1595, 4
      %s1597 = smul.addr %s1596, 4
      %s1598 = scalar_lea.vmem %s3, %s1597
      %p1599 = pneg %p132
      %p1600 = pneg %p129
      %p1601 = scmp.lt.s32.totalorder %s86, 1
      %s1602 = scalar_select %p1601, %s86, 1
      %p1603 = scmp.lt.s32.totalorder %s1602, 1
      %s1604 = scalar_select %p1603, %s1602, 1
      %s1605 = scalar_lea.vmem %s5, %s1604
      %p1606 = pneg %p162
      %p1607 = pneg %p159
      %p1608 = scmp.lt.s32.totalorder %s86, 1
      %s1609 = scalar_select %p1608, %s86, 1
      %p1610 = scmp.lt.s32.totalorder %s1609, 1
      %s1611 = scalar_select %p1610, %s1609, 1
      %s1612 = smul.addr %s1611, 4
      %s1613 = smul.addr %s1612, 4
      %s1614 = scalar_lea.vmem %s7, %s1613
      %p1615 = pneg %p192
      %p1616 = pneg %p189
      %p1617 = scmp.lt.s32.totalorder %s86, 1
      %s1618 = scalar_select %p1617, %s86, 1
      %p1619 = scmp.lt.s32.totalorder %s1618, 1
      %s1620 = scalar_select %p1619, %s1618, 1
      %s1621 = scalar_lea.vmem %s9, %s1620
      %p1622 = pneg %p222
      %p1623 = pneg %p219
      %p1624 = scmp.lt.s32.totalorder %s86, 1
      %s1625 = scalar_select %p1624, %s86, 1
      %p1626 = scmp.lt.s32.totalorder %s1625, 1
      %s1627 = scalar_select %p1626, %s1625, 1
      %s1628 = scalar_lea.vmem %s11, %s1627
      %p1629 = pneg %p252
      %p1630 = pneg %p249
      %p1631 = scmp.lt.s32.totalorder %s86, 1
      %s1632 = scalar_select %p1631, %s86, 1
      %p1633 = scmp.lt.s32.totalorder %s1632, 1
      %s1634 = scalar_select %p1633, %s1632, 1
      %s1635 = scalar_lea.vmem %s13, %s1634
      %p1636 = pneg %p282
      %p1637 = pneg %p279
      %p1638 = scmp.lt.s32.totalorder %s86, 1
      %s1639 = scalar_select %p1638, %s86, 1
      %p1640 = scmp.lt.s32.totalorder %s1639, 1
      %s1641 = scalar_select %p1640, %s1639, 1
      %s1642 = smul.addr %s1641, 64
      %s1643 = smul.addr %s1642, 4
      %s1644 = scalar_lea.vmem %s15, %s1643
      %p1645 = pneg %p312
      %p1646 = pneg %p309
      %p1647 = scmp.lt.s32.totalorder %s86, 1
      %s1648 = scalar_select %p1647, %s86, 1
      %p1649 = scmp.lt.s32.totalorder %s1648, 1
      %s1650 = scalar_select %p1649, %s1648, 1
      %s1651 = smul.addr %s1650, 16
      %s1652 = scalar_lea.vmem %s17, %s1651
      %p1653 = pneg %p342
      %p1654 = pneg %p339
      %p1655 = scmp.lt.s32.totalorder %s86, 1
      %s1656 = scalar_select %p1655, %s86, 1
      %p1657 = scmp.lt.s32.totalorder %s1656, 1
      %s1658 = scalar_select %p1657, %s1656, 1
      %s1659 = smul.addr %s1658, 256
      %s1660 = smul.addr %s1659, 4
      %s1661 = scalar_lea.vmem %s19, %s1660
      %p1662 = pneg %p372
      %p1663 = pneg %p369
      %p1664 = scmp.lt.s32.totalorder %s86, 1
      %s1665 = scalar_select %p1664, %s86, 1
      %p1666 = scmp.lt.s32.totalorder %s1665, 1
      %s1667 = scalar_select %p1666, %s1665, 1
      %s1668 = scalar_lea.vmem %s21, %s1667
      %p1669 = pneg %p402
      %p1670 = pneg %p399
      %p1671 = scmp.lt.s32.totalorder %s86, 1
      %s1672 = scalar_select %p1671, %s86, 1
      %p1673 = scmp.lt.s32.totalorder %s1672, 1
      %s1674 = scalar_select %p1673, %s1672, 1
      %s1675 = scalar_lea.vmem %s23, %s1674
      %p1676 = pneg %p432
      %p1677 = pneg %p429
      %p1678 = scmp.lt.s32.totalorder %s86, 1
      %s1679 = scalar_select %p1678, %s86, 1
      %p1680 = scmp.lt.s32.totalorder %s1679, 1
      %s1681 = scalar_select %p1680, %s1679, 1
      %s1682 = scalar_lea.vmem %s25, %s1681
      %p1683 = pneg %p462
      %p1684 = pneg %p459
      %p1685 = pneg %p483
      %p1686 = pneg %p480
      %p1687 = pneg %p504
      %p1688 = pneg %p501
      %s1689 = ssub.s32 %s86, 2
      %p1690 = scmp.gt.s32.totalorder %s1689, 0
      %s1691 = scalar_select %p1690, %s1689, 0
      %p1692 = scmp.lt.s32.totalorder %s1691, 5
      %s1693 = scalar_select %p1692, %s1691, 5
      %s1694 = smul.addr %s1693, 4
      %s1695 = smul.addr %s1694, 4
      %s1696 = scalar_lea.vmem %s31, %s1695
      %p1697 = pneg %p536
      %p1698 = pneg %p533
      %s1699 = ssub.s32 %s86, 2
      %p1700 = scmp.gt.s32.totalorder %s1699, 0
      %s1701 = scalar_select %p1700, %s1699, 0
      %p1702 = scmp.lt.s32.totalorder %s1701, 5
      %s1703 = scalar_select %p1702, %s1701, 5
      %s1704 = scalar_lea.vmem %s33, %s1703
      %p1705 = pneg %p568
      %p1706 = pneg %p565
      %s1707 = ssub.s32 %s86, 2
      %p1708 = scmp.gt.s32.totalorder %s1707, 0
      %s1709 = scalar_select %p1708, %s1707, 0
      %p1710 = scmp.lt.s32.totalorder %s1709, 5
      %s1711 = scalar_select %p1710, %s1709, 5
      %s1712 = smul.addr %s1711, 4
      %s1713 = smul.addr %s1712, 4
      %s1714 = scalar_lea.vmem %s35, %s1713
      %p1715 = pneg %p600
      %p1716 = pneg %p597
      %s1717 = ssub.s32 %s86, 2
      %p1718 = scmp.gt.s32.totalorder %s1717, 0
      %s1719 = scalar_select %p1718, %s1717, 0
      %p1720 = scmp.lt.s32.totalorder %s1719, 5
      %s1721 = scalar_select %p1720, %s1719, 5
      %s1722 = scalar_lea.vmem %s37, %s1721
      %p1723 = pneg %p632
      %p1724 = pneg %p629
      %s1725 = ssub.s32 %s86, 2
      %p1726 = scmp.gt.s32.totalorder %s1725, 0
      %s1727 = scalar_select %p1726, %s1725, 0
      %p1728 = scmp.lt.s32.totalorder %s1727, 5
      %s1729 = scalar_select %p1728, %s1727, 5
      %s1730 = scalar_lea.vmem %s39, %s1729
      %p1731 = pneg %p664
      %p1732 = pneg %p661
      %s1733 = ssub.s32 %s86, 2
      %p1734 = scmp.gt.s32.totalorder %s1733, 0
      %s1735 = scalar_select %p1734, %s1733, 0
      %p1736 = scmp.lt.s32.totalorder %s1735, 5
      %s1737 = scalar_select %p1736, %s1735, 5
      %s1738 = scalar_lea.vmem %s41, %s1737
      %p1739 = pneg %p696
      %p1740 = pneg %p693
      %s1741 = ssub.s32 %s86, 2
      %p1742 = scmp.gt.s32.totalorder %s1741, 0
      %s1743 = scalar_select %p1742, %s1741, 0
      %p1744 = scmp.lt.s32.totalorder %s1743, 5
      %s1745 = scalar_select %p1744, %s1743, 5
      %s1746 = smul.addr %s1745, 4
      %s1747 = smul.addr %s1746, 4
      %s1748 = scalar_lea.vmem %s43, %s1747
      %p1749 = pneg %p728
      %p1750 = pneg %p725
      %s1751 = ssub.s32 %s86, 2
      %p1752 = scmp.gt.s32.totalorder %s1751, 0
      %s1753 = scalar_select %p1752, %s1751, 0
      %p1754 = scmp.lt.s32.totalorder %s1753, 5
      %s1755 = scalar_select %p1754, %s1753, 5
      %s1756 = scalar_lea.vmem %s45, %s1755
      %p1757 = pneg %p760
      %p1758 = pneg %p757
      %s1759 = ssub.s32 %s86, 2
      %p1760 = scmp.gt.s32.totalorder %s1759, 0
      %s1761 = scalar_select %p1760, %s1759, 0
      %p1762 = scmp.lt.s32.totalorder %s1761, 5
      %s1763 = scalar_select %p1762, %s1761, 5
      %s1764 = smul.addr %s1763, 4
      %s1765 = smul.addr %s1764, 4
      %s1766 = scalar_lea.vmem %s47, %s1765
      %p1767 = pneg %p792
      %p1768 = pneg %p789
      %s1769 = ssub.s32 %s86, 2
      %p1770 = scmp.gt.s32.totalorder %s1769, 0
      %s1771 = scalar_select %p1770, %s1769, 0
      %p1772 = scmp.lt.s32.totalorder %s1771, 5
      %s1773 = scalar_select %p1772, %s1771, 5
      %s1774 = scalar_lea.vmem %s49, %s1773
      %p1775 = pneg %p824
      %p1776 = pneg %p821
      %s1777 = ssub.s32 %s86, 2
      %p1778 = scmp.gt.s32.totalorder %s1777, 0
      %s1779 = scalar_select %p1778, %s1777, 0
      %p1780 = scmp.lt.s32.totalorder %s1779, 5
      %s1781 = scalar_select %p1780, %s1779, 5
      %s1782 = scalar_lea.vmem %s51, %s1781
      %p1783 = pneg %p856
      %p1784 = pneg %p853
      %s1785 = ssub.s32 %s86, 2
      %p1786 = scmp.gt.s32.totalorder %s1785, 0
      %s1787 = scalar_select %p1786, %s1785, 0
      %p1788 = scmp.lt.s32.totalorder %s1787, 5
      %s1789 = scalar_select %p1788, %s1787, 5
      %s1790 = scalar_lea.vmem %s53, %s1789
      %p1791 = pneg %p888
      %p1792 = pneg %p885
      %s1793 = ssub.s32 %s86, 2
      %p1794 = scmp.gt.s32.totalorder %s1793, 0
      %s1795 = scalar_select %p1794, %s1793, 0
      %p1796 = scmp.lt.s32.totalorder %s1795, 5
      %s1797 = scalar_select %p1796, %s1795, 5
      %s1798 = smul.addr %s1797, 64
      %s1799 = smul.addr %s1798, 4
      %s1800 = scalar_lea.vmem %s55, %s1799
      %p1801 = pneg %p920
      %p1802 = pneg %p917
      %s1803 = ssub.s32 %s86, 2
      %p1804 = scmp.gt.s32.totalorder %s1803, 0
      %s1805 = scalar_select %p1804, %s1803, 0
      %p1806 = scmp.lt.s32.totalorder %s1805, 5
      %s1807 = scalar_select %p1806, %s1805, 5
      %s1808 = smul.addr %s1807, 16
      %s1809 = scalar_lea.vmem %s57, %s1808
      %p1810 = pneg %p952
      %p1811 = pneg %p949
      %s1812 = ssub.s32 %s86, 2
      %p1813 = scmp.gt.s32.totalorder %s1812, 0
      %s1814 = scalar_select %p1813, %s1812, 0
      %p1815 = scmp.lt.s32.totalorder %s1814, 5
      %s1816 = scalar_select %p1815, %s1814, 5
      %s1817 = smul.addr %s1816, 256
      %s1818 = smul.addr %s1817, 4
      %s1819 = scalar_lea.vmem %s59, %s1818
      %p1820 = pneg %p984
      %p1821 = pneg %p981
      %s1822 = ssub.s32 %s86, 2
      %p1823 = scmp.gt.s32.totalorder %s1822, 0
      %s1824 = scalar_select %p1823, %s1822, 0
      %p1825 = scmp.lt.s32.totalorder %s1824, 5
      %s1826 = scalar_select %p1825, %s1824, 5
      %s1827 = scalar_lea.vmem %s61, %s1826
      %p1828 = pneg %p1016
      %p1829 = pneg %p1013
      %s1830 = ssub.s32 %s86, 2
      %p1831 = scmp.gt.s32.totalorder %s1830, 0
      %s1832 = scalar_select %p1831, %s1830, 0
      %p1833 = scmp.lt.s32.totalorder %s1832, 5
      %s1834 = scalar_select %p1833, %s1832, 5
      %s1835 = scalar_lea.vmem %s63, %s1834
      %p1836 = pneg %p1048
      %p1837 = pneg %p1045
      %s1838 = ssub.s32 %s86, 2
      %p1839 = scmp.gt.s32.totalorder %s1838, 0
      %s1840 = scalar_select %p1839, %s1838, 0
      %p1841 = scmp.lt.s32.totalorder %s1840, 5
      %s1842 = scalar_select %p1841, %s1840, 5
      %s1843 = scalar_lea.vmem %s65, %s1842
      %p1844 = pneg %p1080
      %p1845 = pneg %p1077
      %p1846 = pneg %p1101
      %p1847 = pneg %p1098
      %p1848 = pneg %p1122
      %p1849 = pneg %p1119
      %p1850 = pneg %p1143
      %p1851 = pneg %p1140
      %p1852 = pneg %p1164
      %p1853 = pneg %p1161
      %p1854 = pneg %p1185
      %p1855 = pneg %p1182
      %p1856 = scmp.lt.s32.totalorder %s86, 1
      %s1857 = scalar_select %p1856, %s86, 1
      %p1858 = scmp.lt.s32.totalorder %s1857, 1
      %s1859 = scalar_select %p1858, %s1857, 1
      %s1860 = smul.addr %s1859, 4
      %s1861 = smul.addr %s1860, 4
      %s1862 = scalar_lea.vmem %s3, %s1861
      %p1863 = scmp.lt.s32.totalorder %s86, 1
      %s1864 = scalar_select %p1863, %s86, 1
      %p1865 = scmp.lt.s32.totalorder %s86, 1
      %s1866 = scalar_select %p1865, %s86, 1
      %p1867 = scmp.lt.s32.totalorder %s1866, 1
      %s1868 = scalar_select %p1867, %s1866, 1
      %s1869 = scalar_lea.vmem %s5, %s1868
      %p1870 = scmp.lt.s32.totalorder %s86, 1
      %s1871 = scalar_select %p1870, %s86, 1
      %p1872 = scmp.lt.s32.totalorder %s86, 1
      %s1873 = scalar_select %p1872, %s86, 1
      %p1874 = scmp.lt.s32.totalorder %s1873, 1
      %s1875 = scalar_select %p1874, %s1873, 1
      %s1876 = smul.addr %s1875, 4
      %s1877 = smul.addr %s1876, 4
      %s1878 = scalar_lea.vmem %s7, %s1877
      %p1879 = scmp.lt.s32.totalorder %s86, 1
      %s1880 = scalar_select %p1879, %s86, 1
      %p1881 = scmp.lt.s32.totalorder %s86, 1
      %s1882 = scalar_select %p1881, %s86, 1
      %p1883 = scmp.lt.s32.totalorder %s1882, 1
      %s1884 = scalar_select %p1883, %s1882, 1
      %s1885 = scalar_lea.vmem %s9, %s1884
      %p1886 = scmp.lt.s32.totalorder %s86, 1
      %s1887 = scalar_select %p1886, %s86, 1
      %p1888 = scmp.lt.s32.totalorder %s86, 1
      %s1889 = scalar_select %p1888, %s86, 1
      %p1890 = scmp.lt.s32.totalorder %s1889, 1
      %s1891 = scalar_select %p1890, %s1889, 1
      %s1892 = scalar_lea.vmem %s11, %s1891
      %p1893 = scmp.lt.s32.totalorder %s86, 1
      %s1894 = scalar_select %p1893, %s86, 1
      %p1895 = scmp.lt.s32.totalorder %s86, 1
      %s1896 = scalar_select %p1895, %s86, 1
      %p1897 = scmp.lt.s32.totalorder %s1896, 1
      %s1898 = scalar_select %p1897, %s1896, 1
      %s1899 = scalar_lea.vmem %s13, %s1898
      %p1900 = scmp.lt.s32.totalorder %s86, 1
      %s1901 = scalar_select %p1900, %s86, 1
      %p1902 = scmp.lt.s32.totalorder %s86, 1
      %s1903 = scalar_select %p1902, %s86, 1
      %p1904 = scmp.lt.s32.totalorder %s1903, 1
      %s1905 = scalar_select %p1904, %s1903, 1
      %s1906 = smul.addr %s1905, 64
      %s1907 = smul.addr %s1906, 4
      %s1908 = scalar_lea.vmem %s15, %s1907
      %p1909 = scmp.lt.s32.totalorder %s86, 1
      %s1910 = scalar_select %p1909, %s86, 1
      %p1911 = scmp.lt.s32.totalorder %s86, 1
      %s1912 = scalar_select %p1911, %s86, 1
      %p1913 = scmp.lt.s32.totalorder %s1912, 1
      %s1914 = scalar_select %p1913, %s1912, 1
      %s1915 = smul.addr %s1914, 16
      %s1916 = scalar_lea.vmem %s17, %s1915
      %p1917 = scmp.lt.s32.totalorder %s86, 1
      %s1918 = scalar_select %p1917, %s86, 1
      %p1919 = scmp.lt.s32.totalorder %s86, 1
      %s1920 = scalar_select %p1919, %s86, 1
      %p1921 = scmp.lt.s32.totalorder %s1920, 1
      %s1922 = scalar_select %p1921, %s1920, 1
      %s1923 = smul.addr %s1922, 256
      %s1924 = smul.addr %s1923, 4
      %s1925 = scalar_lea.vmem %s19, %s1924
      %p1926 = scmp.lt.s32.totalorder %s86, 1
      %s1927 = scalar_select %p1926, %s86, 1
      %p1928 = scmp.lt.s32.totalorder %s86, 1
      %s1929 = scalar_select %p1928, %s86, 1
      %p1930 = scmp.lt.s32.totalorder %s1929, 1
      %s1931 = scalar_select %p1930, %s1929, 1
      %s1932 = scalar_lea.vmem %s21, %s1931
      %p1933 = scmp.lt.s32.totalorder %s86, 1
      %s1934 = scalar_select %p1933, %s86, 1
      %p1935 = scmp.lt.s32.totalorder %s86, 1
      %s1936 = scalar_select %p1935, %s86, 1
      %p1937 = scmp.lt.s32.totalorder %s1936, 1
      %s1938 = scalar_select %p1937, %s1936, 1
      %s1939 = scalar_lea.vmem %s23, %s1938
      %p1940 = scmp.lt.s32.totalorder %s86, 1
      %s1941 = scalar_select %p1940, %s86, 1
      %p1942 = scmp.lt.s32.totalorder %s86, 1
      %s1943 = scalar_select %p1942, %s86, 1
      %p1944 = scmp.lt.s32.totalorder %s1943, 1
      %s1945 = scalar_select %p1944, %s1943, 1
      %s1946 = scalar_lea.vmem %s25, %s1945
      %p1947 = scmp.lt.s32.totalorder %s86, 1
      %s1948 = scalar_select %p1947, %s86, 1
      %s1949 = ssub.s32 %s86, 2
      %p1950 = scmp.gt.s32.totalorder %s1949, 0
      %s1951 = scalar_select %p1950, %s1949, 0
      %p1952 = scmp.lt.s32.totalorder %s1951, 5
      %s1953 = scalar_select %p1952, %s1951, 5
      %s1954 = smul.addr %s1953, 4
      %s1955 = smul.addr %s1954, 4
      %s1956 = scalar_lea.vmem %s31, %s1955
      %s1957 = ssub.s32 %s86, 2
      %p1958 = scmp.gt.s32.totalorder %s1957, 0
      %s1959 = scalar_select %p1958, %s1957, 0
      %s1960 = ssub.s32 %s86, 2
      %p1961 = scmp.gt.s32.totalorder %s1960, 0
      %s1962 = scalar_select %p1961, %s1960, 0
      %p1963 = scmp.lt.s32.totalorder %s1962, 5
      %s1964 = scalar_select %p1963, %s1962, 5
      %s1965 = scalar_lea.vmem %s33, %s1964
      %s1966 = ssub.s32 %s86, 2
      %p1967 = scmp.gt.s32.totalorder %s1966, 0
      %s1968 = scalar_select %p1967, %s1966, 0
      %s1969 = ssub.s32 %s86, 2
      %p1970 = scmp.gt.s32.totalorder %s1969, 0
      %s1971 = scalar_select %p1970, %s1969, 0
      %p1972 = scmp.lt.s32.totalorder %s1971, 5
      %s1973 = scalar_select %p1972, %s1971, 5
      %s1974 = smul.addr %s1973, 4
      %s1975 = smul.addr %s1974, 4
      %s1976 = scalar_lea.vmem %s35, %s1975
      %s1977 = ssub.s32 %s86, 2
      %p1978 = scmp.gt.s32.totalorder %s1977, 0
      %s1979 = scalar_select %p1978, %s1977, 0
      %s1980 = ssub.s32 %s86, 2
      %p1981 = scmp.gt.s32.totalorder %s1980, 0
      %s1982 = scalar_select %p1981, %s1980, 0
      %p1983 = scmp.lt.s32.totalorder %s1982, 5
      %s1984 = scalar_select %p1983, %s1982, 5
      %s1985 = scalar_lea.vmem %s37, %s1984
      %s1986 = ssub.s32 %s86, 2
      %p1987 = scmp.gt.s32.totalorder %s1986, 0
      %s1988 = scalar_select %p1987, %s1986, 0
      %s1989 = ssub.s32 %s86, 2
      %p1990 = scmp.gt.s32.totalorder %s1989, 0
      %s1991 = scalar_select %p1990, %s1989, 0
      %p1992 = scmp.lt.s32.totalorder %s1991, 5
      %s1993 = scalar_select %p1992, %s1991, 5
      %s1994 = scalar_lea.vmem %s39, %s1993
      %s1995 = ssub.s32 %s86, 2
      %p1996 = scmp.gt.s32.totalorder %s1995, 0
      %s1997 = scalar_select %p1996, %s1995, 0
      %s1998 = ssub.s32 %s86, 2
      %p1999 = scmp.gt.s32.totalorder %s1998, 0
      %s2000 = scalar_select %p1999, %s1998, 0
      %p2001 = scmp.lt.s32.totalorder %s2000, 5
      %s2002 = scalar_select %p2001, %s2000, 5
      %s2003 = scalar_lea.vmem %s41, %s2002
      %s2004 = ssub.s32 %s86, 2
      %p2005 = scmp.gt.s32.totalorder %s2004, 0
      %s2006 = scalar_select %p2005, %s2004, 0
      %s2007 = ssub.s32 %s86, 2
      %p2008 = scmp.gt.s32.totalorder %s2007, 0
      %s2009 = scalar_select %p2008, %s2007, 0
      %p2010 = scmp.lt.s32.totalorder %s2009, 5
      %s2011 = scalar_select %p2010, %s2009, 5
      %s2012 = smul.addr %s2011, 4
      %s2013 = smul.addr %s2012, 4
      %s2014 = scalar_lea.vmem %s43, %s2013
      %s2015 = ssub.s32 %s86, 2
      %p2016 = scmp.gt.s32.totalorder %s2015, 0
      %s2017 = scalar_select %p2016, %s2015, 0
      %s2018 = ssub.s32 %s86, 2
      %p2019 = scmp.gt.s32.totalorder %s2018, 0
      %s2020 = scalar_select %p2019, %s2018, 0
      %p2021 = scmp.lt.s32.totalorder %s2020, 5
      %s2022 = scalar_select %p2021, %s2020, 5
      %s2023 = scalar_lea.vmem %s45, %s2022
      %s2024 = ssub.s32 %s86, 2
      %p2025 = scmp.gt.s32.totalorder %s2024, 0
      %s2026 = scalar_select %p2025, %s2024, 0
      %s2027 = ssub.s32 %s86, 2
      %p2028 = scmp.gt.s32.totalorder %s2027, 0
      %s2029 = scalar_select %p2028, %s2027, 0
      %p2030 = scmp.lt.s32.totalorder %s2029, 5
      %s2031 = scalar_select %p2030, %s2029, 5
      %s2032 = smul.addr %s2031, 4
      %s2033 = smul.addr %s2032, 4
      %s2034 = scalar_lea.vmem %s47, %s2033
      %s2035 = ssub.s32 %s86, 2
      %p2036 = scmp.gt.s32.totalorder %s2035, 0
      %s2037 = scalar_select %p2036, %s2035, 0
      %s2038 = ssub.s32 %s86, 2
      %p2039 = scmp.gt.s32.totalorder %s2038, 0
      %s2040 = scalar_select %p2039, %s2038, 0
      %p2041 = scmp.lt.s32.totalorder %s2040, 5
      %s2042 = scalar_select %p2041, %s2040, 5
      %s2043 = scalar_lea.vmem %s49, %s2042
      %s2044 = ssub.s32 %s86, 2
      %p2045 = scmp.gt.s32.totalorder %s2044, 0
      %s2046 = scalar_select %p2045, %s2044, 0
      %s2047 = ssub.s32 %s86, 2
      %p2048 = scmp.gt.s32.totalorder %s2047, 0
      %s2049 = scalar_select %p2048, %s2047, 0
      %p2050 = scmp.lt.s32.totalorder %s2049, 5
      %s2051 = scalar_select %p2050, %s2049, 5
      %s2052 = scalar_lea.vmem %s51, %s2051
      %s2053 = ssub.s32 %s86, 2
      %p2054 = scmp.gt.s32.totalorder %s2053, 0
      %s2055 = scalar_select %p2054, %s2053, 0
      %s2056 = ssub.s32 %s86, 2
      %p2057 = scmp.gt.s32.totalorder %s2056, 0
      %s2058 = scalar_select %p2057, %s2056, 0
      %p2059 = scmp.lt.s32.totalorder %s2058, 5
      %s2060 = scalar_select %p2059, %s2058, 5
      %s2061 = scalar_lea.vmem %s53, %s2060
      %s2062 = ssub.s32 %s86, 2
      %p2063 = scmp.gt.s32.totalorder %s2062, 0
      %s2064 = scalar_select %p2063, %s2062, 0
      %s2065 = ssub.s32 %s86, 2
      %p2066 = scmp.gt.s32.totalorder %s2065, 0
      %s2067 = scalar_select %p2066, %s2065, 0
      %p2068 = scmp.lt.s32.totalorder %s2067, 5
      %s2069 = scalar_select %p2068, %s2067, 5
      %s2070 = smul.addr %s2069, 64
      %s2071 = smul.addr %s2070, 4
      %s2072 = scalar_lea.vmem %s55, %s2071
      %s2073 = ssub.s32 %s86, 2
      %p2074 = scmp.gt.s32.totalorder %s2073, 0
      %s2075 = scalar_select %p2074, %s2073, 0
      %s2076 = ssub.s32 %s86, 2
      %p2077 = scmp.gt.s32.totalorder %s2076, 0
      %s2078 = scalar_select %p2077, %s2076, 0
      %p2079 = scmp.lt.s32.totalorder %s2078, 5
      %s2080 = scalar_select %p2079, %s2078, 5
      %s2081 = smul.addr %s2080, 16
      %s2082 = scalar_lea.vmem %s57, %s2081
      %s2083 = ssub.s32 %s86, 2
      %p2084 = scmp.gt.s32.totalorder %s2083, 0
      %s2085 = scalar_select %p2084, %s2083, 0
      %s2086 = ssub.s32 %s86, 2
      %p2087 = scmp.gt.s32.totalorder %s2086, 0
      %s2088 = scalar_select %p2087, %s2086, 0
      %p2089 = scmp.lt.s32.totalorder %s2088, 5
      %s2090 = scalar_select %p2089, %s2088, 5
      %s2091 = smul.addr %s2090, 256
      %s2092 = smul.addr %s2091, 4
      %s2093 = scalar_lea.vmem %s59, %s2092
      %s2094 = ssub.s32 %s86, 2
      %p2095 = scmp.gt.s32.totalorder %s2094, 0
      %s2096 = scalar_select %p2095, %s2094, 0
      %s2097 = ssub.s32 %s86, 2
      %p2098 = scmp.gt.s32.totalorder %s2097, 0
      %s2099 = scalar_select %p2098, %s2097, 0
      %p2100 = scmp.lt.s32.totalorder %s2099, 5
      %s2101 = scalar_select %p2100, %s2099, 5
      %s2102 = scalar_lea.vmem %s61, %s2101
      %s2103 = ssub.s32 %s86, 2
      %p2104 = scmp.gt.s32.totalorder %s2103, 0
      %s2105 = scalar_select %p2104, %s2103, 0
      %s2106 = ssub.s32 %s86, 2
      %p2107 = scmp.gt.s32.totalorder %s2106, 0
      %s2108 = scalar_select %p2107, %s2106, 0
      %p2109 = scmp.lt.s32.totalorder %s2108, 5
      %s2110 = scalar_select %p2109, %s2108, 5
      %s2111 = scalar_lea.vmem %s63, %s2110
      %s2112 = ssub.s32 %s86, 2
      %p2113 = scmp.gt.s32.totalorder %s2112, 0
      %s2114 = scalar_select %p2113, %s2112, 0
      %s2115 = ssub.s32 %s86, 2
      %p2116 = scmp.gt.s32.totalorder %s2115, 0
      %s2117 = scalar_select %p2116, %s2115, 0
      %p2118 = scmp.lt.s32.totalorder %s2117, 5
      %s2119 = scalar_select %p2118, %s2117, 5
      %s2120 = scalar_lea.vmem %s65, %s2119
      %s2121 = ssub.s32 %s86, 2
      %p2122 = scmp.gt.s32.totalorder %s2121, 0
      %s2123 = scalar_select %p2122, %s2121, 0
      %p2125 = scmp.eq.s32.totalorder %s86, 0
      %p2126 = scmp.eq.s32.totalorder %s86, 2
      %p2127 = por %p2125, %p2126
      // Predicated region
      $region169: #{transformer_model_forward.1} parent=167 // pred_check
        %p2128 = pneg %p2127
      $region170: #{transformer_model_forward.1} parent=167 // pred_check_branch
        %2130 = sbr.rel (%p2128) target = $region172
      $region171: #{transformer_model_forward.1} parent=167 // pred_region
        %v2131 = vld [vmem:[%s1] sm:$0xff]
        %v2132 = vld [vmem:[%s1 + $0x8] sm:$0xff]
        %vm2133 = vcmask 261120
        %2134 = vst.msk [vmem:[#allocation2] sm:$0xff] %vm2133, %v2131
        %2135 = vst.msk [vmem:[#allocation2 + $0x8] sm:$0xff] %vm2133, %v2132
      $region172: #{transformer_model_forward.1} parent=167 // pred_fallthru
        _
      %v2136 = vld [vmem:[#allocation2] sm:$0xff]
      %v2137 = vld [vmem:[#allocation2 + $0x8] sm:$0xff]
      %p2138 = scmp.lt.s32.totalorder %s86, 2
      // Predicated region
      $region173: #{transformer_model_forward.1} parent=167 // pred_check
        %p2139 = pneg %p2138
      $region174: #{transformer_model_forward.1} parent=167 // pred_check_branch
        %2141 = sbr.rel (%p2139) target = $region176
      $region175: #{transformer_model_forward.1} parent=167 // pred_region
        %v2142 = vld [vmem:[%s1862] sm:$0xf]
        %v2143 = vld [vmem:[%s1862 + $0x4] sm:$0xf]
        %v2144 = vld [vmem:[%s1862 + $0x8] sm:$0xf]
        %v2145 = vld [vmem:[%s1862 + $0xc] sm:$0xf]
        %v2146 = vld [vmem:[%s1869] sm:$0x1]
        %v2147 = vld [vmem:[%s1878] sm:$0xf]
        %v2148 = vld [vmem:[%s1878 + $0x4] sm:$0xf]
        %v2149 = vld [vmem:[%s1878 + $0x8] sm:$0xf]
        %v2150 = vld [vmem:[%s1878 + $0xc] sm:$0xf]
        %v2151 = vld [vmem:[%s1885] sm:$0x1]
        %v2152 = vpack.c.bf16 %v2137, %v2136
        %v2154 = vlaneseq
        %v2155 = vshrl.u32 %v2154, 7
        %v2156 = vsub.s32 0, %v2155
        %v2157 = vrot.slane %v2146, %v2156
        %v2163 = vunpack.c.l.b16 %v2142
        %v2164 = vunpack.c.l.b16 %v2143
        %v2165 = vunpack.c.l.b16 %v2144
        %v2166 = vunpack.c.l.b16 %v2145
        %v2167 = vpack.c.b16 %v2164, %v2163
        %v2168 = vpack.c.b16 %v2166, %v2165
        %vm2171 = vcmask 261120
        %v2173 = vsel %vm2171, %v2152, 0
        %2175 = vmatprep.subr.bf16.mxu0 0
        %2176 = vmatpush1.bf16.msra.mxu0 %v2167
        %2177 = vmatprep.subr.bf16.mxu0 0
        %2178 = vmatpush1.bf16.msra.mxu0 %v2168
        %2179 = vmatprep.subr.bf16.mxu0 0
        %2180 = vmatpush1.bf16.msra.mxu0 0
        %2181 = vmatprep.subr.bf16.mxu0 0
        %2182 = vmatpush1.bf16.msra.mxu0 0
        %2183 = vmatprep.subr.bf16.mxu0 0
        %2184 = vmatpush1.bf16.msra.mxu0 0
        %2185 = vmatprep.subr.bf16.mxu0 0
        %2186 = vmatpush1.bf16.msra.mxu0 0
        %2187 = vmatprep.subr.bf16.mxu0 0
        %2188 = vmatpush1.bf16.msra.mxu0 0
        %2189 = vmatprep.subr.bf16.mxu0 0
        %2190 = vmatpush1.bf16.msra.mxu0 0
        %2191 = vmatprep.subr.bf16.mxu0 0
        %2192 = vmatpush1.bf16.msra.mxu0 0
        %2193 = vmatprep.subr.bf16.mxu0 0
        %2194 = vmatpush1.bf16.msra.mxu0 0
        %2195 = vmatprep.subr.bf16.mxu0 0
        %2196 = vmatpush1.bf16.msra.mxu0 0
        %2197 = vmatprep.subr.bf16.mxu0 0
        %2198 = vmatpush1.bf16.msra.mxu0 0
        %2199 = vmatprep.subr.bf16.mxu0 0
        %2200 = vmatpush1.bf16.msra.mxu0 0
        %2201 = vmatprep.subr.bf16.mxu0 0
        %2202 = vmatpush1.bf16.msra.mxu0 0
        %2203 = vmatprep.subr.bf16.mxu0 0
        %2204 = vmatpush1.bf16.msra.mxu0 0
        %2205 = vmatprep.subr.bf16.mxu0 0
        %2206 = vmatpush1.bf16.msra.mxu0 0
        %2207 = vmatprep.mubr.bf16.mxu0 0
        %2208 = vmatmul.mubr.bf16.gmra.mrb[0].mxu0 %v2173
        %v2209 = vpop.f32.mrb[0].mxu0
        %v2210 = vadd.f32 %v2157, %v2209
        %v2211 = vpop.f32.mrb[0].mxu0
        %v2212 = vpop.f32.mrb[0].mxu0
        %v2213 = vadd.f32 %v2157, %v2212
        %v2214 = vpop.f32.mrb[0].mxu0
        %2215 = vdwg.mxu0
        %v2216 = vmul.f32 %v2210, 0.35355338
        %v2217 = vmul.f32 %v2213, 0.35355338
        %v2218 = vpack.c.bf16 %v2217, %v2216
        %v2220 = vunpack.c.l.b16 %v2218
        %v2221 = vunpack.c.h.b16 %v2218
        %v2222 = vpack.c.b16 %v2220, %v2220
        %v2223 = vpack.c.b16 %v2221, %v2221
        %v2224 = vpack.c.bf16 %v2213, %v2210
        %v2226 = vunpack.c.l.b16 %v2224
        %v2227 = vunpack.c.h.b16 %v2224
        %v2228 = vpack.c.b16 %v2226, %v2226
        %2229 = vrot.lane.b32.xlu0 %v2228, 96
        %v2230 = vpop.permute.xlu0 %2229
        %vm2231 = vcmask 64512
        %v2233 = vsel %vm2231, %v2222, 0
        %v2236 = vsel %vm2231, %v2230, 0
        %2238 = vmatprep.subr.bf16.mxu0 0
        %2239 = vmatpush1.bf16.xpose.msra.mxu0 %v2236
        %2240 = vmatprep.subr.bf16.mxu0 0
        %2241 = vmatpush1.bf16.xpose.msra.mxu0 0
        %2242 = vmatprep.subr.bf16.mxu0 0
        %2243 = vmatpush1.bf16.xpose.msra.mxu0 0
        %2244 = vmatprep.subr.bf16.mxu0 0
        %2245 = vmatpush1.bf16.xpose.msra.mxu0 0
        %2246 = vmatprep.subr.bf16.mxu0 0
        %2247 = vmatpush1.bf16.xpose.msra.mxu0 0
        %2248 = vmatprep.subr.bf16.mxu0 0
        %2249 = vmatpush1.bf16.xpose.msra.mxu0 0
        %2250 = vmatprep.subr.bf16.mxu0 0
        %2251 = vmatpush1.bf16.xpose.msra.mxu0 0
        %2252 = vmatprep.subr.bf16.mxu0 0
        %2253 = vmatpush1.bf16.xpose.msra.mxu0 0
        %2254 = vmatprep.subr.bf16.mxu0 0
        %2255 = vmatpush1.bf16.xpose.msra.mxu0 0
        %2256 = vmatprep.subr.bf16.mxu0 0
        %2257 = vmatpush1.bf16.xpose.msra.mxu0 0
        %2258 = vmatprep.subr.bf16.mxu0 0
        %2259 = vmatpush1.bf16.xpose.msra.mxu0 0
        %2260 = vmatprep.subr.bf16.mxu0 0
        %2261 = vmatpush1.bf16.xpose.msra.mxu0 0
        %2262 = vmatprep.subr.bf16.mxu0 0
        %2263 = vmatpush1.bf16.xpose.msra.mxu0 0
        %2264 = vmatprep.subr.bf16.mxu0 0
        %2265 = vmatpush1.bf16.xpose.msra.mxu0 0
        %2266 = vmatprep.subr.bf16.mxu0 0
        %2267 = vmatpush1.bf16.xpose.msra.mxu0 0
        %2268 = vmatprep.subr.bf16.mxu0 0
        %2269 = vmatpush1.bf16.xpose.msra.mxu0 0
        %2270 = vmatprep.mubr.bf16.mxu0 0
        %2271 = vmatmul.mubr.bf16.gmra.mrb[0].mxu0 %v2233
        %v2272 = vpop.f32.mrb[0].mxu0
        %v2273 = vadd.f32 0.0, %v2272
        %v2274 = vpop.f32.mrb[0].mxu0
        %v2275 = vpop.f32.mrb[0].mxu0
        %v2276 = vpop.f32.mrb[0].mxu0
        %2277 = vdwg.mxu0
        %v2278 = vpack.c.b16 %v2227, %v2227
        %2279 = vrot.lane.b32.xlu0 %v2278, 96
        %v2280 = vpop.permute.xlu0 %2279
        %v2282 = vsel %vm2231, %v2223, 0
        %v2285 = vsel %vm2231, %v2280, 0
        %2287 = vmatprep.subr.bf16.mxu0 0
        %2288 = vmatpush1.bf16.xpose.msra.mxu0 %v2285
        %2289 = vmatprep.subr.bf16.mxu0 0
        %2290 = vmatpush1.bf16.xpose.msra.mxu0 0
        %2291 = vmatprep.subr.bf16.mxu0 0
        %2292 = vmatpush1.bf16.xpose.msra.mxu0 0
        %2293 = vmatprep.subr.bf16.mxu0 0
        %2294 = vmatpush1.bf16.xpose.msra.mxu0 0
        %2295 = vmatprep.subr.bf16.mxu0 0
        %2296 = vmatpush1.bf16.xpose.msra.mxu0 0
        %2297 = vmatprep.subr.bf16.mxu0 0
        %2298 = vmatpush1.bf16.xpose.msra.mxu0 0
        %2299 = vmatprep.subr.bf16.mxu0 0
        %2300 = vmatpush1.bf16.xpose.msra.mxu0 0
        %2301 = vmatprep.subr.bf16.mxu0 0
        %2302 = vmatpush1.bf16.xpose.msra.mxu0 0
        %2303 = vmatprep.subr.bf16.mxu0 0
        %2304 = vmatpush1.bf16.xpose.msra.mxu0 0
        %2305 = vmatprep.subr.bf16.mxu0 0
        %2306 = vmatpush1.bf16.xpose.msra.mxu0 0
        %2307 = vmatprep.subr.bf16.mxu0 0
        %2308 = vmatpush1.bf16.xpose.msra.mxu0 0
        %2309 = vmatprep.subr.bf16.mxu0 0
        %2310 = vmatpush1.bf16.xpose.msra.mxu0 0
        %2311 = vmatprep.subr.bf16.mxu0 0
        %2312 = vmatpush1.bf16.xpose.msra.mxu0 0
        %2313 = vmatprep.subr.bf16.mxu0 0
        %2314 = vmatpush1.bf16.xpose.msra.mxu0 0
        %2315 = vmatprep.subr.bf16.mxu0 0
        %2316 = vmatpush1.bf16.xpose.msra.mxu0 0
        %2317 = vmatprep.subr.bf16.mxu0 0
        %2318 = vmatpush1.bf16.xpose.msra.mxu0 0
        %2319 = vmatprep.mubr.bf16.mxu0 0
        %2320 = vmatmul.mubr.bf16.gmra.mrb[0].mxu0 %v2282
        %v2321 = vpop.f32.mrb[0].mxu0
        %v2322 = vadd.f32 0.0, %v2321
        %v2323 = vpop.f32.mrb[0].mxu0
        %v2324 = vpop.f32.mrb[0].mxu0
        %v2325 = vpop.f32.mrb[0].mxu0
        %2326 = vdwg.mxu0
        %v2327 = vsel %vm2231, %v2273, -inf
        %2328 = vmax.xlane.f32.xlu0 %v2327
        %v2329 = vpop.xlane.xlu0 %2328
        %v2330 = vsel %vm2231, %v2322, -inf
        %2331 = vmax.xlane.f32.xlu0 %v2330
        %v2332 = vpop.xlane.xlu0 %2331
        %v2333 = vsub.f32 %v2273, %v2329
        %v2334 = vsub.f32 %v2322, %v2332
        %v2335 = vmul.f32 %v2333, 1.442695
        %v2336 = vpow.pop %v2335
        %v2337 = vmul.f32 %v2334, 1.442695
        %v2338 = vpow.pop %v2337
        %v2339 = vsel %vm2231, %v2336, 0.0
        %2340 = vadd.xlane.f32.xlu0 %v2339
        %v2341 = vpop.xlane.xlu0 %2340
        %v2342 = vsel %vm2231, %v2338, 0.0
        %2343 = vadd.xlane.f32.xlu0 %v2342
        %v2344 = vpop.xlane.xlu0 %2343
        %v2345 = vrcp.pop %v2341
        %v2346 = vrcp.pop %v2344
        %v2347 = vmul.f32 %v2336, %v2345
        %v2348 = vmul.f32 %v2338, %v2346
        %v2349 = vpack.c.bf16 %v2347, %v2347
        %v2350 = vpack.c.bf16 %v2348, %v2348
        %2351 = vrot.lane.b32.xlu0 %v2228, 64
        %v2352 = vpop.permute.xlu0 %2351
        %v2354 = vsel %vm2231, %v2349, 0
        %vm2356 = vcmask 1043456
        %v2358 = vsel %vm2356, %v2352, 0
        %2360 = vmatprep.subr.bf16.mxu0 0
        %2361 = vmatpush1.bf16.msra.mxu0 %v2358
        %2362 = vmatprep.subr.bf16.mxu0 0
        %2363 = vmatpush1.bf16.msra.mxu0 0
        %2364 = vmatprep.subr.bf16.mxu0 0
        %2365 = vmatpush1.bf16.msra.mxu0 0
        %2366 = vmatprep.subr.bf16.mxu0 0
        %2367 = vmatpush1.bf16.msra.mxu0 0
        %2368 = vmatprep.subr.bf16.mxu0 0
        %2369 = vmatpush1.bf16.msra.mxu0 0
        %2370 = vmatprep.subr.bf16.mxu0 0
        %2371 = vmatpush1.bf16.msra.mxu0 0
        %2372 = vmatprep.subr.bf16.mxu0 0
        %2373 = vmatpush1.bf16.msra.mxu0 0
        %2374 = vmatprep.subr.bf16.mxu0 0
        %2375 = vmatpush1.bf16.msra.mxu0 0
        %2376 = vmatprep.subr.bf16.mxu0 0
        %2377 = vmatpush1.bf16.msra.mxu0 0
        %2378 = vmatprep.subr.bf16.mxu0 0
        %2379 = vmatpush1.bf16.msra.mxu0 0
        %2380 = vmatprep.subr.bf16.mxu0 0
        %2381 = vmatpush1.bf16.msra.mxu0 0
        %2382 = vmatprep.subr.bf16.mxu0 0
        %2383 = vmatpush1.bf16.msra.mxu0 0
        %2384 = vmatprep.subr.bf16.mxu0 0
        %2385 = vmatpush1.bf16.msra.mxu0 0
        %2386 = vmatprep.subr.bf16.mxu0 0
        %2387 = vmatpush1.bf16.msra.mxu0 0
        %2388 = vmatprep.subr.bf16.mxu0 0
        %2389 = vmatpush1.bf16.msra.mxu0 0
        %2390 = vmatprep.subr.bf16.mxu0 0
        %2391 = vmatpush1.bf16.msra.mxu0 0
        %2392 = vmatprep.mubr.bf16.mxu0 0
        %2393 = vmatmul.mubr.bf16.gmra.mrb[0].mxu0 %v2354
        %v2394 = vpop.f32.mrb[0].mxu0
        %v2395 = vadd.f32 0.0, %v2394
        %v2396 = vpop.f32.mrb[0].mxu0
        %v2397 = vpop.f32.mrb[0].mxu0
        %v2398 = vpop.f32.mrb[0].mxu0
        %2399 = vdwg.mxu0
        %2400 = vrot.lane.b32.xlu0 %v2278, 64
        %v2401 = vpop.permute.xlu0 %2400
        %v2403 = vsel %vm2231, %v2350, 0
        %v2406 = vsel %vm2356, %v2401, 0
        %2408 = vmatprep.subr.bf16.mxu0 0
        %2409 = vmatpush1.bf16.msra.mxu0 %v2406
        %2410 = vmatprep.subr.bf16.mxu0 0
        %2411 = vmatpush1.bf16.msra.mxu0 0
        %2412 = vmatprep.subr.bf16.mxu0 0
        %2413 = vmatpush1.bf16.msra.mxu0 0
        %2414 = vmatprep.subr.bf16.mxu0 0
        %2415 = vmatpush1.bf16.msra.mxu0 0
        %2416 = vmatprep.subr.bf16.mxu0 0
        %2417 = vmatpush1.bf16.msra.mxu0 0
        %2418 = vmatprep.subr.bf16.mxu0 0
        %2419 = vmatpush1.bf16.msra.mxu0 0
        %2420 = vmatprep.subr.bf16.mxu0 0
        %2421 = vmatpush1.bf16.msra.mxu0 0
        %2422 = vmatprep.subr.bf16.mxu0 0
        %2423 = vmatpush1.bf16.msra.mxu0 0
        %2424 = vmatprep.subr.bf16.mxu0 0
        %2425 = vmatpush1.bf16.msra.mxu0 0
        %2426 = vmatprep.subr.bf16.mxu0 0
        %2427 = vmatpush1.bf16.msra.mxu0 0
        %2428 = vmatprep.subr.bf16.mxu0 0
        %2429 = vmatpush1.bf16.msra.mxu0 0
        %2430 = vmatprep.subr.bf16.mxu0 0
        %2431 = vmatpush1.bf16.msra.mxu0 0
        %2432 = vmatprep.subr.bf16.mxu0 0
        %2433 = vmatpush1.bf16.msra.mxu0 0
        %2434 = vmatprep.subr.bf16.mxu0 0
        %2435 = vmatpush1.bf16.msra.mxu0 0
        %2436 = vmatprep.subr.bf16.mxu0 0
        %2437 = vmatpush1.bf16.msra.mxu0 0
        %2438 = vmatprep.subr.bf16.mxu0 0
        %2439 = vmatpush1.bf16.msra.mxu0 0
        %2440 = vmatprep.mubr.bf16.mxu0 0
        %2441 = vmatmul.mubr.bf16.gmra.mrb[0].mxu0 %v2403
        %v2442 = vpop.f32.mrb[0].mxu0
        %v2443 = vadd.f32 0.0, %v2442
        %v2444 = vpop.f32.mrb[0].mxu0
        %v2445 = vpop.f32.mrb[0].mxu0
        %v2446 = vpop.f32.mrb[0].mxu0
        %2447 = vdwg.mxu0
        %2448 = vrot.lane.b32.xlu0 %v2222, 120
        %v2449 = vpop.permute.xlu0 %2448
        %2450 = vrot.lane.b32.xlu0 %v2228, 88
        %v2451 = vpop.permute.xlu0 %2450
        %v2453 = vsel %vm2231, %v2449, 0
        %v2456 = vsel %vm2231, %v2451, 0
        %2458 = vmatprep.subr.bf16.mxu0 0
        %2459 = vmatpush1.bf16.xpose.msra.mxu0 %v2456
        %2460 = vmatprep.subr.bf16.mxu0 0
        %2461 = vmatpush1.bf16.xpose.msra.mxu0 0
        %2462 = vmatprep.subr.bf16.mxu0 0
        %2463 = vmatpush1.bf16.xpose.msra.mxu0 0
        %2464 = vmatprep.subr.bf16.mxu0 0
        %2465 = vmatpush1.bf16.xpose.msra.mxu0 0
        %2466 = vmatprep.subr.bf16.mxu0 0
        %2467 = vmatpush1.bf16.xpose.msra.mxu0 0
        %2468 = vmatprep.subr.bf16.mxu0 0
        %2469 = vmatpush1.bf16.xpose.msra.mxu0 0
        %2470 = vmatprep.subr.bf16.mxu0 0
        %2471 = vmatpush1.bf16.xpose.msra.mxu0 0
        %2472 = vmatprep.subr.bf16.mxu0 0
        %2473 = vmatpush1.bf16.xpose.msra.mxu0 0
        %2474 = vmatprep.subr.bf16.mxu0 0
        %2475 = vmatpush1.bf16.xpose.msra.mxu0 0
        %2476 = vmatprep.subr.bf16.mxu0 0
        %2477 = vmatpush1.bf16.xpose.msra.mxu0 0
        %2478 = vmatprep.subr.bf16.mxu0 0
        %2479 = vmatpush1.bf16.xpose.msra.mxu0 0
        %2480 = vmatprep.subr.bf16.mxu0 0
        %2481 = vmatpush1.bf16.xpose.msra.mxu0 0
        %2482 = vmatprep.subr.bf16.mxu0 0
        %2483 = vmatpush1.bf16.xpose.msra.mxu0 0
        %2484 = vmatprep.subr.bf16.mxu0 0
        %2485 = vmatpush1.bf16.xpose.msra.mxu0 0
        %2486 = vmatprep.subr.bf16.mxu0 0
        %2487 = vmatpush1.bf16.xpose.msra.mxu0 0
        %2488 = vmatprep.subr.bf16.mxu0 0
        %2489 = vmatpush1.bf16.xpose.msra.mxu0 0
        %2490 = vmatprep.mubr.bf16.mxu0 0
        %2491 = vmatmul.mubr.bf16.gmra.mrb[0].mxu0 %v2453
        %v2492 = vpop.f32.mrb[0].mxu0
        %v2493 = vadd.f32 0.0, %v2492
        %v2494 = vpop.f32.mrb[0].mxu0
        %v2495 = vpop.f32.mrb[0].mxu0
        %v2496 = vpop.f32.mrb[0].mxu0
        %2497 = vdwg.mxu0
        %2498 = vrot.lane.b32.xlu0 %v2223, 120
        %v2499 = vpop.permute.xlu0 %2498
        %2500 = vrot.lane.b32.xlu0 %v2278, 88
        %v2501 = vpop.permute.xlu0 %2500
        %v2503 = vsel %vm2231, %v2499, 0
        %v2506 = vsel %vm2231, %v2501, 0
        %2508 = vmatprep.subr.bf16.mxu0 0
        %2509 = vmatpush1.bf16.xpose.msra.mxu0 %v2506
        %2510 = vmatprep.subr.bf16.mxu0 0
        %2511 = vmatpush1.bf16.xpose.msra.mxu0 0
        %2512 = vmatprep.subr.bf16.mxu0 0
        %2513 = vmatpush1.bf16.xpose.msra.mxu0 0
        %2514 = vmatprep.subr.bf16.mxu0 0
        %2515 = vmatpush1.bf16.xpose.msra.mxu0 0
        %2516 = vmatprep.subr.bf16.mxu0 0
        %2517 = vmatpush1.bf16.xpose.msra.mxu0 0
        %2518 = vmatprep.subr.bf16.mxu0 0
        %2519 = vmatpush1.bf16.xpose.msra.mxu0 0
        %2520 = vmatprep.subr.bf16.mxu0 0
        %2521 = vmatpush1.bf16.xpose.msra.mxu0 0
        %2522 = vmatprep.subr.bf16.mxu0 0
        %2523 = vmatpush1.bf16.xpose.msra.mxu0 0
        %2524 = vmatprep.subr.bf16.mxu0 0
        %2525 = vmatpush1.bf16.xpose.msra.mxu0 0
        %2526 = vmatprep.subr.bf16.mxu0 0
        %2527 = vmatpush1.bf16.xpose.msra.mxu0 0
        %2528 = vmatprep.subr.bf16.mxu0 0
        %2529 = vmatpush1.bf16.xpose.msra.mxu0 0
        %2530 = vmatprep.subr.bf16.mxu0 0
        %2531 = vmatpush1.bf16.xpose.msra.mxu0 0
        %2532 = vmatprep.subr.bf16.mxu0 0
        %2533 = vmatpush1.bf16.xpose.msra.mxu0 0
        %2534 = vmatprep.subr.bf16.mxu0 0
        %2535 = vmatpush1.bf16.xpose.msra.mxu0 0
        %2536 = vmatprep.subr.bf16.mxu0 0
        %2537 = vmatpush1.bf16.xpose.msra.mxu0 0
        %2538 = vmatprep.subr.bf16.mxu0 0
        %2539 = vmatpush1.bf16.xpose.msra.mxu0 0
        %2540 = vmatprep.mubr.bf16.mxu0 0
        %2541 = vmatmul.mubr.bf16.gmra.mrb[0].mxu0 %v2503
        %v2542 = vpop.f32.mrb[0].mxu0
        %v2543 = vadd.f32 0.0, %v2542
        %v2544 = vpop.f32.mrb[0].mxu0
        %v2545 = vpop.f32.mrb[0].mxu0
        %v2546 = vpop.f32.mrb[0].mxu0
        %2547 = vdwg.mxu0
        %v2548 = vsel %vm2231, %v2493, -inf
        %2549 = vmax.xlane.f32.xlu0 %v2548
        %v2550 = vpop.xlane.xlu0 %2549
        %v2551 = vsel %vm2231, %v2543, -inf
        %2552 = vmax.xlane.f32.xlu0 %v2551
        %v2553 = vpop.xlane.xlu0 %2552
        %v2554 = vsub.f32 %v2493, %v2550
        %v2555 = vsub.f32 %v2543, %v2553
        %v2556 = vmul.f32 %v2554, 1.442695
        %v2557 = vpow.pop %v2556
        %v2558 = vmul.f32 %v2555, 1.442695
        %v2559 = vpow.pop %v2558
        %v2560 = vsel %vm2231, %v2557, 0.0
        %2561 = vadd.xlane.f32.xlu0 %v2560
        %v2562 = vpop.xlane.xlu0 %2561
        %v2563 = vsel %vm2231, %v2559, 0.0
        %2564 = vadd.xlane.f32.xlu0 %v2563
        %v2565 = vpop.xlane.xlu0 %2564
        %v2566 = vrcp.pop %v2562
        %v2567 = vrcp.pop %v2565
        %v2568 = vmul.f32 %v2557, %v2566
        %v2569 = vmul.f32 %v2559, %v2567
        %v2570 = vpack.c.bf16 %v2568, %v2568
        %v2571 = vpack.c.bf16 %v2569, %v2569
        %2572 = vrot.lane.b32.xlu0 %v2228, 56
        %v2573 = vpop.permute.xlu0 %2572
        %v2575 = vsel %vm2231, %v2570, 0
        %v2578 = vsel %vm2356, %v2573, 0
        %2580 = vmatprep.subr.bf16.mxu0 0
        %2581 = vmatpush1.bf16.msra.mxu0 %v2578
        %2582 = vmatprep.subr.bf16.mxu0 0
        %2583 = vmatpush1.bf16.msra.mxu0 0
        %2584 = vmatprep.subr.bf16.mxu0 0
        %2585 = vmatpush1.bf16.msra.mxu0 0
        %2586 = vmatprep.subr.bf16.mxu0 0
        %2587 = vmatpush1.bf16.msra.mxu0 0
        %2588 = vmatprep.subr.bf16.mxu0 0
        %2589 = vmatpush1.bf16.msra.mxu0 0
        %2590 = vmatprep.subr.bf16.mxu0 0
        %2591 = vmatpush1.bf16.msra.mxu0 0
        %2592 = vmatprep.subr.bf16.mxu0 0
        %2593 = vmatpush1.bf16.msra.mxu0 0
        %2594 = vmatprep.subr.bf16.mxu0 0
        %2595 = vmatpush1.bf16.msra.mxu0 0
        %2596 = vmatprep.subr.bf16.mxu0 0
        %2597 = vmatpush1.bf16.msra.mxu0 0
        %2598 = vmatprep.subr.bf16.mxu0 0
        %2599 = vmatpush1.bf16.msra.mxu0 0
        %2600 = vmatprep.subr.bf16.mxu0 0
        %2601 = vmatpush1.bf16.msra.mxu0 0
        %2602 = vmatprep.subr.bf16.mxu0 0
        %2603 = vmatpush1.bf16.msra.mxu0 0
        %2604 = vmatprep.subr.bf16.mxu0 0
        %2605 = vmatpush1.bf16.msra.mxu0 0
        %2606 = vmatprep.subr.bf16.mxu0 0
        %2607 = vmatpush1.bf16.msra.mxu0 0
        %2608 = vmatprep.subr.bf16.mxu0 0
        %2609 = vmatpush1.bf16.msra.mxu0 0
        %2610 = vmatprep.subr.bf16.mxu0 0
        %2611 = vmatpush1.bf16.msra.mxu0 0
        %2612 = vmatprep.mubr.bf16.mxu0 0
        %2613 = vmatmul.mubr.bf16.gmra.mrb[0].mxu0 %v2575
        %v2614 = vpop.f32.mrb[0].mxu0
        %v2615 = vadd.f32 0.0, %v2614
        %v2616 = vpop.f32.mrb[0].mxu0
        %v2617 = vpop.f32.mrb[0].mxu0
        %v2618 = vpop.f32.mrb[0].mxu0
        %2619 = vdwg.mxu0
        %2620 = vrot.lane.b32.xlu0 %v2278, 56
        %v2621 = vpop.permute.xlu0 %2620
        %v2623 = vsel %vm2231, %v2571, 0
        %v2626 = vsel %vm2356, %v2621, 0
        %2628 = vmatprep.subr.bf16.mxu0 0
        %2629 = vmatpush1.bf16.msra.mxu0 %v2626
        %2630 = vmatprep.subr.bf16.mxu0 0
        %2631 = vmatpush1.bf16.msra.mxu0 0
        %2632 = vmatprep.subr.bf16.mxu0 0
        %2633 = vmatpush1.bf16.msra.mxu0 0
        %2634 = vmatprep.subr.bf16.mxu0 0
        %2635 = vmatpush1.bf16.msra.mxu0 0
        %2636 = vmatprep.subr.bf16.mxu0 0
        %2637 = vmatpush1.bf16.msra.mxu0 0
        %2638 = vmatprep.subr.bf16.mxu0 0
        %2639 = vmatpush1.bf16.msra.mxu0 0
        %2640 = vmatprep.subr.bf16.mxu0 0
        %2641 = vmatpush1.bf16.msra.mxu0 0
        %2642 = vmatprep.subr.bf16.mxu0 0
        %2643 = vmatpush1.bf16.msra.mxu0 0
        %2644 = vmatprep.subr.bf16.mxu0 0
        %2645 = vmatpush1.bf16.msra.mxu0 0
        %2646 = vmatprep.subr.bf16.mxu0 0
        %2647 = vmatpush1.bf16.msra.mxu0 0
        %2648 = vmatprep.subr.bf16.mxu0 0
        %2649 = vmatpush1.bf16.msra.mxu0 0
        %2650 = vmatprep.subr.bf16.mxu0 0
        %2651 = vmatpush1.bf16.msra.mxu0 0
        %2652 = vmatprep.subr.bf16.mxu0 0
        %2653 = vmatpush1.bf16.msra.mxu0 0
        %2654 = vmatprep.subr.bf16.mxu0 0
        %2655 = vmatpush1.bf16.msra.mxu0 0
        %2656 = vmatprep.subr.bf16.mxu0 0
        %2657 = vmatpush1.bf16.msra.mxu0 0
        %2658 = vmatprep.subr.bf16.mxu0 0
        %2659 = vmatpush1.bf16.msra.mxu0 0
        %2660 = vmatprep.mubr.bf16.mxu0 0
        %2661 = vmatmul.mubr.bf16.gmra.mrb[0].mxu0 %v2623
        %v2662 = vpop.f32.mrb[0].mxu0
        %v2663 = vadd.f32 0.0, %v2662
        %v2664 = vpop.f32.mrb[0].mxu0
        %v2665 = vpop.f32.mrb[0].mxu0
        %v2666 = vpop.f32.mrb[0].mxu0
        %2667 = vdwg.mxu0
        %2668 = vrot.lane.b32.xlu0 %v2222, 112
        %v2669 = vpop.permute.xlu0 %2668
        %2670 = vrot.lane.b32.xlu0 %v2228, 80
        %v2671 = vpop.permute.xlu0 %2670
        %v2673 = vsel %vm2231, %v2669, 0
        %v2676 = vsel %vm2231, %v2671, 0
        %2678 = vmatprep.subr.bf16.mxu0 0
        %2679 = vmatpush1.bf16.xpose.msra.mxu0 %v2676
        %2680 = vmatprep.subr.bf16.mxu0 0
        %2681 = vmatpush1.bf16.xpose.msra.mxu0 0
        %2682 = vmatprep.subr.bf16.mxu0 0
        %2683 = vmatpush1.bf16.xpose.msra.mxu0 0
        %2684 = vmatprep.subr.bf16.mxu0 0
        %2685 = vmatpush1.bf16.xpose.msra.mxu0 0
        %2686 = vmatprep.subr.bf16.mxu0 0
        %2687 = vmatpush1.bf16.xpose.msra.mxu0 0
        %2688 = vmatprep.subr.bf16.mxu0 0
        %2689 = vmatpush1.bf16.xpose.msra.mxu0 0
        %2690 = vmatprep.subr.bf16.mxu0 0
        %2691 = vmatpush1.bf16.xpose.msra.mxu0 0
        %2692 = vmatprep.subr.bf16.mxu0 0
        %2693 = vmatpush1.bf16.xpose.msra.mxu0 0
        %2694 = vmatprep.subr.bf16.mxu0 0
        %2695 = vmatpush1.bf16.xpose.msra.mxu0 0
        %2696 = vmatprep.subr.bf16.mxu0 0
        %2697 = vmatpush1.bf16.xpose.msra.mxu0 0
        %2698 = vmatprep.subr.bf16.mxu0 0
        %2699 = vmatpush1.bf16.xpose.msra.mxu0 0
        %2700 = vmatprep.subr.bf16.mxu0 0
        %2701 = vmatpush1.bf16.xpose.msra.mxu0 0
        %2702 = vmatprep.subr.bf16.mxu0 0
        %2703 = vmatpush1.bf16.xpose.msra.mxu0 0
        %2704 = vmatprep.subr.bf16.mxu0 0
        %2705 = vmatpush1.bf16.xpose.msra.mxu0 0
        %2706 = vmatprep.subr.bf16.mxu0 0
        %2707 = vmatpush1.bf16.xpose.msra.mxu0 0
        %2708 = vmatprep.subr.bf16.mxu0 0
        %2709 = vmatpush1.bf16.xpose.msra.mxu0 0
        %2710 = vmatprep.mubr.bf16.mxu0 0
        %2711 = vmatmul.mubr.bf16.gmra.mrb[0].mxu0 %v2673
        %v2712 = vpop.f32.mrb[0].mxu0
        %v2713 = vadd.f32 0.0, %v2712
        %v2714 = vpop.f32.mrb[0].mxu0
        %v2715 = vpop.f32.mrb[0].mxu0
        %v2716 = vpop.f32.mrb[0].mxu0
        %2717 = vdwg.mxu0
        %2718 = vrot.lane.b32.xlu0 %v2223, 112
        %v2719 = vpop.permute.xlu0 %2718
        %2720 = vrot.lane.b32.xlu0 %v2278, 80
        %v2721 = vpop.permute.xlu0 %2720
        %v2723 = vsel %vm2231, %v2719, 0
        %v2726 = vsel %vm2231, %v2721, 0
        %2728 = vmatprep.subr.bf16.mxu0 0
        %2729 = vmatpush1.bf16.xpose.msra.mxu0 %v2726
        %2730 = vmatprep.subr.bf16.mxu0 0
        %2731 = vmatpush1.bf16.xpose.msra.mxu0 0
        %2732 = vmatprep.subr.bf16.mxu0 0
        %2733 = vmatpush1.bf16.xpose.msra.mxu0 0
        %2734 = vmatprep.subr.bf16.mxu0 0
        %2735 = vmatpush1.bf16.xpose.msra.mxu0 0
        %2736 = vmatprep.subr.bf16.mxu0 0
        %2737 = vmatpush1.bf16.xpose.msra.mxu0 0
        %2738 = vmatprep.subr.bf16.mxu0 0
        %2739 = vmatpush1.bf16.xpose.msra.mxu0 0
        %2740 = vmatprep.subr.bf16.mxu0 0
        %2741 = vmatpush1.bf16.xpose.msra.mxu0 0
        %2742 = vmatprep.subr.bf16.mxu0 0
        %2743 = vmatpush1.bf16.xpose.msra.mxu0 0
        %2744 = vmatprep.subr.bf16.mxu0 0
        %2745 = vmatpush1.bf16.xpose.msra.mxu0 0
        %2746 = vmatprep.subr.bf16.mxu0 0
        %2747 = vmatpush1.bf16.xpose.msra.mxu0 0
        %2748 = vmatprep.subr.bf16.mxu0 0
        %2749 = vmatpush1.bf16.xpose.msra.mxu0 0
        %2750 = vmatprep.subr.bf16.mxu0 0
        %2751 = vmatpush1.bf16.xpose.msra.mxu0 0
        %2752 = vmatprep.subr.bf16.mxu0 0
        %2753 = vmatpush1.bf16.xpose.msra.mxu0 0
        %2754 = vmatprep.subr.bf16.mxu0 0
        %2755 = vmatpush1.bf16.xpose.msra.mxu0 0
        %2756 = vmatprep.subr.bf16.mxu0 0
        %2757 = vmatpush1.bf16.xpose.msra.mxu0 0
        %2758 = vmatprep.subr.bf16.mxu0 0
        %2759 = vmatpush1.bf16.xpose.msra.mxu0 0
        %2760 = vmatprep.mubr.bf16.mxu0 0
        %2761 = vmatmul.mubr.bf16.gmra.mrb[0].mxu0 %v2723
        %v2762 = vpop.f32.mrb[0].mxu0
        %v2763 = vadd.f32 0.0, %v2762
        %v2764 = vpop.f32.mrb[0].mxu0
        %v2765 = vpop.f32.mrb[0].mxu0
        %v2766 = vpop.f32.mrb[0].mxu0
        %2767 = vdwg.mxu0
        %v2768 = vsel %vm2231, %v2713, -inf
        %2769 = vmax.xlane.f32.xlu0 %v2768
        %v2770 = vpop.xlane.xlu0 %2769
        %v2771 = vsel %vm2231, %v2763, -inf
        %2772 = vmax.xlane.f32.xlu0 %v2771
        %v2773 = vpop.xlane.xlu0 %2772
        %v2774 = vsub.f32 %v2713, %v2770
        %v2775 = vsub.f32 %v2763, %v2773
        %v2776 = vmul.f32 %v2774, 1.442695
        %v2777 = vpow.pop %v2776
        %v2778 = vmul.f32 %v2775, 1.442695
        %v2779 = vpow.pop %v2778
        %v2780 = vsel %vm2231, %v2777, 0.0
        %2781 = vadd.xlane.f32.xlu0 %v2780
        %v2782 = vpop.xlane.xlu0 %2781
        %v2783 = vsel %vm2231, %v2779, 0.0
        %2784 = vadd.xlane.f32.xlu0 %v2783
        %v2785 = vpop.xlane.xlu0 %2784
        %v2786 = vrcp.pop %v2782
        %v2787 = vrcp.pop %v2785
        %v2788 = vmul.f32 %v2777, %v2786
        %v2789 = vmul.f32 %v2779, %v2787
        %v2790 = vpack.c.bf16 %v2788, %v2788
        %v2791 = vpack.c.bf16 %v2789, %v2789
        %2792 = vrot.lane.b32.xlu0 %v2228, 48
        %v2793 = vpop.permute.xlu0 %2792
        %v2795 = vsel %vm2231, %v2790, 0
        %v2798 = vsel %vm2356, %v2793, 0
        %2800 = vmatprep.subr.bf16.mxu0 0
        %2801 = vmatpush1.bf16.msra.mxu0 %v2798
        %2802 = vmatprep.subr.bf16.mxu0 0
        %2803 = vmatpush1.bf16.msra.mxu0 0
        %2804 = vmatprep.subr.bf16.mxu0 0
        %2805 = vmatpush1.bf16.msra.mxu0 0
        %2806 = vmatprep.subr.bf16.mxu0 0
        %2807 = vmatpush1.bf16.msra.mxu0 0
        %2808 = vmatprep.subr.bf16.mxu0 0
        %2809 = vmatpush1.bf16.msra.mxu0 0
        %2810 = vmatprep.subr.bf16.mxu0 0
        %2811 = vmatpush1.bf16.msra.mxu0 0
        %2812 = vmatprep.subr.bf16.mxu0 0
        %2813 = vmatpush1.bf16.msra.mxu0 0
        %2814 = vmatprep.subr.bf16.mxu0 0
        %2815 = vmatpush1.bf16.msra.mxu0 0
        %2816 = vmatprep.subr.bf16.mxu0 0
        %2817 = vmatpush1.bf16.msra.mxu0 0
        %2818 = vmatprep.subr.bf16.mxu0 0
        %2819 = vmatpush1.bf16.msra.mxu0 0
        %2820 = vmatprep.subr.bf16.mxu0 0
        %2821 = vmatpush1.bf16.msra.mxu0 0
        %2822 = vmatprep.subr.bf16.mxu0 0
        %2823 = vmatpush1.bf16.msra.mxu0 0
        %2824 = vmatprep.subr.bf16.mxu0 0
        %2825 = vmatpush1.bf16.msra.mxu0 0
        %2826 = vmatprep.subr.bf16.mxu0 0
        %2827 = vmatpush1.bf16.msra.mxu0 0
        %2828 = vmatprep.subr.bf16.mxu0 0
        %2829 = vmatpush1.bf16.msra.mxu0 0
        %2830 = vmatprep.subr.bf16.mxu0 0
        %2831 = vmatpush1.bf16.msra.mxu0 0
        %2832 = vmatprep.mubr.bf16.mxu0 0
        %2833 = vmatmul.mubr.bf16.gmra.mrb[0].mxu0 %v2795
        %v2834 = vpop.f32.mrb[0].mxu0
        %v2835 = vadd.f32 0.0, %v2834
        %v2836 = vpop.f32.mrb[0].mxu0
        %v2837 = vpop.f32.mrb[0].mxu0
        %v2838 = vpop.f32.mrb[0].mxu0
        %2839 = vdwg.mxu0
        %2840 = vrot.lane.b32.xlu0 %v2278, 48
        %v2841 = vpop.permute.xlu0 %2840
        %v2843 = vsel %vm2231, %v2791, 0
        %v2846 = vsel %vm2356, %v2841, 0
        %2848 = vmatprep.subr.bf16.mxu0 0
        %2849 = vmatpush1.bf16.msra.mxu0 %v2846
        %2850 = vmatprep.subr.bf16.mxu0 0
        %2851 = vmatpush1.bf16.msra.mxu0 0
        %2852 = vmatprep.subr.bf16.mxu0 0
        %2853 = vmatpush1.bf16.msra.mxu0 0
        %2854 = vmatprep.subr.bf16.mxu0 0
        %2855 = vmatpush1.bf16.msra.mxu0 0
        %2856 = vmatprep.subr.bf16.mxu0 0
        %2857 = vmatpush1.bf16.msra.mxu0 0
        %2858 = vmatprep.subr.bf16.mxu0 0
        %2859 = vmatpush1.bf16.msra.mxu0 0
        %2860 = vmatprep.subr.bf16.mxu0 0
        %2861 = vmatpush1.bf16.msra.mxu0 0
        %2862 = vmatprep.subr.bf16.mxu0 0
        %2863 = vmatpush1.bf16.msra.mxu0 0
        %2864 = vmatprep.subr.bf16.mxu0 0
        %2865 = vmatpush1.bf16.msra.mxu0 0
        %2866 = vmatprep.subr.bf16.mxu0 0
        %2867 = vmatpush1.bf16.msra.mxu0 0
        %2868 = vmatprep.subr.bf16.mxu0 0
        %2869 = vmatpush1.bf16.msra.mxu0 0
        %2870 = vmatprep.subr.bf16.mxu0 0
        %2871 = vmatpush1.bf16.msra.mxu0 0
        %2872 = vmatprep.subr.bf16.mxu0 0
        %2873 = vmatpush1.bf16.msra.mxu0 0
        %2874 = vmatprep.subr.bf16.mxu0 0
        %2875 = vmatpush1.bf16.msra.mxu0 0
        %2876 = vmatprep.subr.bf16.mxu0 0
        %2877 = vmatpush1.bf16.msra.mxu0 0
        %2878 = vmatprep.subr.bf16.mxu0 0
        %2879 = vmatpush1.bf16.msra.mxu0 0
        %2880 = vmatprep.mubr.bf16.mxu0 0
        %2881 = vmatmul.mubr.bf16.gmra.mrb[0].mxu0 %v2843
        %v2882 = vpop.f32.mrb[0].mxu0
        %v2883 = vadd.f32 0.0, %v2882
        %v2884 = vpop.f32.mrb[0].mxu0
        %v2885 = vpop.f32.mrb[0].mxu0
        %v2886 = vpop.f32.mrb[0].mxu0
        %2887 = vdwg.mxu0
        %2888 = vrot.lane.b32.xlu0 %v2222, 104
        %v2889 = vpop.permute.xlu0 %2888
        %2890 = vrot.lane.b32.xlu0 %v2228, 72
        %v2891 = vpop.permute.xlu0 %2890
        %v2893 = vsel %vm2231, %v2889, 0
        %v2896 = vsel %vm2231, %v2891, 0
        %2898 = vmatprep.subr.bf16.mxu0 0
        %2899 = vmatpush1.bf16.xpose.msra.mxu0 %v2896
        %2900 = vmatprep.subr.bf16.mxu0 0
        %2901 = vmatpush1.bf16.xpose.msra.mxu0 0
        %2902 = vmatprep.subr.bf16.mxu0 0
        %2903 = vmatpush1.bf16.xpose.msra.mxu0 0
        %2904 = vmatprep.subr.bf16.mxu0 0
        %2905 = vmatpush1.bf16.xpose.msra.mxu0 0
        %2906 = vmatprep.subr.bf16.mxu0 0
        %2907 = vmatpush1.bf16.xpose.msra.mxu0 0
        %2908 = vmatprep.subr.bf16.mxu0 0
        %2909 = vmatpush1.bf16.xpose.msra.mxu0 0
        %2910 = vmatprep.subr.bf16.mxu0 0
        %2911 = vmatpush1.bf16.xpose.msra.mxu0 0
        %2912 = vmatprep.subr.bf16.mxu0 0
        %2913 = vmatpush1.bf16.xpose.msra.mxu0 0
        %2914 = vmatprep.subr.bf16.mxu0 0
        %2915 = vmatpush1.bf16.xpose.msra.mxu0 0
        %2916 = vmatprep.subr.bf16.mxu0 0
        %2917 = vmatpush1.bf16.xpose.msra.mxu0 0
        %2918 = vmatprep.subr.bf16.mxu0 0
        %2919 = vmatpush1.bf16.xpose.msra.mxu0 0
        %2920 = vmatprep.subr.bf16.mxu0 0
        %2921 = vmatpush1.bf16.xpose.msra.mxu0 0
        %2922 = vmatprep.subr.bf16.mxu0 0
        %2923 = vmatpush1.bf16.xpose.msra.mxu0 0
        %2924 = vmatprep.subr.bf16.mxu0 0
        %2925 = vmatpush1.bf16.xpose.msra.mxu0 0
        %2926 = vmatprep.subr.bf16.mxu0 0
        %2927 = vmatpush1.bf16.xpose.msra.mxu0 0
        %2928 = vmatprep.subr.bf16.mxu0 0
        %2929 = vmatpush1.bf16.xpose.msra.mxu0 0
        %2930 = vmatprep.mubr.bf16.mxu0 0
        %2931 = vmatmul.mubr.bf16.gmra.mrb[0].mxu0 %v2893
        %v2932 = vpop.f32.mrb[0].mxu0
        %v2933 = vadd.f32 0.0, %v2932
        %v2934 = vpop.f32.mrb[0].mxu0
        %v2935 = vpop.f32.mrb[0].mxu0
        %v2936 = vpop.f32.mrb[0].mxu0
        %2937 = vdwg.mxu0
        %2938 = vrot.lane.b32.xlu0 %v2223, 104
        %v2939 = vpop.permute.xlu0 %2938
        %2940 = vrot.lane.b32.xlu0 %v2278, 72
        %v2941 = vpop.permute.xlu0 %2940
        %v2943 = vsel %vm2231, %v2939, 0
        %v2946 = vsel %vm2231, %v2941, 0
        %2948 = vmatprep.subr.bf16.mxu0 0
        %2949 = vmatpush1.bf16.xpose.msra.mxu0 %v2946
        %2950 = vmatprep.subr.bf16.mxu0 0
        %2951 = vmatpush1.bf16.xpose.msra.mxu0 0
        %2952 = vmatprep.subr.bf16.mxu0 0
        %2953 = vmatpush1.bf16.xpose.msra.mxu0 0
        %2954 = vmatprep.subr.bf16.mxu0 0
        %2955 = vmatpush1.bf16.xpose.msra.mxu0 0
        %2956 = vmatprep.subr.bf16.mxu0 0
        %2957 = vmatpush1.bf16.xpose.msra.mxu0 0
        %2958 = vmatprep.subr.bf16.mxu0 0
        %2959 = vmatpush1.bf16.xpose.msra.mxu0 0
        %2960 = vmatprep.subr.bf16.mxu0 0
        %2961 = vmatpush1.bf16.xpose.msra.mxu0 0
        %2962 = vmatprep.subr.bf16.mxu0 0
        %2963 = vmatpush1.bf16.xpose.msra.mxu0 0
        %2964 = vmatprep.subr.bf16.mxu0 0
        %2965 = vmatpush1.bf16.xpose.msra.mxu0 0
        %2966 = vmatprep.subr.bf16.mxu0 0
        %2967 = vmatpush1.bf16.xpose.msra.mxu0 0
        %2968 = vmatprep.subr.bf16.mxu0 0
        %2969 = vmatpush1.bf16.xpose.msra.mxu0 0
        %2970 = vmatprep.subr.bf16.mxu0 0
        %2971 = vmatpush1.bf16.xpose.msra.mxu0 0
        %2972 = vmatprep.subr.bf16.mxu0 0
        %2973 = vmatpush1.bf16.xpose.msra.mxu0 0
        %2974 = vmatprep.subr.bf16.mxu0 0
        %2975 = vmatpush1.bf16.xpose.msra.mxu0 0
        %2976 = vmatprep.subr.bf16.mxu0 0
        %2977 = vmatpush1.bf16.xpose.msra.mxu0 0
        %2978 = vmatprep.subr.bf16.mxu0 0
        %2979 = vmatpush1.bf16.xpose.msra.mxu0 0
        %2980 = vmatprep.mubr.bf16.mxu0 0
        %2981 = vmatmul.mubr.bf16.gmra.mrb[0].mxu0 %v2943
        %v2982 = vpop.f32.mrb[0].mxu0
        %v2983 = vadd.f32 0.0, %v2982
        %v2984 = vpop.f32.mrb[0].mxu0
        %v2985 = vpop.f32.mrb[0].mxu0
        %v2986 = vpop.f32.mrb[0].mxu0
        %2987 = vdwg.mxu0
        %v2988 = vsel %vm2231, %v2933, -inf
        %2989 = vmax.xlane.f32.xlu0 %v2988
        %v2990 = vpop.xlane.xlu0 %2989
        %v2991 = vsel %vm2231, %v2983, -inf
        %2992 = vmax.xlane.f32.xlu0 %v2991
        %v2993 = vpop.xlane.xlu0 %2992
        %v2994 = vsub.f32 %v2933, %v2990
        %v2995 = vsub.f32 %v2983, %v2993
        %v2996 = vmul.f32 %v2994, 1.442695
        %v2997 = vpow.pop %v2996
        %v2998 = vmul.f32 %v2995, 1.442695
        %v2999 = vpow.pop %v2998
        %v3000 = vsel %vm2231, %v2997, 0.0
        %3001 = vadd.xlane.f32.xlu0 %v3000
        %v3002 = vpop.xlane.xlu0 %3001
        %v3003 = vsel %vm2231, %v2999, 0.0
        %3004 = vadd.xlane.f32.xlu0 %v3003
        %v3005 = vpop.xlane.xlu0 %3004
        %v3006 = vrcp.pop %v3002
        %v3007 = vrcp.pop %v3005
        %v3008 = vmul.f32 %v2997, %v3006
        %v3009 = vmul.f32 %v2999, %v3007
        %v3010 = vpack.c.bf16 %v3008, %v3008
        %v3011 = vpack.c.bf16 %v3009, %v3009
        %3012 = vrot.lane.b32.xlu0 %v2228, 40
        %v3013 = vpop.permute.xlu0 %3012
        %v3015 = vsel %vm2231, %v3010, 0
        %v3018 = vsel %vm2356, %v3013, 0
        %3020 = vmatprep.subr.bf16.mxu0 0
        %3021 = vmatpush1.bf16.msra.mxu0 %v3018
        %3022 = vmatprep.subr.bf16.mxu0 0
        %3023 = vmatpush1.bf16.msra.mxu0 0
        %3024 = vmatprep.subr.bf16.mxu0 0
        %3025 = vmatpush1.bf16.msra.mxu0 0
        %3026 = vmatprep.subr.bf16.mxu0 0
        %3027 = vmatpush1.bf16.msra.mxu0 0
        %3028 = vmatprep.subr.bf16.mxu0 0
        %3029 = vmatpush1.bf16.msra.mxu0 0
        %3030 = vmatprep.subr.bf16.mxu0 0
        %3031 = vmatpush1.bf16.msra.mxu0 0
        %3032 = vmatprep.subr.bf16.mxu0 0
        %3033 = vmatpush1.bf16.msra.mxu0 0
        %3034 = vmatprep.subr.bf16.mxu0 0
        %3035 = vmatpush1.bf16.msra.mxu0 0
        %3036 = vmatprep.subr.bf16.mxu0 0
        %3037 = vmatpush1.bf16.msra.mxu0 0
        %3038 = vmatprep.subr.bf16.mxu0 0
        %3039 = vmatpush1.bf16.msra.mxu0 0
        %3040 = vmatprep.subr.bf16.mxu0 0
        %3041 = vmatpush1.bf16.msra.mxu0 0
        %3042 = vmatprep.subr.bf16.mxu0 0
        %3043 = vmatpush1.bf16.msra.mxu0 0
        %3044 = vmatprep.subr.bf16.mxu0 0
        %3045 = vmatpush1.bf16.msra.mxu0 0
        %3046 = vmatprep.subr.bf16.mxu0 0
        %3047 = vmatpush1.bf16.msra.mxu0 0
        %3048 = vmatprep.subr.bf16.mxu0 0
        %3049 = vmatpush1.bf16.msra.mxu0 0
        %3050 = vmatprep.subr.bf16.mxu0 0
        %3051 = vmatpush1.bf16.msra.mxu0 0
        %3052 = vmatprep.mubr.bf16.mxu0 0
        %3053 = vmatmul.mubr.bf16.gmra.mrb[0].mxu0 %v3015
        %v3054 = vpop.f32.mrb[0].mxu0
        %v3055 = vadd.f32 0.0, %v3054
        %v3056 = vpop.f32.mrb[0].mxu0
        %v3057 = vpop.f32.mrb[0].mxu0
        %v3058 = vpop.f32.mrb[0].mxu0
        %3059 = vdwg.mxu0
        %3060 = vrot.lane.b32.xlu0 %v2278, 40
        %v3061 = vpop.permute.xlu0 %3060
        %v3063 = vsel %vm2231, %v3011, 0
        %v3066 = vsel %vm2356, %v3061, 0
        %3068 = vmatprep.subr.bf16.mxu0 0
        %3069 = vmatpush1.bf16.msra.mxu0 %v3066
        %3070 = vmatprep.subr.bf16.mxu0 0
        %3071 = vmatpush1.bf16.msra.mxu0 0
        %3072 = vmatprep.subr.bf16.mxu0 0
        %3073 = vmatpush1.bf16.msra.mxu0 0
        %3074 = vmatprep.subr.bf16.mxu0 0
        %3075 = vmatpush1.bf16.msra.mxu0 0
        %3076 = vmatprep.subr.bf16.mxu0 0
        %3077 = vmatpush1.bf16.msra.mxu0 0
        %3078 = vmatprep.subr.bf16.mxu0 0
        %3079 = vmatpush1.bf16.msra.mxu0 0
        %3080 = vmatprep.subr.bf16.mxu0 0
        %3081 = vmatpush1.bf16.msra.mxu0 0
        %3082 = vmatprep.subr.bf16.mxu0 0
        %3083 = vmatpush1.bf16.msra.mxu0 0
        %3084 = vmatprep.subr.bf16.mxu0 0
        %3085 = vmatpush1.bf16.msra.mxu0 0
        %3086 = vmatprep.subr.bf16.mxu0 0
        %3087 = vmatpush1.bf16.msra.mxu0 0
        %3088 = vmatprep.subr.bf16.mxu0 0
        %3089 = vmatpush1.bf16.msra.mxu0 0
        %3090 = vmatprep.subr.bf16.mxu0 0
        %3091 = vmatpush1.bf16.msra.mxu0 0
        %3092 = vmatprep.subr.bf16.mxu0 0
        %3093 = vmatpush1.bf16.msra.mxu0 0
        %3094 = vmatprep.subr.bf16.mxu0 0
        %3095 = vmatpush1.bf16.msra.mxu0 0
        %3096 = vmatprep.subr.bf16.mxu0 0
        %3097 = vmatpush1.bf16.msra.mxu0 0
        %3098 = vmatprep.subr.bf16.mxu0 0
        %3099 = vmatpush1.bf16.msra.mxu0 0
        %3100 = vmatprep.mubr.bf16.mxu0 0
        %3101 = vmatmul.mubr.bf16.gmra.mrb[0].mxu0 %v3063
        %v3102 = vpop.f32.mrb[0].mxu0
        %v3103 = vadd.f32 0.0, %v3102
        %v3104 = vpop.f32.mrb[0].mxu0
        %v3105 = vpop.f32.mrb[0].mxu0
        %v3106 = vpop.f32.mrb[0].mxu0
        %3107 = vdwg.mxu0
        %3110 = vrot.lane.b32.xlu0 %v2615, 8
        %v3111 = vpop.permute.xlu0 %3110
        %3112 = vrot.lane.b32.xlu0 %v2663, 8
        %v3113 = vpop.permute.xlu0 %3112
        %3118 = vrot.lane.b32.xlu0 %v2835, 16
        %v3119 = vpop.permute.xlu0 %3118
        %3120 = vrot.lane.b32.xlu0 %v2883, 16
        %v3121 = vpop.permute.xlu0 %3120
        %3126 = vrot.lane.b32.xlu0 %v3055, 24
        %v3127 = vpop.permute.xlu0 %3126
        %3128 = vrot.lane.b32.xlu0 %v3103, 24
        %v3129 = vpop.permute.xlu0 %3128
        %v3132 = vsel %vm2231, %v2395, %v3111
        %v3133 = vsel %vm2231, %v2443, %v3113
        %vm3134 = vcmask 130048
        %v3135 = vsel %vm3134, %v3132, %v3119
        %v3136 = vsel %vm3134, %v3133, %v3121
        %vm3137 = vcmask 195584
        %v3138 = vsel %vm3137, %v3135, %v3127
        %v3139 = vsel %vm3137, %v3136, %v3129
        %v3140 = vpack.c.bf16 %v3139, %v3138
        %v3142 = vlaneseq
        %v3143 = vshrl.u32 %v3142, 7
        %v3144 = vsub.s32 0, %v3143
        %v3145 = vrot.slane %v2151, %v3144
        %v3151 = vunpack.c.l.b16 %v2147
        %v3152 = vunpack.c.l.b16 %v2148
        %v3153 = vunpack.c.l.b16 %v2149
        %v3154 = vunpack.c.l.b16 %v2150
        %v3155 = vpack.c.b16 %v3152, %v3151
        %v3156 = vpack.c.b16 %v3154, %v3153
        %v3160 = vsel %vm2171, %v3140, 0
        %3162 = vmatprep.subr.bf16.mxu0 0
        %3163 = vmatpush1.bf16.msra.mxu0 %v3155
        %3164 = vmatprep.subr.bf16.mxu0 0
        %3165 = vmatpush1.bf16.msra.mxu0 %v3156
        %3166 = vmatprep.subr.bf16.mxu0 0
        %3167 = vmatpush1.bf16.msra.mxu0 0
        %3168 = vmatprep.subr.bf16.mxu0 0
        %3169 = vmatpush1.bf16.msra.mxu0 0
        %3170 = vmatprep.subr.bf16.mxu0 0
        %3171 = vmatpush1.bf16.msra.mxu0 0
        %3172 = vmatprep.subr.bf16.mxu0 0
        %3173 = vmatpush1.bf16.msra.mxu0 0
        %3174 = vmatprep.subr.bf16.mxu0 0
        %3175 = vmatpush1.bf16.msra.mxu0 0
        %3176 = vmatprep.subr.bf16.mxu0 0
        %3177 = vmatpush1.bf16.msra.mxu0 0
        %3178 = vmatprep.subr.bf16.mxu0 0
        %3179 = vmatpush1.bf16.msra.mxu0 0
        %3180 = vmatprep.subr.bf16.mxu0 0
        %3181 = vmatpush1.bf16.msra.mxu0 0
        %3182 = vmatprep.subr.bf16.mxu0 0
        %3183 = vmatpush1.bf16.msra.mxu0 0
        %3184 = vmatprep.subr.bf16.mxu0 0
        %3185 = vmatpush1.bf16.msra.mxu0 0
        %3186 = vmatprep.subr.bf16.mxu0 0
        %3187 = vmatpush1.bf16.msra.mxu0 0
        %3188 = vmatprep.subr.bf16.mxu0 0
        %3189 = vmatpush1.bf16.msra.mxu0 0
        %3190 = vmatprep.subr.bf16.mxu0 0
        %3191 = vmatpush1.bf16.msra.mxu0 0
        %3192 = vmatprep.subr.bf16.mxu0 0
        %3193 = vmatpush1.bf16.msra.mxu0 0
        %3194 = vmatprep.mubr.bf16.mxu0 0
        %3195 = vmatmul.mubr.bf16.gmra.mrb[0].mxu0 %v3160
        %v3196 = vpop.f32.mrb[0].mxu0
        %v3197 = vadd.f32 %v3145, %v3196
        %v3198 = vpop.f32.mrb[0].mxu0
        %v3199 = vpop.f32.mrb[0].mxu0
        %v3200 = vadd.f32 %v3145, %v3199
        %v3201 = vpop.f32.mrb[0].mxu0
        %3202 = vdwg.mxu0
        %v3203 = vadd.f32 %v2136, %v3197
        %v3204 = vadd.f32 %v2137, %v3200
        %v3205 = vld [vmem:[%s1892] sm:$0x1]
        %v3206 = vld [vmem:[%s1899] sm:$0x1]
        %v3207 = vsel %vm2171, %v3203, 0.0
        %3208 = vadd.xlane.f32.xlu0 %v3207
        %v3209 = vpop.xlane.xlu0 %3208
        %v3210 = vsel %vm2171, %v3204, 0.0
        %3211 = vadd.xlane.f32.xlu0 %v3210
        %v3212 = vpop.xlane.xlu0 %3211
        %v3213 = vrcp.pop 32.0
        %v3214 = vmul.f32 %v3209, %v3213
        %v3215 = vmul.f32 %v3212, %v3213
        %v3216 = vsub.f32 %v3203, %v3214
        %v3217 = vsub.f32 %v3204, %v3215
        %v3218 = vmul.f32 %v3216, %v3216
        %v3219 = vmul.f32 %v3217, %v3217
        %v3220 = vsel %vm2171, %v3218, 0.0
        %3221 = vadd.xlane.f32.xlu0 %v3220
        %v3222 = vpop.xlane.xlu0 %3221
        %v3223 = vsel %vm2171, %v3219, 0.0
        %3224 = vadd.xlane.f32.xlu0 %v3223
        %v3225 = vpop.xlane.xlu0 %3224
        %v3226 = vmul.f32 %v3222, %v3213
        %v3227 = vmul.f32 %v3225, %v3213
        %v3228 = vadd.f32 %v3226, 1e-05
        %v3229 = vadd.f32 %v3227, 1e-05
        %v3230 = vrsqrt.pop %v3228
        %v3231 = vrsqrt.pop %v3229
        %v3232 = vmul.f32 %v3216, %v3230
        %v3233 = vmul.f32 %v3217, %v3231
        %v3235 = vlaneseq
        %v3236 = vshrl.u32 %v3235, 7
        %v3237 = vsub.s32 0, %v3236
        %v3238 = vrot.slane %v3205, %v3237
        %v3240 = vmul.f32 %v3232, %v3238
        %v3241 = vmul.f32 %v3233, %v3238
        %v3243 = vlaneseq
        %v3244 = vshrl.u32 %v3243, 7
        %v3245 = vsub.s32 0, %v3244
        %v3246 = vrot.slane %v3206, %v3245
        %v3248 = vadd.f32 %v3240, %v3246
        %v3249 = vadd.f32 %v3241, %v3246
        %v3250 = vld [vmem:[%s1908] sm:$0xff]
        %v3251 = vld [vmem:[%s1908 + $0x8] sm:$0xff]
        %v3252 = vld [vmem:[%s1908 + $0x10] sm:$0xff]
        %v3253 = vld [vmem:[%s1908 + $0x18] sm:$0xff]
        %v3254 = vld [vmem:[%s1908 + $0x20] sm:$0xff]
        %v3255 = vld [vmem:[%s1908 + $0x28] sm:$0xff]
        %v3256 = vld [vmem:[%s1908 + $0x30] sm:$0xff]
        %v3257 = vld [vmem:[%s1908 + $0x38] sm:$0xff]
        %v3258 = vld [vmem:[%s1908 + $0x40] sm:$0xff]
        %v3259 = vld [vmem:[%s1908 + $0x48] sm:$0xff]
        %v3260 = vld [vmem:[%s1908 + $0x50] sm:$0xff]
        %v3261 = vld [vmem:[%s1908 + $0x58] sm:$0xff]
        %v3262 = vld [vmem:[%s1908 + $0x60] sm:$0xff]
        %v3263 = vld [vmem:[%s1908 + $0x68] sm:$0xff]
        %v3264 = vld [vmem:[%s1908 + $0x70] sm:$0xff]
        %v3265 = vld [vmem:[%s1908 + $0x78] sm:$0xff]
        %v3266 = vld [vmem:[%s1908 + $0x80] sm:$0xff]
        %v3267 = vld [vmem:[%s1908 + $0x88] sm:$0xff]
        %v3268 = vld [vmem:[%s1908 + $0x90] sm:$0xff]
        %v3269 = vld [vmem:[%s1908 + $0x98] sm:$0xff]
        %v3270 = vld [vmem:[%s1908 + $0xa0] sm:$0xff]
        %v3271 = vld [vmem:[%s1908 + $0xa8] sm:$0xff]
        %v3272 = vld [vmem:[%s1908 + $0xb0] sm:$0xff]
        %v3273 = vld [vmem:[%s1908 + $0xb8] sm:$0xff]
        %v3274 = vld [vmem:[%s1908 + $0xc0] sm:$0xff]
        %v3275 = vld [vmem:[%s1908 + $0xc8] sm:$0xff]
        %v3276 = vld [vmem:[%s1908 + $0xd0] sm:$0xff]
        %v3277 = vld [vmem:[%s1908 + $0xd8] sm:$0xff]
        %v3278 = vld [vmem:[%s1908 + $0xe0] sm:$0xff]
        %v3279 = vld [vmem:[%s1908 + $0xe8] sm:$0xff]
        %v3280 = vld [vmem:[%s1908 + $0xf0] sm:$0xff]
        %v3281 = vld [vmem:[%s1908 + $0xf8] sm:$0xff]
        %v3282 = vld [vmem:[%s1916] sm:$0xff]
        %v3283 = vld [vmem:[%s1916 + $0x8] sm:$0xff]
        %v3284 = vld [vmem:[%s1925] sm:$0xf]
        %v3285 = vld [vmem:[%s1925 + $0x4] sm:$0xf]
        %v3286 = vld [vmem:[%s1925 + $0x8] sm:$0xf]
        %v3287 = vld [vmem:[%s1925 + $0xc] sm:$0xf]
        %v3288 = vld [vmem:[%s1925 + $0x10] sm:$0xf]
        %v3289 = vld [vmem:[%s1925 + $0x14] sm:$0xf]
        %v3290 = vld [vmem:[%s1925 + $0x18] sm:$0xf]
        %v3291 = vld [vmem:[%s1925 + $0x1c] sm:$0xf]
        %v3292 = vld [vmem:[%s1925 + $0x20] sm:$0xf]
        %v3293 = vld [vmem:[%s1925 + $0x24] sm:$0xf]
        %v3294 = vld [vmem:[%s1925 + $0x28] sm:$0xf]
        %v3295 = vld [vmem:[%s1925 + $0x2c] sm:$0xf]
        %v3296 = vld [vmem:[%s1925 + $0x30] sm:$0xf]
        %v3297 = vld [vmem:[%s1925 + $0x34] sm:$0xf]
        %v3298 = vld [vmem:[%s1925 + $0x38] sm:$0xf]
        %v3299 = vld [vmem:[%s1925 + $0x3c] sm:$0xf]
        %v3300 = vld [vmem:[%s1925 + $0x40] sm:$0xf]
        %v3301 = vld [vmem:[%s1925 + $0x44] sm:$0xf]
        %v3302 = vld [vmem:[%s1925 + $0x48] sm:$0xf]
        %v3303 = vld [vmem:[%s1925 + $0x4c] sm:$0xf]
        %v3304 = vld [vmem:[%s1925 + $0x50] sm:$0xf]
        %v3305 = vld [vmem:[%s1925 + $0x54] sm:$0xf]
        %v3306 = vld [vmem:[%s1925 + $0x58] sm:$0xf]
        %v3307 = vld [vmem:[%s1925 + $0x5c] sm:$0xf]
        %v3308 = vld [vmem:[%s1925 + $0x60] sm:$0xf]
        %v3309 = vld [vmem:[%s1925 + $0x64] sm:$0xf]
        %v3310 = vld [vmem:[%s1925 + $0x68] sm:$0xf]
        %v3311 = vld [vmem:[%s1925 + $0x6c] sm:$0xf]
        %v3312 = vld [vmem:[%s1925 + $0x70] sm:$0xf]
        %v3313 = vld [vmem:[%s1925 + $0x74] sm:$0xf]
        %v3314 = vld [vmem:[%s1925 + $0x78] sm:$0xf]
        %v3315 = vld [vmem:[%s1925 + $0x7c] sm:$0xf]
        %v3316 = vld [vmem:[%s1925 + $0x80] sm:$0xf]
        %v3317 = vld [vmem:[%s1925 + $0x84] sm:$0xf]
        %v3318 = vld [vmem:[%s1925 + $0x88] sm:$0xf]
        %v3319 = vld [vmem:[%s1925 + $0x8c] sm:$0xf]
        %v3320 = vld [vmem:[%s1925 + $0x90] sm:$0xf]
        %v3321 = vld [vmem:[%s1925 + $0x94] sm:$0xf]
        %v3322 = vld [vmem:[%s1925 + $0x98] sm:$0xf]
        %v3323 = vld [vmem:[%s1925 + $0x9c] sm:$0xf]
        %v3324 = vld [vmem:[%s1925 + $0xa0] sm:$0xf]
        %v3325 = vld [vmem:[%s1925 + $0xa4] sm:$0xf]
        %v3326 = vld [vmem:[%s1925 + $0xa8] sm:$0xf]
        %v3327 = vld [vmem:[%s1925 + $0xac] sm:$0xf]
        %v3328 = vld [vmem:[%s1925 + $0xb0] sm:$0xf]
        %v3329 = vld [vmem:[%s1925 + $0xb4] sm:$0xf]
        %v3330 = vld [vmem:[%s1925 + $0xb8] sm:$0xf]
        %v3331 = vld [vmem:[%s1925 + $0xbc] sm:$0xf]
        %v3332 = vld [vmem:[%s1925 + $0xc0] sm:$0xf]
        %v3333 = vld [vmem:[%s1925 + $0xc4] sm:$0xf]
        %v3334 = vld [vmem:[%s1925 + $0xc8] sm:$0xf]
        %v3335 = vld [vmem:[%s1925 + $0xcc] sm:$0xf]
        %v3336 = vld [vmem:[%s1925 + $0xd0] sm:$0xf]
        %v3337 = vld [vmem:[%s1925 + $0xd4] sm:$0xf]
        %v3338 = vld [vmem:[%s1925 + $0xd8] sm:$0xf]
        %v3339 = vld [vmem:[%s1925 + $0xdc] sm:$0xf]
        %v3340 = vld [vmem:[%s1925 + $0xe0] sm:$0xf]
        %v3341 = vld [vmem:[%s1925 + $0xe4] sm:$0xf]
        %v3342 = vld [vmem:[%s1925 + $0xe8] sm:$0xf]
        %v3343 = vld [vmem:[%s1925 + $0xec] sm:$0xf]
        %v3344 = vld [vmem:[%s1925 + $0xf0] sm:$0xf]
        %v3345 = vld [vmem:[%s1925 + $0xf4] sm:$0xf]
        %v3346 = vld [vmem:[%s1925 + $0xf8] sm:$0xf]
        %v3347 = vld [vmem:[%s1925 + $0xfc] sm:$0xf]
        %v3348 = vld [vmem:[%s1925 + $0x100] sm:$0xf]
        %v3349 = vld [vmem:[%s1925 + $0x104] sm:$0xf]
        %v3350 = vld [vmem:[%s1925 + $0x108] sm:$0xf]
        %v3351 = vld [vmem:[%s1925 + $0x10c] sm:$0xf]
        %v3352 = vld [vmem:[%s1925 + $0x110] sm:$0xf]
        %v3353 = vld [vmem:[%s1925 + $0x114] sm:$0xf]
        %v3354 = vld [vmem:[%s1925 + $0x118] sm:$0xf]
        %v3355 = vld [vmem:[%s1925 + $0x11c] sm:$0xf]
        %v3356 = vld [vmem:[%s1925 + $0x120] sm:$0xf]
        %v3357 = vld [vmem:[%s1925 + $0x124] sm:$0xf]
        %v3358 = vld [vmem:[%s1925 + $0x128] sm:$0xf]
        %v3359 = vld [vmem:[%s1925 + $0x12c] sm:$0xf]
        %v3360 = vld [vmem:[%s1925 + $0x130] sm:$0xf]
        %v3361 = vld [vmem:[%s1925 + $0x134] sm:$0xf]
        %v3362 = vld [vmem:[%s1925 + $0x138] sm:$0xf]
        %v3363 = vld [vmem:[%s1925 + $0x13c] sm:$0xf]
        %v3364 = vld [vmem:[%s1925 + $0x140] sm:$0xf]
        %v3365 = vld [vmem:[%s1925 + $0x144] sm:$0xf]
        %v3366 = vld [vmem:[%s1925 + $0x148] sm:$0xf]
        %v3367 = vld [vmem:[%s1925 + $0x14c] sm:$0xf]
        %v3368 = vld [vmem:[%s1925 + $0x150] sm:$0xf]
        %v3369 = vld [vmem:[%s1925 + $0x154] sm:$0xf]
        %v3370 = vld [vmem:[%s1925 + $0x158] sm:$0xf]
        %v3371 = vld [vmem:[%s1925 + $0x15c] sm:$0xf]
        %v3372 = vld [vmem:[%s1925 + $0x160] sm:$0xf]
        %v3373 = vld [vmem:[%s1925 + $0x164] sm:$0xf]
        %v3374 = vld [vmem:[%s1925 + $0x168] sm:$0xf]
        %v3375 = vld [vmem:[%s1925 + $0x16c] sm:$0xf]
        %v3376 = vld [vmem:[%s1925 + $0x170] sm:$0xf]
        %v3377 = vld [vmem:[%s1925 + $0x174] sm:$0xf]
        %v3378 = vld [vmem:[%s1925 + $0x178] sm:$0xf]
        %v3379 = vld [vmem:[%s1925 + $0x17c] sm:$0xf]
        %v3380 = vld [vmem:[%s1925 + $0x180] sm:$0xf]
        %v3381 = vld [vmem:[%s1925 + $0x184] sm:$0xf]
        %v3382 = vld [vmem:[%s1925 + $0x188] sm:$0xf]
        %v3383 = vld [vmem:[%s1925 + $0x18c] sm:$0xf]
        %v3384 = vld [vmem:[%s1925 + $0x190] sm:$0xf]
        %v3385 = vld [vmem:[%s1925 + $0x194] sm:$0xf]
        %v3386 = vld [vmem:[%s1925 + $0x198] sm:$0xf]
        %v3387 = vld [vmem:[%s1925 + $0x19c] sm:$0xf]
        %v3388 = vld [vmem:[%s1925 + $0x1a0] sm:$0xf]
        %v3389 = vld [vmem:[%s1925 + $0x1a4] sm:$0xf]
        %v3390 = vld [vmem:[%s1925 + $0x1a8] sm:$0xf]
        %v3391 = vld [vmem:[%s1925 + $0x1ac] sm:$0xf]
        %v3392 = vld [vmem:[%s1925 + $0x1b0] sm:$0xf]
        %v3393 = vld [vmem:[%s1925 + $0x1b4] sm:$0xf]
        %v3394 = vld [vmem:[%s1925 + $0x1b8] sm:$0xf]
        %v3395 = vld [vmem:[%s1925 + $0x1bc] sm:$0xf]
        %v3396 = vld [vmem:[%s1925 + $0x1c0] sm:$0xf]
        %v3397 = vld [vmem:[%s1925 + $0x1c4] sm:$0xf]
        %v3398 = vld [vmem:[%s1925 + $0x1c8] sm:$0xf]
        %v3399 = vld [vmem:[%s1925 + $0x1cc] sm:$0xf]
        %v3400 = vld [vmem:[%s1925 + $0x1d0] sm:$0xf]
        %v3401 = vld [vmem:[%s1925 + $0x1d4] sm:$0xf]
        %v3402 = vld [vmem:[%s1925 + $0x1d8] sm:$0xf]
        %v3403 = vld [vmem:[%s1925 + $0x1dc] sm:$0xf]
        %v3404 = vld [vmem:[%s1925 + $0x1e0] sm:$0xf]
        %v3405 = vld [vmem:[%s1925 + $0x1e4] sm:$0xf]
        %v3406 = vld [vmem:[%s1925 + $0x1e8] sm:$0xf]
        %v3407 = vld [vmem:[%s1925 + $0x1ec] sm:$0xf]
        %v3408 = vld [vmem:[%s1925 + $0x1f0] sm:$0xf]
        %v3409 = vld [vmem:[%s1925 + $0x1f4] sm:$0xf]
        %v3410 = vld [vmem:[%s1925 + $0x1f8] sm:$0xf]
        %v3411 = vld [vmem:[%s1925 + $0x1fc] sm:$0xf]
        %v3412 = vld [vmem:[%s1925 + $0x200] sm:$0xf]
        %v3413 = vld [vmem:[%s1925 + $0x204] sm:$0xf]
        %v3414 = vld [vmem:[%s1925 + $0x208] sm:$0xf]
        %v3415 = vld [vmem:[%s1925 + $0x20c] sm:$0xf]
        %v3416 = vld [vmem:[%s1925 + $0x210] sm:$0xf]
        %v3417 = vld [vmem:[%s1925 + $0x214] sm:$0xf]
        %v3418 = vld [vmem:[%s1925 + $0x218] sm:$0xf]
        %v3419 = vld [vmem:[%s1925 + $0x21c] sm:$0xf]
        %v3420 = vld [vmem:[%s1925 + $0x220] sm:$0xf]
        %v3421 = vld [vmem:[%s1925 + $0x224] sm:$0xf]
        %v3422 = vld [vmem:[%s1925 + $0x228] sm:$0xf]
        %v3423 = vld [vmem:[%s1925 + $0x22c] sm:$0xf]
        %v3424 = vld [vmem:[%s1925 + $0x230] sm:$0xf]
        %v3425 = vld [vmem:[%s1925 + $0x234] sm:$0xf]
        %v3426 = vld [vmem:[%s1925 + $0x238] sm:$0xf]
        %v3427 = vld [vmem:[%s1925 + $0x23c] sm:$0xf]
        %v3428 = vld [vmem:[%s1925 + $0x240] sm:$0xf]
        %v3429 = vld [vmem:[%s1925 + $0x244] sm:$0xf]
        %v3430 = vld [vmem:[%s1925 + $0x248] sm:$0xf]
        %v3431 = vld [vmem:[%s1925 + $0x24c] sm:$0xf]
        %v3432 = vld [vmem:[%s1925 + $0x250] sm:$0xf]
        %v3433 = vld [vmem:[%s1925 + $0x254] sm:$0xf]
        %v3434 = vld [vmem:[%s1925 + $0x258] sm:$0xf]
        %v3435 = vld [vmem:[%s1925 + $0x25c] sm:$0xf]
        %v3436 = vld [vmem:[%s1925 + $0x260] sm:$0xf]
        %v3437 = vld [vmem:[%s1925 + $0x264] sm:$0xf]
        %v3438 = vld [vmem:[%s1925 + $0x268] sm:$0xf]
        %v3439 = vld [vmem:[%s1925 + $0x26c] sm:$0xf]
        %v3440 = vld [vmem:[%s1925 + $0x270] sm:$0xf]
        %v3441 = vld [vmem:[%s1925 + $0x274] sm:$0xf]
        %v3442 = vld [vmem:[%s1925 + $0x278] sm:$0xf]
        %v3443 = vld [vmem:[%s1925 + $0x27c] sm:$0xf]
        %v3444 = vld [vmem:[%s1925 + $0x280] sm:$0xf]
        %v3445 = vld [vmem:[%s1925 + $0x284] sm:$0xf]
        %v3446 = vld [vmem:[%s1925 + $0x288] sm:$0xf]
        %v3447 = vld [vmem:[%s1925 + $0x28c] sm:$0xf]
        %v3448 = vld [vmem:[%s1925 + $0x290] sm:$0xf]
        %v3449 = vld [vmem:[%s1925 + $0x294] sm:$0xf]
        %v3450 = vld [vmem:[%s1925 + $0x298] sm:$0xf]
        %v3451 = vld [vmem:[%s1925 + $0x29c] sm:$0xf]
        %v3452 = vld [vmem:[%s1925 + $0x2a0] sm:$0xf]
        %v3453 = vld [vmem:[%s1925 + $0x2a4] sm:$0xf]
        %v3454 = vld [vmem:[%s1925 + $0x2a8] sm:$0xf]
        %v3455 = vld [vmem:[%s1925 + $0x2ac] sm:$0xf]
        %v3456 = vld [vmem:[%s1925 + $0x2b0] sm:$0xf]
        %v3457 = vld [vmem:[%s1925 + $0x2b4] sm:$0xf]
        %v3458 = vld [vmem:[%s1925 + $0x2b8] sm:$0xf]
        %v3459 = vld [vmem:[%s1925 + $0x2bc] sm:$0xf]
        %v3460 = vld [vmem:[%s1925 + $0x2c0] sm:$0xf]
        %v3461 = vld [vmem:[%s1925 + $0x2c4] sm:$0xf]
        %v3462 = vld [vmem:[%s1925 + $0x2c8] sm:$0xf]
        %v3463 = vld [vmem:[%s1925 + $0x2cc] sm:$0xf]
        %v3464 = vld [vmem:[%s1925 + $0x2d0] sm:$0xf]
        %v3465 = vld [vmem:[%s1925 + $0x2d4] sm:$0xf]
        %v3466 = vld [vmem:[%s1925 + $0x2d8] sm:$0xf]
        %v3467 = vld [vmem:[%s1925 + $0x2dc] sm:$0xf]
        %v3468 = vld [vmem:[%s1925 + $0x2e0] sm:$0xf]
        %v3469 = vld [vmem:[%s1925 + $0x2e4] sm:$0xf]
        %v3470 = vld [vmem:[%s1925 + $0x2e8] sm:$0xf]
        %v3471 = vld [vmem:[%s1925 + $0x2ec] sm:$0xf]
        %v3472 = vld [vmem:[%s1925 + $0x2f0] sm:$0xf]
        %v3473 = vld [vmem:[%s1925 + $0x2f4] sm:$0xf]
        %v3474 = vld [vmem:[%s1925 + $0x2f8] sm:$0xf]
        %v3475 = vld [vmem:[%s1925 + $0x2fc] sm:$0xf]
        %v3476 = vld [vmem:[%s1925 + $0x300] sm:$0xf]
        %v3477 = vld [vmem:[%s1925 + $0x304] sm:$0xf]
        %v3478 = vld [vmem:[%s1925 + $0x308] sm:$0xf]
        %v3479 = vld [vmem:[%s1925 + $0x30c] sm:$0xf]
        %v3480 = vld [vmem:[%s1925 + $0x310] sm:$0xf]
        %v3481 = vld [vmem:[%s1925 + $0x314] sm:$0xf]
        %v3482 = vld [vmem:[%s1925 + $0x318] sm:$0xf]
        %v3483 = vld [vmem:[%s1925 + $0x31c] sm:$0xf]
        %v3484 = vld [vmem:[%s1925 + $0x320] sm:$0xf]
        %v3485 = vld [vmem:[%s1925 + $0x324] sm:$0xf]
        %v3486 = vld [vmem:[%s1925 + $0x328] sm:$0xf]
        %v3487 = vld [vmem:[%s1925 + $0x32c] sm:$0xf]
        %v3488 = vld [vmem:[%s1925 + $0x330] sm:$0xf]
        %v3489 = vld [vmem:[%s1925 + $0x334] sm:$0xf]
        %v3490 = vld [vmem:[%s1925 + $0x338] sm:$0xf]
        %v3491 = vld [vmem:[%s1925 + $0x33c] sm:$0xf]
        %v3492 = vld [vmem:[%s1925 + $0x340] sm:$0xf]
        %v3493 = vld [vmem:[%s1925 + $0x344] sm:$0xf]
        %v3494 = vld [vmem:[%s1925 + $0x348] sm:$0xf]
        %v3495 = vld [vmem:[%s1925 + $0x34c] sm:$0xf]
        %v3496 = vld [vmem:[%s1925 + $0x350] sm:$0xf]
        %v3497 = vld [vmem:[%s1925 + $0x354] sm:$0xf]
        %v3498 = vld [vmem:[%s1925 + $0x358] sm:$0xf]
        %v3499 = vld [vmem:[%s1925 + $0x35c] sm:$0xf]
        %v3500 = vld [vmem:[%s1925 + $0x360] sm:$0xf]
        %v3501 = vld [vmem:[%s1925 + $0x364] sm:$0xf]
        %v3502 = vld [vmem:[%s1925 + $0x368] sm:$0xf]
        %v3503 = vld [vmem:[%s1925 + $0x36c] sm:$0xf]
        %v3504 = vld [vmem:[%s1925 + $0x370] sm:$0xf]
        %v3505 = vld [vmem:[%s1925 + $0x374] sm:$0xf]
        %v3506 = vld [vmem:[%s1925 + $0x378] sm:$0xf]
        %v3507 = vld [vmem:[%s1925 + $0x37c] sm:$0xf]
        %v3508 = vld [vmem:[%s1925 + $0x380] sm:$0xf]
        %v3509 = vld [vmem:[%s1925 + $0x384] sm:$0xf]
        %v3510 = vld [vmem:[%s1925 + $0x388] sm:$0xf]
        %v3511 = vld [vmem:[%s1925 + $0x38c] sm:$0xf]
        %v3512 = vld [vmem:[%s1925 + $0x390] sm:$0xf]
        %v3513 = vld [vmem:[%s1925 + $0x394] sm:$0xf]
        %v3514 = vld [vmem:[%s1925 + $0x398] sm:$0xf]
        %v3515 = vld [vmem:[%s1925 + $0x39c] sm:$0xf]
        %v3516 = vld [vmem:[%s1925 + $0x3a0] sm:$0xf]
        %v3517 = vld [vmem:[%s1925 + $0x3a4] sm:$0xf]
        %v3518 = vld [vmem:[%s1925 + $0x3a8] sm:$0xf]
        %v3519 = vld [vmem:[%s1925 + $0x3ac] sm:$0xf]
        %v3520 = vld [vmem:[%s1925 + $0x3b0] sm:$0xf]
        %v3521 = vld [vmem:[%s1925 + $0x3b4] sm:$0xf]
        %v3522 = vld [vmem:[%s1925 + $0x3b8] sm:$0xf]
        %v3523 = vld [vmem:[%s1925 + $0x3bc] sm:$0xf]
        %v3524 = vld [vmem:[%s1925 + $0x3c0] sm:$0xf]
        %v3525 = vld [vmem:[%s1925 + $0x3c4] sm:$0xf]
        %v3526 = vld [vmem:[%s1925 + $0x3c8] sm:$0xf]
        %v3527 = vld [vmem:[%s1925 + $0x3cc] sm:$0xf]
        %v3528 = vld [vmem:[%s1925 + $0x3d0] sm:$0xf]
        %v3529 = vld [vmem:[%s1925 + $0x3d4] sm:$0xf]
        %v3530 = vld [vmem:[%s1925 + $0x3d8] sm:$0xf]
        %v3531 = vld [vmem:[%s1925 + $0x3dc] sm:$0xf]
        %v3532 = vld [vmem:[%s1925 + $0x3e0] sm:$0xf]
        %v3533 = vld [vmem:[%s1925 + $0x3e4] sm:$0xf]
        %v3534 = vld [vmem:[%s1925 + $0x3e8] sm:$0xf]
        %v3535 = vld [vmem:[%s1925 + $0x3ec] sm:$0xf]
        %v3536 = vld [vmem:[%s1925 + $0x3f0] sm:$0xf]
        %v3537 = vld [vmem:[%s1925 + $0x3f4] sm:$0xf]
        %v3538 = vld [vmem:[%s1925 + $0x3f8] sm:$0xf]
        %v3539 = vld [vmem:[%s1925 + $0x3fc] sm:$0xf]
        %v3540 = vld [vmem:[%s1932] sm:$0x1]
        %v3541 = vpack.c.bf16 %v3249, %v3248
        %v3544 = vlaneseq
        %v3545 = vshrl.u32 %v3544, 7
        %v3546 = vsub.s32 0, %v3545
        %v3547 = vrot.slane %v3282, %v3546
        %v3548 = vlaneseq
        %v3549 = vshrl.u32 %v3548, 7
        %v3550 = vsub.s32 1, %v3549
        %v3551 = vrot.slane %v3282, %v3550
        %v3552 = vlaneseq
        %v3553 = vshrl.u32 %v3552, 7
        %v3554 = vsub.s32 2, %v3553
        %v3555 = vrot.slane %v3282, %v3554
        %v3556 = vlaneseq
        %v3557 = vshrl.u32 %v3556, 7
        %v3558 = vsub.s32 3, %v3557
        %v3559 = vrot.slane %v3282, %v3558
        %v3560 = vlaneseq
        %v3561 = vshrl.u32 %v3560, 7
        %v3562 = vsub.s32 4, %v3561
        %v3563 = vrot.slane %v3282, %v3562
        %v3564 = vlaneseq
        %v3565 = vshrl.u32 %v3564, 7
        %v3566 = vsub.s32 5, %v3565
        %v3567 = vrot.slane %v3282, %v3566
        %v3568 = vlaneseq
        %v3569 = vshrl.u32 %v3568, 7
        %v3570 = vsub.s32 6, %v3569
        %v3571 = vrot.slane %v3282, %v3570
        %v3572 = vlaneseq
        %v3573 = vshrl.u32 %v3572, 7
        %v3574 = vsub.s32 7, %v3573
        %v3575 = vrot.slane %v3282, %v3574
        %v3576 = vlaneseq
        %v3577 = vshrl.u32 %v3576, 7
        %v3578 = vsub.s32 0, %v3577
        %v3579 = vrot.slane %v3283, %v3578
        %v3580 = vlaneseq
        %v3581 = vshrl.u32 %v3580, 7
        %v3582 = vsub.s32 1, %v3581
        %v3583 = vrot.slane %v3283, %v3582
        %v3584 = vlaneseq
        %v3585 = vshrl.u32 %v3584, 7
        %v3586 = vsub.s32 2, %v3585
        %v3587 = vrot.slane %v3283, %v3586
        %v3588 = vlaneseq
        %v3589 = vshrl.u32 %v3588, 7
        %v3590 = vsub.s32 3, %v3589
        %v3591 = vrot.slane %v3283, %v3590
        %v3592 = vlaneseq
        %v3593 = vshrl.u32 %v3592, 7
        %v3594 = vsub.s32 4, %v3593
        %v3595 = vrot.slane %v3283, %v3594
        %v3596 = vlaneseq
        %v3597 = vshrl.u32 %v3596, 7
        %v3598 = vsub.s32 5, %v3597
        %v3599 = vrot.slane %v3283, %v3598
        %v3600 = vlaneseq
        %v3601 = vshrl.u32 %v3600, 7
        %v3602 = vsub.s32 6, %v3601
        %v3603 = vrot.slane %v3283, %v3602
        %v3604 = vlaneseq
        %v3605 = vshrl.u32 %v3604, 7
        %v3606 = vsub.s32 7, %v3605
        %v3607 = vrot.slane %v3283, %v3606
        %v3656 = vunpack.c.l.b16 %v3250
        %v3657 = vunpack.c.h.b16 %v3250
        %v3658 = vunpack.c.l.b16 %v3251
        %v3659 = vunpack.c.h.b16 %v3251
        %v3660 = vunpack.c.l.b16 %v3252
        %v3661 = vunpack.c.h.b16 %v3252
        %v3662 = vunpack.c.l.b16 %v3253
        %v3663 = vunpack.c.h.b16 %v3253
        %v3664 = vunpack.c.l.b16 %v3254
        %v3665 = vunpack.c.h.b16 %v3254
        %v3666 = vunpack.c.l.b16 %v3255
        %v3667 = vunpack.c.h.b16 %v3255
        %v3668 = vunpack.c.l.b16 %v3256
        %v3669 = vunpack.c.h.b16 %v3256
        %v3670 = vunpack.c.l.b16 %v3257
        %v3671 = vunpack.c.h.b16 %v3257
        %v3672 = vunpack.c.l.b16 %v3258
        %v3673 = vunpack.c.h.b16 %v3258
        %v3674 = vunpack.c.l.b16 %v3259
        %v3675 = vunpack.c.h.b16 %v3259
        %v3676 = vunpack.c.l.b16 %v3260
        %v3677 = vunpack.c.h.b16 %v3260
        %v3678 = vunpack.c.l.b16 %v3261
        %v3679 = vunpack.c.h.b16 %v3261
        %v3680 = vunpack.c.l.b16 %v3262
        %v3681 = vunpack.c.h.b16 %v3262
        %v3682 = vunpack.c.l.b16 %v3263
        %v3683 = vunpack.c.h.b16 %v3263
        %v3684 = vunpack.c.l.b16 %v3264
        %v3685 = vunpack.c.h.b16 %v3264
        %v3686 = vunpack.c.l.b16 %v3265
        %v3687 = vunpack.c.h.b16 %v3265
        %v3688 = vunpack.c.l.b16 %v3266
        %v3689 = vunpack.c.h.b16 %v3266
        %v3690 = vunpack.c.l.b16 %v3267
        %v3691 = vunpack.c.h.b16 %v3267
        %v3692 = vunpack.c.l.b16 %v3268
        %v3693 = vunpack.c.h.b16 %v3268
        %v3694 = vunpack.c.l.b16 %v3269
        %v3695 = vunpack.c.h.b16 %v3269
        %v3696 = vunpack.c.l.b16 %v3270
        %v3697 = vunpack.c.h.b16 %v3270
        %v3698 = vunpack.c.l.b16 %v3271
        %v3699 = vunpack.c.h.b16 %v3271
        %v3700 = vunpack.c.l.b16 %v3272
        %v3701 = vunpack.c.h.b16 %v3272
        %v3702 = vunpack.c.l.b16 %v3273
        %v3703 = vunpack.c.h.b16 %v3273
        %v3704 = vunpack.c.l.b16 %v3274
        %v3705 = vunpack.c.h.b16 %v3274
        %v3706 = vunpack.c.l.b16 %v3275
        %v3707 = vunpack.c.h.b16 %v3275
        %v3708 = vunpack.c.l.b16 %v3276
        %v3709 = vunpack.c.h.b16 %v3276
        %v3710 = vunpack.c.l.b16 %v3277
        %v3711 = vunpack.c.h.b16 %v3277
        %v3712 = vunpack.c.l.b16 %v3278
        %v3713 = vunpack.c.h.b16 %v3278
        %v3714 = vunpack.c.l.b16 %v3279
        %v3715 = vunpack.c.h.b16 %v3279
        %v3716 = vunpack.c.l.b16 %v3280
        %v3717 = vunpack.c.h.b16 %v3280
        %v3718 = vunpack.c.l.b16 %v3281
        %v3719 = vunpack.c.h.b16 %v3281
        %v3720 = vpack.c.b16 %v3672, %v3656
        %v3721 = vpack.c.b16 %v3673, %v3657
        %v3722 = vpack.c.b16 %v3674, %v3658
        %v3723 = vpack.c.b16 %v3675, %v3659
        %v3724 = vpack.c.b16 %v3676, %v3660
        %v3725 = vpack.c.b16 %v3677, %v3661
        %v3726 = vpack.c.b16 %v3678, %v3662
        %v3727 = vpack.c.b16 %v3679, %v3663
        %v3728 = vpack.c.b16 %v3680, %v3664
        %v3729 = vpack.c.b16 %v3681, %v3665
        %v3730 = vpack.c.b16 %v3682, %v3666
        %v3731 = vpack.c.b16 %v3683, %v3667
        %v3732 = vpack.c.b16 %v3684, %v3668
        %v3733 = vpack.c.b16 %v3685, %v3669
        %v3734 = vpack.c.b16 %v3686, %v3670
        %v3735 = vpack.c.b16 %v3687, %v3671
        %v3736 = vpack.c.b16 %v3704, %v3688
        %v3737 = vpack.c.b16 %v3705, %v3689
        %v3738 = vpack.c.b16 %v3706, %v3690
        %v3739 = vpack.c.b16 %v3707, %v3691
        %v3740 = vpack.c.b16 %v3708, %v3692
        %v3741 = vpack.c.b16 %v3709, %v3693
        %v3742 = vpack.c.b16 %v3710, %v3694
        %v3743 = vpack.c.b16 %v3711, %v3695
        %v3744 = vpack.c.b16 %v3712, %v3696
        %v3745 = vpack.c.b16 %v3713, %v3697
        %v3746 = vpack.c.b16 %v3714, %v3698
        %v3747 = vpack.c.b16 %v3715, %v3699
        %v3748 = vpack.c.b16 %v3716, %v3700
        %v3749 = vpack.c.b16 %v3717, %v3701
        %v3750 = vpack.c.b16 %v3718, %v3702
        %v3751 = vpack.c.b16 %v3719, %v3703
        %v3785 = vsel %vm2171, %v3541, 0
        %3787 = vmatprep.subr.bf16.mxu0 %v3721
        %3788 = vmatpush1.bf16.msra.mxu0 %v3720
        %3789 = vmatprep.subr.bf16.mxu0 %v3737
        %3790 = vmatpush1.bf16.msra.mxu0 %v3736
        %3791 = vmatprep.subr.bf16.mxu0 0
        %3792 = vmatpush1.bf16.msra.mxu0 0
        %3793 = vmatprep.subr.bf16.mxu0 0
        %3794 = vmatpush1.bf16.msra.mxu0 0
        %3795 = vmatprep.subr.bf16.mxu0 0
        %3796 = vmatpush1.bf16.msra.mxu0 0
        %3797 = vmatprep.subr.bf16.mxu0 0
        %3798 = vmatpush1.bf16.msra.mxu0 0
        %3799 = vmatprep.subr.bf16.mxu0 0
        %3800 = vmatpush1.bf16.msra.mxu0 0
        %3801 = vmatprep.subr.bf16.mxu0 0
        %3802 = vmatpush1.bf16.msra.mxu0 0
        %3803 = vmatprep.subr.bf16.mxu0 0
        %3804 = vmatpush1.bf16.msra.mxu0 0
        %3805 = vmatprep.subr.bf16.mxu0 0
        %3806 = vmatpush1.bf16.msra.mxu0 0
        %3807 = vmatprep.subr.bf16.mxu0 0
        %3808 = vmatpush1.bf16.msra.mxu0 0
        %3809 = vmatprep.subr.bf16.mxu0 0
        %3810 = vmatpush1.bf16.msra.mxu0 0
        %3811 = vmatprep.subr.bf16.mxu0 0
        %3812 = vmatpush1.bf16.msra.mxu0 0
        %3813 = vmatprep.subr.bf16.mxu0 0
        %3814 = vmatpush1.bf16.msra.mxu0 0
        %3815 = vmatprep.subr.bf16.mxu0 0
        %3816 = vmatpush1.bf16.msra.mxu0 0
        %3817 = vmatprep.subr.bf16.mxu0 0
        %3818 = vmatpush1.bf16.msra.mxu0 0
        %3819 = vmatprep.mubr.bf16.mxu0 0
        %3820 = vmatmul.mubr.bf16.gmra.mrb[0].mxu0 %v3785
        %v3821 = vpop.f32.mrb[0].mxu0
        %v3822 = vadd.f32 %v3547, %v3821
        %v3823 = vpop.f32.mrb[0].mxu0
        %v3824 = vadd.f32 %v3551, %v3823
        %v3825 = vpop.f32.mrb[0].mxu0
        %v3826 = vadd.f32 %v3547, %v3825
        %v3827 = vpop.f32.mrb[0].mxu0
        %v3828 = vadd.f32 %v3551, %v3827
        %3829 = vdwg.mxu0
        %3830 = vmatprep.subr.bf16.mxu0 %v3723
        %3831 = vmatpush1.bf16.msra.mxu0 %v3722
        %3832 = vmatprep.subr.bf16.mxu0 %v3739
        %3833 = vmatpush1.bf16.msra.mxu0 %v3738
        %3834 = vmatprep.subr.bf16.mxu0 0
        %3835 = vmatpush1.bf16.msra.mxu0 0
        %3836 = vmatprep.subr.bf16.mxu0 0
        %3837 = vmatpush1.bf16.msra.mxu0 0
        %3838 = vmatprep.subr.bf16.mxu0 0
        %3839 = vmatpush1.bf16.msra.mxu0 0
        %3840 = vmatprep.subr.bf16.mxu0 0
        %3841 = vmatpush1.bf16.msra.mxu0 0
        %3842 = vmatprep.subr.bf16.mxu0 0
        %3843 = vmatpush1.bf16.msra.mxu0 0
        %3844 = vmatprep.subr.bf16.mxu0 0
        %3845 = vmatpush1.bf16.msra.mxu0 0
        %3846 = vmatprep.subr.bf16.mxu0 0
        %3847 = vmatpush1.bf16.msra.mxu0 0
        %3848 = vmatprep.subr.bf16.mxu0 0
        %3849 = vmatpush1.bf16.msra.mxu0 0
        %3850 = vmatprep.subr.bf16.mxu0 0
        %3851 = vmatpush1.bf16.msra.mxu0 0
        %3852 = vmatprep.subr.bf16.mxu0 0
        %3853 = vmatpush1.bf16.msra.mxu0 0
        %3854 = vmatprep.subr.bf16.mxu0 0
        %3855 = vmatpush1.bf16.msra.mxu0 0
        %3856 = vmatprep.subr.bf16.mxu0 0
        %3857 = vmatpush1.bf16.msra.mxu0 0
        %3858 = vmatprep.subr.bf16.mxu0 0
        %3859 = vmatpush1.bf16.msra.mxu0 0
        %3860 = vmatprep.subr.bf16.mxu0 0
        %3861 = vmatpush1.bf16.msra.mxu0 0
        %3862 = vmatprep.mubr.bf16.mxu0 0
        %3863 = vmatmul.mubr.bf16.gmra.mrb[0].mxu0 %v3785
        %v3864 = vpop.f32.mrb[0].mxu0
        %v3865 = vadd.f32 %v3555, %v3864
        %v3866 = vpop.f32.mrb[0].mxu0
        %v3867 = vadd.f32 %v3559, %v3866
        %v3868 = vpop.f32.mrb[0].mxu0
        %v3869 = vadd.f32 %v3555, %v3868
        %v3870 = vpop.f32.mrb[0].mxu0
        %v3871 = vadd.f32 %v3559, %v3870
        %3872 = vdwg.mxu0
        %3873 = vmatprep.subr.bf16.mxu0 %v3725
        %3874 = vmatpush1.bf16.msra.mxu0 %v3724
        %3875 = vmatprep.subr.bf16.mxu0 %v3741
        %3876 = vmatpush1.bf16.msra.mxu0 %v3740
        %3877 = vmatprep.subr.bf16.mxu0 0
        %3878 = vmatpush1.bf16.msra.mxu0 0
        %3879 = vmatprep.subr.bf16.mxu0 0
        %3880 = vmatpush1.bf16.msra.mxu0 0
        %3881 = vmatprep.subr.bf16.mxu0 0
        %3882 = vmatpush1.bf16.msra.mxu0 0
        %3883 = vmatprep.subr.bf16.mxu0 0
        %3884 = vmatpush1.bf16.msra.mxu0 0
        %3885 = vmatprep.subr.bf16.mxu0 0
        %3886 = vmatpush1.bf16.msra.mxu0 0
        %3887 = vmatprep.subr.bf16.mxu0 0
        %3888 = vmatpush1.bf16.msra.mxu0 0
        %3889 = vmatprep.subr.bf16.mxu0 0
        %3890 = vmatpush1.bf16.msra.mxu0 0
        %3891 = vmatprep.subr.bf16.mxu0 0
        %3892 = vmatpush1.bf16.msra.mxu0 0
        %3893 = vmatprep.subr.bf16.mxu0 0
        %3894 = vmatpush1.bf16.msra.mxu0 0
        %3895 = vmatprep.subr.bf16.mxu0 0
        %3896 = vmatpush1.bf16.msra.mxu0 0
        %3897 = vmatprep.subr.bf16.mxu0 0
        %3898 = vmatpush1.bf16.msra.mxu0 0
        %3899 = vmatprep.subr.bf16.mxu0 0
        %3900 = vmatpush1.bf16.msra.mxu0 0
        %3901 = vmatprep.subr.bf16.mxu0 0
        %3902 = vmatpush1.bf16.msra.mxu0 0
        %3903 = vmatprep.subr.bf16.mxu0 0
        %3904 = vmatpush1.bf16.msra.mxu0 0
        %3905 = vmatprep.mubr.bf16.mxu0 0
        %3906 = vmatmul.mubr.bf16.gmra.mrb[0].mxu0 %v3785
        %v3907 = vpop.f32.mrb[0].mxu0
        %v3908 = vadd.f32 %v3563, %v3907
        %v3909 = vpop.f32.mrb[0].mxu0
        %v3910 = vadd.f32 %v3567, %v3909
        %v3911 = vpop.f32.mrb[0].mxu0
        %v3912 = vadd.f32 %v3563, %v3911
        %v3913 = vpop.f32.mrb[0].mxu0
        %v3914 = vadd.f32 %v3567, %v3913
        %3915 = vdwg.mxu0
        %3916 = vmatprep.subr.bf16.mxu0 %v3727
        %3917 = vmatpush1.bf16.msra.mxu0 %v3726
        %3918 = vmatprep.subr.bf16.mxu0 %v3743
        %3919 = vmatpush1.bf16.msra.mxu0 %v3742
        %3920 = vmatprep.subr.bf16.mxu0 0
        %3921 = vmatpush1.bf16.msra.mxu0 0
        %3922 = vmatprep.subr.bf16.mxu0 0
        %3923 = vmatpush1.bf16.msra.mxu0 0
        %3924 = vmatprep.subr.bf16.mxu0 0
        %3925 = vmatpush1.bf16.msra.mxu0 0
        %3926 = vmatprep.subr.bf16.mxu0 0
        %3927 = vmatpush1.bf16.msra.mxu0 0
        %3928 = vmatprep.subr.bf16.mxu0 0
        %3929 = vmatpush1.bf16.msra.mxu0 0
        %3930 = vmatprep.subr.bf16.mxu0 0
        %3931 = vmatpush1.bf16.msra.mxu0 0
        %3932 = vmatprep.subr.bf16.mxu0 0
        %3933 = vmatpush1.bf16.msra.mxu0 0
        %3934 = vmatprep.subr.bf16.mxu0 0
        %3935 = vmatpush1.bf16.msra.mxu0 0
        %3936 = vmatprep.subr.bf16.mxu0 0
        %3937 = vmatpush1.bf16.msra.mxu0 0
        %3938 = vmatprep.subr.bf16.mxu0 0
        %3939 = vmatpush1.bf16.msra.mxu0 0
        %3940 = vmatprep.subr.bf16.mxu0 0
        %3941 = vmatpush1.bf16.msra.mxu0 0
        %3942 = vmatprep.subr.bf16.mxu0 0
        %3943 = vmatpush1.bf16.msra.mxu0 0
        %3944 = vmatprep.subr.bf16.mxu0 0
        %3945 = vmatpush1.bf16.msra.mxu0 0
        %3946 = vmatprep.subr.bf16.mxu0 0
        %3947 = vmatpush1.bf16.msra.mxu0 0
        %3948 = vmatprep.mubr.bf16.mxu0 0
        %3949 = vmatmul.mubr.bf16.gmra.mrb[0].mxu0 %v3785
        %v3950 = vpop.f32.mrb[0].mxu0
        %v3951 = vadd.f32 %v3571, %v3950
        %v3952 = vpop.f32.mrb[0].mxu0
        %v3953 = vadd.f32 %v3575, %v3952
        %v3954 = vpop.f32.mrb[0].mxu0
        %v3955 = vadd.f32 %v3571, %v3954
        %v3956 = vpop.f32.mrb[0].mxu0
        %v3957 = vadd.f32 %v3575, %v3956
        %3958 = vdwg.mxu0
        %3959 = vmatprep.subr.bf16.mxu0 %v3729
        %3960 = vmatpush1.bf16.msra.mxu0 %v3728
        %3961 = vmatprep.subr.bf16.mxu0 %v3745
        %3962 = vmatpush1.bf16.msra.mxu0 %v3744
        %3963 = vmatprep.subr.bf16.mxu0 0
        %3964 = vmatpush1.bf16.msra.mxu0 0
        %3965 = vmatprep.subr.bf16.mxu0 0
        %3966 = vmatpush1.bf16.msra.mxu0 0
        %3967 = vmatprep.subr.bf16.mxu0 0
        %3968 = vmatpush1.bf16.msra.mxu0 0
        %3969 = vmatprep.subr.bf16.mxu0 0
        %3970 = vmatpush1.bf16.msra.mxu0 0
        %3971 = vmatprep.subr.bf16.mxu0 0
        %3972 = vmatpush1.bf16.msra.mxu0 0
        %3973 = vmatprep.subr.bf16.mxu0 0
        %3974 = vmatpush1.bf16.msra.mxu0 0
        %3975 = vmatprep.subr.bf16.mxu0 0
        %3976 = vmatpush1.bf16.msra.mxu0 0
        %3977 = vmatprep.subr.bf16.mxu0 0
        %3978 = vmatpush1.bf16.msra.mxu0 0
        %3979 = vmatprep.subr.bf16.mxu0 0
        %3980 = vmatpush1.bf16.msra.mxu0 0
        %3981 = vmatprep.subr.bf16.mxu0 0
        %3982 = vmatpush1.bf16.msra.mxu0 0
        %3983 = vmatprep.subr.bf16.mxu0 0
        %3984 = vmatpush1.bf16.msra.mxu0 0
        %3985 = vmatprep.subr.bf16.mxu0 0
        %3986 = vmatpush1.bf16.msra.mxu0 0
        %3987 = vmatprep.subr.bf16.mxu0 0
        %3988 = vmatpush1.bf16.msra.mxu0 0
        %3989 = vmatprep.subr.bf16.mxu0 0
        %3990 = vmatpush1.bf16.msra.mxu0 0
        %3991 = vmatprep.mubr.bf16.mxu0 0
        %3992 = vmatmul.mubr.bf16.gmra.mrb[0].mxu0 %v3785
        %v3993 = vpop.f32.mrb[0].mxu0
        %v3994 = vadd.f32 %v3579, %v3993
        %v3995 = vpop.f32.mrb[0].mxu0
        %v3996 = vadd.f32 %v3583, %v3995
        %v3997 = vpop.f32.mrb[0].mxu0
        %v3998 = vadd.f32 %v3579, %v3997
        %v3999 = vpop.f32.mrb[0].mxu0
        %v4000 = vadd.f32 %v3583, %v3999
        %4001 = vdwg.mxu0
        %4002 = vmatprep.subr.bf16.mxu0 %v3731
        %4003 = vmatpush1.bf16.msra.mxu0 %v3730
        %4004 = vmatprep.subr.bf16.mxu0 %v3747
        %4005 = vmatpush1.bf16.msra.mxu0 %v3746
        %4006 = vmatprep.subr.bf16.mxu0 0
        %4007 = vmatpush1.bf16.msra.mxu0 0
        %4008 = vmatprep.subr.bf16.mxu0 0
        %4009 = vmatpush1.bf16.msra.mxu0 0
        %4010 = vmatprep.subr.bf16.mxu0 0
        %4011 = vmatpush1.bf16.msra.mxu0 0
        %4012 = vmatprep.subr.bf16.mxu0 0
        %4013 = vmatpush1.bf16.msra.mxu0 0
        %4014 = vmatprep.subr.bf16.mxu0 0
        %4015 = vmatpush1.bf16.msra.mxu0 0
        %4016 = vmatprep.subr.bf16.mxu0 0
        %4017 = vmatpush1.bf16.msra.mxu0 0
        %4018 = vmatprep.subr.bf16.mxu0 0
        %4019 = vmatpush1.bf16.msra.mxu0 0
        %4020 = vmatprep.subr.bf16.mxu0 0
        %4021 = vmatpush1.bf16.msra.mxu0 0
        %4022 = vmatprep.subr.bf16.mxu0 0
        %4023 = vmatpush1.bf16.msra.mxu0 0
        %4024 = vmatprep.subr.bf16.mxu0 0
        %4025 = vmatpush1.bf16.msra.mxu0 0
        %4026 = vmatprep.subr.bf16.mxu0 0
        %4027 = vmatpush1.bf16.msra.mxu0 0
        %4028 = vmatprep.subr.bf16.mxu0 0
        %4029 = vmatpush1.bf16.msra.mxu0 0
        %4030 = vmatprep.subr.bf16.mxu0 0
        %4031 = vmatpush1.bf16.msra.mxu0 0
        %4032 = vmatprep.subr.bf16.mxu0 0
        %4033 = vmatpush1.bf16.msra.mxu0 0
        %4034 = vmatprep.mubr.bf16.mxu0 0
        %4035 = vmatmul.mubr.bf16.gmra.mrb[0].mxu0 %v3785
        %v4036 = vpop.f32.mrb[0].mxu0
        %v4037 = vadd.f32 %v3587, %v4036
        %v4038 = vpop.f32.mrb[0].mxu0
        %v4039 = vadd.f32 %v3591, %v4038
        %v4040 = vpop.f32.mrb[0].mxu0
        %v4041 = vadd.f32 %v3587, %v4040
        %v4042 = vpop.f32.mrb[0].mxu0
        %v4043 = vadd.f32 %v3591, %v4042
        %4044 = vdwg.mxu0
        %4045 = vmatprep.subr.bf16.mxu0 %v3733
        %4046 = vmatpush1.bf16.msra.mxu0 %v3732
        %4047 = vmatprep.subr.bf16.mxu0 %v3749
        %4048 = vmatpush1.bf16.msra.mxu0 %v3748
        %4049 = vmatprep.subr.bf16.mxu0 0
        %4050 = vmatpush1.bf16.msra.mxu0 0
        %4051 = vmatprep.subr.bf16.mxu0 0
        %4052 = vmatpush1.bf16.msra.mxu0 0
        %4053 = vmatprep.subr.bf16.mxu0 0
        %4054 = vmatpush1.bf16.msra.mxu0 0
        %4055 = vmatprep.subr.bf16.mxu0 0
        %4056 = vmatpush1.bf16.msra.mxu0 0
        %4057 = vmatprep.subr.bf16.mxu0 0
        %4058 = vmatpush1.bf16.msra.mxu0 0
        %4059 = vmatprep.subr.bf16.mxu0 0
        %4060 = vmatpush1.bf16.msra.mxu0 0
        %4061 = vmatprep.subr.bf16.mxu0 0
        %4062 = vmatpush1.bf16.msra.mxu0 0
        %4063 = vmatprep.subr.bf16.mxu0 0
        %4064 = vmatpush1.bf16.msra.mxu0 0
        %4065 = vmatprep.subr.bf16.mxu0 0
        %4066 = vmatpush1.bf16.msra.mxu0 0
        %4067 = vmatprep.subr.bf16.mxu0 0
        %4068 = vmatpush1.bf16.msra.mxu0 0
        %4069 = vmatprep.subr.bf16.mxu0 0
        %4070 = vmatpush1.bf16.msra.mxu0 0
        %4071 = vmatprep.subr.bf16.mxu0 0
        %4072 = vmatpush1.bf16.msra.mxu0 0
        %4073 = vmatprep.subr.bf16.mxu0 0
        %4074 = vmatpush1.bf16.msra.mxu0 0
        %4075 = vmatprep.subr.bf16.mxu0 0
        %4076 = vmatpush1.bf16.msra.mxu0 0
        %4077 = vmatprep.mubr.bf16.mxu0 0
        %4078 = vmatmul.mubr.bf16.gmra.mrb[0].mxu0 %v3785
        %v4079 = vpop.f32.mrb[0].mxu0
        %v4080 = vadd.f32 %v3595, %v4079
        %v4081 = vpop.f32.mrb[0].mxu0
        %v4082 = vadd.f32 %v3599, %v4081
        %v4083 = vpop.f32.mrb[0].mxu0
        %v4084 = vadd.f32 %v3595, %v4083
        %v4085 = vpop.f32.mrb[0].mxu0
        %v4086 = vadd.f32 %v3599, %v4085
        %4087 = vdwg.mxu0
        %4088 = vmatprep.subr.bf16.mxu0 %v3735
        %4089 = vmatpush1.bf16.msra.mxu0 %v3734
        %4090 = vmatprep.subr.bf16.mxu0 %v3751
        %4091 = vmatpush1.bf16.msra.mxu0 %v3750
        %4092 = vmatprep.subr.bf16.mxu0 0
        %4093 = vmatpush1.bf16.msra.mxu0 0
        %4094 = vmatprep.subr.bf16.mxu0 0
        %4095 = vmatpush1.bf16.msra.mxu0 0
        %4096 = vmatprep.subr.bf16.mxu0 0
        %4097 = vmatpush1.bf16.msra.mxu0 0
        %4098 = vmatprep.subr.bf16.mxu0 0
        %4099 = vmatpush1.bf16.msra.mxu0 0
        %4100 = vmatprep.subr.bf16.mxu0 0
        %4101 = vmatpush1.bf16.msra.mxu0 0
        %4102 = vmatprep.subr.bf16.mxu0 0
        %4103 = vmatpush1.bf16.msra.mxu0 0
        %4104 = vmatprep.subr.bf16.mxu0 0
        %4105 = vmatpush1.bf16.msra.mxu0 0
        %4106 = vmatprep.subr.bf16.mxu0 0
        %4107 = vmatpush1.bf16.msra.mxu0 0
        %4108 = vmatprep.subr.bf16.mxu0 0
        %4109 = vmatpush1.bf16.msra.mxu0 0
        %4110 = vmatprep.subr.bf16.mxu0 0
        %4111 = vmatpush1.bf16.msra.mxu0 0
        %4112 = vmatprep.subr.bf16.mxu0 0
        %4113 = vmatpush1.bf16.msra.mxu0 0
        %4114 = vmatprep.subr.bf16.mxu0 0
        %4115 = vmatpush1.bf16.msra.mxu0 0
        %4116 = vmatprep.subr.bf16.mxu0 0
        %4117 = vmatpush1.bf16.msra.mxu0 0
        %4118 = vmatprep.subr.bf16.mxu0 0
        %4119 = vmatpush1.bf16.msra.mxu0 0
        %4120 = vmatprep.mubr.bf16.mxu0 0
        %4121 = vmatmul.mubr.bf16.gmra.mrb[0].mxu0 %v3785
        %v4122 = vpop.f32.mrb[0].mxu0
        %v4123 = vadd.f32 %v3603, %v4122
        %v4124 = vpop.f32.mrb[0].mxu0
        %v4125 = vadd.f32 %v3607, %v4124
        %v4126 = vpop.f32.mrb[0].mxu0
        %v4127 = vadd.f32 %v3603, %v4126
        %v4128 = vpop.f32.mrb[0].mxu0
        %v4129 = vadd.f32 %v3607, %v4128
        %4130 = vdwg.mxu0
        %v4131 = vmax.f32 %v3822, 0.0
        %v4132 = vmax.f32 %v3824, 0.0
        %v4133 = vmax.f32 %v3865, 0.0
        %v4134 = vmax.f32 %v3867, 0.0
        %v4135 = vmax.f32 %v3908, 0.0
        %v4136 = vmax.f32 %v3910, 0.0
        %v4137 = vmax.f32 %v3951, 0.0
        %v4138 = vmax.f32 %v3953, 0.0
        %v4139 = vmax.f32 %v3994, 0.0
        %v4140 = vmax.f32 %v3996, 0.0
        %v4141 = vmax.f32 %v4037, 0.0
        %v4142 = vmax.f32 %v4039, 0.0
        %v4143 = vmax.f32 %v4080, 0.0
        %v4144 = vmax.f32 %v4082, 0.0
        %v4145 = vmax.f32 %v4123, 0.0
        %v4146 = vmax.f32 %v4125, 0.0
        %v4147 = vmax.f32 %v3826, 0.0
        %v4148 = vmax.f32 %v3828, 0.0
        %v4149 = vmax.f32 %v3869, 0.0
        %v4150 = vmax.f32 %v3871, 0.0
        %v4151 = vmax.f32 %v3912, 0.0
        %v4152 = vmax.f32 %v3914, 0.0
        %v4153 = vmax.f32 %v3955, 0.0
        %v4154 = vmax.f32 %v3957, 0.0
        %v4155 = vmax.f32 %v3998, 0.0
        %v4156 = vmax.f32 %v4000, 0.0
        %v4157 = vmax.f32 %v4041, 0.0
        %v4158 = vmax.f32 %v4043, 0.0
        %v4159 = vmax.f32 %v4084, 0.0
        %v4160 = vmax.f32 %v4086, 0.0
        %v4161 = vmax.f32 %v4127, 0.0
        %v4162 = vmax.f32 %v4129, 0.0
        %v4163 = vpack.c.bf16 %v4147, %v4131
        %v4164 = vpack.c.bf16 %v4148, %v4132
        %v4165 = vpack.c.bf16 %v4149, %v4133
        %v4166 = vpack.c.bf16 %v4150, %v4134
        %v4167 = vpack.c.bf16 %v4151, %v4135
        %v4168 = vpack.c.bf16 %v4152, %v4136
        %v4169 = vpack.c.bf16 %v4153, %v4137
        %v4170 = vpack.c.bf16 %v4154, %v4138
        %v4171 = vpack.c.bf16 %v4155, %v4139
        %v4172 = vpack.c.bf16 %v4156, %v4140
        %v4173 = vpack.c.bf16 %v4157, %v4141
        %v4174 = vpack.c.bf16 %v4158, %v4142
        %v4175 = vpack.c.bf16 %v4159, %v4143
        %v4176 = vpack.c.bf16 %v4160, %v4144
        %v4177 = vpack.c.bf16 %v4161, %v4145
        %v4178 = vpack.c.bf16 %v4162, %v4146
        %v4180 = vlaneseq
        %v4181 = vshrl.u32 %v4180, 7
        %v4182 = vsub.s32 0, %v4181
        %v4183 = vrot.slane %v3540, %v4182
        %v4441 = vunpack.c.l.b16 %v3284
        %v4442 = vunpack.c.l.b16 %v3285
        %v4443 = vunpack.c.l.b16 %v3286
        %v4444 = vunpack.c.l.b16 %v3287
        %v4445 = vunpack.c.l.b16 %v3288
        %v4446 = vunpack.c.l.b16 %v3289
        %v4447 = vunpack.c.l.b16 %v3290
        %v4448 = vunpack.c.l.b16 %v3291
        %v4449 = vunpack.c.l.b16 %v3292
        %v4450 = vunpack.c.l.b16 %v3293
        %v4451 = vunpack.c.l.b16 %v3294
        %v4452 = vunpack.c.l.b16 %v3295
        %v4453 = vunpack.c.l.b16 %v3296
        %v4454 = vunpack.c.l.b16 %v3297
        %v4455 = vunpack.c.l.b16 %v3298
        %v4456 = vunpack.c.l.b16 %v3299
        %v4457 = vunpack.c.l.b16 %v3300
        %v4458 = vunpack.c.l.b16 %v3301
        %v4459 = vunpack.c.l.b16 %v3302
        %v4460 = vunpack.c.l.b16 %v3303
        %v4461 = vunpack.c.l.b16 %v3304
        %v4462 = vunpack.c.l.b16 %v3305
        %v4463 = vunpack.c.l.b16 %v3306
        %v4464 = vunpack.c.l.b16 %v3307
        %v4465 = vunpack.c.l.b16 %v3308
        %v4466 = vunpack.c.l.b16 %v3309
        %v4467 = vunpack.c.l.b16 %v3310
        %v4468 = vunpack.c.l.b16 %v3311
        %v4469 = vunpack.c.l.b16 %v3312
        %v4470 = vunpack.c.l.b16 %v3313
        %v4471 = vunpack.c.l.b16 %v3314
        %v4472 = vunpack.c.l.b16 %v3315
        %v4473 = vunpack.c.l.b16 %v3316
        %v4474 = vunpack.c.l.b16 %v3317
        %v4475 = vunpack.c.l.b16 %v3318
        %v4476 = vunpack.c.l.b16 %v3319
        %v4477 = vunpack.c.l.b16 %v3320
        %v4478 = vunpack.c.l.b16 %v3321
        %v4479 = vunpack.c.l.b16 %v3322
        %v4480 = vunpack.c.l.b16 %v3323
        %v4481 = vunpack.c.l.b16 %v3324
        %v4482 = vunpack.c.l.b16 %v3325
        %v4483 = vunpack.c.l.b16 %v3326
        %v4484 = vunpack.c.l.b16 %v3327
        %v4485 = vunpack.c.l.b16 %v3328
        %v4486 = vunpack.c.l.b16 %v3329
        %v4487 = vunpack.c.l.b16 %v3330
        %v4488 = vunpack.c.l.b16 %v3331
        %v4489 = vunpack.c.l.b16 %v3332
        %v4490 = vunpack.c.l.b16 %v3333
        %v4491 = vunpack.c.l.b16 %v3334
        %v4492 = vunpack.c.l.b16 %v3335
        %v4493 = vunpack.c.l.b16 %v3336
        %v4494 = vunpack.c.l.b16 %v3337
        %v4495 = vunpack.c.l.b16 %v3338
        %v4496 = vunpack.c.l.b16 %v3339
        %v4497 = vunpack.c.l.b16 %v3340
        %v4498 = vunpack.c.l.b16 %v3341
        %v4499 = vunpack.c.l.b16 %v3342
        %v4500 = vunpack.c.l.b16 %v3343
        %v4501 = vunpack.c.l.b16 %v3344
        %v4502 = vunpack.c.l.b16 %v3345
        %v4503 = vunpack.c.l.b16 %v3346
        %v4504 = vunpack.c.l.b16 %v3347
        %v4505 = vunpack.c.l.b16 %v3348
        %v4506 = vunpack.c.l.b16 %v3349
        %v4507 = vunpack.c.l.b16 %v3350
        %v4508 = vunpack.c.l.b16 %v3351
        %v4509 = vunpack.c.l.b16 %v3352
        %v4510 = vunpack.c.l.b16 %v3353
        %v4511 = vunpack.c.l.b16 %v3354
        %v4512 = vunpack.c.l.b16 %v3355
        %v4513 = vunpack.c.l.b16 %v3356
        %v4514 = vunpack.c.l.b16 %v3357
        %v4515 = vunpack.c.l.b16 %v3358
        %v4516 = vunpack.c.l.b16 %v3359
        %v4517 = vunpack.c.l.b16 %v3360
        %v4518 = vunpack.c.l.b16 %v3361
        %v4519 = vunpack.c.l.b16 %v3362
        %v4520 = vunpack.c.l.b16 %v3363
        %v4521 = vunpack.c.l.b16 %v3364
        %v4522 = vunpack.c.l.b16 %v3365
        %v4523 = vunpack.c.l.b16 %v3366
        %v4524 = vunpack.c.l.b16 %v3367
        %v4525 = vunpack.c.l.b16 %v3368
        %v4526 = vunpack.c.l.b16 %v3369
        %v4527 = vunpack.c.l.b16 %v3370
        %v4528 = vunpack.c.l.b16 %v3371
        %v4529 = vunpack.c.l.b16 %v3372
        %v4530 = vunpack.c.l.b16 %v3373
        %v4531 = vunpack.c.l.b16 %v3374
        %v4532 = vunpack.c.l.b16 %v3375
        %v4533 = vunpack.c.l.b16 %v3376
        %v4534 = vunpack.c.l.b16 %v3377
        %v4535 = vunpack.c.l.b16 %v3378
        %v4536 = vunpack.c.l.b16 %v3379
        %v4537 = vunpack.c.l.b16 %v3380
        %v4538 = vunpack.c.l.b16 %v3381
        %v4539 = vunpack.c.l.b16 %v3382
        %v4540 = vunpack.c.l.b16 %v3383
        %v4541 = vunpack.c.l.b16 %v3384
        %v4542 = vunpack.c.l.b16 %v3385
        %v4543 = vunpack.c.l.b16 %v3386
        %v4544 = vunpack.c.l.b16 %v3387
        %v4545 = vunpack.c.l.b16 %v3388
        %v4546 = vunpack.c.l.b16 %v3389
        %v4547 = vunpack.c.l.b16 %v3390
        %v4548 = vunpack.c.l.b16 %v3391
        %v4549 = vunpack.c.l.b16 %v3392
        %v4550 = vunpack.c.l.b16 %v3393
        %v4551 = vunpack.c.l.b16 %v3394
        %v4552 = vunpack.c.l.b16 %v3395
        %v4553 = vunpack.c.l.b16 %v3396
        %v4554 = vunpack.c.l.b16 %v3397
        %v4555 = vunpack.c.l.b16 %v3398
        %v4556 = vunpack.c.l.b16 %v3399
        %v4557 = vunpack.c.l.b16 %v3400
        %v4558 = vunpack.c.l.b16 %v3401
        %v4559 = vunpack.c.l.b16 %v3402
        %v4560 = vunpack.c.l.b16 %v3403
        %v4561 = vunpack.c.l.b16 %v3404
        %v4562 = vunpack.c.l.b16 %v3405
        %v4563 = vunpack.c.l.b16 %v3406
        %v4564 = vunpack.c.l.b16 %v3407
        %v4565 = vunpack.c.l.b16 %v3408
        %v4566 = vunpack.c.l.b16 %v3409
        %v4567 = vunpack.c.l.b16 %v3410
        %v4568 = vunpack.c.l.b16 %v3411
        %v4569 = vunpack.c.l.b16 %v3412
        %v4570 = vunpack.c.l.b16 %v3413
        %v4571 = vunpack.c.l.b16 %v3414
        %v4572 = vunpack.c.l.b16 %v3415
        %v4573 = vunpack.c.l.b16 %v3416
        %v4574 = vunpack.c.l.b16 %v3417
        %v4575 = vunpack.c.l.b16 %v3418
        %v4576 = vunpack.c.l.b16 %v3419
        %v4577 = vunpack.c.l.b16 %v3420
        %v4578 = vunpack.c.l.b16 %v3421
        %v4579 = vunpack.c.l.b16 %v3422
        %v4580 = vunpack.c.l.b16 %v3423
        %v4581 = vunpack.c.l.b16 %v3424
        %v4582 = vunpack.c.l.b16 %v3425
        %v4583 = vunpack.c.l.b16 %v3426
        %v4584 = vunpack.c.l.b16 %v3427
        %v4585 = vunpack.c.l.b16 %v3428
        %v4586 = vunpack.c.l.b16 %v3429
        %v4587 = vunpack.c.l.b16 %v3430
        %v4588 = vunpack.c.l.b16 %v3431
        %v4589 = vunpack.c.l.b16 %v3432
        %v4590 = vunpack.c.l.b16 %v3433
        %v4591 = vunpack.c.l.b16 %v3434
        %v4592 = vunpack.c.l.b16 %v3435
        %v4593 = vunpack.c.l.b16 %v3436
        %v4594 = vunpack.c.l.b16 %v3437
        %v4595 = vunpack.c.l.b16 %v3438
        %v4596 = vunpack.c.l.b16 %v3439
        %v4597 = vunpack.c.l.b16 %v3440
        %v4598 = vunpack.c.l.b16 %v3441
        %v4599 = vunpack.c.l.b16 %v3442
        %v4600 = vunpack.c.l.b16 %v3443
        %v4601 = vunpack.c.l.b16 %v3444
        %v4602 = vunpack.c.l.b16 %v3445
        %v4603 = vunpack.c.l.b16 %v3446
        %v4604 = vunpack.c.l.b16 %v3447
        %v4605 = vunpack.c.l.b16 %v3448
        %v4606 = vunpack.c.l.b16 %v3449
        %v4607 = vunpack.c.l.b16 %v3450
        %v4608 = vunpack.c.l.b16 %v3451
        %v4609 = vunpack.c.l.b16 %v3452
        %v4610 = vunpack.c.l.b16 %v3453
        %v4611 = vunpack.c.l.b16 %v3454
        %v4612 = vunpack.c.l.b16 %v3455
        %v4613 = vunpack.c.l.b16 %v3456
        %v4614 = vunpack.c.l.b16 %v3457
        %v4615 = vunpack.c.l.b16 %v3458
        %v4616 = vunpack.c.l.b16 %v3459
        %v4617 = vunpack.c.l.b16 %v3460
        %v4618 = vunpack.c.l.b16 %v3461
        %v4619 = vunpack.c.l.b16 %v3462
        %v4620 = vunpack.c.l.b16 %v3463
        %v4621 = vunpack.c.l.b16 %v3464
        %v4622 = vunpack.c.l.b16 %v3465
        %v4623 = vunpack.c.l.b16 %v3466
        %v4624 = vunpack.c.l.b16 %v3467
        %v4625 = vunpack.c.l.b16 %v3468
        %v4626 = vunpack.c.l.b16 %v3469
        %v4627 = vunpack.c.l.b16 %v3470
        %v4628 = vunpack.c.l.b16 %v3471
        %v4629 = vunpack.c.l.b16 %v3472
        %v4630 = vunpack.c.l.b16 %v3473
        %v4631 = vunpack.c.l.b16 %v3474
        %v4632 = vunpack.c.l.b16 %v3475
        %v4633 = vunpack.c.l.b16 %v3476
        %v4634 = vunpack.c.l.b16 %v3477
        %v4635 = vunpack.c.l.b16 %v3478
        %v4636 = vunpack.c.l.b16 %v3479
        %v4637 = vunpack.c.l.b16 %v3480
        %v4638 = vunpack.c.l.b16 %v3481
        %v4639 = vunpack.c.l.b16 %v3482
        %v4640 = vunpack.c.l.b16 %v3483
        %v4641 = vunpack.c.l.b16 %v3484
        %v4642 = vunpack.c.l.b16 %v3485
        %v4643 = vunpack.c.l.b16 %v3486
        %v4644 = vunpack.c.l.b16 %v3487
        %v4645 = vunpack.c.l.b16 %v3488
        %v4646 = vunpack.c.l.b16 %v3489
        %v4647 = vunpack.c.l.b16 %v3490
        %v4648 = vunpack.c.l.b16 %v3491
        %v4649 = vunpack.c.l.b16 %v3492
        %v4650 = vunpack.c.l.b16 %v3493
        %v4651 = vunpack.c.l.b16 %v3494
        %v4652 = vunpack.c.l.b16 %v3495
        %v4653 = vunpack.c.l.b16 %v3496
        %v4654 = vunpack.c.l.b16 %v3497
        %v4655 = vunpack.c.l.b16 %v3498
        %v4656 = vunpack.c.l.b16 %v3499
        %v4657 = vunpack.c.l.b16 %v3500
        %v4658 = vunpack.c.l.b16 %v3501
        %v4659 = vunpack.c.l.b16 %v3502
        %v4660 = vunpack.c.l.b16 %v3503
        %v4661 = vunpack.c.l.b16 %v3504
        %v4662 = vunpack.c.l.b16 %v3505
        %v4663 = vunpack.c.l.b16 %v3506
        %v4664 = vunpack.c.l.b16 %v3507
        %v4665 = vunpack.c.l.b16 %v3508
        %v4666 = vunpack.c.l.b16 %v3509
        %v4667 = vunpack.c.l.b16 %v3510
        %v4668 = vunpack.c.l.b16 %v3511
        %v4669 = vunpack.c.l.b16 %v3512
        %v4670 = vunpack.c.l.b16 %v3513
        %v4671 = vunpack.c.l.b16 %v3514
        %v4672 = vunpack.c.l.b16 %v3515
        %v4673 = vunpack.c.l.b16 %v3516
        %v4674 = vunpack.c.l.b16 %v3517
        %v4675 = vunpack.c.l.b16 %v3518
        %v4676 = vunpack.c.l.b16 %v3519
        %v4677 = vunpack.c.l.b16 %v3520
        %v4678 = vunpack.c.l.b16 %v3521
        %v4679 = vunpack.c.l.b16 %v3522
        %v4680 = vunpack.c.l.b16 %v3523
        %v4681 = vunpack.c.l.b16 %v3524
        %v4682 = vunpack.c.l.b16 %v3525
        %v4683 = vunpack.c.l.b16 %v3526
        %v4684 = vunpack.c.l.b16 %v3527
        %v4685 = vunpack.c.l.b16 %v3528
        %v4686 = vunpack.c.l.b16 %v3529
        %v4687 = vunpack.c.l.b16 %v3530
        %v4688 = vunpack.c.l.b16 %v3531
        %v4689 = vunpack.c.l.b16 %v3532
        %v4690 = vunpack.c.l.b16 %v3533
        %v4691 = vunpack.c.l.b16 %v3534
        %v4692 = vunpack.c.l.b16 %v3535
        %v4693 = vunpack.c.l.b16 %v3536
        %v4694 = vunpack.c.l.b16 %v3537
        %v4695 = vunpack.c.l.b16 %v3538
        %v4696 = vunpack.c.l.b16 %v3539
        %v4697 = vpack.c.b16 %v4442, %v4441
        %v4698 = vpack.c.b16 %v4444, %v4443
        %v4699 = vpack.c.b16 %v4446, %v4445
        %v4700 = vpack.c.b16 %v4448, %v4447
        %v4701 = vpack.c.b16 %v4450, %v4449
        %v4702 = vpack.c.b16 %v4452, %v4451
        %v4703 = vpack.c.b16 %v4454, %v4453
        %v4704 = vpack.c.b16 %v4456, %v4455
        %v4705 = vpack.c.b16 %v4458, %v4457
        %v4706 = vpack.c.b16 %v4460, %v4459
        %v4707 = vpack.c.b16 %v4462, %v4461
        %v4708 = vpack.c.b16 %v4464, %v4463
        %v4709 = vpack.c.b16 %v4466, %v4465
        %v4710 = vpack.c.b16 %v4468, %v4467
        %v4711 = vpack.c.b16 %v4470, %v4469
        %v4712 = vpack.c.b16 %v4472, %v4471
        %v4713 = vpack.c.b16 %v4474, %v4473
        %v4714 = vpack.c.b16 %v4476, %v4475
        %v4715 = vpack.c.b16 %v4478, %v4477
        %v4716 = vpack.c.b16 %v4480, %v4479
        %v4717 = vpack.c.b16 %v4482, %v4481
        %v4718 = vpack.c.b16 %v4484, %v4483
        %v4719 = vpack.c.b16 %v4486, %v4485
        %v4720 = vpack.c.b16 %v4488, %v4487
        %v4721 = vpack.c.b16 %v4490, %v4489
        %v4722 = vpack.c.b16 %v4492, %v4491
        %v4723 = vpack.c.b16 %v4494, %v4493
        %v4724 = vpack.c.b16 %v4496, %v4495
        %v4725 = vpack.c.b16 %v4498, %v4497
        %v4726 = vpack.c.b16 %v4500, %v4499
        %v4727 = vpack.c.b16 %v4502, %v4501
        %v4728 = vpack.c.b16 %v4504, %v4503
        %v4729 = vpack.c.b16 %v4506, %v4505
        %v4730 = vpack.c.b16 %v4508, %v4507
        %v4731 = vpack.c.b16 %v4510, %v4509
        %v4732 = vpack.c.b16 %v4512, %v4511
        %v4733 = vpack.c.b16 %v4514, %v4513
        %v4734 = vpack.c.b16 %v4516, %v4515
        %v4735 = vpack.c.b16 %v4518, %v4517
        %v4736 = vpack.c.b16 %v4520, %v4519
        %v4737 = vpack.c.b16 %v4522, %v4521
        %v4738 = vpack.c.b16 %v4524, %v4523
        %v4739 = vpack.c.b16 %v4526, %v4525
        %v4740 = vpack.c.b16 %v4528, %v4527
        %v4741 = vpack.c.b16 %v4530, %v4529
        %v4742 = vpack.c.b16 %v4532, %v4531
        %v4743 = vpack.c.b16 %v4534, %v4533
        %v4744 = vpack.c.b16 %v4536, %v4535
        %v4745 = vpack.c.b16 %v4538, %v4537
        %v4746 = vpack.c.b16 %v4540, %v4539
        %v4747 = vpack.c.b16 %v4542, %v4541
        %v4748 = vpack.c.b16 %v4544, %v4543
        %v4749 = vpack.c.b16 %v4546, %v4545
        %v4750 = vpack.c.b16 %v4548, %v4547
        %v4751 = vpack.c.b16 %v4550, %v4549
        %v4752 = vpack.c.b16 %v4552, %v4551
        %v4753 = vpack.c.b16 %v4554, %v4553
        %v4754 = vpack.c.b16 %v4556, %v4555
        %v4755 = vpack.c.b16 %v4558, %v4557
        %v4756 = vpack.c.b16 %v4560, %v4559
        %v4757 = vpack.c.b16 %v4562, %v4561
        %v4758 = vpack.c.b16 %v4564, %v4563
        %v4759 = vpack.c.b16 %v4566, %v4565
        %v4760 = vpack.c.b16 %v4568, %v4567
        %v4761 = vpack.c.b16 %v4570, %v4569
        %v4762 = vpack.c.b16 %v4572, %v4571
        %v4763 = vpack.c.b16 %v4574, %v4573
        %v4764 = vpack.c.b16 %v4576, %v4575
        %v4765 = vpack.c.b16 %v4578, %v4577
        %v4766 = vpack.c.b16 %v4580, %v4579
        %v4767 = vpack.c.b16 %v4582, %v4581
        %v4768 = vpack.c.b16 %v4584, %v4583
        %v4769 = vpack.c.b16 %v4586, %v4585
        %v4770 = vpack.c.b16 %v4588, %v4587
        %v4771 = vpack.c.b16 %v4590, %v4589
        %v4772 = vpack.c.b16 %v4592, %v4591
        %v4773 = vpack.c.b16 %v4594, %v4593
        %v4774 = vpack.c.b16 %v4596, %v4595
        %v4775 = vpack.c.b16 %v4598, %v4597
        %v4776 = vpack.c.b16 %v4600, %v4599
        %v4777 = vpack.c.b16 %v4602, %v4601
        %v4778 = vpack.c.b16 %v4604, %v4603
        %v4779 = vpack.c.b16 %v4606, %v4605
        %v4780 = vpack.c.b16 %v4608, %v4607
        %v4781 = vpack.c.b16 %v4610, %v4609
        %v4782 = vpack.c.b16 %v4612, %v4611
        %v4783 = vpack.c.b16 %v4614, %v4613
        %v4784 = vpack.c.b16 %v4616, %v4615
        %v4785 = vpack.c.b16 %v4618, %v4617
        %v4786 = vpack.c.b16 %v4620, %v4619
        %v4787 = vpack.c.b16 %v4622, %v4621
        %v4788 = vpack.c.b16 %v4624, %v4623
        %v4789 = vpack.c.b16 %v4626, %v4625
        %v4790 = vpack.c.b16 %v4628, %v4627
        %v4791 = vpack.c.b16 %v4630, %v4629
        %v4792 = vpack.c.b16 %v4632, %v4631
        %v4793 = vpack.c.b16 %v4634, %v4633
        %v4794 = vpack.c.b16 %v4636, %v4635
        %v4795 = vpack.c.b16 %v4638, %v4637
        %v4796 = vpack.c.b16 %v4640, %v4639
        %v4797 = vpack.c.b16 %v4642, %v4641
        %v4798 = vpack.c.b16 %v4644, %v4643
        %v4799 = vpack.c.b16 %v4646, %v4645
        %v4800 = vpack.c.b16 %v4648, %v4647
        %v4801 = vpack.c.b16 %v4650, %v4649
        %v4802 = vpack.c.b16 %v4652, %v4651
        %v4803 = vpack.c.b16 %v4654, %v4653
        %v4804 = vpack.c.b16 %v4656, %v4655
        %v4805 = vpack.c.b16 %v4658, %v4657
        %v4806 = vpack.c.b16 %v4660, %v4659
        %v4807 = vpack.c.b16 %v4662, %v4661
        %v4808 = vpack.c.b16 %v4664, %v4663
        %v4809 = vpack.c.b16 %v4666, %v4665
        %v4810 = vpack.c.b16 %v4668, %v4667
        %v4811 = vpack.c.b16 %v4670, %v4669
        %v4812 = vpack.c.b16 %v4672, %v4671
        %v4813 = vpack.c.b16 %v4674, %v4673
        %v4814 = vpack.c.b16 %v4676, %v4675
        %v4815 = vpack.c.b16 %v4678, %v4677
        %v4816 = vpack.c.b16 %v4680, %v4679
        %v4817 = vpack.c.b16 %v4682, %v4681
        %v4818 = vpack.c.b16 %v4684, %v4683
        %v4819 = vpack.c.b16 %v4686, %v4685
        %v4820 = vpack.c.b16 %v4688, %v4687
        %v4821 = vpack.c.b16 %v4690, %v4689
        %v4822 = vpack.c.b16 %v4692, %v4691
        %v4823 = vpack.c.b16 %v4694, %v4693
        %v4824 = vpack.c.b16 %v4696, %v4695
        %4953 = vmatprep.subr.bf16.mxu0 0
        %4954 = vmatpush1.bf16.msra.mxu0 %v4697
        %4955 = vmatprep.subr.bf16.mxu0 0
        %4956 = vmatpush1.bf16.msra.mxu0 %v4698
        %4957 = vmatprep.subr.bf16.mxu0 0
        %4958 = vmatpush1.bf16.msra.mxu0 %v4699
        %4959 = vmatprep.subr.bf16.mxu0 0
        %4960 = vmatpush1.bf16.msra.mxu0 %v4700
        %4961 = vmatprep.subr.bf16.mxu0 0
        %4962 = vmatpush1.bf16.msra.mxu0 %v4701
        %4963 = vmatprep.subr.bf16.mxu0 0
        %4964 = vmatpush1.bf16.msra.mxu0 %v4702
        %4965 = vmatprep.subr.bf16.mxu0 0
        %4966 = vmatpush1.bf16.msra.mxu0 %v4703
        %4967 = vmatprep.subr.bf16.mxu0 0
        %4968 = vmatpush1.bf16.msra.mxu0 %v4704
        %4969 = vmatprep.subr.bf16.mxu0 0
        %4970 = vmatpush1.bf16.msra.mxu0 %v4705
        %4971 = vmatprep.subr.bf16.mxu0 0
        %4972 = vmatpush1.bf16.msra.mxu0 %v4706
        %4973 = vmatprep.subr.bf16.mxu0 0
        %4974 = vmatpush1.bf16.msra.mxu0 %v4707
        %4975 = vmatprep.subr.bf16.mxu0 0
        %4976 = vmatpush1.bf16.msra.mxu0 %v4708
        %4977 = vmatprep.subr.bf16.mxu0 0
        %4978 = vmatpush1.bf16.msra.mxu0 %v4709
        %4979 = vmatprep.subr.bf16.mxu0 0
        %4980 = vmatpush1.bf16.msra.mxu0 %v4710
        %4981 = vmatprep.subr.bf16.mxu0 0
        %4982 = vmatpush1.bf16.msra.mxu0 %v4711
        %4983 = vmatprep.subr.bf16.mxu0 0
        %4984 = vmatpush1.bf16.msra.mxu0 %v4712
        %4985 = vmatprep.mubr.bf16.mxu0 %v4164
        %4986 = vmatmul.mubr.bf16.gmra.mrb[0].mxu0 %v4163
        %v4987 = vpop.f32.mrb[0].mxu0
        %v4988 = vadd.f32 %v4183, %v4987
        %v4989 = vpop.f32.mrb[0].mxu0
        %v4990 = vpop.f32.mrb[0].mxu0
        %v4991 = vadd.f32 %v4183, %v4990
        %v4992 = vpop.f32.mrb[0].mxu0
        %4993 = vdwg.mxu0
        %4994 = vmatprep.subr.bf16.mxu0 0
        %4995 = vmatpush1.bf16.msra.mxu0 %v4713
        %4996 = vmatprep.subr.bf16.mxu0 0
        %4997 = vmatpush1.bf16.msra.mxu0 %v4714
        %4998 = vmatprep.subr.bf16.mxu0 0
        %4999 = vmatpush1.bf16.msra.mxu0 %v4715
        %5000 = vmatprep.subr.bf16.mxu0 0
        %5001 = vmatpush1.bf16.msra.mxu0 %v4716
        %5002 = vmatprep.subr.bf16.mxu0 0
        %5003 = vmatpush1.bf16.msra.mxu0 %v4717
        %5004 = vmatprep.subr.bf16.mxu0 0
        %5005 = vmatpush1.bf16.msra.mxu0 %v4718
        %5006 = vmatprep.subr.bf16.mxu0 0
        %5007 = vmatpush1.bf16.msra.mxu0 %v4719
        %5008 = vmatprep.subr.bf16.mxu0 0
        %5009 = vmatpush1.bf16.msra.mxu0 %v4720
        %5010 = vmatprep.subr.bf16.mxu0 0
        %5011 = vmatpush1.bf16.msra.mxu0 %v4721
        %5012 = vmatprep.subr.bf16.mxu0 0
        %5013 = vmatpush1.bf16.msra.mxu0 %v4722
        %5014 = vmatprep.subr.bf16.mxu0 0
        %5015 = vmatpush1.bf16.msra.mxu0 %v4723
        %5016 = vmatprep.subr.bf16.mxu0 0
        %5017 = vmatpush1.bf16.msra.mxu0 %v4724
        %5018 = vmatprep.subr.bf16.mxu0 0
        %5019 = vmatpush1.bf16.msra.mxu0 %v4725
        %5020 = vmatprep.subr.bf16.mxu0 0
        %5021 = vmatpush1.bf16.msra.mxu0 %v4726
        %5022 = vmatprep.subr.bf16.mxu0 0
        %5023 = vmatpush1.bf16.msra.mxu0 %v4727
        %5024 = vmatprep.subr.bf16.mxu0 0
        %5025 = vmatpush1.bf16.msra.mxu0 %v4728
        %5026 = vmatprep.mubr.bf16.mxu0 %v4166
        %5027 = vmatmul.mubr.bf16.gmra.mrb[0].mxu0 %v4165
        %v5028 = vpop.f32.mrb[0].mxu0
        %v5029 = vadd.f32 %v4988, %v5028
        %v5030 = vpop.f32.mrb[0].mxu0
        %v5031 = vpop.f32.mrb[0].mxu0
        %v5032 = vadd.f32 %v4991, %v5031
        %v5033 = vpop.f32.mrb[0].mxu0
        %5034 = vdwg.mxu0
        %5035 = vmatprep.subr.bf16.mxu0 0
        %5036 = vmatpush1.bf16.msra.mxu0 %v4729
        %5037 = vmatprep.subr.bf16.mxu0 0
        %5038 = vmatpush1.bf16.msra.mxu0 %v4730
        %5039 = vmatprep.subr.bf16.mxu0 0
        %5040 = vmatpush1.bf16.msra.mxu0 %v4731
        %5041 = vmatprep.subr.bf16.mxu0 0
        %5042 = vmatpush1.bf16.msra.mxu0 %v4732
        %5043 = vmatprep.subr.bf16.mxu0 0
        %5044 = vmatpush1.bf16.msra.mxu0 %v4733
        %5045 = vmatprep.subr.bf16.mxu0 0
        %5046 = vmatpush1.bf16.msra.mxu0 %v4734
        %5047 = vmatprep.subr.bf16.mxu0 0
        %5048 = vmatpush1.bf16.msra.mxu0 %v4735
        %5049 = vmatprep.subr.bf16.mxu0 0
        %5050 = vmatpush1.bf16.msra.mxu0 %v4736
        %5051 = vmatprep.subr.bf16.mxu0 0
        %5052 = vmatpush1.bf16.msra.mxu0 %v4737
        %5053 = vmatprep.subr.bf16.mxu0 0
        %5054 = vmatpush1.bf16.msra.mxu0 %v4738
        %5055 = vmatprep.subr.bf16.mxu0 0
        %5056 = vmatpush1.bf16.msra.mxu0 %v4739
        %5057 = vmatprep.subr.bf16.mxu0 0
        %5058 = vmatpush1.bf16.msra.mxu0 %v4740
        %5059 = vmatprep.subr.bf16.mxu0 0
        %5060 = vmatpush1.bf16.msra.mxu0 %v4741
        %5061 = vmatprep.subr.bf16.mxu0 0
        %5062 = vmatpush1.bf16.msra.mxu0 %v4742
        %5063 = vmatprep.subr.bf16.mxu0 0
        %5064 = vmatpush1.bf16.msra.mxu0 %v4743
        %5065 = vmatprep.subr.bf16.mxu0 0
        %5066 = vmatpush1.bf16.msra.mxu0 %v4744
        %5067 = vmatprep.mubr.bf16.mxu0 %v4168
        %5068 = vmatmul.mubr.bf16.gmra.mrb[0].mxu0 %v4167
        %v5069 = vpop.f32.mrb[0].mxu0
        %v5070 = vadd.f32 %v5029, %v5069
        %v5071 = vpop.f32.mrb[0].mxu0
        %v5072 = vpop.f32.mrb[0].mxu0
        %v5073 = vadd.f32 %v5032, %v5072
        %v5074 = vpop.f32.mrb[0].mxu0
        %5075 = vdwg.mxu0
        %5076 = vmatprep.subr.bf16.mxu0 0
        %5077 = vmatpush1.bf16.msra.mxu0 %v4745
        %5078 = vmatprep.subr.bf16.mxu0 0
        %5079 = vmatpush1.bf16.msra.mxu0 %v4746
        %5080 = vmatprep.subr.bf16.mxu0 0
        %5081 = vmatpush1.bf16.msra.mxu0 %v4747
        %5082 = vmatprep.subr.bf16.mxu0 0
        %5083 = vmatpush1.bf16.msra.mxu0 %v4748
        %5084 = vmatprep.subr.bf16.mxu0 0
        %5085 = vmatpush1.bf16.msra.mxu0 %v4749
        %5086 = vmatprep.subr.bf16.mxu0 0
        %5087 = vmatpush1.bf16.msra.mxu0 %v4750
        %5088 = vmatprep.subr.bf16.mxu0 0
        %5089 = vmatpush1.bf16.msra.mxu0 %v4751
        %5090 = vmatprep.subr.bf16.mxu0 0
        %5091 = vmatpush1.bf16.msra.mxu0 %v4752
        %5092 = vmatprep.subr.bf16.mxu0 0
        %5093 = vmatpush1.bf16.msra.mxu0 %v4753
        %5094 = vmatprep.subr.bf16.mxu0 0
        %5095 = vmatpush1.bf16.msra.mxu0 %v4754
        %5096 = vmatprep.subr.bf16.mxu0 0
        %5097 = vmatpush1.bf16.msra.mxu0 %v4755
        %5098 = vmatprep.subr.bf16.mxu0 0
        %5099 = vmatpush1.bf16.msra.mxu0 %v4756
        %5100 = vmatprep.subr.bf16.mxu0 0
        %5101 = vmatpush1.bf16.msra.mxu0 %v4757
        %5102 = vmatprep.subr.bf16.mxu0 0
        %5103 = vmatpush1.bf16.msra.mxu0 %v4758
        %5104 = vmatprep.subr.bf16.mxu0 0
        %5105 = vmatpush1.bf16.msra.mxu0 %v4759
        %5106 = vmatprep.subr.bf16.mxu0 0
        %5107 = vmatpush1.bf16.msra.mxu0 %v4760
        %5108 = vmatprep.mubr.bf16.mxu0 %v4170
        %5109 = vmatmul.mubr.bf16.gmra.mrb[0].mxu0 %v4169
        %v5110 = vpop.f32.mrb[0].mxu0
        %v5111 = vadd.f32 %v5070, %v5110
        %v5112 = vpop.f32.mrb[0].mxu0
        %v5113 = vpop.f32.mrb[0].mxu0
        %v5114 = vadd.f32 %v5073, %v5113
        %v5115 = vpop.f32.mrb[0].mxu0
        %5116 = vdwg.mxu0
        %5117 = vmatprep.subr.bf16.mxu0 0
        %5118 = vmatpush1.bf16.msra.mxu0 %v4761
        %5119 = vmatprep.subr.bf16.mxu0 0
        %5120 = vmatpush1.bf16.msra.mxu0 %v4762
        %5121 = vmatprep.subr.bf16.mxu0 0
        %5122 = vmatpush1.bf16.msra.mxu0 %v4763
        %5123 = vmatprep.subr.bf16.mxu0 0
        %5124 = vmatpush1.bf16.msra.mxu0 %v4764
        %5125 = vmatprep.subr.bf16.mxu0 0
        %5126 = vmatpush1.bf16.msra.mxu0 %v4765
        %5127 = vmatprep.subr.bf16.mxu0 0
        %5128 = vmatpush1.bf16.msra.mxu0 %v4766
        %5129 = vmatprep.subr.bf16.mxu0 0
        %5130 = vmatpush1.bf16.msra.mxu0 %v4767
        %5131 = vmatprep.subr.bf16.mxu0 0
        %5132 = vmatpush1.bf16.msra.mxu0 %v4768
        %5133 = vmatprep.subr.bf16.mxu0 0
        %5134 = vmatpush1.bf16.msra.mxu0 %v4769
        %5135 = vmatprep.subr.bf16.mxu0 0
        %5136 = vmatpush1.bf16.msra.mxu0 %v4770
        %5137 = vmatprep.subr.bf16.mxu0 0
        %5138 = vmatpush1.bf16.msra.mxu0 %v4771
        %5139 = vmatprep.subr.bf16.mxu0 0
        %5140 = vmatpush1.bf16.msra.mxu0 %v4772
        %5141 = vmatprep.subr.bf16.mxu0 0
        %5142 = vmatpush1.bf16.msra.mxu0 %v4773
        %5143 = vmatprep.subr.bf16.mxu0 0
        %5144 = vmatpush1.bf16.msra.mxu0 %v4774
        %5145 = vmatprep.subr.bf16.mxu0 0
        %5146 = vmatpush1.bf16.msra.mxu0 %v4775
        %5147 = vmatprep.subr.bf16.mxu0 0
        %5148 = vmatpush1.bf16.msra.mxu0 %v4776
        %5149 = vmatprep.mubr.bf16.mxu0 %v4172
        %5150 = vmatmul.mubr.bf16.gmra.mrb[0].mxu0 %v4171
        %v5151 = vpop.f32.mrb[0].mxu0
        %v5152 = vadd.f32 %v5111, %v5151
        %v5153 = vpop.f32.mrb[0].mxu0
        %v5154 = vpop.f32.mrb[0].mxu0
        %v5155 = vadd.f32 %v5114, %v5154
        %v5156 = vpop.f32.mrb[0].mxu0
        %5157 = vdwg.mxu0
        %5158 = vmatprep.subr.bf16.mxu0 0
        %5159 = vmatpush1.bf16.msra.mxu0 %v4777
        %5160 = vmatprep.subr.bf16.mxu0 0
        %5161 = vmatpush1.bf16.msra.mxu0 %v4778
        %5162 = vmatprep.subr.bf16.mxu0 0
        %5163 = vmatpush1.bf16.msra.mxu0 %v4779
        %5164 = vmatprep.subr.bf16.mxu0 0
        %5165 = vmatpush1.bf16.msra.mxu0 %v4780
        %5166 = vmatprep.subr.bf16.mxu0 0
        %5167 = vmatpush1.bf16.msra.mxu0 %v4781
        %5168 = vmatprep.subr.bf16.mxu0 0
        %5169 = vmatpush1.bf16.msra.mxu0 %v4782
        %5170 = vmatprep.subr.bf16.mxu0 0
        %5171 = vmatpush1.bf16.msra.mxu0 %v4783
        %5172 = vmatprep.subr.bf16.mxu0 0
        %5173 = vmatpush1.bf16.msra.mxu0 %v4784
        %5174 = vmatprep.subr.bf16.mxu0 0
        %5175 = vmatpush1.bf16.msra.mxu0 %v4785
        %5176 = vmatprep.subr.bf16.mxu0 0
        %5177 = vmatpush1.bf16.msra.mxu0 %v4786
        %5178 = vmatprep.subr.bf16.mxu0 0
        %5179 = vmatpush1.bf16.msra.mxu0 %v4787
        %5180 = vmatprep.subr.bf16.mxu0 0
        %5181 = vmatpush1.bf16.msra.mxu0 %v4788
        %5182 = vmatprep.subr.bf16.mxu0 0
        %5183 = vmatpush1.bf16.msra.mxu0 %v4789
        %5184 = vmatprep.subr.bf16.mxu0 0
        %5185 = vmatpush1.bf16.msra.mxu0 %v4790
        %5186 = vmatprep.subr.bf16.mxu0 0
        %5187 = vmatpush1.bf16.msra.mxu0 %v4791
        %5188 = vmatprep.subr.bf16.mxu0 0
        %5189 = vmatpush1.bf16.msra.mxu0 %v4792
        %5190 = vmatprep.mubr.bf16.mxu0 %v4174
        %5191 = vmatmul.mubr.bf16.gmra.mrb[0].mxu0 %v4173
        %v5192 = vpop.f32.mrb[0].mxu0
        %v5193 = vadd.f32 %v5152, %v5192
        %v5194 = vpop.f32.mrb[0].mxu0
        %v5195 = vpop.f32.mrb[0].mxu0
        %v5196 = vadd.f32 %v5155, %v5195
        %v5197 = vpop.f32.mrb[0].mxu0
        %5198 = vdwg.mxu0
        %5199 = vmatprep.subr.bf16.mxu0 0
        %5200 = vmatpush1.bf16.msra.mxu0 %v4793
        %5201 = vmatprep.subr.bf16.mxu0 0
        %5202 = vmatpush1.bf16.msra.mxu0 %v4794
        %5203 = vmatprep.subr.bf16.mxu0 0
        %5204 = vmatpush1.bf16.msra.mxu0 %v4795
        %5205 = vmatprep.subr.bf16.mxu0 0
        %5206 = vmatpush1.bf16.msra.mxu0 %v4796
        %5207 = vmatprep.subr.bf16.mxu0 0
        %5208 = vmatpush1.bf16.msra.mxu0 %v4797
        %5209 = vmatprep.subr.bf16.mxu0 0
        %5210 = vmatpush1.bf16.msra.mxu0 %v4798
        %5211 = vmatprep.subr.bf16.mxu0 0
        %5212 = vmatpush1.bf16.msra.mxu0 %v4799
        %5213 = vmatprep.subr.bf16.mxu0 0
        %5214 = vmatpush1.bf16.msra.mxu0 %v4800
        %5215 = vmatprep.subr.bf16.mxu0 0
        %5216 = vmatpush1.bf16.msra.mxu0 %v4801
        %5217 = vmatprep.subr.bf16.mxu0 0
        %5218 = vmatpush1.bf16.msra.mxu0 %v4802
        %5219 = vmatprep.subr.bf16.mxu0 0
        %5220 = vmatpush1.bf16.msra.mxu0 %v4803
        %5221 = vmatprep.subr.bf16.mxu0 0
        %5222 = vmatpush1.bf16.msra.mxu0 %v4804
        %5223 = vmatprep.subr.bf16.mxu0 0
        %5224 = vmatpush1.bf16.msra.mxu0 %v4805
        %5225 = vmatprep.subr.bf16.mxu0 0
        %5226 = vmatpush1.bf16.msra.mxu0 %v4806
        %5227 = vmatprep.subr.bf16.mxu0 0
        %5228 = vmatpush1.bf16.msra.mxu0 %v4807
        %5229 = vmatprep.subr.bf16.mxu0 0
        %5230 = vmatpush1.bf16.msra.mxu0 %v4808
        %5231 = vmatprep.mubr.bf16.mxu0 %v4176
        %5232 = vmatmul.mubr.bf16.gmra.mrb[0].mxu0 %v4175
        %v5233 = vpop.f32.mrb[0].mxu0
        %v5234 = vadd.f32 %v5193, %v5233
        %v5235 = vpop.f32.mrb[0].mxu0
        %v5236 = vpop.f32.mrb[0].mxu0
        %v5237 = vadd.f32 %v5196, %v5236
        %v5238 = vpop.f32.mrb[0].mxu0
        %5239 = vdwg.mxu0
        %5240 = vmatprep.subr.bf16.mxu0 0
        %5241 = vmatpush1.bf16.msra.mxu0 %v4809
        %5242 = vmatprep.subr.bf16.mxu0 0
        %5243 = vmatpush1.bf16.msra.mxu0 %v4810
        %5244 = vmatprep.subr.bf16.mxu0 0
        %5245 = vmatpush1.bf16.msra.mxu0 %v4811
        %5246 = vmatprep.subr.bf16.mxu0 0
        %5247 = vmatpush1.bf16.msra.mxu0 %v4812
        %5248 = vmatprep.subr.bf16.mxu0 0
        %5249 = vmatpush1.bf16.msra.mxu0 %v4813
        %5250 = vmatprep.subr.bf16.mxu0 0
        %5251 = vmatpush1.bf16.msra.mxu0 %v4814
        %5252 = vmatprep.subr.bf16.mxu0 0
        %5253 = vmatpush1.bf16.msra.mxu0 %v4815
        %5254 = vmatprep.subr.bf16.mxu0 0
        %5255 = vmatpush1.bf16.msra.mxu0 %v4816
        %5256 = vmatprep.subr.bf16.mxu0 0
        %5257 = vmatpush1.bf16.msra.mxu0 %v4817
        %5258 = vmatprep.subr.bf16.mxu0 0
        %5259 = vmatpush1.bf16.msra.mxu0 %v4818
        %5260 = vmatprep.subr.bf16.mxu0 0
        %5261 = vmatpush1.bf16.msra.mxu0 %v4819
        %5262 = vmatprep.subr.bf16.mxu0 0
        %5263 = vmatpush1.bf16.msra.mxu0 %v4820
        %5264 = vmatprep.subr.bf16.mxu0 0
        %5265 = vmatpush1.bf16.msra.mxu0 %v4821
        %5266 = vmatprep.subr.bf16.mxu0 0
        %5267 = vmatpush1.bf16.msra.mxu0 %v4822
        %5268 = vmatprep.subr.bf16.mxu0 0
        %5269 = vmatpush1.bf16.msra.mxu0 %v4823
        %5270 = vmatprep.subr.bf16.mxu0 0
        %5271 = vmatpush1.bf16.msra.mxu0 %v4824
        %5272 = vmatprep.mubr.bf16.mxu0 %v4178
        %5273 = vmatmul.mubr.bf16.gmra.mrb[0].mxu0 %v4177
        %v5274 = vpop.f32.mrb[0].mxu0
        %v5275 = vadd.f32 %v5234, %v5274
        %v5276 = vpop.f32.mrb[0].mxu0
        %v5277 = vpop.f32.mrb[0].mxu0
        %v5278 = vadd.f32 %v5237, %v5277
        %v5279 = vpop.f32.mrb[0].mxu0
        %5280 = vdwg.mxu0
        %v5281 = vadd.f32 %v3248, %v5275
        %v5282 = vadd.f32 %v3249, %v5278
        %v5283 = vld [vmem:[%s1939] sm:$0x1]
        %v5284 = vld [vmem:[%s1946] sm:$0x1]
        %v5285 = vsel %vm2171, %v5281, 0.0
        %5286 = vadd.xlane.f32.xlu0 %v5285
        %v5287 = vpop.xlane.xlu0 %5286
        %v5288 = vsel %vm2171, %v5282, 0.0
        %5289 = vadd.xlane.f32.xlu0 %v5288
        %v5290 = vpop.xlane.xlu0 %5289
        %v5291 = vmul.f32 %v5287, %v3213
        %v5292 = vmul.f32 %v5290, %v3213
        %v5293 = vsub.f32 %v5281, %v5291
        %v5294 = vsub.f32 %v5282, %v5292
        %v5295 = vmul.f32 %v5293, %v5293
        %v5296 = vmul.f32 %v5294, %v5294
        %v5297 = vsel %vm2171, %v5295, 0.0
        %5298 = vadd.xlane.f32.xlu0 %v5297
        %v5299 = vpop.xlane.xlu0 %5298
        %v5300 = vsel %vm2171, %v5296, 0.0
        %5301 = vadd.xlane.f32.xlu0 %v5300
        %v5302 = vpop.xlane.xlu0 %5301
        %v5303 = vmul.f32 %v5299, %v3213
        %v5304 = vmul.f32 %v5302, %v3213
        %v5305 = vadd.f32 %v5303, 1e-05
        %v5306 = vadd.f32 %v5304, 1e-05
        %v5307 = vrsqrt.pop %v5305
        %v5308 = vrsqrt.pop %v5306
        %v5309 = vmul.f32 %v5293, %v5307
        %v5310 = vmul.f32 %v5294, %v5308
        %v5312 = vlaneseq
        %v5313 = vshrl.u32 %v5312, 7
        %v5314 = vsub.s32 0, %v5313
        %v5315 = vrot.slane %v5283, %v5314
        %v5317 = vmul.f32 %v5309, %v5315
        %v5318 = vmul.f32 %v5310, %v5315
        %v5320 = vlaneseq
        %v5321 = vshrl.u32 %v5320, 7
        %v5322 = vsub.s32 0, %v5321
        %v5323 = vrot.slane %v5284, %v5322
        %v5325 = vadd.f32 %v5317, %v5323
        %v5326 = vadd.f32 %v5318, %v5323
        %p5327 = scmp.lt.s32.totalorder %s86, 1
        // Predicated region
        $region177: #{transformer_model_forward.1} parent=175 // pred_check
          %p5328 = pneg %p5327
        $region178: #{transformer_model_forward.1} parent=175 // pred_check_branch
          %5330 = sbr.rel (%p5328) target = $region180
        $region179: #{transformer_model_forward.1} parent=175 // pred_region
          %5331 = vst.msk [vmem:[#allocation2] sm:$0xff] %vm2171, %v5325
          %5332 = vst.msk [vmem:[#allocation2 + $0x8] sm:$0xff] %vm2171, %v5326
        $region180: #{transformer_model_forward.1} parent=175 // pred_fallthru
          _
        %p5333 = scmp.eq.s32.totalorder %s86, 1
        // Predicated region
        $region181: #{transformer_model_forward.1} parent=175 // pred_check
          %p5334 = pneg %p5333
        $region182: #{transformer_model_forward.1} parent=175 // pred_check_branch
          %5336 = sbr.rel (%p5334) target = $region184
        $region183: #{transformer_model_forward.1} parent=175 // pred_region
          %v5337 = vld [vmem:[%s27] sm:$0x1]
          %v5338 = vld [vmem:[%s29] sm:$0x1]
          %v5339 = vsel %vm2171, %v5325, 0.0
          %5340 = vadd.xlane.f32.xlu0 %v5339
          %v5341 = vpop.xlane.xlu0 %5340
          %v5342 = vsel %vm2171, %v5326, 0.0
          %5343 = vadd.xlane.f32.xlu0 %v5342
          %v5344 = vpop.xlane.xlu0 %5343
          %v5345 = vmul.f32 %v5341, %v3213
          %v5346 = vmul.f32 %v5344, %v3213
          %v5347 = vsub.f32 %v5325, %v5345
          %v5348 = vsub.f32 %v5326, %v5346
          %v5349 = vmul.f32 %v5347, %v5347
          %v5350 = vmul.f32 %v5348, %v5348
          %v5351 = vsel %vm2171, %v5349, 0.0
          %5352 = vadd.xlane.f32.xlu0 %v5351
          %v5353 = vpop.xlane.xlu0 %5352
          %v5354 = vsel %vm2171, %v5350, 0.0
          %5355 = vadd.xlane.f32.xlu0 %v5354
          %v5356 = vpop.xlane.xlu0 %5355
          %v5357 = vmul.f32 %v5353, %v3213
          %v5358 = vmul.f32 %v5356, %v3213
          %v5359 = vadd.f32 %v5357, 1e-05
          %v5360 = vadd.f32 %v5358, 1e-05
          %v5361 = vrsqrt.pop %v5359
          %v5362 = vrsqrt.pop %v5360
          %v5363 = vmul.f32 %v5347, %v5361
          %v5364 = vmul.f32 %v5348, %v5362
          %v5366 = vlaneseq
          %v5367 = vshrl.u32 %v5366, 7
          %v5368 = vsub.s32 0, %v5367
          %v5369 = vrot.slane %v5337, %v5368
          %v5371 = vmul.f32 %v5363, %v5369
          %v5372 = vmul.f32 %v5364, %v5369
          %v5374 = vlaneseq
          %v5375 = vshrl.u32 %v5374, 7
          %v5376 = vsub.s32 0, %v5375
          %v5377 = vrot.slane %v5338, %v5376
          %v5379 = vadd.f32 %v5371, %v5377
          %v5380 = vadd.f32 %v5372, %v5377
          %5381 = vst.msk [vmem:[#allocation3] sm:$0xff] %vm2171, %v5379
          %5382 = vst.msk [vmem:[#allocation3 + $0x8] sm:$0xff] %vm2171, %v5380
        $region184: #{transformer_model_forward.1} parent=175 // pred_fallthru
          _
      $region176: #{transformer_model_forward.1} parent=167 // pred_fallthru
        _
      %p5383 = scmp.ge.s32.totalorder %s86, 2
      // Predicated region
      $region185: #{transformer_model_forward.1} parent=167 // pred_check
        %p5384 = pneg %p5383
      $region186: #{transformer_model_forward.1} parent=167 // pred_check_branch
        %5386 = sbr.rel (%p5384) target = $region188
      $region187: #{transformer_model_forward.1} parent=167 // pred_region
        %v5387 = vld [vmem:[#allocation3] sm:$0xff]
        %v5388 = vld [vmem:[#allocation3 + $0x8] sm:$0xff]
        %v5389 = vld [vmem:[%s1956] sm:$0xf]
        %v5390 = vld [vmem:[%s1956 + $0x4] sm:$0xf]
        %v5391 = vld [vmem:[%s1956 + $0x8] sm:$0xf]
        %v5392 = vld [vmem:[%s1956 + $0xc] sm:$0xf]
        %v5393 = vld [vmem:[%s1965] sm:$0x1]
        %v5394 = vld [vmem:[%s1976] sm:$0xf]
        %v5395 = vld [vmem:[%s1976 + $0x4] sm:$0xf]
        %v5396 = vld [vmem:[%s1976 + $0x8] sm:$0xf]
        %v5397 = vld [vmem:[%s1976 + $0xc] sm:$0xf]
        %v5398 = vld [vmem:[%s1985] sm:$0x1]
        %v5399 = vpack.c.bf16 %v2137, %v2136
        %v5401 = vlaneseq
        %v5402 = vshrl.u32 %v5401, 7
        %v5403 = vsub.s32 0, %v5402
        %v5404 = vrot.slane %v5393, %v5403
        %v5410 = vunpack.c.l.b16 %v5389
        %v5411 = vunpack.c.l.b16 %v5390
        %v5412 = vunpack.c.l.b16 %v5391
        %v5413 = vunpack.c.l.b16 %v5392
        %v5414 = vpack.c.b16 %v5411, %v5410
        %v5415 = vpack.c.b16 %v5413, %v5412
        %vm5418 = vcmask 261120
        %v5420 = vsel %vm5418, %v5399, 0
        %5422 = vmatprep.subr.bf16.mxu0 0
        %5423 = vmatpush1.bf16.msra.mxu0 %v5414
        %5424 = vmatprep.subr.bf16.mxu0 0
        %5425 = vmatpush1.bf16.msra.mxu0 %v5415
        %5426 = vmatprep.subr.bf16.mxu0 0
        %5427 = vmatpush1.bf16.msra.mxu0 0
        %5428 = vmatprep.subr.bf16.mxu0 0
        %5429 = vmatpush1.bf16.msra.mxu0 0
        %5430 = vmatprep.subr.bf16.mxu0 0
        %5431 = vmatpush1.bf16.msra.mxu0 0
        %5432 = vmatprep.subr.bf16.mxu0 0
        %5433 = vmatpush1.bf16.msra.mxu0 0
        %5434 = vmatprep.subr.bf16.mxu0 0
        %5435 = vmatpush1.bf16.msra.mxu0 0
        %5436 = vmatprep.subr.bf16.mxu0 0
        %5437 = vmatpush1.bf16.msra.mxu0 0
        %5438 = vmatprep.subr.bf16.mxu0 0
        %5439 = vmatpush1.bf16.msra.mxu0 0
        %5440 = vmatprep.subr.bf16.mxu0 0
        %5441 = vmatpush1.bf16.msra.mxu0 0
        %5442 = vmatprep.subr.bf16.mxu0 0
        %5443 = vmatpush1.bf16.msra.mxu0 0
        %5444 = vmatprep.subr.bf16.mxu0 0
        %5445 = vmatpush1.bf16.msra.mxu0 0
        %5446 = vmatprep.subr.bf16.mxu0 0
        %5447 = vmatpush1.bf16.msra.mxu0 0
        %5448 = vmatprep.subr.bf16.mxu0 0
        %5449 = vmatpush1.bf16.msra.mxu0 0
        %5450 = vmatprep.subr.bf16.mxu0 0
        %5451 = vmatpush1.bf16.msra.mxu0 0
        %5452 = vmatprep.subr.bf16.mxu0 0
        %5453 = vmatpush1.bf16.msra.mxu0 0
        %5454 = vmatprep.mubr.bf16.mxu0 0
        %5455 = vmatmul.mubr.bf16.gmra.mrb[0].mxu0 %v5420
        %v5456 = vpop.f32.mrb[0].mxu0
        %v5457 = vadd.f32 %v5404, %v5456
        %v5458 = vpop.f32.mrb[0].mxu0
        %v5459 = vpop.f32.mrb[0].mxu0
        %v5460 = vadd.f32 %v5404, %v5459
        %v5461 = vpop.f32.mrb[0].mxu0
        %5462 = vdwg.mxu0
        %v5463 = vmul.f32 %v5457, 0.35355338
        %v5464 = vmul.f32 %v5460, 0.35355338
        %v5465 = vpack.c.bf16 %v5464, %v5463
        %v5467 = vunpack.c.l.b16 %v5465
        %v5468 = vunpack.c.h.b16 %v5465
        %v5469 = vpack.c.b16 %v5467, %v5467
        %v5470 = vpack.c.b16 %v5468, %v5468
        %v5471 = vpack.c.bf16 %v5460, %v5457
        %v5473 = vunpack.c.l.b16 %v5471
        %v5474 = vunpack.c.h.b16 %v5471
        %v5475 = vpack.c.b16 %v5473, %v5473
        %5476 = vrot.lane.b32.xlu0 %v5475, 96
        %v5477 = vpop.permute.xlu0 %5476
        %vm5478 = vcmask 64512
        %v5480 = vsel %vm5478, %v5469, 0
        %v5483 = vsel %vm5478, %v5477, 0
        %5485 = vmatprep.subr.bf16.mxu0 0
        %5486 = vmatpush1.bf16.xpose.msra.mxu0 %v5483
        %5487 = vmatprep.subr.bf16.mxu0 0
        %5488 = vmatpush1.bf16.xpose.msra.mxu0 0
        %5489 = vmatprep.subr.bf16.mxu0 0
        %5490 = vmatpush1.bf16.xpose.msra.mxu0 0
        %5491 = vmatprep.subr.bf16.mxu0 0
        %5492 = vmatpush1.bf16.xpose.msra.mxu0 0
        %5493 = vmatprep.subr.bf16.mxu0 0
        %5494 = vmatpush1.bf16.xpose.msra.mxu0 0
        %5495 = vmatprep.subr.bf16.mxu0 0
        %5496 = vmatpush1.bf16.xpose.msra.mxu0 0
        %5497 = vmatprep.subr.bf16.mxu0 0
        %5498 = vmatpush1.bf16.xpose.msra.mxu0 0
        %5499 = vmatprep.subr.bf16.mxu0 0
        %5500 = vmatpush1.bf16.xpose.msra.mxu0 0
        %5501 = vmatprep.subr.bf16.mxu0 0
        %5502 = vmatpush1.bf16.xpose.msra.mxu0 0
        %5503 = vmatprep.subr.bf16.mxu0 0
        %5504 = vmatpush1.bf16.xpose.msra.mxu0 0
        %5505 = vmatprep.subr.bf16.mxu0 0
        %5506 = vmatpush1.bf16.xpose.msra.mxu0 0
        %5507 = vmatprep.subr.bf16.mxu0 0
        %5508 = vmatpush1.bf16.xpose.msra.mxu0 0
        %5509 = vmatprep.subr.bf16.mxu0 0
        %5510 = vmatpush1.bf16.xpose.msra.mxu0 0
        %5511 = vmatprep.subr.bf16.mxu0 0
        %5512 = vmatpush1.bf16.xpose.msra.mxu0 0
        %5513 = vmatprep.subr.bf16.mxu0 0
        %5514 = vmatpush1.bf16.xpose.msra.mxu0 0
        %5515 = vmatprep.subr.bf16.mxu0 0
        %5516 = vmatpush1.bf16.xpose.msra.mxu0 0
        %5517 = vmatprep.mubr.bf16.mxu0 0
        %5518 = vmatmul.mubr.bf16.gmra.mrb[0].mxu0 %v5480
        %v5519 = vpop.f32.mrb[0].mxu0
        %v5520 = vadd.f32 0.0, %v5519
        %v5521 = vpop.f32.mrb[0].mxu0
        %v5522 = vpop.f32.mrb[0].mxu0
        %v5523 = vpop.f32.mrb[0].mxu0
        %5524 = vdwg.mxu0
        %v5525 = vpack.c.b16 %v5474, %v5474
        %5526 = vrot.lane.b32.xlu0 %v5525, 96
        %v5527 = vpop.permute.xlu0 %5526
        %v5529 = vsel %vm5478, %v5470, 0
        %v5532 = vsel %vm5478, %v5527, 0
        %5534 = vmatprep.subr.bf16.mxu0 0
        %5535 = vmatpush1.bf16.xpose.msra.mxu0 %v5532
        %5536 = vmatprep.subr.bf16.mxu0 0
        %5537 = vmatpush1.bf16.xpose.msra.mxu0 0
        %5538 = vmatprep.subr.bf16.mxu0 0
        %5539 = vmatpush1.bf16.xpose.msra.mxu0 0
        %5540 = vmatprep.subr.bf16.mxu0 0
        %5541 = vmatpush1.bf16.xpose.msra.mxu0 0
        %5542 = vmatprep.subr.bf16.mxu0 0
        %5543 = vmatpush1.bf16.xpose.msra.mxu0 0
        %5544 = vmatprep.subr.bf16.mxu0 0
        %5545 = vmatpush1.bf16.xpose.msra.mxu0 0
        %5546 = vmatprep.subr.bf16.mxu0 0
        %5547 = vmatpush1.bf16.xpose.msra.mxu0 0
        %5548 = vmatprep.subr.bf16.mxu0 0
        %5549 = vmatpush1.bf16.xpose.msra.mxu0 0
        %5550 = vmatprep.subr.bf16.mxu0 0
        %5551 = vmatpush1.bf16.xpose.msra.mxu0 0
        %5552 = vmatprep.subr.bf16.mxu0 0
        %5553 = vmatpush1.bf16.xpose.msra.mxu0 0
        %5554 = vmatprep.subr.bf16.mxu0 0
        %5555 = vmatpush1.bf16.xpose.msra.mxu0 0
        %5556 = vmatprep.subr.bf16.mxu0 0
        %5557 = vmatpush1.bf16.xpose.msra.mxu0 0
        %5558 = vmatprep.subr.bf16.mxu0 0
        %5559 = vmatpush1.bf16.xpose.msra.mxu0 0
        %5560 = vmatprep.subr.bf16.mxu0 0
        %5561 = vmatpush1.bf16.xpose.msra.mxu0 0
        %5562 = vmatprep.subr.bf16.mxu0 0
        %5563 = vmatpush1.bf16.xpose.msra.mxu0 0
        %5564 = vmatprep.subr.bf16.mxu0 0
        %5565 = vmatpush1.bf16.xpose.msra.mxu0 0
        %5566 = vmatprep.mubr.bf16.mxu0 0
        %5567 = vmatmul.mubr.bf16.gmra.mrb[0].mxu0 %v5529
        %v5568 = vpop.f32.mrb[0].mxu0
        %v5569 = vadd.f32 0.0, %v5568
        %v5570 = vpop.f32.mrb[0].mxu0
        %v5571 = vpop.f32.mrb[0].mxu0
        %v5572 = vpop.f32.mrb[0].mxu0
        %5573 = vdwg.mxu0
        %v5574 = vsel %vm5478, %v5520, -inf
        %5575 = vmax.xlane.f32.xlu0 %v5574
        %v5576 = vpop.xlane.xlu0 %5575
        %v5577 = vsel %vm5478, %v5569, -inf
        %5578 = vmax.xlane.f32.xlu0 %v5577
        %v5579 = vpop.xlane.xlu0 %5578
        %v5580 = vsub.f32 %v5520, %v5576
        %v5581 = vsub.f32 %v5569, %v5579
        %v5582 = vmul.f32 %v5580, 1.442695
        %v5583 = vpow.pop %v5582
        %v5584 = vmul.f32 %v5581, 1.442695
        %v5585 = vpow.pop %v5584
        %v5586 = vsel %vm5478, %v5583, 0.0
        %5587 = vadd.xlane.f32.xlu0 %v5586
        %v5588 = vpop.xlane.xlu0 %5587
        %v5589 = vsel %vm5478, %v5585, 0.0
        %5590 = vadd.xlane.f32.xlu0 %v5589
        %v5591 = vpop.xlane.xlu0 %5590
        %v5592 = vrcp.pop %v5588
        %v5593 = vrcp.pop %v5591
        %v5594 = vmul.f32 %v5583, %v5592
        %v5595 = vmul.f32 %v5585, %v5593
        %v5596 = vpack.c.bf16 %v5594, %v5594
        %v5597 = vpack.c.bf16 %v5595, %v5595
        %5598 = vrot.lane.b32.xlu0 %v5475, 64
        %v5599 = vpop.permute.xlu0 %5598
        %v5601 = vsel %vm5478, %v5596, 0
        %vm5603 = vcmask 1043456
        %v5605 = vsel %vm5603, %v5599, 0
        %5607 = vmatprep.subr.bf16.mxu0 0
        %5608 = vmatpush1.bf16.msra.mxu0 %v5605
        %5609 = vmatprep.subr.bf16.mxu0 0
        %5610 = vmatpush1.bf16.msra.mxu0 0
        %5611 = vmatprep.subr.bf16.mxu0 0
        %5612 = vmatpush1.bf16.msra.mxu0 0
        %5613 = vmatprep.subr.bf16.mxu0 0
        %5614 = vmatpush1.bf16.msra.mxu0 0
        %5615 = vmatprep.subr.bf16.mxu0 0
        %5616 = vmatpush1.bf16.msra.mxu0 0
        %5617 = vmatprep.subr.bf16.mxu0 0
        %5618 = vmatpush1.bf16.msra.mxu0 0
        %5619 = vmatprep.subr.bf16.mxu0 0
        %5620 = vmatpush1.bf16.msra.mxu0 0
        %5621 = vmatprep.subr.bf16.mxu0 0
        %5622 = vmatpush1.bf16.msra.mxu0 0
        %5623 = vmatprep.subr.bf16.mxu0 0
        %5624 = vmatpush1.bf16.msra.mxu0 0
        %5625 = vmatprep.subr.bf16.mxu0 0
        %5626 = vmatpush1.bf16.msra.mxu0 0
        %5627 = vmatprep.subr.bf16.mxu0 0
        %5628 = vmatpush1.bf16.msra.mxu0 0
        %5629 = vmatprep.subr.bf16.mxu0 0
        %5630 = vmatpush1.bf16.msra.mxu0 0
        %5631 = vmatprep.subr.bf16.mxu0 0
        %5632 = vmatpush1.bf16.msra.mxu0 0
        %5633 = vmatprep.subr.bf16.mxu0 0
        %5634 = vmatpush1.bf16.msra.mxu0 0
        %5635 = vmatprep.subr.bf16.mxu0 0
        %5636 = vmatpush1.bf16.msra.mxu0 0
        %5637 = vmatprep.subr.bf16.mxu0 0
        %5638 = vmatpush1.bf16.msra.mxu0 0
        %5639 = vmatprep.mubr.bf16.mxu0 0
        %5640 = vmatmul.mubr.bf16.gmra.mrb[0].mxu0 %v5601
        %v5641 = vpop.f32.mrb[0].mxu0
        %v5642 = vadd.f32 0.0, %v5641
        %v5643 = vpop.f32.mrb[0].mxu0
        %v5644 = vpop.f32.mrb[0].mxu0
        %v5645 = vpop.f32.mrb[0].mxu0
        %5646 = vdwg.mxu0
        %5647 = vrot.lane.b32.xlu0 %v5525, 64
        %v5648 = vpop.permute.xlu0 %5647
        %v5650 = vsel %vm5478, %v5597, 0
        %v5653 = vsel %vm5603, %v5648, 0
        %5655 = vmatprep.subr.bf16.mxu0 0
        %5656 = vmatpush1.bf16.msra.mxu0 %v5653
        %5657 = vmatprep.subr.bf16.mxu0 0
        %5658 = vmatpush1.bf16.msra.mxu0 0
        %5659 = vmatprep.subr.bf16.mxu0 0
        %5660 = vmatpush1.bf16.msra.mxu0 0
        %5661 = vmatprep.subr.bf16.mxu0 0
        %5662 = vmatpush1.bf16.msra.mxu0 0
        %5663 = vmatprep.subr.bf16.mxu0 0
        %5664 = vmatpush1.bf16.msra.mxu0 0
        %5665 = vmatprep.subr.bf16.mxu0 0
        %5666 = vmatpush1.bf16.msra.mxu0 0
        %5667 = vmatprep.subr.bf16.mxu0 0
        %5668 = vmatpush1.bf16.msra.mxu0 0
        %5669 = vmatprep.subr.bf16.mxu0 0
        %5670 = vmatpush1.bf16.msra.mxu0 0
        %5671 = vmatprep.subr.bf16.mxu0 0
        %5672 = vmatpush1.bf16.msra.mxu0 0
        %5673 = vmatprep.subr.bf16.mxu0 0
        %5674 = vmatpush1.bf16.msra.mxu0 0
        %5675 = vmatprep.subr.bf16.mxu0 0
        %5676 = vmatpush1.bf16.msra.mxu0 0
        %5677 = vmatprep.subr.bf16.mxu0 0
        %5678 = vmatpush1.bf16.msra.mxu0 0
        %5679 = vmatprep.subr.bf16.mxu0 0
        %5680 = vmatpush1.bf16.msra.mxu0 0
        %5681 = vmatprep.subr.bf16.mxu0 0
        %5682 = vmatpush1.bf16.msra.mxu0 0
        %5683 = vmatprep.subr.bf16.mxu0 0
        %5684 = vmatpush1.bf16.msra.mxu0 0
        %5685 = vmatprep.subr.bf16.mxu0 0
        %5686 = vmatpush1.bf16.msra.mxu0 0
        %5687 = vmatprep.mubr.bf16.mxu0 0
        %5688 = vmatmul.mubr.bf16.gmra.mrb[0].mxu0 %v5650
        %v5689 = vpop.f32.mrb[0].mxu0
        %v5690 = vadd.f32 0.0, %v5689
        %v5691 = vpop.f32.mrb[0].mxu0
        %v5692 = vpop.f32.mrb[0].mxu0
        %v5693 = vpop.f32.mrb[0].mxu0
        %5694 = vdwg.mxu0
        %5695 = vrot.lane.b32.xlu0 %v5469, 120
        %v5696 = vpop.permute.xlu0 %5695
        %5697 = vrot.lane.b32.xlu0 %v5475, 88
        %v5698 = vpop.permute.xlu0 %5697
        %v5700 = vsel %vm5478, %v5696, 0
        %v5703 = vsel %vm5478, %v5698, 0
        %5705 = vmatprep.subr.bf16.mxu0 0
        %5706 = vmatpush1.bf16.xpose.msra.mxu0 %v5703
        %5707 = vmatprep.subr.bf16.mxu0 0
        %5708 = vmatpush1.bf16.xpose.msra.mxu0 0
        %5709 = vmatprep.subr.bf16.mxu0 0
        %5710 = vmatpush1.bf16.xpose.msra.mxu0 0
        %5711 = vmatprep.subr.bf16.mxu0 0
        %5712 = vmatpush1.bf16.xpose.msra.mxu0 0
        %5713 = vmatprep.subr.bf16.mxu0 0
        %5714 = vmatpush1.bf16.xpose.msra.mxu0 0
        %5715 = vmatprep.subr.bf16.mxu0 0
        %5716 = vmatpush1.bf16.xpose.msra.mxu0 0
        %5717 = vmatprep.subr.bf16.mxu0 0
        %5718 = vmatpush1.bf16.xpose.msra.mxu0 0
        %5719 = vmatprep.subr.bf16.mxu0 0
        %5720 = vmatpush1.bf16.xpose.msra.mxu0 0
        %5721 = vmatprep.subr.bf16.mxu0 0
        %5722 = vmatpush1.bf16.xpose.msra.mxu0 0
        %5723 = vmatprep.subr.bf16.mxu0 0
        %5724 = vmatpush1.bf16.xpose.msra.mxu0 0
        %5725 = vmatprep.subr.bf16.mxu0 0
        %5726 = vmatpush1.bf16.xpose.msra.mxu0 0
        %5727 = vmatprep.subr.bf16.mxu0 0
        %5728 = vmatpush1.bf16.xpose.msra.mxu0 0
        %5729 = vmatprep.subr.bf16.mxu0 0
        %5730 = vmatpush1.bf16.xpose.msra.mxu0 0
        %5731 = vmatprep.subr.bf16.mxu0 0
        %5732 = vmatpush1.bf16.xpose.msra.mxu0 0
        %5733 = vmatprep.subr.bf16.mxu0 0
        %5734 = vmatpush1.bf16.xpose.msra.mxu0 0
        %5735 = vmatprep.subr.bf16.mxu0 0
        %5736 = vmatpush1.bf16.xpose.msra.mxu0 0
        %5737 = vmatprep.mubr.bf16.mxu0 0
        %5738 = vmatmul.mubr.bf16.gmra.mrb[0].mxu0 %v5700
        %v5739 = vpop.f32.mrb[0].mxu0
        %v5740 = vadd.f32 0.0, %v5739
        %v5741 = vpop.f32.mrb[0].mxu0
        %v5742 = vpop.f32.mrb[0].mxu0
        %v5743 = vpop.f32.mrb[0].mxu0
        %5744 = vdwg.mxu0
        %5745 = vrot.lane.b32.xlu0 %v5470, 120
        %v5746 = vpop.permute.xlu0 %5745
        %5747 = vrot.lane.b32.xlu0 %v5525, 88
        %v5748 = vpop.permute.xlu0 %5747
        %v5750 = vsel %vm5478, %v5746, 0
        %v5753 = vsel %vm5478, %v5748, 0
        %5755 = vmatprep.subr.bf16.mxu0 0
        %5756 = vmatpush1.bf16.xpose.msra.mxu0 %v5753
        %5757 = vmatprep.subr.bf16.mxu0 0
        %5758 = vmatpush1.bf16.xpose.msra.mxu0 0
        %5759 = vmatprep.subr.bf16.mxu0 0
        %5760 = vmatpush1.bf16.xpose.msra.mxu0 0
        %5761 = vmatprep.subr.bf16.mxu0 0
        %5762 = vmatpush1.bf16.xpose.msra.mxu0 0
        %5763 = vmatprep.subr.bf16.mxu0 0
        %5764 = vmatpush1.bf16.xpose.msra.mxu0 0
        %5765 = vmatprep.subr.bf16.mxu0 0
        %5766 = vmatpush1.bf16.xpose.msra.mxu0 0
        %5767 = vmatprep.subr.bf16.mxu0 0
        %5768 = vmatpush1.bf16.xpose.msra.mxu0 0
        %5769 = vmatprep.subr.bf16.mxu0 0
        %5770 = vmatpush1.bf16.xpose.msra.mxu0 0
        %5771 = vmatprep.subr.bf16.mxu0 0
        %5772 = vmatpush1.bf16.xpose.msra.mxu0 0
        %5773 = vmatprep.subr.bf16.mxu0 0
        %5774 = vmatpush1.bf16.xpose.msra.mxu0 0
        %5775 = vmatprep.subr.bf16.mxu0 0
        %5776 = vmatpush1.bf16.xpose.msra.mxu0 0
        %5777 = vmatprep.subr.bf16.mxu0 0
        %5778 = vmatpush1.bf16.xpose.msra.mxu0 0
        %5779 = vmatprep.subr.bf16.mxu0 0
        %5780 = vmatpush1.bf16.xpose.msra.mxu0 0
        %5781 = vmatprep.subr.bf16.mxu0 0
        %5782 = vmatpush1.bf16.xpose.msra.mxu0 0
        %5783 = vmatprep.subr.bf16.mxu0 0
        %5784 = vmatpush1.bf16.xpose.msra.mxu0 0
        %5785 = vmatprep.subr.bf16.mxu0 0
        %5786 = vmatpush1.bf16.xpose.msra.mxu0 0
        %5787 = vmatprep.mubr.bf16.mxu0 0
        %5788 = vmatmul.mubr.bf16.gmra.mrb[0].mxu0 %v5750
        %v5789 = vpop.f32.mrb[0].mxu0
        %v5790 = vadd.f32 0.0, %v5789
        %v5791 = vpop.f32.mrb[0].mxu0
        %v5792 = vpop.f32.mrb[0].mxu0
        %v5793 = vpop.f32.mrb[0].mxu0
        %5794 = vdwg.mxu0
        %v5795 = vsel %vm5478, %v5740, -inf
        %5796 = vmax.xlane.f32.xlu0 %v5795
        %v5797 = vpop.xlane.xlu0 %5796
        %v5798 = vsel %vm5478, %v5790, -inf
        %5799 = vmax.xlane.f32.xlu0 %v5798
        %v5800 = vpop.xlane.xlu0 %5799
        %v5801 = vsub.f32 %v5740, %v5797
        %v5802 = vsub.f32 %v5790, %v5800
        %v5803 = vmul.f32 %v5801, 1.442695
        %v5804 = vpow.pop %v5803
        %v5805 = vmul.f32 %v5802, 1.442695
        %v5806 = vpow.pop %v5805
        %v5807 = vsel %vm5478, %v5804, 0.0
        %5808 = vadd.xlane.f32.xlu0 %v5807
        %v5809 = vpop.xlane.xlu0 %5808
        %v5810 = vsel %vm5478, %v5806, 0.0
        %5811 = vadd.xlane.f32.xlu0 %v5810
        %v5812 = vpop.xlane.xlu0 %5811
        %v5813 = vrcp.pop %v5809
        %v5814 = vrcp.pop %v5812
        %v5815 = vmul.f32 %v5804, %v5813
        %v5816 = vmul.f32 %v5806, %v5814
        %v5817 = vpack.c.bf16 %v5815, %v5815
        %v5818 = vpack.c.bf16 %v5816, %v5816
        %5819 = vrot.lane.b32.xlu0 %v5475, 56
        %v5820 = vpop.permute.xlu0 %5819
        %v5822 = vsel %vm5478, %v5817, 0
        %v5825 = vsel %vm5603, %v5820, 0
        %5827 = vmatprep.subr.bf16.mxu0 0
        %5828 = vmatpush1.bf16.msra.mxu0 %v5825
        %5829 = vmatprep.subr.bf16.mxu0 0
        %5830 = vmatpush1.bf16.msra.mxu0 0
        %5831 = vmatprep.subr.bf16.mxu0 0
        %5832 = vmatpush1.bf16.msra.mxu0 0
        %5833 = vmatprep.subr.bf16.mxu0 0
        %5834 = vmatpush1.bf16.msra.mxu0 0
        %5835 = vmatprep.subr.bf16.mxu0 0
        %5836 = vmatpush1.bf16.msra.mxu0 0
        %5837 = vmatprep.subr.bf16.mxu0 0
        %5838 = vmatpush1.bf16.msra.mxu0 0
        %5839 = vmatprep.subr.bf16.mxu0 0
        %5840 = vmatpush1.bf16.msra.mxu0 0
        %5841 = vmatprep.subr.bf16.mxu0 0
        %5842 = vmatpush1.bf16.msra.mxu0 0
        %5843 = vmatprep.subr.bf16.mxu0 0
        %5844 = vmatpush1.bf16.msra.mxu0 0
        %5845 = vmatprep.subr.bf16.mxu0 0
        %5846 = vmatpush1.bf16.msra.mxu0 0
        %5847 = vmatprep.subr.bf16.mxu0 0
        %5848 = vmatpush1.bf16.msra.mxu0 0
        %5849 = vmatprep.subr.bf16.mxu0 0
        %5850 = vmatpush1.bf16.msra.mxu0 0
        %5851 = vmatprep.subr.bf16.mxu0 0
        %5852 = vmatpush1.bf16.msra.mxu0 0
        %5853 = vmatprep.subr.bf16.mxu0 0
        %5854 = vmatpush1.bf16.msra.mxu0 0
        %5855 = vmatprep.subr.bf16.mxu0 0
        %5856 = vmatpush1.bf16.msra.mxu0 0
        %5857 = vmatprep.subr.bf16.mxu0 0
        %5858 = vmatpush1.bf16.msra.mxu0 0
        %5859 = vmatprep.mubr.bf16.mxu0 0
        %5860 = vmatmul.mubr.bf16.gmra.mrb[0].mxu0 %v5822
        %v5861 = vpop.f32.mrb[0].mxu0
        %v5862 = vadd.f32 0.0, %v5861
        %v5863 = vpop.f32.mrb[0].mxu0
        %v5864 = vpop.f32.mrb[0].mxu0
        %v5865 = vpop.f32.mrb[0].mxu0
        %5866 = vdwg.mxu0
        %5867 = vrot.lane.b32.xlu0 %v5525, 56
        %v5868 = vpop.permute.xlu0 %5867
        %v5870 = vsel %vm5478, %v5818, 0
        %v5873 = vsel %vm5603, %v5868, 0
        %5875 = vmatprep.subr.bf16.mxu0 0
        %5876 = vmatpush1.bf16.msra.mxu0 %v5873
        %5877 = vmatprep.subr.bf16.mxu0 0
        %5878 = vmatpush1.bf16.msra.mxu0 0
        %5879 = vmatprep.subr.bf16.mxu0 0
        %5880 = vmatpush1.bf16.msra.mxu0 0
        %5881 = vmatprep.subr.bf16.mxu0 0
        %5882 = vmatpush1.bf16.msra.mxu0 0
        %5883 = vmatprep.subr.bf16.mxu0 0
        %5884 = vmatpush1.bf16.msra.mxu0 0
        %5885 = vmatprep.subr.bf16.mxu0 0
        %5886 = vmatpush1.bf16.msra.mxu0 0
        %5887 = vmatprep.subr.bf16.mxu0 0
        %5888 = vmatpush1.bf16.msra.mxu0 0
        %5889 = vmatprep.subr.bf16.mxu0 0
        %5890 = vmatpush1.bf16.msra.mxu0 0
        %5891 = vmatprep.subr.bf16.mxu0 0
        %5892 = vmatpush1.bf16.msra.mxu0 0
        %5893 = vmatprep.subr.bf16.mxu0 0
        %5894 = vmatpush1.bf16.msra.mxu0 0
        %5895 = vmatprep.subr.bf16.mxu0 0
        %5896 = vmatpush1.bf16.msra.mxu0 0
        %5897 = vmatprep.subr.bf16.mxu0 0
        %5898 = vmatpush1.bf16.msra.mxu0 0
        %5899 = vmatprep.subr.bf16.mxu0 0
        %5900 = vmatpush1.bf16.msra.mxu0 0
        %5901 = vmatprep.subr.bf16.mxu0 0
        %5902 = vmatpush1.bf16.msra.mxu0 0
        %5903 = vmatprep.subr.bf16.mxu0 0
        %5904 = vmatpush1.bf16.msra.mxu0 0
        %5905 = vmatprep.subr.bf16.mxu0 0
        %5906 = vmatpush1.bf16.msra.mxu0 0
        %5907 = vmatprep.mubr.bf16.mxu0 0
        %5908 = vmatmul.mubr.bf16.gmra.mrb[0].mxu0 %v5870
        %v5909 = vpop.f32.mrb[0].mxu0
        %v5910 = vadd.f32 0.0, %v5909
        %v5911 = vpop.f32.mrb[0].mxu0
        %v5912 = vpop.f32.mrb[0].mxu0
        %v5913 = vpop.f32.mrb[0].mxu0
        %5914 = vdwg.mxu0
        %5915 = vrot.lane.b32.xlu0 %v5469, 112
        %v5916 = vpop.permute.xlu0 %5915
        %5917 = vrot.lane.b32.xlu0 %v5475, 80
        %v5918 = vpop.permute.xlu0 %5917
        %v5920 = vsel %vm5478, %v5916, 0
        %v5923 = vsel %vm5478, %v5918, 0
        %5925 = vmatprep.subr.bf16.mxu0 0
        %5926 = vmatpush1.bf16.xpose.msra.mxu0 %v5923
        %5927 = vmatprep.subr.bf16.mxu0 0
        %5928 = vmatpush1.bf16.xpose.msra.mxu0 0
        %5929 = vmatprep.subr.bf16.mxu0 0
        %5930 = vmatpush1.bf16.xpose.msra.mxu0 0
        %5931 = vmatprep.subr.bf16.mxu0 0
        %5932 = vmatpush1.bf16.xpose.msra.mxu0 0
        %5933 = vmatprep.subr.bf16.mxu0 0
        %5934 = vmatpush1.bf16.xpose.msra.mxu0 0
        %5935 = vmatprep.subr.bf16.mxu0 0
        %5936 = vmatpush1.bf16.xpose.msra.mxu0 0
        %5937 = vmatprep.subr.bf16.mxu0 0
        %5938 = vmatpush1.bf16.xpose.msra.mxu0 0
        %5939 = vmatprep.subr.bf16.mxu0 0
        %5940 = vmatpush1.bf16.xpose.msra.mxu0 0
        %5941 = vmatprep.subr.bf16.mxu0 0
        %5942 = vmatpush1.bf16.xpose.msra.mxu0 0
        %5943 = vmatprep.subr.bf16.mxu0 0
        %5944 = vmatpush1.bf16.xpose.msra.mxu0 0
        %5945 = vmatprep.subr.bf16.mxu0 0
        %5946 = vmatpush1.bf16.xpose.msra.mxu0 0
        %5947 = vmatprep.subr.bf16.mxu0 0
        %5948 = vmatpush1.bf16.xpose.msra.mxu0 0
        %5949 = vmatprep.subr.bf16.mxu0 0
        %5950 = vmatpush1.bf16.xpose.msra.mxu0 0
        %5951 = vmatprep.subr.bf16.mxu0 0
        %5952 = vmatpush1.bf16.xpose.msra.mxu0 0
        %5953 = vmatprep.subr.bf16.mxu0 0
        %5954 = vmatpush1.bf16.xpose.msra.mxu0 0
        %5955 = vmatprep.subr.bf16.mxu0 0
        %5956 = vmatpush1.bf16.xpose.msra.mxu0 0
        %5957 = vmatprep.mubr.bf16.mxu0 0
        %5958 = vmatmul.mubr.bf16.gmra.mrb[0].mxu0 %v5920
        %v5959 = vpop.f32.mrb[0].mxu0
        %v5960 = vadd.f32 0.0, %v5959
        %v5961 = vpop.f32.mrb[0].mxu0
        %v5962 = vpop.f32.mrb[0].mxu0
        %v5963 = vpop.f32.mrb[0].mxu0
        %5964 = vdwg.mxu0
        %5965 = vrot.lane.b32.xlu0 %v5470, 112
        %v5966 = vpop.permute.xlu0 %5965
        %5967 = vrot.lane.b32.xlu0 %v5525, 80
        %v5968 = vpop.permute.xlu0 %5967
        %v5970 = vsel %vm5478, %v5966, 0
        %v5973 = vsel %vm5478, %v5968, 0
        %5975 = vmatprep.subr.bf16.mxu0 0
        %5976 = vmatpush1.bf16.xpose.msra.mxu0 %v5973
        %5977 = vmatprep.subr.bf16.mxu0 0
        %5978 = vmatpush1.bf16.xpose.msra.mxu0 0
        %5979 = vmatprep.subr.bf16.mxu0 0
        %5980 = vmatpush1.bf16.xpose.msra.mxu0 0
        %5981 = vmatprep.subr.bf16.mxu0 0
        %5982 = vmatpush1.bf16.xpose.msra.mxu0 0
        %5983 = vmatprep.subr.bf16.mxu0 0
        %5984 = vmatpush1.bf16.xpose.msra.mxu0 0
        %5985 = vmatprep.subr.bf16.mxu0 0
        %5986 = vmatpush1.bf16.xpose.msra.mxu0 0
        %5987 = vmatprep.subr.bf16.mxu0 0
        %5988 = vmatpush1.bf16.xpose.msra.mxu0 0
        %5989 = vmatprep.subr.bf16.mxu0 0
        %5990 = vmatpush1.bf16.xpose.msra.mxu0 0
        %5991 = vmatprep.subr.bf16.mxu0 0
        %5992 = vmatpush1.bf16.xpose.msra.mxu0 0
        %5993 = vmatprep.subr.bf16.mxu0 0
        %5994 = vmatpush1.bf16.xpose.msra.mxu0 0
        %5995 = vmatprep.subr.bf16.mxu0 0
        %5996 = vmatpush1.bf16.xpose.msra.mxu0 0
        %5997 = vmatprep.subr.bf16.mxu0 0
        %5998 = vmatpush1.bf16.xpose.msra.mxu0 0
        %5999 = vmatprep.subr.bf16.mxu0 0
        %6000 = vmatpush1.bf16.xpose.msra.mxu0 0
        %6001 = vmatprep.subr.bf16.mxu0 0
        %6002 = vmatpush1.bf16.xpose.msra.mxu0 0
        %6003 = vmatprep.subr.bf16.mxu0 0
        %6004 = vmatpush1.bf16.xpose.msra.mxu0 0
        %6005 = vmatprep.subr.bf16.mxu0 0
        %6006 = vmatpush1.bf16.xpose.msra.mxu0 0
        %6007 = vmatprep.mubr.bf16.mxu0 0
        %6008 = vmatmul.mubr.bf16.gmra.mrb[0].mxu0 %v5970
        %v6009 = vpop.f32.mrb[0].mxu0
        %v6010 = vadd.f32 0.0, %v6009
        %v6011 = vpop.f32.mrb[0].mxu0
        %v6012 = vpop.f32.mrb[0].mxu0
        %v6013 = vpop.f32.mrb[0].mxu0
        %6014 = vdwg.mxu0
        %v6015 = vsel %vm5478, %v5960, -inf
        %6016 = vmax.xlane.f32.xlu0 %v6015
        %v6017 = vpop.xlane.xlu0 %6016
        %v6018 = vsel %vm5478, %v6010, -inf
        %6019 = vmax.xlane.f32.xlu0 %v6018
        %v6020 = vpop.xlane.xlu0 %6019
        %v6021 = vsub.f32 %v5960, %v6017
        %v6022 = vsub.f32 %v6010, %v6020
        %v6023 = vmul.f32 %v6021, 1.442695
        %v6024 = vpow.pop %v6023
        %v6025 = vmul.f32 %v6022, 1.442695
        %v6026 = vpow.pop %v6025
        %v6027 = vsel %vm5478, %v6024, 0.0
        %6028 = vadd.xlane.f32.xlu0 %v6027
        %v6029 = vpop.xlane.xlu0 %6028
        %v6030 = vsel %vm5478, %v6026, 0.0
        %6031 = vadd.xlane.f32.xlu0 %v6030
        %v6032 = vpop.xlane.xlu0 %6031
        %v6033 = vrcp.pop %v6029
        %v6034 = vrcp.pop %v6032
        %v6035 = vmul.f32 %v6024, %v6033
        %v6036 = vmul.f32 %v6026, %v6034
        %v6037 = vpack.c.bf16 %v6035, %v6035
        %v6038 = vpack.c.bf16 %v6036, %v6036
        %6039 = vrot.lane.b32.xlu0 %v5475, 48
        %v6040 = vpop.permute.xlu0 %6039
        %v6042 = vsel %vm5478, %v6037, 0
        %v6045 = vsel %vm5603, %v6040, 0
        %6047 = vmatprep.subr.bf16.mxu0 0
        %6048 = vmatpush1.bf16.msra.mxu0 %v6045
        %6049 = vmatprep.subr.bf16.mxu0 0
        %6050 = vmatpush1.bf16.msra.mxu0 0
        %6051 = vmatprep.subr.bf16.mxu0 0
        %6052 = vmatpush1.bf16.msra.mxu0 0
        %6053 = vmatprep.subr.bf16.mxu0 0
        %6054 = vmatpush1.bf16.msra.mxu0 0
        %6055 = vmatprep.subr.bf16.mxu0 0
        %6056 = vmatpush1.bf16.msra.mxu0 0
        %6057 = vmatprep.subr.bf16.mxu0 0
        %6058 = vmatpush1.bf16.msra.mxu0 0
        %6059 = vmatprep.subr.bf16.mxu0 0
        %6060 = vmatpush1.bf16.msra.mxu0 0
        %6061 = vmatprep.subr.bf16.mxu0 0
        %6062 = vmatpush1.bf16.msra.mxu0 0
        %6063 = vmatprep.subr.bf16.mxu0 0
        %6064 = vmatpush1.bf16.msra.mxu0 0
        %6065 = vmatprep.subr.bf16.mxu0 0
        %6066 = vmatpush1.bf16.msra.mxu0 0
        %6067 = vmatprep.subr.bf16.mxu0 0
        %6068 = vmatpush1.bf16.msra.mxu0 0
        %6069 = vmatprep.subr.bf16.mxu0 0
        %6070 = vmatpush1.bf16.msra.mxu0 0
        %6071 = vmatprep.subr.bf16.mxu0 0
        %6072 = vmatpush1.bf16.msra.mxu0 0
        %6073 = vmatprep.subr.bf16.mxu0 0
        %6074 = vmatpush1.bf16.msra.mxu0 0
        %6075 = vmatprep.subr.bf16.mxu0 0
        %6076 = vmatpush1.bf16.msra.mxu0 0
        %6077 = vmatprep.subr.bf16.mxu0 0
        %6078 = vmatpush1.bf16.msra.mxu0 0
        %6079 = vmatprep.mubr.bf16.mxu0 0
        %6080 = vmatmul.mubr.bf16.gmra.mrb[0].mxu0 %v6042
        %v6081 = vpop.f32.mrb[0].mxu0
        %v6082 = vadd.f32 0.0, %v6081
        %v6083 = vpop.f32.mrb[0].mxu0
        %v6084 = vpop.f32.mrb[0].mxu0
        %v6085 = vpop.f32.mrb[0].mxu0
        %6086 = vdwg.mxu0
        %6087 = vrot.lane.b32.xlu0 %v5525, 48
        %v6088 = vpop.permute.xlu0 %6087
        %v6090 = vsel %vm5478, %v6038, 0
        %v6093 = vsel %vm5603, %v6088, 0
        %6095 = vmatprep.subr.bf16.mxu0 0
        %6096 = vmatpush1.bf16.msra.mxu0 %v6093
        %6097 = vmatprep.subr.bf16.mxu0 0
        %6098 = vmatpush1.bf16.msra.mxu0 0
        %6099 = vmatprep.subr.bf16.mxu0 0
        %6100 = vmatpush1.bf16.msra.mxu0 0
        %6101 = vmatprep.subr.bf16.mxu0 0
        %6102 = vmatpush1.bf16.msra.mxu0 0
        %6103 = vmatprep.subr.bf16.mxu0 0
        %6104 = vmatpush1.bf16.msra.mxu0 0
        %6105 = vmatprep.subr.bf16.mxu0 0
        %6106 = vmatpush1.bf16.msra.mxu0 0
        %6107 = vmatprep.subr.bf16.mxu0 0
        %6108 = vmatpush1.bf16.msra.mxu0 0
        %6109 = vmatprep.subr.bf16.mxu0 0
        %6110 = vmatpush1.bf16.msra.mxu0 0
        %6111 = vmatprep.subr.bf16.mxu0 0
        %6112 = vmatpush1.bf16.msra.mxu0 0
        %6113 = vmatprep.subr.bf16.mxu0 0
        %6114 = vmatpush1.bf16.msra.mxu0 0
        %6115 = vmatprep.subr.bf16.mxu0 0
        %6116 = vmatpush1.bf16.msra.mxu0 0
        %6117 = vmatprep.subr.bf16.mxu0 0
        %6118 = vmatpush1.bf16.msra.mxu0 0
        %6119 = vmatprep.subr.bf16.mxu0 0
        %6120 = vmatpush1.bf16.msra.mxu0 0
        %6121 = vmatprep.subr.bf16.mxu0 0
        %6122 = vmatpush1.bf16.msra.mxu0 0
        %6123 = vmatprep.subr.bf16.mxu0 0
        %6124 = vmatpush1.bf16.msra.mxu0 0
        %6125 = vmatprep.subr.bf16.mxu0 0
        %6126 = vmatpush1.bf16.msra.mxu0 0
        %6127 = vmatprep.mubr.bf16.mxu0 0
        %6128 = vmatmul.mubr.bf16.gmra.mrb[0].mxu0 %v6090
        %v6129 = vpop.f32.mrb[0].mxu0
        %v6130 = vadd.f32 0.0, %v6129
        %v6131 = vpop.f32.mrb[0].mxu0
        %v6132 = vpop.f32.mrb[0].mxu0
        %v6133 = vpop.f32.mrb[0].mxu0
        %6134 = vdwg.mxu0
        %6135 = vrot.lane.b32.xlu0 %v5469, 104
        %v6136 = vpop.permute.xlu0 %6135
        %6137 = vrot.lane.b32.xlu0 %v5475, 72
        %v6138 = vpop.permute.xlu0 %6137
        %v6140 = vsel %vm5478, %v6136, 0
        %v6143 = vsel %vm5478, %v6138, 0
        %6145 = vmatprep.subr.bf16.mxu0 0
        %6146 = vmatpush1.bf16.xpose.msra.mxu0 %v6143
        %6147 = vmatprep.subr.bf16.mxu0 0
        %6148 = vmatpush1.bf16.xpose.msra.mxu0 0
        %6149 = vmatprep.subr.bf16.mxu0 0
        %6150 = vmatpush1.bf16.xpose.msra.mxu0 0
        %6151 = vmatprep.subr.bf16.mxu0 0
        %6152 = vmatpush1.bf16.xpose.msra.mxu0 0
        %6153 = vmatprep.subr.bf16.mxu0 0
        %6154 = vmatpush1.bf16.xpose.msra.mxu0 0
        %6155 = vmatprep.subr.bf16.mxu0 0
        %6156 = vmatpush1.bf16.xpose.msra.mxu0 0
        %6157 = vmatprep.subr.bf16.mxu0 0
        %6158 = vmatpush1.bf16.xpose.msra.mxu0 0
        %6159 = vmatprep.subr.bf16.mxu0 0
        %6160 = vmatpush1.bf16.xpose.msra.mxu0 0
        %6161 = vmatprep.subr.bf16.mxu0 0
        %6162 = vmatpush1.bf16.xpose.msra.mxu0 0
        %6163 = vmatprep.subr.bf16.mxu0 0
        %6164 = vmatpush1.bf16.xpose.msra.mxu0 0
        %6165 = vmatprep.subr.bf16.mxu0 0
        %6166 = vmatpush1.bf16.xpose.msra.mxu0 0
        %6167 = vmatprep.subr.bf16.mxu0 0
        %6168 = vmatpush1.bf16.xpose.msra.mxu0 0
        %6169 = vmatprep.subr.bf16.mxu0 0
        %6170 = vmatpush1.bf16.xpose.msra.mxu0 0
        %6171 = vmatprep.subr.bf16.mxu0 0
        %6172 = vmatpush1.bf16.xpose.msra.mxu0 0
        %6173 = vmatprep.subr.bf16.mxu0 0
        %6174 = vmatpush1.bf16.xpose.msra.mxu0 0
        %6175 = vmatprep.subr.bf16.mxu0 0
        %6176 = vmatpush1.bf16.xpose.msra.mxu0 0
        %6177 = vmatprep.mubr.bf16.mxu0 0
        %6178 = vmatmul.mubr.bf16.gmra.mrb[0].mxu0 %v6140
        %v6179 = vpop.f32.mrb[0].mxu0
        %v6180 = vadd.f32 0.0, %v6179
        %v6181 = vpop.f32.mrb[0].mxu0
        %v6182 = vpop.f32.mrb[0].mxu0
        %v6183 = vpop.f32.mrb[0].mxu0
        %6184 = vdwg.mxu0
        %6185 = vrot.lane.b32.xlu0 %v5470, 104
        %v6186 = vpop.permute.xlu0 %6185
        %6187 = vrot.lane.b32.xlu0 %v5525, 72
        %v6188 = vpop.permute.xlu0 %6187
        %v6190 = vsel %vm5478, %v6186, 0
        %v6193 = vsel %vm5478, %v6188, 0
        %6195 = vmatprep.subr.bf16.mxu0 0
        %6196 = vmatpush1.bf16.xpose.msra.mxu0 %v6193
        %6197 = vmatprep.subr.bf16.mxu0 0
        %6198 = vmatpush1.bf16.xpose.msra.mxu0 0
        %6199 = vmatprep.subr.bf16.mxu0 0
        %6200 = vmatpush1.bf16.xpose.msra.mxu0 0
        %6201 = vmatprep.subr.bf16.mxu0 0
        %6202 = vmatpush1.bf16.xpose.msra.mxu0 0
        %6203 = vmatprep.subr.bf16.mxu0 0
        %6204 = vmatpush1.bf16.xpose.msra.mxu0 0
        %6205 = vmatprep.subr.bf16.mxu0 0
        %6206 = vmatpush1.bf16.xpose.msra.mxu0 0
        %6207 = vmatprep.subr.bf16.mxu0 0
        %6208 = vmatpush1.bf16.xpose.msra.mxu0 0
        %6209 = vmatprep.subr.bf16.mxu0 0
        %6210 = vmatpush1.bf16.xpose.msra.mxu0 0
        %6211 = vmatprep.subr.bf16.mxu0 0
        %6212 = vmatpush1.bf16.xpose.msra.mxu0 0
        %6213 = vmatprep.subr.bf16.mxu0 0
        %6214 = vmatpush1.bf16.xpose.msra.mxu0 0
        %6215 = vmatprep.subr.bf16.mxu0 0
        %6216 = vmatpush1.bf16.xpose.msra.mxu0 0
        %6217 = vmatprep.subr.bf16.mxu0 0
        %6218 = vmatpush1.bf16.xpose.msra.mxu0 0
        %6219 = vmatprep.subr.bf16.mxu0 0
        %6220 = vmatpush1.bf16.xpose.msra.mxu0 0
        %6221 = vmatprep.subr.bf16.mxu0 0
        %6222 = vmatpush1.bf16.xpose.msra.mxu0 0
        %6223 = vmatprep.subr.bf16.mxu0 0
        %6224 = vmatpush1.bf16.xpose.msra.mxu0 0
        %6225 = vmatprep.subr.bf16.mxu0 0
        %6226 = vmatpush1.bf16.xpose.msra.mxu0 0
        %6227 = vmatprep.mubr.bf16.mxu0 0
        %6228 = vmatmul.mubr.bf16.gmra.mrb[0].mxu0 %v6190
        %v6229 = vpop.f32.mrb[0].mxu0
        %v6230 = vadd.f32 0.0, %v6229
        %v6231 = vpop.f32.mrb[0].mxu0
        %v6232 = vpop.f32.mrb[0].mxu0
        %v6233 = vpop.f32.mrb[0].mxu0
        %6234 = vdwg.mxu0
        %v6235 = vsel %vm5478, %v6180, -inf
        %6236 = vmax.xlane.f32.xlu0 %v6235
        %v6237 = vpop.xlane.xlu0 %6236
        %v6238 = vsel %vm5478, %v6230, -inf
        %6239 = vmax.xlane.f32.xlu0 %v6238
        %v6240 = vpop.xlane.xlu0 %6239
        %v6241 = vsub.f32 %v6180, %v6237
        %v6242 = vsub.f32 %v6230, %v6240
        %v6243 = vmul.f32 %v6241, 1.442695
        %v6244 = vpow.pop %v6243
        %v6245 = vmul.f32 %v6242, 1.442695
        %v6246 = vpow.pop %v6245
        %v6247 = vsel %vm5478, %v6244, 0.0
        %6248 = vadd.xlane.f32.xlu0 %v6247
        %v6249 = vpop.xlane.xlu0 %6248
        %v6250 = vsel %vm5478, %v6246, 0.0
        %6251 = vadd.xlane.f32.xlu0 %v6250
        %v6252 = vpop.xlane.xlu0 %6251
        %v6253 = vrcp.pop %v6249
        %v6254 = vrcp.pop %v6252
        %v6255 = vmul.f32 %v6244, %v6253
        %v6256 = vmul.f32 %v6246, %v6254
        %v6257 = vpack.c.bf16 %v6255, %v6255
        %v6258 = vpack.c.bf16 %v6256, %v6256
        %6259 = vrot.lane.b32.xlu0 %v5475, 40
        %v6260 = vpop.permute.xlu0 %6259
        %v6262 = vsel %vm5478, %v6257, 0
        %v6265 = vsel %vm5603, %v6260, 0
        %6267 = vmatprep.subr.bf16.mxu0 0
        %6268 = vmatpush1.bf16.msra.mxu0 %v6265
        %6269 = vmatprep.subr.bf16.mxu0 0
        %6270 = vmatpush1.bf16.msra.mxu0 0
        %6271 = vmatprep.subr.bf16.mxu0 0
        %6272 = vmatpush1.bf16.msra.mxu0 0
        %6273 = vmatprep.subr.bf16.mxu0 0
        %6274 = vmatpush1.bf16.msra.mxu0 0
        %6275 = vmatprep.subr.bf16.mxu0 0
        %6276 = vmatpush1.bf16.msra.mxu0 0
        %6277 = vmatprep.subr.bf16.mxu0 0
        %6278 = vmatpush1.bf16.msra.mxu0 0
        %6279 = vmatprep.subr.bf16.mxu0 0
        %6280 = vmatpush1.bf16.msra.mxu0 0
        %6281 = vmatprep.subr.bf16.mxu0 0
        %6282 = vmatpush1.bf16.msra.mxu0 0
        %6283 = vmatprep.subr.bf16.mxu0 0
        %6284 = vmatpush1.bf16.msra.mxu0 0
        %6285 = vmatprep.subr.bf16.mxu0 0
        %6286 = vmatpush1.bf16.msra.mxu0 0
        %6287 = vmatprep.subr.bf16.mxu0 0
        %6288 = vmatpush1.bf16.msra.mxu0 0
        %6289 = vmatprep.subr.bf16.mxu0 0
        %6290 = vmatpush1.bf16.msra.mxu0 0
        %6291 = vmatprep.subr.bf16.mxu0 0
        %6292 = vmatpush1.bf16.msra.mxu0 0
        %6293 = vmatprep.subr.bf16.mxu0 0
        %6294 = vmatpush1.bf16.msra.mxu0 0
        %6295 = vmatprep.subr.bf16.mxu0 0
        %6296 = vmatpush1.bf16.msra.mxu0 0
        %6297 = vmatprep.subr.bf16.mxu0 0
        %6298 = vmatpush1.bf16.msra.mxu0 0
        %6299 = vmatprep.mubr.bf16.mxu0 0
        %6300 = vmatmul.mubr.bf16.gmra.mrb[0].mxu0 %v6262
        %v6301 = vpop.f32.mrb[0].mxu0
        %v6302 = vadd.f32 0.0, %v6301
        %v6303 = vpop.f32.mrb[0].mxu0
        %v6304 = vpop.f32.mrb[0].mxu0
        %v6305 = vpop.f32.mrb[0].mxu0
        %6306 = vdwg.mxu0
        %6307 = vrot.lane.b32.xlu0 %v5525, 40
        %v6308 = vpop.permute.xlu0 %6307
        %v6310 = vsel %vm5478, %v6258, 0
        %v6313 = vsel %vm5603, %v6308, 0
        %6315 = vmatprep.subr.bf16.mxu0 0
        %6316 = vmatpush1.bf16.msra.mxu0 %v6313
        %6317 = vmatprep.subr.bf16.mxu0 0
        %6318 = vmatpush1.bf16.msra.mxu0 0
        %6319 = vmatprep.subr.bf16.mxu0 0
        %6320 = vmatpush1.bf16.msra.mxu0 0
        %6321 = vmatprep.subr.bf16.mxu0 0
        %6322 = vmatpush1.bf16.msra.mxu0 0
        %6323 = vmatprep.subr.bf16.mxu0 0
        %6324 = vmatpush1.bf16.msra.mxu0 0
        %6325 = vmatprep.subr.bf16.mxu0 0
        %6326 = vmatpush1.bf16.msra.mxu0 0
        %6327 = vmatprep.subr.bf16.mxu0 0
        %6328 = vmatpush1.bf16.msra.mxu0 0
        %6329 = vmatprep.subr.bf16.mxu0 0
        %6330 = vmatpush1.bf16.msra.mxu0 0
        %6331 = vmatprep.subr.bf16.mxu0 0
        %6332 = vmatpush1.bf16.msra.mxu0 0
        %6333 = vmatprep.subr.bf16.mxu0 0
        %6334 = vmatpush1.bf16.msra.mxu0 0
        %6335 = vmatprep.subr.bf16.mxu0 0
        %6336 = vmatpush1.bf16.msra.mxu0 0
        %6337 = vmatprep.subr.bf16.mxu0 0
        %6338 = vmatpush1.bf16.msra.mxu0 0
        %6339 = vmatprep.subr.bf16.mxu0 0
        %6340 = vmatpush1.bf16.msra.mxu0 0
        %6341 = vmatprep.subr.bf16.mxu0 0
        %6342 = vmatpush1.bf16.msra.mxu0 0
        %6343 = vmatprep.subr.bf16.mxu0 0
        %6344 = vmatpush1.bf16.msra.mxu0 0
        %6345 = vmatprep.subr.bf16.mxu0 0
        %6346 = vmatpush1.bf16.msra.mxu0 0
        %6347 = vmatprep.mubr.bf16.mxu0 0
        %6348 = vmatmul.mubr.bf16.gmra.mrb[0].mxu0 %v6310
        %v6349 = vpop.f32.mrb[0].mxu0
        %v6350 = vadd.f32 0.0, %v6349
        %v6351 = vpop.f32.mrb[0].mxu0
        %v6352 = vpop.f32.mrb[0].mxu0
        %v6353 = vpop.f32.mrb[0].mxu0
        %6354 = vdwg.mxu0
        %6357 = vrot.lane.b32.xlu0 %v5862, 8
        %v6358 = vpop.permute.xlu0 %6357
        %6359 = vrot.lane.b32.xlu0 %v5910, 8
        %v6360 = vpop.permute.xlu0 %6359
        %6365 = vrot.lane.b32.xlu0 %v6082, 16
        %v6366 = vpop.permute.xlu0 %6365
        %6367 = vrot.lane.b32.xlu0 %v6130, 16
        %v6368 = vpop.permute.xlu0 %6367
        %6373 = vrot.lane.b32.xlu0 %v6302, 24
        %v6374 = vpop.permute.xlu0 %6373
        %6375 = vrot.lane.b32.xlu0 %v6350, 24
        %v6376 = vpop.permute.xlu0 %6375
        %v6379 = vsel %vm5478, %v5642, %v6358
        %v6380 = vsel %vm5478, %v5690, %v6360
        %vm6381 = vcmask 130048
        %v6382 = vsel %vm6381, %v6379, %v6366
        %v6383 = vsel %vm6381, %v6380, %v6368
        %vm6384 = vcmask 195584
        %v6385 = vsel %vm6384, %v6382, %v6374
        %v6386 = vsel %vm6384, %v6383, %v6376
        %v6387 = vpack.c.bf16 %v6386, %v6385
        %v6389 = vlaneseq
        %v6390 = vshrl.u32 %v6389, 7
        %v6391 = vsub.s32 0, %v6390
        %v6392 = vrot.slane %v5398, %v6391
        %v6398 = vunpack.c.l.b16 %v5394
        %v6399 = vunpack.c.l.b16 %v5395
        %v6400 = vunpack.c.l.b16 %v5396
        %v6401 = vunpack.c.l.b16 %v5397
        %v6402 = vpack.c.b16 %v6399, %v6398
        %v6403 = vpack.c.b16 %v6401, %v6400
        %v6407 = vsel %vm5418, %v6387, 0
        %6409 = vmatprep.subr.bf16.mxu0 0
        %6410 = vmatpush1.bf16.msra.mxu0 %v6402
        %6411 = vmatprep.subr.bf16.mxu0 0
        %6412 = vmatpush1.bf16.msra.mxu0 %v6403
        %6413 = vmatprep.subr.bf16.mxu0 0
        %6414 = vmatpush1.bf16.msra.mxu0 0
        %6415 = vmatprep.subr.bf16.mxu0 0
        %6416 = vmatpush1.bf16.msra.mxu0 0
        %6417 = vmatprep.subr.bf16.mxu0 0
        %6418 = vmatpush1.bf16.msra.mxu0 0
        %6419 = vmatprep.subr.bf16.mxu0 0
        %6420 = vmatpush1.bf16.msra.mxu0 0
        %6421 = vmatprep.subr.bf16.mxu0 0
        %6422 = vmatpush1.bf16.msra.mxu0 0
        %6423 = vmatprep.subr.bf16.mxu0 0
        %6424 = vmatpush1.bf16.msra.mxu0 0
        %6425 = vmatprep.subr.bf16.mxu0 0
        %6426 = vmatpush1.bf16.msra.mxu0 0
        %6427 = vmatprep.subr.bf16.mxu0 0
        %6428 = vmatpush1.bf16.msra.mxu0 0
        %6429 = vmatprep.subr.bf16.mxu0 0
        %6430 = vmatpush1.bf16.msra.mxu0 0
        %6431 = vmatprep.subr.bf16.mxu0 0
        %6432 = vmatpush1.bf16.msra.mxu0 0
        %6433 = vmatprep.subr.bf16.mxu0 0
        %6434 = vmatpush1.bf16.msra.mxu0 0
        %6435 = vmatprep.subr.bf16.mxu0 0
        %6436 = vmatpush1.bf16.msra.mxu0 0
        %6437 = vmatprep.subr.bf16.mxu0 0
        %6438 = vmatpush1.bf16.msra.mxu0 0
        %6439 = vmatprep.subr.bf16.mxu0 0
        %6440 = vmatpush1.bf16.msra.mxu0 0
        %6441 = vmatprep.mubr.bf16.mxu0 0
        %6442 = vmatmul.mubr.bf16.gmra.mrb[0].mxu0 %v6407
        %v6443 = vpop.f32.mrb[0].mxu0
        %v6444 = vadd.f32 %v6392, %v6443
        %v6445 = vpop.f32.mrb[0].mxu0
        %v6446 = vpop.f32.mrb[0].mxu0
        %v6447 = vadd.f32 %v6392, %v6446
        %v6448 = vpop.f32.mrb[0].mxu0
        %6449 = vdwg.mxu0
        %v6450 = vadd.f32 %v2136, %v6444
        %v6451 = vadd.f32 %v2137, %v6447
        %v6452 = vld [vmem:[%s1994] sm:$0x1]
        %v6453 = vld [vmem:[%s2003] sm:$0x1]
        %v6454 = vsel %vm5418, %v6450, 0.0
        %6455 = vadd.xlane.f32.xlu0 %v6454
        %v6456 = vpop.xlane.xlu0 %6455
        %v6457 = vsel %vm5418, %v6451, 0.0
        %6458 = vadd.xlane.f32.xlu0 %v6457
        %v6459 = vpop.xlane.xlu0 %6458
        %v6460 = vrcp.pop 32.0
        %v6461 = vmul.f32 %v6456, %v6460
        %v6462 = vmul.f32 %v6459, %v6460
        %v6463 = vsub.f32 %v6450, %v6461
        %v6464 = vsub.f32 %v6451, %v6462
        %v6465 = vmul.f32 %v6463, %v6463
        %v6466 = vmul.f32 %v6464, %v6464
        %v6467 = vsel %vm5418, %v6465, 0.0
        %6468 = vadd.xlane.f32.xlu0 %v6467
        %v6469 = vpop.xlane.xlu0 %6468
        %v6470 = vsel %vm5418, %v6466, 0.0
        %6471 = vadd.xlane.f32.xlu0 %v6470
        %v6472 = vpop.xlane.xlu0 %6471
        %v6473 = vmul.f32 %v6469, %v6460
        %v6474 = vmul.f32 %v6472, %v6460
        %v6475 = vadd.f32 %v6473, 1e-05
        %v6476 = vadd.f32 %v6474, 1e-05
        %v6477 = vrsqrt.pop %v6475
        %v6478 = vrsqrt.pop %v6476
        %v6479 = vmul.f32 %v6463, %v6477
        %v6480 = vmul.f32 %v6464, %v6478
        %v6482 = vlaneseq
        %v6483 = vshrl.u32 %v6482, 7
        %v6484 = vsub.s32 0, %v6483
        %v6485 = vrot.slane %v6452, %v6484
        %v6487 = vmul.f32 %v6479, %v6485
        %v6488 = vmul.f32 %v6480, %v6485
        %v6490 = vlaneseq
        %v6491 = vshrl.u32 %v6490, 7
        %v6492 = vsub.s32 0, %v6491
        %v6493 = vrot.slane %v6453, %v6492
        %v6495 = vadd.f32 %v6487, %v6493
        %v6496 = vadd.f32 %v6488, %v6493
        %v6497 = vld [vmem:[%s2014] sm:$0xf]
        %v6498 = vld [vmem:[%s2014 + $0x4] sm:$0xf]
        %v6499 = vld [vmem:[%s2014 + $0x8] sm:$0xf]
        %v6500 = vld [vmem:[%s2014 + $0xc] sm:$0xf]
        %v6501 = vld [vmem:[%s2023] sm:$0x1]
        %v6502 = vld [vmem:[%s2034] sm:$0xf]
        %v6503 = vld [vmem:[%s2034 + $0x4] sm:$0xf]
        %v6504 = vld [vmem:[%s2034 + $0x8] sm:$0xf]
        %v6505 = vld [vmem:[%s2034 + $0xc] sm:$0xf]
        %v6506 = vld [vmem:[%s2043] sm:$0x1]
        %v6507 = vpack.c.bf16 %v6496, %v6495
        %v6509 = vlaneseq
        %v6510 = vshrl.u32 %v6509, 7
        %v6511 = vsub.s32 0, %v6510
        %v6512 = vrot.slane %v6501, %v6511
        %v6518 = vunpack.c.l.b16 %v6497
        %v6519 = vunpack.c.l.b16 %v6498
        %v6520 = vunpack.c.l.b16 %v6499
        %v6521 = vunpack.c.l.b16 %v6500
        %v6522 = vpack.c.b16 %v6519, %v6518
        %v6523 = vpack.c.b16 %v6521, %v6520
        %v6527 = vsel %vm5418, %v6507, 0
        %6529 = vmatprep.subr.bf16.mxu0 0
        %6530 = vmatpush1.bf16.msra.mxu0 %v6522
        %6531 = vmatprep.subr.bf16.mxu0 0
        %6532 = vmatpush1.bf16.msra.mxu0 %v6523
        %6533 = vmatprep.subr.bf16.mxu0 0
        %6534 = vmatpush1.bf16.msra.mxu0 0
        %6535 = vmatprep.subr.bf16.mxu0 0
        %6536 = vmatpush1.bf16.msra.mxu0 0
        %6537 = vmatprep.subr.bf16.mxu0 0
        %6538 = vmatpush1.bf16.msra.mxu0 0
        %6539 = vmatprep.subr.bf16.mxu0 0
        %6540 = vmatpush1.bf16.msra.mxu0 0
        %6541 = vmatprep.subr.bf16.mxu0 0
        %6542 = vmatpush1.bf16.msra.mxu0 0
        %6543 = vmatprep.subr.bf16.mxu0 0
        %6544 = vmatpush1.bf16.msra.mxu0 0
        %6545 = vmatprep.subr.bf16.mxu0 0
        %6546 = vmatpush1.bf16.msra.mxu0 0
        %6547 = vmatprep.subr.bf16.mxu0 0
        %6548 = vmatpush1.bf16.msra.mxu0 0
        %6549 = vmatprep.subr.bf16.mxu0 0
        %6550 = vmatpush1.bf16.msra.mxu0 0
        %6551 = vmatprep.subr.bf16.mxu0 0
        %6552 = vmatpush1.bf16.msra.mxu0 0
        %6553 = vmatprep.subr.bf16.mxu0 0
        %6554 = vmatpush1.bf16.msra.mxu0 0
        %6555 = vmatprep.subr.bf16.mxu0 0
        %6556 = vmatpush1.bf16.msra.mxu0 0
        %6557 = vmatprep.subr.bf16.mxu0 0
        %6558 = vmatpush1.bf16.msra.mxu0 0
        %6559 = vmatprep.subr.bf16.mxu0 0
        %6560 = vmatpush1.bf16.msra.mxu0 0
        %6561 = vmatprep.mubr.bf16.mxu0 0
        %6562 = vmatmul.mubr.bf16.gmra.mrb[0].mxu0 %v6527
        %v6563 = vpop.f32.mrb[0].mxu0
        %v6564 = vadd.f32 %v6512, %v6563
        %v6565 = vpop.f32.mrb[0].mxu0
        %v6566 = vpop.f32.mrb[0].mxu0
        %v6567 = vadd.f32 %v6512, %v6566
        %v6568 = vpop.f32.mrb[0].mxu0
        %6569 = vdwg.mxu0
        %v6570 = vpack.c.bf16 %v5388, %v5387
        %6571 = vrot.lane.b32.xlu0 %v6522, 96
        %v6572 = vpop.permute.xlu0 %6571
        %6573 = vrot.lane.b32.xlu0 %v6523, 96
        %v6574 = vpop.permute.xlu0 %6573
        %6577 = vrot.lane.b32.xlu0 %v6512, 96
        %v6578 = vpop.permute.xlu0 %6577
        %v6581 = vsel %vm5418, %v6570, 0
        %6583 = vmatprep.subr.bf16.mxu0 0
        %6584 = vmatpush1.bf16.msra.mxu0 %v6572
        %6585 = vmatprep.subr.bf16.mxu0 0
        %6586 = vmatpush1.bf16.msra.mxu0 %v6574
        %6587 = vmatprep.subr.bf16.mxu0 0
        %6588 = vmatpush1.bf16.msra.mxu0 0
        %6589 = vmatprep.subr.bf16.mxu0 0
        %6590 = vmatpush1.bf16.msra.mxu0 0
        %6591 = vmatprep.subr.bf16.mxu0 0
        %6592 = vmatpush1.bf16.msra.mxu0 0
        %6593 = vmatprep.subr.bf16.mxu0 0
        %6594 = vmatpush1.bf16.msra.mxu0 0
        %6595 = vmatprep.subr.bf16.mxu0 0
        %6596 = vmatpush1.bf16.msra.mxu0 0
        %6597 = vmatprep.subr.bf16.mxu0 0
        %6598 = vmatpush1.bf16.msra.mxu0 0
        %6599 = vmatprep.subr.bf16.mxu0 0
        %6600 = vmatpush1.bf16.msra.mxu0 0
        %6601 = vmatprep.subr.bf16.mxu0 0
        %6602 = vmatpush1.bf16.msra.mxu0 0
        %6603 = vmatprep.subr.bf16.mxu0 0
        %6604 = vmatpush1.bf16.msra.mxu0 0
        %6605 = vmatprep.subr.bf16.mxu0 0
        %6606 = vmatpush1.bf16.msra.mxu0 0
        %6607 = vmatprep.subr.bf16.mxu0 0
        %6608 = vmatpush1.bf16.msra.mxu0 0
        %6609 = vmatprep.subr.bf16.mxu0 0
        %6610 = vmatpush1.bf16.msra.mxu0 0
        %6611 = vmatprep.subr.bf16.mxu0 0
        %6612 = vmatpush1.bf16.msra.mxu0 0
        %6613 = vmatprep.subr.bf16.mxu0 0
        %6614 = vmatpush1.bf16.msra.mxu0 0
        %6615 = vmatprep.mubr.bf16.mxu0 0
        %6616 = vmatmul.mubr.bf16.gmra.mrb[0].mxu0 %v6581
        %v6617 = vpop.f32.mrb[0].mxu0
        %v6618 = vadd.f32 %v6578, %v6617
        %v6619 = vpop.f32.mrb[0].mxu0
        %v6620 = vpop.f32.mrb[0].mxu0
        %v6621 = vadd.f32 %v6578, %v6620
        %v6622 = vpop.f32.mrb[0].mxu0
        %6623 = vdwg.mxu0
        %v6624 = vmul.f32 %v6564, 0.35355338
        %v6625 = vmul.f32 %v6567, 0.35355338
        %v6626 = vpack.c.bf16 %v6625, %v6624
        %v6628 = vunpack.c.l.b16 %v6626
        %v6629 = vunpack.c.h.b16 %v6626
        %v6630 = vpack.c.b16 %v6628, %v6628
        %v6631 = vpack.c.b16 %v6629, %v6629
        %v6632 = vpack.c.bf16 %v6621, %v6618
        %v6634 = vunpack.c.l.b16 %v6632
        %v6635 = vunpack.c.h.b16 %v6632
        %v6636 = vpack.c.b16 %v6634, %v6634
        %v6637 = vpack.c.b16 %v6635, %v6635
        %v6639 = vsel %vm5478, %v6630, 0
        %v6642 = vsel %vm5478, %v6636, 0
        %6644 = vmatprep.subr.bf16.mxu0 0
        %6645 = vmatpush1.bf16.xpose.msra.mxu0 %v6642
        %6646 = vmatprep.subr.bf16.mxu0 0
        %6647 = vmatpush1.bf16.xpose.msra.mxu0 0
        %6648 = vmatprep.subr.bf16.mxu0 0
        %6649 = vmatpush1.bf16.xpose.msra.mxu0 0
        %6650 = vmatprep.subr.bf16.mxu0 0
        %6651 = vmatpush1.bf16.xpose.msra.mxu0 0
        %6652 = vmatprep.subr.bf16.mxu0 0
        %6653 = vmatpush1.bf16.xpose.msra.mxu0 0
        %6654 = vmatprep.subr.bf16.mxu0 0
        %6655 = vmatpush1.bf16.xpose.msra.mxu0 0
        %6656 = vmatprep.subr.bf16.mxu0 0
        %6657 = vmatpush1.bf16.xpose.msra.mxu0 0
        %6658 = vmatprep.subr.bf16.mxu0 0
        %6659 = vmatpush1.bf16.xpose.msra.mxu0 0
        %6660 = vmatprep.subr.bf16.mxu0 0
        %6661 = vmatpush1.bf16.xpose.msra.mxu0 0
        %6662 = vmatprep.subr.bf16.mxu0 0
        %6663 = vmatpush1.bf16.xpose.msra.mxu0 0
        %6664 = vmatprep.subr.bf16.mxu0 0
        %6665 = vmatpush1.bf16.xpose.msra.mxu0 0
        %6666 = vmatprep.subr.bf16.mxu0 0
        %6667 = vmatpush1.bf16.xpose.msra.mxu0 0
        %6668 = vmatprep.subr.bf16.mxu0 0
        %6669 = vmatpush1.bf16.xpose.msra.mxu0 0
        %6670 = vmatprep.subr.bf16.mxu0 0
        %6671 = vmatpush1.bf16.xpose.msra.mxu0 0
        %6672 = vmatprep.subr.bf16.mxu0 0
        %6673 = vmatpush1.bf16.xpose.msra.mxu0 0
        %6674 = vmatprep.subr.bf16.mxu0 0
        %6675 = vmatpush1.bf16.xpose.msra.mxu0 0
        %6676 = vmatprep.mubr.bf16.mxu0 0
        %6677 = vmatmul.mubr.bf16.gmra.mrb[0].mxu0 %v6639
        %v6678 = vpop.f32.mrb[0].mxu0
        %v6679 = vadd.f32 0.0, %v6678
        %v6680 = vpop.f32.mrb[0].mxu0
        %v6681 = vpop.f32.mrb[0].mxu0
        %v6682 = vpop.f32.mrb[0].mxu0
        %6683 = vdwg.mxu0
        %v6685 = vsel %vm5478, %v6631, 0
        %v6688 = vsel %vm5478, %v6637, 0
        %6690 = vmatprep.subr.bf16.mxu0 0
        %6691 = vmatpush1.bf16.xpose.msra.mxu0 %v6688
        %6692 = vmatprep.subr.bf16.mxu0 0
        %6693 = vmatpush1.bf16.xpose.msra.mxu0 0
        %6694 = vmatprep.subr.bf16.mxu0 0
        %6695 = vmatpush1.bf16.xpose.msra.mxu0 0
        %6696 = vmatprep.subr.bf16.mxu0 0
        %6697 = vmatpush1.bf16.xpose.msra.mxu0 0
        %6698 = vmatprep.subr.bf16.mxu0 0
        %6699 = vmatpush1.bf16.xpose.msra.mxu0 0
        %6700 = vmatprep.subr.bf16.mxu0 0
        %6701 = vmatpush1.bf16.xpose.msra.mxu0 0
        %6702 = vmatprep.subr.bf16.mxu0 0
        %6703 = vmatpush1.bf16.xpose.msra.mxu0 0
        %6704 = vmatprep.subr.bf16.mxu0 0
        %6705 = vmatpush1.bf16.xpose.msra.mxu0 0
        %6706 = vmatprep.subr.bf16.mxu0 0
        %6707 = vmatpush1.bf16.xpose.msra.mxu0 0
        %6708 = vmatprep.subr.bf16.mxu0 0
        %6709 = vmatpush1.bf16.xpose.msra.mxu0 0
        %6710 = vmatprep.subr.bf16.mxu0 0
        %6711 = vmatpush1.bf16.xpose.msra.mxu0 0
        %6712 = vmatprep.subr.bf16.mxu0 0
        %6713 = vmatpush1.bf16.xpose.msra.mxu0 0
        %6714 = vmatprep.subr.bf16.mxu0 0
        %6715 = vmatpush1.bf16.xpose.msra.mxu0 0
        %6716 = vmatprep.subr.bf16.mxu0 0
        %6717 = vmatpush1.bf16.xpose.msra.mxu0 0
        %6718 = vmatprep.subr.bf16.mxu0 0
        %6719 = vmatpush1.bf16.xpose.msra.mxu0 0
        %6720 = vmatprep.subr.bf16.mxu0 0
        %6721 = vmatpush1.bf16.xpose.msra.mxu0 0
        %6722 = vmatprep.mubr.bf16.mxu0 0
        %6723 = vmatmul.mubr.bf16.gmra.mrb[0].mxu0 %v6685
        %v6724 = vpop.f32.mrb[0].mxu0
        %v6725 = vadd.f32 0.0, %v6724
        %v6726 = vpop.f32.mrb[0].mxu0
        %v6727 = vpop.f32.mrb[0].mxu0
        %v6728 = vpop.f32.mrb[0].mxu0
        %6729 = vdwg.mxu0
        %v6730 = vsel %vm5478, %v6679, -inf
        %6731 = vmax.xlane.f32.xlu0 %v6730
        %v6732 = vpop.xlane.xlu0 %6731
        %v6733 = vsel %vm5478, %v6725, -inf
        %6734 = vmax.xlane.f32.xlu0 %v6733
        %v6735 = vpop.xlane.xlu0 %6734
        %v6736 = vsub.f32 %v6679, %v6732
        %v6737 = vsub.f32 %v6725, %v6735
        %v6738 = vmul.f32 %v6736, 1.442695
        %v6739 = vpow.pop %v6738
        %v6740 = vmul.f32 %v6737, 1.442695
        %v6741 = vpow.pop %v6740
        %v6742 = vsel %vm5478, %v6739, 0.0
        %6743 = vadd.xlane.f32.xlu0 %v6742
        %v6744 = vpop.xlane.xlu0 %6743
        %v6745 = vsel %vm5478, %v6741, 0.0
        %6746 = vadd.xlane.f32.xlu0 %v6745
        %v6747 = vpop.xlane.xlu0 %6746
        %v6748 = vrcp.pop %v6744
        %v6749 = vrcp.pop %v6747
        %v6750 = vmul.f32 %v6739, %v6748
        %v6751 = vmul.f32 %v6741, %v6749
        %v6752 = vpack.c.bf16 %v6750, %v6750
        %v6753 = vpack.c.bf16 %v6751, %v6751
        %6754 = vrot.lane.b32.xlu0 %v6636, 96
        %v6755 = vpop.permute.xlu0 %6754
        %v6757 = vsel %vm5478, %v6752, 0
        %v6760 = vsel %vm5603, %v6755, 0
        %6762 = vmatprep.subr.bf16.mxu0 0
        %6763 = vmatpush1.bf16.msra.mxu0 %v6760
        %6764 = vmatprep.subr.bf16.mxu0 0
        %6765 = vmatpush1.bf16.msra.mxu0 0
        %6766 = vmatprep.subr.bf16.mxu0 0
        %6767 = vmatpush1.bf16.msra.mxu0 0
        %6768 = vmatprep.subr.bf16.mxu0 0
        %6769 = vmatpush1.bf16.msra.mxu0 0
        %6770 = vmatprep.subr.bf16.mxu0 0
        %6771 = vmatpush1.bf16.msra.mxu0 0
        %6772 = vmatprep.subr.bf16.mxu0 0
        %6773 = vmatpush1.bf16.msra.mxu0 0
        %6774 = vmatprep.subr.bf16.mxu0 0
        %6775 = vmatpush1.bf16.msra.mxu0 0
        %6776 = vmatprep.subr.bf16.mxu0 0
        %6777 = vmatpush1.bf16.msra.mxu0 0
        %6778 = vmatprep.subr.bf16.mxu0 0
        %6779 = vmatpush1.bf16.msra.mxu0 0
        %6780 = vmatprep.subr.bf16.mxu0 0
        %6781 = vmatpush1.bf16.msra.mxu0 0
        %6782 = vmatprep.subr.bf16.mxu0 0
        %6783 = vmatpush1.bf16.msra.mxu0 0
        %6784 = vmatprep.subr.bf16.mxu0 0
        %6785 = vmatpush1.bf16.msra.mxu0 0
        %6786 = vmatprep.subr.bf16.mxu0 0
        %6787 = vmatpush1.bf16.msra.mxu0 0
        %6788 = vmatprep.subr.bf16.mxu0 0
        %6789 = vmatpush1.bf16.msra.mxu0 0
        %6790 = vmatprep.subr.bf16.mxu0 0
        %6791 = vmatpush1.bf16.msra.mxu0 0
        %6792 = vmatprep.subr.bf16.mxu0 0
        %6793 = vmatpush1.bf16.msra.mxu0 0
        %6794 = vmatprep.mubr.bf16.mxu0 0
        %6795 = vmatmul.mubr.bf16.gmra.mrb[0].mxu0 %v6757
        %v6796 = vpop.f32.mrb[0].mxu0
        %v6797 = vadd.f32 0.0, %v6796
        %v6798 = vpop.f32.mrb[0].mxu0
        %v6799 = vpop.f32.mrb[0].mxu0
        %v6800 = vpop.f32.mrb[0].mxu0
        %6801 = vdwg.mxu0
        %6802 = vrot.lane.b32.xlu0 %v6637, 96
        %v6803 = vpop.permute.xlu0 %6802
        %v6805 = vsel %vm5478, %v6753, 0
        %v6808 = vsel %vm5603, %v6803, 0
        %6810 = vmatprep.subr.bf16.mxu0 0
        %6811 = vmatpush1.bf16.msra.mxu0 %v6808
        %6812 = vmatprep.subr.bf16.mxu0 0
        %6813 = vmatpush1.bf16.msra.mxu0 0
        %6814 = vmatprep.subr.bf16.mxu0 0
        %6815 = vmatpush1.bf16.msra.mxu0 0
        %6816 = vmatprep.subr.bf16.mxu0 0
        %6817 = vmatpush1.bf16.msra.mxu0 0
        %6818 = vmatprep.subr.bf16.mxu0 0
        %6819 = vmatpush1.bf16.msra.mxu0 0
        %6820 = vmatprep.subr.bf16.mxu0 0
        %6821 = vmatpush1.bf16.msra.mxu0 0
        %6822 = vmatprep.subr.bf16.mxu0 0
        %6823 = vmatpush1.bf16.msra.mxu0 0
        %6824 = vmatprep.subr.bf16.mxu0 0
        %6825 = vmatpush1.bf16.msra.mxu0 0
        %6826 = vmatprep.subr.bf16.mxu0 0
        %6827 = vmatpush1.bf16.msra.mxu0 0
        %6828 = vmatprep.subr.bf16.mxu0 0
        %6829 = vmatpush1.bf16.msra.mxu0 0
        %6830 = vmatprep.subr.bf16.mxu0 0
        %6831 = vmatpush1.bf16.msra.mxu0 0
        %6832 = vmatprep.subr.bf16.mxu0 0
        %6833 = vmatpush1.bf16.msra.mxu0 0
        %6834 = vmatprep.subr.bf16.mxu0 0
        %6835 = vmatpush1.bf16.msra.mxu0 0
        %6836 = vmatprep.subr.bf16.mxu0 0
        %6837 = vmatpush1.bf16.msra.mxu0 0
        %6838 = vmatprep.subr.bf16.mxu0 0
        %6839 = vmatpush1.bf16.msra.mxu0 0
        %6840 = vmatprep.subr.bf16.mxu0 0
        %6841 = vmatpush1.bf16.msra.mxu0 0
        %6842 = vmatprep.mubr.bf16.mxu0 0
        %6843 = vmatmul.mubr.bf16.gmra.mrb[0].mxu0 %v6805
        %v6844 = vpop.f32.mrb[0].mxu0
        %v6845 = vadd.f32 0.0, %v6844
        %v6846 = vpop.f32.mrb[0].mxu0
        %v6847 = vpop.f32.mrb[0].mxu0
        %v6848 = vpop.f32.mrb[0].mxu0
        %6849 = vdwg.mxu0
        %6850 = vrot.lane.b32.xlu0 %v6630, 120
        %v6851 = vpop.permute.xlu0 %6850
        %6852 = vrot.lane.b32.xlu0 %v6636, 120
        %v6853 = vpop.permute.xlu0 %6852
        %v6855 = vsel %vm5478, %v6851, 0
        %v6858 = vsel %vm5478, %v6853, 0
        %6860 = vmatprep.subr.bf16.mxu0 0
        %6861 = vmatpush1.bf16.xpose.msra.mxu0 %v6858
        %6862 = vmatprep.subr.bf16.mxu0 0
        %6863 = vmatpush1.bf16.xpose.msra.mxu0 0
        %6864 = vmatprep.subr.bf16.mxu0 0
        %6865 = vmatpush1.bf16.xpose.msra.mxu0 0
        %6866 = vmatprep.subr.bf16.mxu0 0
        %6867 = vmatpush1.bf16.xpose.msra.mxu0 0
        %6868 = vmatprep.subr.bf16.mxu0 0
        %6869 = vmatpush1.bf16.xpose.msra.mxu0 0
        %6870 = vmatprep.subr.bf16.mxu0 0
        %6871 = vmatpush1.bf16.xpose.msra.mxu0 0
        %6872 = vmatprep.subr.bf16.mxu0 0
        %6873 = vmatpush1.bf16.xpose.msra.mxu0 0
        %6874 = vmatprep.subr.bf16.mxu0 0
        %6875 = vmatpush1.bf16.xpose.msra.mxu0 0
        %6876 = vmatprep.subr.bf16.mxu0 0
        %6877 = vmatpush1.bf16.xpose.msra.mxu0 0
        %6878 = vmatprep.subr.bf16.mxu0 0
        %6879 = vmatpush1.bf16.xpose.msra.mxu0 0
        %6880 = vmatprep.subr.bf16.mxu0 0
        %6881 = vmatpush1.bf16.xpose.msra.mxu0 0
        %6882 = vmatprep.subr.bf16.mxu0 0
        %6883 = vmatpush1.bf16.xpose.msra.mxu0 0
        %6884 = vmatprep.subr.bf16.mxu0 0
        %6885 = vmatpush1.bf16.xpose.msra.mxu0 0
        %6886 = vmatprep.subr.bf16.mxu0 0
        %6887 = vmatpush1.bf16.xpose.msra.mxu0 0
        %6888 = vmatprep.subr.bf16.mxu0 0
        %6889 = vmatpush1.bf16.xpose.msra.mxu0 0
        %6890 = vmatprep.subr.bf16.mxu0 0
        %6891 = vmatpush1.bf16.xpose.msra.mxu0 0
        %6892 = vmatprep.mubr.bf16.mxu0 0
        %6893 = vmatmul.mubr.bf16.gmra.mrb[0].mxu0 %v6855
        %v6894 = vpop.f32.mrb[0].mxu0
        %v6895 = vadd.f32 0.0, %v6894
        %v6896 = vpop.f32.mrb[0].mxu0
        %v6897 = vpop.f32.mrb[0].mxu0
        %v6898 = vpop.f32.mrb[0].mxu0
        %6899 = vdwg.mxu0
        %6900 = vrot.lane.b32.xlu0 %v6631, 120
        %v6901 = vpop.permute.xlu0 %6900
        %6902 = vrot.lane.b32.xlu0 %v6637, 120
        %v6903 = vpop.permute.xlu0 %6902
        %v6905 = vsel %vm5478, %v6901, 0
        %v6908 = vsel %vm5478, %v6903, 0
        %6910 = vmatprep.subr.bf16.mxu0 0
        %6911 = vmatpush1.bf16.xpose.msra.mxu0 %v6908
        %6912 = vmatprep.subr.bf16.mxu0 0
        %6913 = vmatpush1.bf16.xpose.msra.mxu0 0
        %6914 = vmatprep.subr.bf16.mxu0 0
        %6915 = vmatpush1.bf16.xpose.msra.mxu0 0
        %6916 = vmatprep.subr.bf16.mxu0 0
        %6917 = vmatpush1.bf16.xpose.msra.mxu0 0
        %6918 = vmatprep.subr.bf16.mxu0 0
        %6919 = vmatpush1.bf16.xpose.msra.mxu0 0
        %6920 = vmatprep.subr.bf16.mxu0 0
        %6921 = vmatpush1.bf16.xpose.msra.mxu0 0
        %6922 = vmatprep.subr.bf16.mxu0 0
        %6923 = vmatpush1.bf16.xpose.msra.mxu0 0
        %6924 = vmatprep.subr.bf16.mxu0 0
        %6925 = vmatpush1.bf16.xpose.msra.mxu0 0
        %6926 = vmatprep.subr.bf16.mxu0 0
        %6927 = vmatpush1.bf16.xpose.msra.mxu0 0
        %6928 = vmatprep.subr.bf16.mxu0 0
        %6929 = vmatpush1.bf16.xpose.msra.mxu0 0
        %6930 = vmatprep.subr.bf16.mxu0 0
        %6931 = vmatpush1.bf16.xpose.msra.mxu0 0
        %6932 = vmatprep.subr.bf16.mxu0 0
        %6933 = vmatpush1.bf16.xpose.msra.mxu0 0
        %6934 = vmatprep.subr.bf16.mxu0 0
        %6935 = vmatpush1.bf16.xpose.msra.mxu0 0
        %6936 = vmatprep.subr.bf16.mxu0 0
        %6937 = vmatpush1.bf16.xpose.msra.mxu0 0
        %6938 = vmatprep.subr.bf16.mxu0 0
        %6939 = vmatpush1.bf16.xpose.msra.mxu0 0
        %6940 = vmatprep.subr.bf16.mxu0 0
        %6941 = vmatpush1.bf16.xpose.msra.mxu0 0
        %6942 = vmatprep.mubr.bf16.mxu0 0
        %6943 = vmatmul.mubr.bf16.gmra.mrb[0].mxu0 %v6905
        %v6944 = vpop.f32.mrb[0].mxu0
        %v6945 = vadd.f32 0.0, %v6944
        %v6946 = vpop.f32.mrb[0].mxu0
        %v6947 = vpop.f32.mrb[0].mxu0
        %v6948 = vpop.f32.mrb[0].mxu0
        %6949 = vdwg.mxu0
        %v6950 = vsel %vm5478, %v6895, -inf
        %6951 = vmax.xlane.f32.xlu0 %v6950
        %v6952 = vpop.xlane.xlu0 %6951
        %v6953 = vsel %vm5478, %v6945, -inf
        %6954 = vmax.xlane.f32.xlu0 %v6953
        %v6955 = vpop.xlane.xlu0 %6954
        %v6956 = vsub.f32 %v6895, %v6952
        %v6957 = vsub.f32 %v6945, %v6955
        %v6958 = vmul.f32 %v6956, 1.442695
        %v6959 = vpow.pop %v6958
        %v6960 = vmul.f32 %v6957, 1.442695
        %v6961 = vpow.pop %v6960
        %v6962 = vsel %vm5478, %v6959, 0.0
        %6963 = vadd.xlane.f32.xlu0 %v6962
        %v6964 = vpop.xlane.xlu0 %6963
        %v6965 = vsel %vm5478, %v6961, 0.0
        %6966 = vadd.xlane.f32.xlu0 %v6965
        %v6967 = vpop.xlane.xlu0 %6966
        %v6968 = vrcp.pop %v6964
        %v6969 = vrcp.pop %v6967
        %v6970 = vmul.f32 %v6959, %v6968
        %v6971 = vmul.f32 %v6961, %v6969
        %v6972 = vpack.c.bf16 %v6970, %v6970
        %v6973 = vpack.c.bf16 %v6971, %v6971
        %6974 = vrot.lane.b32.xlu0 %v6636, 88
        %v6975 = vpop.permute.xlu0 %6974
        %v6977 = vsel %vm5478, %v6972, 0
        %v6980 = vsel %vm5603, %v6975, 0
        %6982 = vmatprep.subr.bf16.mxu0 0
        %6983 = vmatpush1.bf16.msra.mxu0 %v6980
        %6984 = vmatprep.subr.bf16.mxu0 0
        %6985 = vmatpush1.bf16.msra.mxu0 0
        %6986 = vmatprep.subr.bf16.mxu0 0
        %6987 = vmatpush1.bf16.msra.mxu0 0
        %6988 = vmatprep.subr.bf16.mxu0 0
        %6989 = vmatpush1.bf16.msra.mxu0 0
        %6990 = vmatprep.subr.bf16.mxu0 0
        %6991 = vmatpush1.bf16.msra.mxu0 0
        %6992 = vmatprep.subr.bf16.mxu0 0
        %6993 = vmatpush1.bf16.msra.mxu0 0
        %6994 = vmatprep.subr.bf16.mxu0 0
        %6995 = vmatpush1.bf16.msra.mxu0 0
        %6996 = vmatprep.subr.bf16.mxu0 0
        %6997 = vmatpush1.bf16.msra.mxu0 0
        %6998 = vmatprep.subr.bf16.mxu0 0
        %6999 = vmatpush1.bf16.msra.mxu0 0
        %7000 = vmatprep.subr.bf16.mxu0 0
        %7001 = vmatpush1.bf16.msra.mxu0 0
        %7002 = vmatprep.subr.bf16.mxu0 0
        %7003 = vmatpush1.bf16.msra.mxu0 0
        %7004 = vmatprep.subr.bf16.mxu0 0
        %7005 = vmatpush1.bf16.msra.mxu0 0
        %7006 = vmatprep.subr.bf16.mxu0 0
        %7007 = vmatpush1.bf16.msra.mxu0 0
        %7008 = vmatprep.subr.bf16.mxu0 0
        %7009 = vmatpush1.bf16.msra.mxu0 0
        %7010 = vmatprep.subr.bf16.mxu0 0
        %7011 = vmatpush1.bf16.msra.mxu0 0
        %7012 = vmatprep.subr.bf16.mxu0 0
        %7013 = vmatpush1.bf16.msra.mxu0 0
        %7014 = vmatprep.mubr.bf16.mxu0 0
        %7015 = vmatmul.mubr.bf16.gmra.mrb[0].mxu0 %v6977
        %v7016 = vpop.f32.mrb[0].mxu0
        %v7017 = vadd.f32 0.0, %v7016
        %v7018 = vpop.f32.mrb[0].mxu0
        %v7019 = vpop.f32.mrb[0].mxu0
        %v7020 = vpop.f32.mrb[0].mxu0
        %7021 = vdwg.mxu0
        %7022 = vrot.lane.b32.xlu0 %v6637, 88
        %v7023 = vpop.permute.xlu0 %7022
        %v7025 = vsel %vm5478, %v6973, 0
        %v7028 = vsel %vm5603, %v7023, 0
        %7030 = vmatprep.subr.bf16.mxu0 0
        %7031 = vmatpush1.bf16.msra.mxu0 %v7028
        %7032 = vmatprep.subr.bf16.mxu0 0
        %7033 = vmatpush1.bf16.msra.mxu0 0
        %7034 = vmatprep.subr.bf16.mxu0 0
        %7035 = vmatpush1.bf16.msra.mxu0 0
        %7036 = vmatprep.subr.bf16.mxu0 0
        %7037 = vmatpush1.bf16.msra.mxu0 0
        %7038 = vmatprep.subr.bf16.mxu0 0
        %7039 = vmatpush1.bf16.msra.mxu0 0
        %7040 = vmatprep.subr.bf16.mxu0 0
        %7041 = vmatpush1.bf16.msra.mxu0 0
        %7042 = vmatprep.subr.bf16.mxu0 0
        %7043 = vmatpush1.bf16.msra.mxu0 0
        %7044 = vmatprep.subr.bf16.mxu0 0
        %7045 = vmatpush1.bf16.msra.mxu0 0
        %7046 = vmatprep.subr.bf16.mxu0 0
        %7047 = vmatpush1.bf16.msra.mxu0 0
        %7048 = vmatprep.subr.bf16.mxu0 0
        %7049 = vmatpush1.bf16.msra.mxu0 0
        %7050 = vmatprep.subr.bf16.mxu0 0
        %7051 = vmatpush1.bf16.msra.mxu0 0
        %7052 = vmatprep.subr.bf16.mxu0 0
        %7053 = vmatpush1.bf16.msra.mxu0 0
        %7054 = vmatprep.subr.bf16.mxu0 0
        %7055 = vmatpush1.bf16.msra.mxu0 0
        %7056 = vmatprep.subr.bf16.mxu0 0
        %7057 = vmatpush1.bf16.msra.mxu0 0
        %7058 = vmatprep.subr.bf16.mxu0 0
        %7059 = vmatpush1.bf16.msra.mxu0 0
        %7060 = vmatprep.subr.bf16.mxu0 0
        %7061 = vmatpush1.bf16.msra.mxu0 0
        %7062 = vmatprep.mubr.bf16.mxu0 0
        %7063 = vmatmul.mubr.bf16.gmra.mrb[0].mxu0 %v7025
        %v7064 = vpop.f32.mrb[0].mxu0
        %v7065 = vadd.f32 0.0, %v7064
        %v7066 = vpop.f32.mrb[0].mxu0
        %v7067 = vpop.f32.mrb[0].mxu0
        %v7068 = vpop.f32.mrb[0].mxu0
        %7069 = vdwg.mxu0
        %7070 = vrot.lane.b32.xlu0 %v6630, 112
        %v7071 = vpop.permute.xlu0 %7070
        %7072 = vrot.lane.b32.xlu0 %v6636, 112
        %v7073 = vpop.permute.xlu0 %7072
        %v7075 = vsel %vm5478, %v7071, 0
        %v7078 = vsel %vm5478, %v7073, 0
        %7080 = vmatprep.subr.bf16.mxu0 0
        %7081 = vmatpush1.bf16.xpose.msra.mxu0 %v7078
        %7082 = vmatprep.subr.bf16.mxu0 0
        %7083 = vmatpush1.bf16.xpose.msra.mxu0 0
        %7084 = vmatprep.subr.bf16.mxu0 0
        %7085 = vmatpush1.bf16.xpose.msra.mxu0 0
        %7086 = vmatprep.subr.bf16.mxu0 0
        %7087 = vmatpush1.bf16.xpose.msra.mxu0 0
        %7088 = vmatprep.subr.bf16.mxu0 0
        %7089 = vmatpush1.bf16.xpose.msra.mxu0 0
        %7090 = vmatprep.subr.bf16.mxu0 0
        %7091 = vmatpush1.bf16.xpose.msra.mxu0 0
        %7092 = vmatprep.subr.bf16.mxu0 0
        %7093 = vmatpush1.bf16.xpose.msra.mxu0 0
        %7094 = vmatprep.subr.bf16.mxu0 0
        %7095 = vmatpush1.bf16.xpose.msra.mxu0 0
        %7096 = vmatprep.subr.bf16.mxu0 0
        %7097 = vmatpush1.bf16.xpose.msra.mxu0 0
        %7098 = vmatprep.subr.bf16.mxu0 0
        %7099 = vmatpush1.bf16.xpose.msra.mxu0 0
        %7100 = vmatprep.subr.bf16.mxu0 0
        %7101 = vmatpush1.bf16.xpose.msra.mxu0 0
        %7102 = vmatprep.subr.bf16.mxu0 0
        %7103 = vmatpush1.bf16.xpose.msra.mxu0 0
        %7104 = vmatprep.subr.bf16.mxu0 0
        %7105 = vmatpush1.bf16.xpose.msra.mxu0 0
        %7106 = vmatprep.subr.bf16.mxu0 0
        %7107 = vmatpush1.bf16.xpose.msra.mxu0 0
        %7108 = vmatprep.subr.bf16.mxu0 0
        %7109 = vmatpush1.bf16.xpose.msra.mxu0 0
        %7110 = vmatprep.subr.bf16.mxu0 0
        %7111 = vmatpush1.bf16.xpose.msra.mxu0 0
        %7112 = vmatprep.mubr.bf16.mxu0 0
        %7113 = vmatmul.mubr.bf16.gmra.mrb[0].mxu0 %v7075
        %v7114 = vpop.f32.mrb[0].mxu0
        %v7115 = vadd.f32 0.0, %v7114
        %v7116 = vpop.f32.mrb[0].mxu0
        %v7117 = vpop.f32.mrb[0].mxu0
        %v7118 = vpop.f32.mrb[0].mxu0
        %7119 = vdwg.mxu0
        %7120 = vrot.lane.b32.xlu0 %v6631, 112
        %v7121 = vpop.permute.xlu0 %7120
        %7122 = vrot.lane.b32.xlu0 %v6637, 112
        %v7123 = vpop.permute.xlu0 %7122
        %v7125 = vsel %vm5478, %v7121, 0
        %v7128 = vsel %vm5478, %v7123, 0
        %7130 = vmatprep.subr.bf16.mxu0 0
        %7131 = vmatpush1.bf16.xpose.msra.mxu0 %v7128
        %7132 = vmatprep.subr.bf16.mxu0 0
        %7133 = vmatpush1.bf16.xpose.msra.mxu0 0
        %7134 = vmatprep.subr.bf16.mxu0 0
        %7135 = vmatpush1.bf16.xpose.msra.mxu0 0
        %7136 = vmatprep.subr.bf16.mxu0 0
        %7137 = vmatpush1.bf16.xpose.msra.mxu0 0
        %7138 = vmatprep.subr.bf16.mxu0 0
        %7139 = vmatpush1.bf16.xpose.msra.mxu0 0
        %7140 = vmatprep.subr.bf16.mxu0 0
        %7141 = vmatpush1.bf16.xpose.msra.mxu0 0
        %7142 = vmatprep.subr.bf16.mxu0 0
        %7143 = vmatpush1.bf16.xpose.msra.mxu0 0
        %7144 = vmatprep.subr.bf16.mxu0 0
        %7145 = vmatpush1.bf16.xpose.msra.mxu0 0
        %7146 = vmatprep.subr.bf16.mxu0 0
        %7147 = vmatpush1.bf16.xpose.msra.mxu0 0
        %7148 = vmatprep.subr.bf16.mxu0 0
        %7149 = vmatpush1.bf16.xpose.msra.mxu0 0
        %7150 = vmatprep.subr.bf16.mxu0 0
        %7151 = vmatpush1.bf16.xpose.msra.mxu0 0
        %7152 = vmatprep.subr.bf16.mxu0 0
        %7153 = vmatpush1.bf16.xpose.msra.mxu0 0
        %7154 = vmatprep.subr.bf16.mxu0 0
        %7155 = vmatpush1.bf16.xpose.msra.mxu0 0
        %7156 = vmatprep.subr.bf16.mxu0 0
        %7157 = vmatpush1.bf16.xpose.msra.mxu0 0
        %7158 = vmatprep.subr.bf16.mxu0 0
        %7159 = vmatpush1.bf16.xpose.msra.mxu0 0
        %7160 = vmatprep.subr.bf16.mxu0 0
        %7161 = vmatpush1.bf16.xpose.msra.mxu0 0
        %7162 = vmatprep.mubr.bf16.mxu0 0
        %7163 = vmatmul.mubr.bf16.gmra.mrb[0].mxu0 %v7125
        %v7164 = vpop.f32.mrb[0].mxu0
        %v7165 = vadd.f32 0.0, %v7164
        %v7166 = vpop.f32.mrb[0].mxu0
        %v7167 = vpop.f32.mrb[0].mxu0
        %v7168 = vpop.f32.mrb[0].mxu0
        %7169 = vdwg.mxu0
        %v7170 = vsel %vm5478, %v7115, -inf
        %7171 = vmax.xlane.f32.xlu0 %v7170
        %v7172 = vpop.xlane.xlu0 %7171
        %v7173 = vsel %vm5478, %v7165, -inf
        %7174 = vmax.xlane.f32.xlu0 %v7173
        %v7175 = vpop.xlane.xlu0 %7174
        %v7176 = vsub.f32 %v7115, %v7172
        %v7177 = vsub.f32 %v7165, %v7175
        %v7178 = vmul.f32 %v7176, 1.442695
        %v7179 = vpow.pop %v7178
        %v7180 = vmul.f32 %v7177, 1.442695
        %v7181 = vpow.pop %v7180
        %v7182 = vsel %vm5478, %v7179, 0.0
        %7183 = vadd.xlane.f32.xlu0 %v7182
        %v7184 = vpop.xlane.xlu0 %7183
        %v7185 = vsel %vm5478, %v7181, 0.0
        %7186 = vadd.xlane.f32.xlu0 %v7185
        %v7187 = vpop.xlane.xlu0 %7186
        %v7188 = vrcp.pop %v7184
        %v7189 = vrcp.pop %v7187
        %v7190 = vmul.f32 %v7179, %v7188
        %v7191 = vmul.f32 %v7181, %v7189
        %v7192 = vpack.c.bf16 %v7190, %v7190
        %v7193 = vpack.c.bf16 %v7191, %v7191
        %7194 = vrot.lane.b32.xlu0 %v6636, 80
        %v7195 = vpop.permute.xlu0 %7194
        %v7197 = vsel %vm5478, %v7192, 0
        %v7200 = vsel %vm5603, %v7195, 0
        %7202 = vmatprep.subr.bf16.mxu0 0
        %7203 = vmatpush1.bf16.msra.mxu0 %v7200
        %7204 = vmatprep.subr.bf16.mxu0 0
        %7205 = vmatpush1.bf16.msra.mxu0 0
        %7206 = vmatprep.subr.bf16.mxu0 0
        %7207 = vmatpush1.bf16.msra.mxu0 0
        %7208 = vmatprep.subr.bf16.mxu0 0
        %7209 = vmatpush1.bf16.msra.mxu0 0
        %7210 = vmatprep.subr.bf16.mxu0 0
        %7211 = vmatpush1.bf16.msra.mxu0 0
        %7212 = vmatprep.subr.bf16.mxu0 0
        %7213 = vmatpush1.bf16.msra.mxu0 0
        %7214 = vmatprep.subr.bf16.mxu0 0
        %7215 = vmatpush1.bf16.msra.mxu0 0
        %7216 = vmatprep.subr.bf16.mxu0 0
        %7217 = vmatpush1.bf16.msra.mxu0 0
        %7218 = vmatprep.subr.bf16.mxu0 0
        %7219 = vmatpush1.bf16.msra.mxu0 0
        %7220 = vmatprep.subr.bf16.mxu0 0
        %7221 = vmatpush1.bf16.msra.mxu0 0
        %7222 = vmatprep.subr.bf16.mxu0 0
        %7223 = vmatpush1.bf16.msra.mxu0 0
        %7224 = vmatprep.subr.bf16.mxu0 0
        %7225 = vmatpush1.bf16.msra.mxu0 0
        %7226 = vmatprep.subr.bf16.mxu0 0
        %7227 = vmatpush1.bf16.msra.mxu0 0
        %7228 = vmatprep.subr.bf16.mxu0 0
        %7229 = vmatpush1.bf16.msra.mxu0 0
        %7230 = vmatprep.subr.bf16.mxu0 0
        %7231 = vmatpush1.bf16.msra.mxu0 0
        %7232 = vmatprep.subr.bf16.mxu0 0
        %7233 = vmatpush1.bf16.msra.mxu0 0
        %7234 = vmatprep.mubr.bf16.mxu0 0
        %7235 = vmatmul.mubr.bf16.gmra.mrb[0].mxu0 %v7197
        %v7236 = vpop.f32.mrb[0].mxu0
        %v7237 = vadd.f32 0.0, %v7236
        %v7238 = vpop.f32.mrb[0].mxu0
        %v7239 = vpop.f32.mrb[0].mxu0
        %v7240 = vpop.f32.mrb[0].mxu0
        %7241 = vdwg.mxu0
        %7242 = vrot.lane.b32.xlu0 %v6637, 80
        %v7243 = vpop.permute.xlu0 %7242
        %v7245 = vsel %vm5478, %v7193, 0
        %v7248 = vsel %vm5603, %v7243, 0
        %7250 = vmatprep.subr.bf16.mxu0 0
        %7251 = vmatpush1.bf16.msra.mxu0 %v7248
        %7252 = vmatprep.subr.bf16.mxu0 0
        %7253 = vmatpush1.bf16.msra.mxu0 0
        %7254 = vmatprep.subr.bf16.mxu0 0
        %7255 = vmatpush1.bf16.msra.mxu0 0
        %7256 = vmatprep.subr.bf16.mxu0 0
        %7257 = vmatpush1.bf16.msra.mxu0 0
        %7258 = vmatprep.subr.bf16.mxu0 0
        %7259 = vmatpush1.bf16.msra.mxu0 0
        %7260 = vmatprep.subr.bf16.mxu0 0
        %7261 = vmatpush1.bf16.msra.mxu0 0
        %7262 = vmatprep.subr.bf16.mxu0 0
        %7263 = vmatpush1.bf16.msra.mxu0 0
        %7264 = vmatprep.subr.bf16.mxu0 0
        %7265 = vmatpush1.bf16.msra.mxu0 0
        %7266 = vmatprep.subr.bf16.mxu0 0
        %7267 = vmatpush1.bf16.msra.mxu0 0
        %7268 = vmatprep.subr.bf16.mxu0 0
        %7269 = vmatpush1.bf16.msra.mxu0 0
        %7270 = vmatprep.subr.bf16.mxu0 0
        %7271 = vmatpush1.bf16.msra.mxu0 0
        %7272 = vmatprep.subr.bf16.mxu0 0
        %7273 = vmatpush1.bf16.msra.mxu0 0
        %7274 = vmatprep.subr.bf16.mxu0 0
        %7275 = vmatpush1.bf16.msra.mxu0 0
        %7276 = vmatprep.subr.bf16.mxu0 0
        %7277 = vmatpush1.bf16.msra.mxu0 0
        %7278 = vmatprep.subr.bf16.mxu0 0
        %7279 = vmatpush1.bf16.msra.mxu0 0
        %7280 = vmatprep.subr.bf16.mxu0 0
        %7281 = vmatpush1.bf16.msra.mxu0 0
        %7282 = vmatprep.mubr.bf16.mxu0 0
        %7283 = vmatmul.mubr.bf16.gmra.mrb[0].mxu0 %v7245
        %v7284 = vpop.f32.mrb[0].mxu0
        %v7285 = vadd.f32 0.0, %v7284
        %v7286 = vpop.f32.mrb[0].mxu0
        %v7287 = vpop.f32.mrb[0].mxu0
        %v7288 = vpop.f32.mrb[0].mxu0
        %7289 = vdwg.mxu0
        %7290 = vrot.lane.b32.xlu0 %v6630, 104
        %v7291 = vpop.permute.xlu0 %7290
        %7292 = vrot.lane.b32.xlu0 %v6636, 104
        %v7293 = vpop.permute.xlu0 %7292
        %v7295 = vsel %vm5478, %v7291, 0
        %v7298 = vsel %vm5478, %v7293, 0
        %7300 = vmatprep.subr.bf16.mxu0 0
        %7301 = vmatpush1.bf16.xpose.msra.mxu0 %v7298
        %7302 = vmatprep.subr.bf16.mxu0 0
        %7303 = vmatpush1.bf16.xpose.msra.mxu0 0
        %7304 = vmatprep.subr.bf16.mxu0 0
        %7305 = vmatpush1.bf16.xpose.msra.mxu0 0
        %7306 = vmatprep.subr.bf16.mxu0 0
        %7307 = vmatpush1.bf16.xpose.msra.mxu0 0
        %7308 = vmatprep.subr.bf16.mxu0 0
        %7309 = vmatpush1.bf16.xpose.msra.mxu0 0
        %7310 = vmatprep.subr.bf16.mxu0 0
        %7311 = vmatpush1.bf16.xpose.msra.mxu0 0
        %7312 = vmatprep.subr.bf16.mxu0 0
        %7313 = vmatpush1.bf16.xpose.msra.mxu0 0
        %7314 = vmatprep.subr.bf16.mxu0 0
        %7315 = vmatpush1.bf16.xpose.msra.mxu0 0
        %7316 = vmatprep.subr.bf16.mxu0 0
        %7317 = vmatpush1.bf16.xpose.msra.mxu0 0
        %7318 = vmatprep.subr.bf16.mxu0 0
        %7319 = vmatpush1.bf16.xpose.msra.mxu0 0
        %7320 = vmatprep.subr.bf16.mxu0 0
        %7321 = vmatpush1.bf16.xpose.msra.mxu0 0
        %7322 = vmatprep.subr.bf16.mxu0 0
        %7323 = vmatpush1.bf16.xpose.msra.mxu0 0
        %7324 = vmatprep.subr.bf16.mxu0 0
        %7325 = vmatpush1.bf16.xpose.msra.mxu0 0
        %7326 = vmatprep.subr.bf16.mxu0 0
        %7327 = vmatpush1.bf16.xpose.msra.mxu0 0
        %7328 = vmatprep.subr.bf16.mxu0 0
        %7329 = vmatpush1.bf16.xpose.msra.mxu0 0
        %7330 = vmatprep.subr.bf16.mxu0 0
        %7331 = vmatpush1.bf16.xpose.msra.mxu0 0
        %7332 = vmatprep.mubr.bf16.mxu0 0
        %7333 = vmatmul.mubr.bf16.gmra.mrb[0].mxu0 %v7295
        %v7334 = vpop.f32.mrb[0].mxu0
        %v7335 = vadd.f32 0.0, %v7334
        %v7336 = vpop.f32.mrb[0].mxu0
        %v7337 = vpop.f32.mrb[0].mxu0
        %v7338 = vpop.f32.mrb[0].mxu0
        %7339 = vdwg.mxu0
        %7340 = vrot.lane.b32.xlu0 %v6631, 104
        %v7341 = vpop.permute.xlu0 %7340
        %7342 = vrot.lane.b32.xlu0 %v6637, 104
        %v7343 = vpop.permute.xlu0 %7342
        %v7345 = vsel %vm5478, %v7341, 0
        %v7348 = vsel %vm5478, %v7343, 0
        %7350 = vmatprep.subr.bf16.mxu0 0
        %7351 = vmatpush1.bf16.xpose.msra.mxu0 %v7348
        %7352 = vmatprep.subr.bf16.mxu0 0
        %7353 = vmatpush1.bf16.xpose.msra.mxu0 0
        %7354 = vmatprep.subr.bf16.mxu0 0
        %7355 = vmatpush1.bf16.xpose.msra.mxu0 0
        %7356 = vmatprep.subr.bf16.mxu0 0
        %7357 = vmatpush1.bf16.xpose.msra.mxu0 0
        %7358 = vmatprep.subr.bf16.mxu0 0
        %7359 = vmatpush1.bf16.xpose.msra.mxu0 0
        %7360 = vmatprep.subr.bf16.mxu0 0
        %7361 = vmatpush1.bf16.xpose.msra.mxu0 0
        %7362 = vmatprep.subr.bf16.mxu0 0
        %7363 = vmatpush1.bf16.xpose.msra.mxu0 0
        %7364 = vmatprep.subr.bf16.mxu0 0
        %7365 = vmatpush1.bf16.xpose.msra.mxu0 0
        %7366 = vmatprep.subr.bf16.mxu0 0
        %7367 = vmatpush1.bf16.xpose.msra.mxu0 0
        %7368 = vmatprep.subr.bf16.mxu0 0
        %7369 = vmatpush1.bf16.xpose.msra.mxu0 0
        %7370 = vmatprep.subr.bf16.mxu0 0
        %7371 = vmatpush1.bf16.xpose.msra.mxu0 0
        %7372 = vmatprep.subr.bf16.mxu0 0
        %7373 = vmatpush1.bf16.xpose.msra.mxu0 0
        %7374 = vmatprep.subr.bf16.mxu0 0
        %7375 = vmatpush1.bf16.xpose.msra.mxu0 0
        %7376 = vmatprep.subr.bf16.mxu0 0
        %7377 = vmatpush1.bf16.xpose.msra.mxu0 0
        %7378 = vmatprep.subr.bf16.mxu0 0
        %7379 = vmatpush1.bf16.xpose.msra.mxu0 0
        %7380 = vmatprep.subr.bf16.mxu0 0
        %7381 = vmatpush1.bf16.xpose.msra.mxu0 0
        %7382 = vmatprep.mubr.bf16.mxu0 0
        %7383 = vmatmul.mubr.bf16.gmra.mrb[0].mxu0 %v7345
        %v7384 = vpop.f32.mrb[0].mxu0
        %v7385 = vadd.f32 0.0, %v7384
        %v7386 = vpop.f32.mrb[0].mxu0
        %v7387 = vpop.f32.mrb[0].mxu0
        %v7388 = vpop.f32.mrb[0].mxu0
        %7389 = vdwg.mxu0
        %v7390 = vsel %vm5478, %v7335, -inf
        %7391 = vmax.xlane.f32.xlu0 %v7390
        %v7392 = vpop.xlane.xlu0 %7391
        %v7393 = vsel %vm5478, %v7385, -inf
        %7394 = vmax.xlane.f32.xlu0 %v7393
        %v7395 = vpop.xlane.xlu0 %7394
        %v7396 = vsub.f32 %v7335, %v7392
        %v7397 = vsub.f32 %v7385, %v7395
        %v7398 = vmul.f32 %v7396, 1.442695
        %v7399 = vpow.pop %v7398
        %v7400 = vmul.f32 %v7397, 1.442695
        %v7401 = vpow.pop %v7400
        %v7402 = vsel %vm5478, %v7399, 0.0
        %7403 = vadd.xlane.f32.xlu0 %v7402
        %v7404 = vpop.xlane.xlu0 %7403
        %v7405 = vsel %vm5478, %v7401, 0.0
        %7406 = vadd.xlane.f32.xlu0 %v7405
        %v7407 = vpop.xlane.xlu0 %7406
        %v7408 = vrcp.pop %v7404
        %v7409 = vrcp.pop %v7407
        %v7410 = vmul.f32 %v7399, %v7408
        %v7411 = vmul.f32 %v7401, %v7409
        %v7412 = vpack.c.bf16 %v7410, %v7410
        %v7413 = vpack.c.bf16 %v7411, %v7411
        %7414 = vrot.lane.b32.xlu0 %v6636, 72
        %v7415 = vpop.permute.xlu0 %7414
        %v7417 = vsel %vm5478, %v7412, 0
        %v7420 = vsel %vm5603, %v7415, 0
        %7422 = vmatprep.subr.bf16.mxu0 0
        %7423 = vmatpush1.bf16.msra.mxu0 %v7420
        %7424 = vmatprep.subr.bf16.mxu0 0
        %7425 = vmatpush1.bf16.msra.mxu0 0
        %7426 = vmatprep.subr.bf16.mxu0 0
        %7427 = vmatpush1.bf16.msra.mxu0 0
        %7428 = vmatprep.subr.bf16.mxu0 0
        %7429 = vmatpush1.bf16.msra.mxu0 0
        %7430 = vmatprep.subr.bf16.mxu0 0
        %7431 = vmatpush1.bf16.msra.mxu0 0
        %7432 = vmatprep.subr.bf16.mxu0 0
        %7433 = vmatpush1.bf16.msra.mxu0 0
        %7434 = vmatprep.subr.bf16.mxu0 0
        %7435 = vmatpush1.bf16.msra.mxu0 0
        %7436 = vmatprep.subr.bf16.mxu0 0
        %7437 = vmatpush1.bf16.msra.mxu0 0
        %7438 = vmatprep.subr.bf16.mxu0 0
        %7439 = vmatpush1.bf16.msra.mxu0 0
        %7440 = vmatprep.subr.bf16.mxu0 0
        %7441 = vmatpush1.bf16.msra.mxu0 0
        %7442 = vmatprep.subr.bf16.mxu0 0
        %7443 = vmatpush1.bf16.msra.mxu0 0
        %7444 = vmatprep.subr.bf16.mxu0 0
        %7445 = vmatpush1.bf16.msra.mxu0 0
        %7446 = vmatprep.subr.bf16.mxu0 0
        %7447 = vmatpush1.bf16.msra.mxu0 0
        %7448 = vmatprep.subr.bf16.mxu0 0
        %7449 = vmatpush1.bf16.msra.mxu0 0
        %7450 = vmatprep.subr.bf16.mxu0 0
        %7451 = vmatpush1.bf16.msra.mxu0 0
        %7452 = vmatprep.subr.bf16.mxu0 0
        %7453 = vmatpush1.bf16.msra.mxu0 0
        %7454 = vmatprep.mubr.bf16.mxu0 0
        %7455 = vmatmul.mubr.bf16.gmra.mrb[0].mxu0 %v7417
        %v7456 = vpop.f32.mrb[0].mxu0
        %v7457 = vadd.f32 0.0, %v7456
        %v7458 = vpop.f32.mrb[0].mxu0
        %v7459 = vpop.f32.mrb[0].mxu0
        %v7460 = vpop.f32.mrb[0].mxu0
        %7461 = vdwg.mxu0
        %7462 = vrot.lane.b32.xlu0 %v6637, 72
        %v7463 = vpop.permute.xlu0 %7462
        %v7465 = vsel %vm5478, %v7413, 0
        %v7468 = vsel %vm5603, %v7463, 0
        %7470 = vmatprep.subr.bf16.mxu0 0
        %7471 = vmatpush1.bf16.msra.mxu0 %v7468
        %7472 = vmatprep.subr.bf16.mxu0 0
        %7473 = vmatpush1.bf16.msra.mxu0 0
        %7474 = vmatprep.subr.bf16.mxu0 0
        %7475 = vmatpush1.bf16.msra.mxu0 0
        %7476 = vmatprep.subr.bf16.mxu0 0
        %7477 = vmatpush1.bf16.msra.mxu0 0
        %7478 = vmatprep.subr.bf16.mxu0 0
        %7479 = vmatpush1.bf16.msra.mxu0 0
        %7480 = vmatprep.subr.bf16.mxu0 0
        %7481 = vmatpush1.bf16.msra.mxu0 0
        %7482 = vmatprep.subr.bf16.mxu0 0
        %7483 = vmatpush1.bf16.msra.mxu0 0
        %7484 = vmatprep.subr.bf16.mxu0 0
        %7485 = vmatpush1.bf16.msra.mxu0 0
        %7486 = vmatprep.subr.bf16.mxu0 0
        %7487 = vmatpush1.bf16.msra.mxu0 0
        %7488 = vmatprep.subr.bf16.mxu0 0
        %7489 = vmatpush1.bf16.msra.mxu0 0
        %7490 = vmatprep.subr.bf16.mxu0 0
        %7491 = vmatpush1.bf16.msra.mxu0 0
        %7492 = vmatprep.subr.bf16.mxu0 0
        %7493 = vmatpush1.bf16.msra.mxu0 0
        %7494 = vmatprep.subr.bf16.mxu0 0
        %7495 = vmatpush1.bf16.msra.mxu0 0
        %7496 = vmatprep.subr.bf16.mxu0 0
        %7497 = vmatpush1.bf16.msra.mxu0 0
        %7498 = vmatprep.subr.bf16.mxu0 0
        %7499 = vmatpush1.bf16.msra.mxu0 0
        %7500 = vmatprep.subr.bf16.mxu0 0
        %7501 = vmatpush1.bf16.msra.mxu0 0
        %7502 = vmatprep.mubr.bf16.mxu0 0
        %7503 = vmatmul.mubr.bf16.gmra.mrb[0].mxu0 %v7465
        %v7504 = vpop.f32.mrb[0].mxu0
        %v7505 = vadd.f32 0.0, %v7504
        %v7506 = vpop.f32.mrb[0].mxu0
        %v7507 = vpop.f32.mrb[0].mxu0
        %v7508 = vpop.f32.mrb[0].mxu0
        %7509 = vdwg.mxu0
        %7512 = vrot.lane.b32.xlu0 %v7017, 8
        %v7513 = vpop.permute.xlu0 %7512
        %7514 = vrot.lane.b32.xlu0 %v7065, 8
        %v7515 = vpop.permute.xlu0 %7514
        %7520 = vrot.lane.b32.xlu0 %v7237, 16
        %v7521 = vpop.permute.xlu0 %7520
        %7522 = vrot.lane.b32.xlu0 %v7285, 16
        %v7523 = vpop.permute.xlu0 %7522
        %7528 = vrot.lane.b32.xlu0 %v7457, 24
        %v7529 = vpop.permute.xlu0 %7528
        %7530 = vrot.lane.b32.xlu0 %v7505, 24
        %v7531 = vpop.permute.xlu0 %7530
        %v7534 = vsel %vm5478, %v6797, %v7513
        %v7535 = vsel %vm5478, %v6845, %v7515
        %v7536 = vsel %vm6381, %v7534, %v7521
        %v7537 = vsel %vm6381, %v7535, %v7523
        %v7538 = vsel %vm6384, %v7536, %v7529
        %v7539 = vsel %vm6384, %v7537, %v7531
        %v7540 = vpack.c.bf16 %v7539, %v7538
        %v7542 = vlaneseq
        %v7543 = vshrl.u32 %v7542, 7
        %v7544 = vsub.s32 0, %v7543
        %v7545 = vrot.slane %v6506, %v7544
        %v7551 = vunpack.c.l.b16 %v6502
        %v7552 = vunpack.c.l.b16 %v6503
        %v7553 = vunpack.c.l.b16 %v6504
        %v7554 = vunpack.c.l.b16 %v6505
        %v7555 = vpack.c.b16 %v7552, %v7551
        %v7556 = vpack.c.b16 %v7554, %v7553
        %v7560 = vsel %vm5418, %v7540, 0
        %7562 = vmatprep.subr.bf16.mxu0 0
        %7563 = vmatpush1.bf16.msra.mxu0 %v7555
        %7564 = vmatprep.subr.bf16.mxu0 0
        %7565 = vmatpush1.bf16.msra.mxu0 %v7556
        %7566 = vmatprep.subr.bf16.mxu0 0
        %7567 = vmatpush1.bf16.msra.mxu0 0
        %7568 = vmatprep.subr.bf16.mxu0 0
        %7569 = vmatpush1.bf16.msra.mxu0 0
        %7570 = vmatprep.subr.bf16.mxu0 0
        %7571 = vmatpush1.bf16.msra.mxu0 0
        %7572 = vmatprep.subr.bf16.mxu0 0
        %7573 = vmatpush1.bf16.msra.mxu0 0
        %7574 = vmatprep.subr.bf16.mxu0 0
        %7575 = vmatpush1.bf16.msra.mxu0 0
        %7576 = vmatprep.subr.bf16.mxu0 0
        %7577 = vmatpush1.bf16.msra.mxu0 0
        %7578 = vmatprep.subr.bf16.mxu0 0
        %7579 = vmatpush1.bf16.msra.mxu0 0
        %7580 = vmatprep.subr.bf16.mxu0 0
        %7581 = vmatpush1.bf16.msra.mxu0 0
        %7582 = vmatprep.subr.bf16.mxu0 0
        %7583 = vmatpush1.bf16.msra.mxu0 0
        %7584 = vmatprep.subr.bf16.mxu0 0
        %7585 = vmatpush1.bf16.msra.mxu0 0
        %7586 = vmatprep.subr.bf16.mxu0 0
        %7587 = vmatpush1.bf16.msra.mxu0 0
        %7588 = vmatprep.subr.bf16.mxu0 0
        %7589 = vmatpush1.bf16.msra.mxu0 0
        %7590 = vmatprep.subr.bf16.mxu0 0
        %7591 = vmatpush1.bf16.msra.mxu0 0
        %7592 = vmatprep.subr.bf16.mxu0 0
        %7593 = vmatpush1.bf16.msra.mxu0 0
        %7594 = vmatprep.mubr.bf16.mxu0 0
        %7595 = vmatmul.mubr.bf16.gmra.mrb[0].mxu0 %v7560
        %v7596 = vpop.f32.mrb[0].mxu0
        %v7597 = vadd.f32 %v7545, %v7596
        %v7598 = vpop.f32.mrb[0].mxu0
        %v7599 = vpop.f32.mrb[0].mxu0
        %v7600 = vadd.f32 %v7545, %v7599
        %v7601 = vpop.f32.mrb[0].mxu0
        %7602 = vdwg.mxu0
        %v7603 = vadd.f32 %v6495, %v7597
        %v7604 = vadd.f32 %v6496, %v7600
        %v7605 = vld [vmem:[%s2052] sm:$0x1]
        %v7606 = vld [vmem:[%s2061] sm:$0x1]
        %v7607 = vsel %vm5418, %v7603, 0.0
        %7608 = vadd.xlane.f32.xlu0 %v7607
        %v7609 = vpop.xlane.xlu0 %7608
        %v7610 = vsel %vm5418, %v7604, 0.0
        %7611 = vadd.xlane.f32.xlu0 %v7610
        %v7612 = vpop.xlane.xlu0 %7611
        %v7613 = vmul.f32 %v7609, %v6460
        %v7614 = vmul.f32 %v7612, %v6460
        %v7615 = vsub.f32 %v7603, %v7613
        %v7616 = vsub.f32 %v7604, %v7614
        %v7617 = vmul.f32 %v7615, %v7615
        %v7618 = vmul.f32 %v7616, %v7616
        %v7619 = vsel %vm5418, %v7617, 0.0
        %7620 = vadd.xlane.f32.xlu0 %v7619
        %v7621 = vpop.xlane.xlu0 %7620
        %v7622 = vsel %vm5418, %v7618, 0.0
        %7623 = vadd.xlane.f32.xlu0 %v7622
        %v7624 = vpop.xlane.xlu0 %7623
        %v7625 = vmul.f32 %v7621, %v6460
        %v7626 = vmul.f32 %v7624, %v6460
        %v7627 = vadd.f32 %v7625, 1e-05
        %v7628 = vadd.f32 %v7626, 1e-05
        %v7629 = vrsqrt.pop %v7627
        %v7630 = vrsqrt.pop %v7628
        %v7631 = vmul.f32 %v7615, %v7629
        %v7632 = vmul.f32 %v7616, %v7630
        %v7634 = vlaneseq
        %v7635 = vshrl.u32 %v7634, 7
        %v7636 = vsub.s32 0, %v7635
        %v7637 = vrot.slane %v7605, %v7636
        %v7639 = vmul.f32 %v7631, %v7637
        %v7640 = vmul.f32 %v7632, %v7637
        %v7642 = vlaneseq
        %v7643 = vshrl.u32 %v7642, 7
        %v7644 = vsub.s32 0, %v7643
        %v7645 = vrot.slane %v7606, %v7644
        %v7647 = vadd.f32 %v7639, %v7645
        %v7648 = vadd.f32 %v7640, %v7645
        %v7649 = vld [vmem:[%s2072] sm:$0xff]
        %v7650 = vld [vmem:[%s2072 + $0x8] sm:$0xff]
        %v7651 = vld [vmem:[%s2072 + $0x10] sm:$0xff]
        %v7652 = vld [vmem:[%s2072 + $0x18] sm:$0xff]
        %v7653 = vld [vmem:[%s2072 + $0x20] sm:$0xff]
        %v7654 = vld [vmem:[%s2072 + $0x28] sm:$0xff]
        %v7655 = vld [vmem:[%s2072 + $0x30] sm:$0xff]
        %v7656 = vld [vmem:[%s2072 + $0x38] sm:$0xff]
        %v7657 = vld [vmem:[%s2072 + $0x40] sm:$0xff]
        %v7658 = vld [vmem:[%s2072 + $0x48] sm:$0xff]
        %v7659 = vld [vmem:[%s2072 + $0x50] sm:$0xff]
        %v7660 = vld [vmem:[%s2072 + $0x58] sm:$0xff]
        %v7661 = vld [vmem:[%s2072 + $0x60] sm:$0xff]
        %v7662 = vld [vmem:[%s2072 + $0x68] sm:$0xff]
        %v7663 = vld [vmem:[%s2072 + $0x70] sm:$0xff]
        %v7664 = vld [vmem:[%s2072 + $0x78] sm:$0xff]
        %v7665 = vld [vmem:[%s2072 + $0x80] sm:$0xff]
        %v7666 = vld [vmem:[%s2072 + $0x88] sm:$0xff]
        %v7667 = vld [vmem:[%s2072 + $0x90] sm:$0xff]
        %v7668 = vld [vmem:[%s2072 + $0x98] sm:$0xff]
        %v7669 = vld [vmem:[%s2072 + $0xa0] sm:$0xff]
        %v7670 = vld [vmem:[%s2072 + $0xa8] sm:$0xff]
        %v7671 = vld [vmem:[%s2072 + $0xb0] sm:$0xff]
        %v7672 = vld [vmem:[%s2072 + $0xb8] sm:$0xff]
        %v7673 = vld [vmem:[%s2072 + $0xc0] sm:$0xff]
        %v7674 = vld [vmem:[%s2072 + $0xc8] sm:$0xff]
        %v7675 = vld [vmem:[%s2072 + $0xd0] sm:$0xff]
        %v7676 = vld [vmem:[%s2072 + $0xd8] sm:$0xff]
        %v7677 = vld [vmem:[%s2072 + $0xe0] sm:$0xff]
        %v7678 = vld [vmem:[%s2072 + $0xe8] sm:$0xff]
        %v7679 = vld [vmem:[%s2072 + $0xf0] sm:$0xff]
        %v7680 = vld [vmem:[%s2072 + $0xf8] sm:$0xff]
        %v7681 = vld [vmem:[%s2082] sm:$0xff]
        %v7682 = vld [vmem:[%s2082 + $0x8] sm:$0xff]
        %v7683 = vld [vmem:[%s2093] sm:$0xf]
        %v7684 = vld [vmem:[%s2093 + $0x4] sm:$0xf]
        %v7685 = vld [vmem:[%s2093 + $0x8] sm:$0xf]
        %v7686 = vld [vmem:[%s2093 + $0xc] sm:$0xf]
        %v7687 = vld [vmem:[%s2093 + $0x10] sm:$0xf]
        %v7688 = vld [vmem:[%s2093 + $0x14] sm:$0xf]
        %v7689 = vld [vmem:[%s2093 + $0x18] sm:$0xf]
        %v7690 = vld [vmem:[%s2093 + $0x1c] sm:$0xf]
        %v7691 = vld [vmem:[%s2093 + $0x20] sm:$0xf]
        %v7692 = vld [vmem:[%s2093 + $0x24] sm:$0xf]
        %v7693 = vld [vmem:[%s2093 + $0x28] sm:$0xf]
        %v7694 = vld [vmem:[%s2093 + $0x2c] sm:$0xf]
        %v7695 = vld [vmem:[%s2093 + $0x30] sm:$0xf]
        %v7696 = vld [vmem:[%s2093 + $0x34] sm:$0xf]
        %v7697 = vld [vmem:[%s2093 + $0x38] sm:$0xf]
        %v7698 = vld [vmem:[%s2093 + $0x3c] sm:$0xf]
        %v7699 = vld [vmem:[%s2093 + $0x40] sm:$0xf]
        %v7700 = vld [vmem:[%s2093 + $0x44] sm:$0xf]
        %v7701 = vld [vmem:[%s2093 + $0x48] sm:$0xf]
        %v7702 = vld [vmem:[%s2093 + $0x4c] sm:$0xf]
        %v7703 = vld [vmem:[%s2093 + $0x50] sm:$0xf]
        %v7704 = vld [vmem:[%s2093 + $0x54] sm:$0xf]
        %v7705 = vld [vmem:[%s2093 + $0x58] sm:$0xf]
        %v7706 = vld [vmem:[%s2093 + $0x5c] sm:$0xf]
        %v7707 = vld [vmem:[%s2093 + $0x60] sm:$0xf]
        %v7708 = vld [vmem:[%s2093 + $0x64] sm:$0xf]
        %v7709 = vld [vmem:[%s2093 + $0x68] sm:$0xf]
        %v7710 = vld [vmem:[%s2093 + $0x6c] sm:$0xf]
        %v7711 = vld [vmem:[%s2093 + $0x70] sm:$0xf]
        %v7712 = vld [vmem:[%s2093 + $0x74] sm:$0xf]
        %v7713 = vld [vmem:[%s2093 + $0x78] sm:$0xf]
        %v7714 = vld [vmem:[%s2093 + $0x7c] sm:$0xf]
        %v7715 = vld [vmem:[%s2093 + $0x80] sm:$0xf]
        %v7716 = vld [vmem:[%s2093 + $0x84] sm:$0xf]
        %v7717 = vld [vmem:[%s2093 + $0x88] sm:$0xf]
        %v7718 = vld [vmem:[%s2093 + $0x8c] sm:$0xf]
        %v7719 = vld [vmem:[%s2093 + $0x90] sm:$0xf]
        %v7720 = vld [vmem:[%s2093 + $0x94] sm:$0xf]
        %v7721 = vld [vmem:[%s2093 + $0x98] sm:$0xf]
        %v7722 = vld [vmem:[%s2093 + $0x9c] sm:$0xf]
        %v7723 = vld [vmem:[%s2093 + $0xa0] sm:$0xf]
        %v7724 = vld [vmem:[%s2093 + $0xa4] sm:$0xf]
        %v7725 = vld [vmem:[%s2093 + $0xa8] sm:$0xf]
        %v7726 = vld [vmem:[%s2093 + $0xac] sm:$0xf]
        %v7727 = vld [vmem:[%s2093 + $0xb0] sm:$0xf]
        %v7728 = vld [vmem:[%s2093 + $0xb4] sm:$0xf]
        %v7729 = vld [vmem:[%s2093 + $0xb8] sm:$0xf]
        %v7730 = vld [vmem:[%s2093 + $0xbc] sm:$0xf]
        %v7731 = vld [vmem:[%s2093 + $0xc0] sm:$0xf]
        %v7732 = vld [vmem:[%s2093 + $0xc4] sm:$0xf]
        %v7733 = vld [vmem:[%s2093 + $0xc8] sm:$0xf]
        %v7734 = vld [vmem:[%s2093 + $0xcc] sm:$0xf]
        %v7735 = vld [vmem:[%s2093 + $0xd0] sm:$0xf]
        %v7736 = vld [vmem:[%s2093 + $0xd4] sm:$0xf]
        %v7737 = vld [vmem:[%s2093 + $0xd8] sm:$0xf]
        %v7738 = vld [vmem:[%s2093 + $0xdc] sm:$0xf]
        %v7739 = vld [vmem:[%s2093 + $0xe0] sm:$0xf]
        %v7740 = vld [vmem:[%s2093 + $0xe4] sm:$0xf]
        %v7741 = vld [vmem:[%s2093 + $0xe8] sm:$0xf]
        %v7742 = vld [vmem:[%s2093 + $0xec] sm:$0xf]
        %v7743 = vld [vmem:[%s2093 + $0xf0] sm:$0xf]
        %v7744 = vld [vmem:[%s2093 + $0xf4] sm:$0xf]
        %v7745 = vld [vmem:[%s2093 + $0xf8] sm:$0xf]
        %v7746 = vld [vmem:[%s2093 + $0xfc] sm:$0xf]
        %v7747 = vld [vmem:[%s2093 + $0x100] sm:$0xf]
        %v7748 = vld [vmem:[%s2093 + $0x104] sm:$0xf]
        %v7749 = vld [vmem:[%s2093 + $0x108] sm:$0xf]
        %v7750 = vld [vmem:[%s2093 + $0x10c] sm:$0xf]
        %v7751 = vld [vmem:[%s2093 + $0x110] sm:$0xf]
        %v7752 = vld [vmem:[%s2093 + $0x114] sm:$0xf]
        %v7753 = vld [vmem:[%s2093 + $0x118] sm:$0xf]
        %v7754 = vld [vmem:[%s2093 + $0x11c] sm:$0xf]
        %v7755 = vld [vmem:[%s2093 + $0x120] sm:$0xf]
        %v7756 = vld [vmem:[%s2093 + $0x124] sm:$0xf]
        %v7757 = vld [vmem:[%s2093 + $0x128] sm:$0xf]
        %v7758 = vld [vmem:[%s2093 + $0x12c] sm:$0xf]
        %v7759 = vld [vmem:[%s2093 + $0x130] sm:$0xf]
        %v7760 = vld [vmem:[%s2093 + $0x134] sm:$0xf]
        %v7761 = vld [vmem:[%s2093 + $0x138] sm:$0xf]
        %v7762 = vld [vmem:[%s2093 + $0x13c] sm:$0xf]
        %v7763 = vld [vmem:[%s2093 + $0x140] sm:$0xf]
        %v7764 = vld [vmem:[%s2093 + $0x144] sm:$0xf]
        %v7765 = vld [vmem:[%s2093 + $0x148] sm:$0xf]
        %v7766 = vld [vmem:[%s2093 + $0x14c] sm:$0xf]
        %v7767 = vld [vmem:[%s2093 + $0x150] sm:$0xf]
        %v7768 = vld [vmem:[%s2093 + $0x154] sm:$0xf]
        %v7769 = vld [vmem:[%s2093 + $0x158] sm:$0xf]
        %v7770 = vld [vmem:[%s2093 + $0x15c] sm:$0xf]
        %v7771 = vld [vmem:[%s2093 + $0x160] sm:$0xf]
        %v7772 = vld [vmem:[%s2093 + $0x164] sm:$0xf]
        %v7773 = vld [vmem:[%s2093 + $0x168] sm:$0xf]
        %v7774 = vld [vmem:[%s2093 + $0x16c] sm:$0xf]
        %v7775 = vld [vmem:[%s2093 + $0x170] sm:$0xf]
        %v7776 = vld [vmem:[%s2093 + $0x174] sm:$0xf]
        %v7777 = vld [vmem:[%s2093 + $0x178] sm:$0xf]
        %v7778 = vld [vmem:[%s2093 + $0x17c] sm:$0xf]
        %v7779 = vld [vmem:[%s2093 + $0x180] sm:$0xf]
        %v7780 = vld [vmem:[%s2093 + $0x184] sm:$0xf]
        %v7781 = vld [vmem:[%s2093 + $0x188] sm:$0xf]
        %v7782 = vld [vmem:[%s2093 + $0x18c] sm:$0xf]
        %v7783 = vld [vmem:[%s2093 + $0x190] sm:$0xf]
        %v7784 = vld [vmem:[%s2093 + $0x194] sm:$0xf]
        %v7785 = vld [vmem:[%s2093 + $0x198] sm:$0xf]
        %v7786 = vld [vmem:[%s2093 + $0x19c] sm:$0xf]
        %v7787 = vld [vmem:[%s2093 + $0x1a0] sm:$0xf]
        %v7788 = vld [vmem:[%s2093 + $0x1a4] sm:$0xf]
        %v7789 = vld [vmem:[%s2093 + $0x1a8] sm:$0xf]
        %v7790 = vld [vmem:[%s2093 + $0x1ac] sm:$0xf]
        %v7791 = vld [vmem:[%s2093 + $0x1b0] sm:$0xf]
        %v7792 = vld [vmem:[%s2093 + $0x1b4] sm:$0xf]
        %v7793 = vld [vmem:[%s2093 + $0x1b8] sm:$0xf]
        %v7794 = vld [vmem:[%s2093 + $0x1bc] sm:$0xf]
        %v7795 = vld [vmem:[%s2093 + $0x1c0] sm:$0xf]
        %v7796 = vld [vmem:[%s2093 + $0x1c4] sm:$0xf]
        %v7797 = vld [vmem:[%s2093 + $0x1c8] sm:$0xf]
        %v7798 = vld [vmem:[%s2093 + $0x1cc] sm:$0xf]
        %v7799 = vld [vmem:[%s2093 + $0x1d0] sm:$0xf]
        %v7800 = vld [vmem:[%s2093 + $0x1d4] sm:$0xf]
        %v7801 = vld [vmem:[%s2093 + $0x1d8] sm:$0xf]
        %v7802 = vld [vmem:[%s2093 + $0x1dc] sm:$0xf]
        %v7803 = vld [vmem:[%s2093 + $0x1e0] sm:$0xf]
        %v7804 = vld [vmem:[%s2093 + $0x1e4] sm:$0xf]
        %v7805 = vld [vmem:[%s2093 + $0x1e8] sm:$0xf]
        %v7806 = vld [vmem:[%s2093 + $0x1ec] sm:$0xf]
        %v7807 = vld [vmem:[%s2093 + $0x1f0] sm:$0xf]
        %v7808 = vld [vmem:[%s2093 + $0x1f4] sm:$0xf]
        %v7809 = vld [vmem:[%s2093 + $0x1f8] sm:$0xf]
        %v7810 = vld [vmem:[%s2093 + $0x1fc] sm:$0xf]
        %v7811 = vld [vmem:[%s2093 + $0x200] sm:$0xf]
        %v7812 = vld [vmem:[%s2093 + $0x204] sm:$0xf]
        %v7813 = vld [vmem:[%s2093 + $0x208] sm:$0xf]
        %v7814 = vld [vmem:[%s2093 + $0x20c] sm:$0xf]
        %v7815 = vld [vmem:[%s2093 + $0x210] sm:$0xf]
        %v7816 = vld [vmem:[%s2093 + $0x214] sm:$0xf]
        %v7817 = vld [vmem:[%s2093 + $0x218] sm:$0xf]
        %v7818 = vld [vmem:[%s2093 + $0x21c] sm:$0xf]
        %v7819 = vld [vmem:[%s2093 + $0x220] sm:$0xf]
        %v7820 = vld [vmem:[%s2093 + $0x224] sm:$0xf]
        %v7821 = vld [vmem:[%s2093 + $0x228] sm:$0xf]
        %v7822 = vld [vmem:[%s2093 + $0x22c] sm:$0xf]
        %v7823 = vld [vmem:[%s2093 + $0x230] sm:$0xf]
        %v7824 = vld [vmem:[%s2093 + $0x234] sm:$0xf]
        %v7825 = vld [vmem:[%s2093 + $0x238] sm:$0xf]
        %v7826 = vld [vmem:[%s2093 + $0x23c] sm:$0xf]
        %v7827 = vld [vmem:[%s2093 + $0x240] sm:$0xf]
        %v7828 = vld [vmem:[%s2093 + $0x244] sm:$0xf]
        %v7829 = vld [vmem:[%s2093 + $0x248] sm:$0xf]
        %v7830 = vld [vmem:[%s2093 + $0x24c] sm:$0xf]
        %v7831 = vld [vmem:[%s2093 + $0x250] sm:$0xf]
        %v7832 = vld [vmem:[%s2093 + $0x254] sm:$0xf]
        %v7833 = vld [vmem:[%s2093 + $0x258] sm:$0xf]
        %v7834 = vld [vmem:[%s2093 + $0x25c] sm:$0xf]
        %v7835 = vld [vmem:[%s2093 + $0x260] sm:$0xf]
        %v7836 = vld [vmem:[%s2093 + $0x264] sm:$0xf]
        %v7837 = vld [vmem:[%s2093 + $0x268] sm:$0xf]
        %v7838 = vld [vmem:[%s2093 + $0x26c] sm:$0xf]
        %v7839 = vld [vmem:[%s2093 + $0x270] sm:$0xf]
        %v7840 = vld [vmem:[%s2093 + $0x274] sm:$0xf]
        %v7841 = vld [vmem:[%s2093 + $0x278] sm:$0xf]
        %v7842 = vld [vmem:[%s2093 + $0x27c] sm:$0xf]
        %v7843 = vld [vmem:[%s2093 + $0x280] sm:$0xf]
        %v7844 = vld [vmem:[%s2093 + $0x284] sm:$0xf]
        %v7845 = vld [vmem:[%s2093 + $0x288] sm:$0xf]
        %v7846 = vld [vmem:[%s2093 + $0x28c] sm:$0xf]
        %v7847 = vld [vmem:[%s2093 + $0x290] sm:$0xf]
        %v7848 = vld [vmem:[%s2093 + $0x294] sm:$0xf]
        %v7849 = vld [vmem:[%s2093 + $0x298] sm:$0xf]
        %v7850 = vld [vmem:[%s2093 + $0x29c] sm:$0xf]
        %v7851 = vld [vmem:[%s2093 + $0x2a0] sm:$0xf]
        %v7852 = vld [vmem:[%s2093 + $0x2a4] sm:$0xf]
        %v7853 = vld [vmem:[%s2093 + $0x2a8] sm:$0xf]
        %v7854 = vld [vmem:[%s2093 + $0x2ac] sm:$0xf]
        %v7855 = vld [vmem:[%s2093 + $0x2b0] sm:$0xf]
        %v7856 = vld [vmem:[%s2093 + $0x2b4] sm:$0xf]
        %v7857 = vld [vmem:[%s2093 + $0x2b8] sm:$0xf]
        %v7858 = vld [vmem:[%s2093 + $0x2bc] sm:$0xf]
        %v7859 = vld [vmem:[%s2093 + $0x2c0] sm:$0xf]
        %v7860 = vld [vmem:[%s2093 + $0x2c4] sm:$0xf]
        %v7861 = vld [vmem:[%s2093 + $0x2c8] sm:$0xf]
        %v7862 = vld [vmem:[%s2093 + $0x2cc] sm:$0xf]
        %v7863 = vld [vmem:[%s2093 + $0x2d0] sm:$0xf]
        %v7864 = vld [vmem:[%s2093 + $0x2d4] sm:$0xf]
        %v7865 = vld [vmem:[%s2093 + $0x2d8] sm:$0xf]
        %v7866 = vld [vmem:[%s2093 + $0x2dc] sm:$0xf]
        %v7867 = vld [vmem:[%s2093 + $0x2e0] sm:$0xf]
        %v7868 = vld [vmem:[%s2093 + $0x2e4] sm:$0xf]
        %v7869 = vld [vmem:[%s2093 + $0x2e8] sm:$0xf]
        %v7870 = vld [vmem:[%s2093 + $0x2ec] sm:$0xf]
        %v7871 = vld [vmem:[%s2093 + $0x2f0] sm:$0xf]
        %v7872 = vld [vmem:[%s2093 + $0x2f4] sm:$0xf]
        %v7873 = vld [vmem:[%s2093 + $0x2f8] sm:$0xf]
        %v7874 = vld [vmem:[%s2093 + $0x2fc] sm:$0xf]
        %v7875 = vld [vmem:[%s2093 + $0x300] sm:$0xf]
        %v7876 = vld [vmem:[%s2093 + $0x304] sm:$0xf]
        %v7877 = vld [vmem:[%s2093 + $0x308] sm:$0xf]
        %v7878 = vld [vmem:[%s2093 + $0x30c] sm:$0xf]
        %v7879 = vld [vmem:[%s2093 + $0x310] sm:$0xf]
        %v7880 = vld [vmem:[%s2093 + $0x314] sm:$0xf]
        %v7881 = vld [vmem:[%s2093 + $0x318] sm:$0xf]
        %v7882 = vld [vmem:[%s2093 + $0x31c] sm:$0xf]
        %v7883 = vld [vmem:[%s2093 + $0x320] sm:$0xf]
        %v7884 = vld [vmem:[%s2093 + $0x324] sm:$0xf]
        %v7885 = vld [vmem:[%s2093 + $0x328] sm:$0xf]
        %v7886 = vld [vmem:[%s2093 + $0x32c] sm:$0xf]
        %v7887 = vld [vmem:[%s2093 + $0x330] sm:$0xf]
        %v7888 = vld [vmem:[%s2093 + $0x334] sm:$0xf]
        %v7889 = vld [vmem:[%s2093 + $0x338] sm:$0xf]
        %v7890 = vld [vmem:[%s2093 + $0x33c] sm:$0xf]
        %v7891 = vld [vmem:[%s2093 + $0x340] sm:$0xf]
        %v7892 = vld [vmem:[%s2093 + $0x344] sm:$0xf]
        %v7893 = vld [vmem:[%s2093 + $0x348] sm:$0xf]
        %v7894 = vld [vmem:[%s2093 + $0x34c] sm:$0xf]
        %v7895 = vld [vmem:[%s2093 + $0x350] sm:$0xf]
        %v7896 = vld [vmem:[%s2093 + $0x354] sm:$0xf]
        %v7897 = vld [vmem:[%s2093 + $0x358] sm:$0xf]
        %v7898 = vld [vmem:[%s2093 + $0x35c] sm:$0xf]
        %v7899 = vld [vmem:[%s2093 + $0x360] sm:$0xf]
        %v7900 = vld [vmem:[%s2093 + $0x364] sm:$0xf]
        %v7901 = vld [vmem:[%s2093 + $0x368] sm:$0xf]
        %v7902 = vld [vmem:[%s2093 + $0x36c] sm:$0xf]
        %v7903 = vld [vmem:[%s2093 + $0x370] sm:$0xf]
        %v7904 = vld [vmem:[%s2093 + $0x374] sm:$0xf]
        %v7905 = vld [vmem:[%s2093 + $0x378] sm:$0xf]
        %v7906 = vld [vmem:[%s2093 + $0x37c] sm:$0xf]
        %v7907 = vld [vmem:[%s2093 + $0x380] sm:$0xf]
        %v7908 = vld [vmem:[%s2093 + $0x384] sm:$0xf]
        %v7909 = vld [vmem:[%s2093 + $0x388] sm:$0xf]
        %v7910 = vld [vmem:[%s2093 + $0x38c] sm:$0xf]
        %v7911 = vld [vmem:[%s2093 + $0x390] sm:$0xf]
        %v7912 = vld [vmem:[%s2093 + $0x394] sm:$0xf]
        %v7913 = vld [vmem:[%s2093 + $0x398] sm:$0xf]
        %v7914 = vld [vmem:[%s2093 + $0x39c] sm:$0xf]
        %v7915 = vld [vmem:[%s2093 + $0x3a0] sm:$0xf]
        %v7916 = vld [vmem:[%s2093 + $0x3a4] sm:$0xf]
        %v7917 = vld [vmem:[%s2093 + $0x3a8] sm:$0xf]
        %v7918 = vld [vmem:[%s2093 + $0x3ac] sm:$0xf]
        %v7919 = vld [vmem:[%s2093 + $0x3b0] sm:$0xf]
        %v7920 = vld [vmem:[%s2093 + $0x3b4] sm:$0xf]
        %v7921 = vld [vmem:[%s2093 + $0x3b8] sm:$0xf]
        %v7922 = vld [vmem:[%s2093 + $0x3bc] sm:$0xf]
        %v7923 = vld [vmem:[%s2093 + $0x3c0] sm:$0xf]
        %v7924 = vld [vmem:[%s2093 + $0x3c4] sm:$0xf]
        %v7925 = vld [vmem:[%s2093 + $0x3c8] sm:$0xf]
        %v7926 = vld [vmem:[%s2093 + $0x3cc] sm:$0xf]
        %v7927 = vld [vmem:[%s2093 + $0x3d0] sm:$0xf]
        %v7928 = vld [vmem:[%s2093 + $0x3d4] sm:$0xf]
        %v7929 = vld [vmem:[%s2093 + $0x3d8] sm:$0xf]
        %v7930 = vld [vmem:[%s2093 + $0x3dc] sm:$0xf]
        %v7931 = vld [vmem:[%s2093 + $0x3e0] sm:$0xf]
        %v7932 = vld [vmem:[%s2093 + $0x3e4] sm:$0xf]
        %v7933 = vld [vmem:[%s2093 + $0x3e8] sm:$0xf]
        %v7934 = vld [vmem:[%s2093 + $0x3ec] sm:$0xf]
        %v7935 = vld [vmem:[%s2093 + $0x3f0] sm:$0xf]
        %v7936 = vld [vmem:[%s2093 + $0x3f4] sm:$0xf]
        %v7937 = vld [vmem:[%s2093 + $0x3f8] sm:$0xf]
        %v7938 = vld [vmem:[%s2093 + $0x3fc] sm:$0xf]
        %v7939 = vld [vmem:[%s2102] sm:$0x1]
        %v7940 = vpack.c.bf16 %v7648, %v7647
        %v7943 = vlaneseq
        %v7944 = vshrl.u32 %v7943, 7
        %v7945 = vsub.s32 0, %v7944
        %v7946 = vrot.slane %v7681, %v7945
        %v7947 = vlaneseq
        %v7948 = vshrl.u32 %v7947, 7
        %v7949 = vsub.s32 1, %v7948
        %v7950 = vrot.slane %v7681, %v7949
        %v7951 = vlaneseq
        %v7952 = vshrl.u32 %v7951, 7
        %v7953 = vsub.s32 2, %v7952
        %v7954 = vrot.slane %v7681, %v7953
        %v7955 = vlaneseq
        %v7956 = vshrl.u32 %v7955, 7
        %v7957 = vsub.s32 3, %v7956
        %v7958 = vrot.slane %v7681, %v7957
        %v7959 = vlaneseq
        %v7960 = vshrl.u32 %v7959, 7
        %v7961 = vsub.s32 4, %v7960
        %v7962 = vrot.slane %v7681, %v7961
        %v7963 = vlaneseq
        %v7964 = vshrl.u32 %v7963, 7
        %v7965 = vsub.s32 5, %v7964
        %v7966 = vrot.slane %v7681, %v7965
        %v7967 = vlaneseq
        %v7968 = vshrl.u32 %v7967, 7
        %v7969 = vsub.s32 6, %v7968
        %v7970 = vrot.slane %v7681, %v7969
        %v7971 = vlaneseq
        %v7972 = vshrl.u32 %v7971, 7
        %v7973 = vsub.s32 7, %v7972
        %v7974 = vrot.slane %v7681, %v7973
        %v7975 = vlaneseq
        %v7976 = vshrl.u32 %v7975, 7
        %v7977 = vsub.s32 0, %v7976
        %v7978 = vrot.slane %v7682, %v7977
        %v7979 = vlaneseq
        %v7980 = vshrl.u32 %v7979, 7
        %v7981 = vsub.s32 1, %v7980
        %v7982 = vrot.slane %v7682, %v7981
        %v7983 = vlaneseq
        %v7984 = vshrl.u32 %v7983, 7
        %v7985 = vsub.s32 2, %v7984
        %v7986 = vrot.slane %v7682, %v7985
        %v7987 = vlaneseq
        %v7988 = vshrl.u32 %v7987, 7
        %v7989 = vsub.s32 3, %v7988
        %v7990 = vrot.slane %v7682, %v7989
        %v7991 = vlaneseq
        %v7992 = vshrl.u32 %v7991, 7
        %v7993 = vsub.s32 4, %v7992
        %v7994 = vrot.slane %v7682, %v7993
        %v7995 = vlaneseq
        %v7996 = vshrl.u32 %v7995, 7
        %v7997 = vsub.s32 5, %v7996
        %v7998 = vrot.slane %v7682, %v7997
        %v7999 = vlaneseq
        %v8000 = vshrl.u32 %v7999, 7
        %v8001 = vsub.s32 6, %v8000
        %v8002 = vrot.slane %v7682, %v8001
        %v8003 = vlaneseq
        %v8004 = vshrl.u32 %v8003, 7
        %v8005 = vsub.s32 7, %v8004
        %v8006 = vrot.slane %v7682, %v8005
        %v8055 = vunpack.c.l.b16 %v7649
        %v8056 = vunpack.c.h.b16 %v7649
        %v8057 = vunpack.c.l.b16 %v7650
        %v8058 = vunpack.c.h.b16 %v7650
        %v8059 = vunpack.c.l.b16 %v7651
        %v8060 = vunpack.c.h.b16 %v7651
        %v8061 = vunpack.c.l.b16 %v7652
        %v8062 = vunpack.c.h.b16 %v7652
        %v8063 = vunpack.c.l.b16 %v7653
        %v8064 = vunpack.c.h.b16 %v7653
        %v8065 = vunpack.c.l.b16 %v7654
        %v8066 = vunpack.c.h.b16 %v7654
        %v8067 = vunpack.c.l.b16 %v7655
        %v8068 = vunpack.c.h.b16 %v7655
        %v8069 = vunpack.c.l.b16 %v7656
        %v8070 = vunpack.c.h.b16 %v7656
        %v8071 = vunpack.c.l.b16 %v7657
        %v8072 = vunpack.c.h.b16 %v7657
        %v8073 = vunpack.c.l.b16 %v7658
        %v8074 = vunpack.c.h.b16 %v7658
        %v8075 = vunpack.c.l.b16 %v7659
        %v8076 = vunpack.c.h.b16 %v7659
        %v8077 = vunpack.c.l.b16 %v7660
        %v8078 = vunpack.c.h.b16 %v7660
        %v8079 = vunpack.c.l.b16 %v7661
        %v8080 = vunpack.c.h.b16 %v7661
        %v8081 = vunpack.c.l.b16 %v7662
        %v8082 = vunpack.c.h.b16 %v7662
        %v8083 = vunpack.c.l.b16 %v7663
        %v8084 = vunpack.c.h.b16 %v7663
        %v8085 = vunpack.c.l.b16 %v7664
        %v8086 = vunpack.c.h.b16 %v7664
        %v8087 = vunpack.c.l.b16 %v7665
        %v8088 = vunpack.c.h.b16 %v7665
        %v8089 = vunpack.c.l.b16 %v7666
        %v8090 = vunpack.c.h.b16 %v7666
        %v8091 = vunpack.c.l.b16 %v7667
        %v8092 = vunpack.c.h.b16 %v7667
        %v8093 = vunpack.c.l.b16 %v7668
        %v8094 = vunpack.c.h.b16 %v7668
        %v8095 = vunpack.c.l.b16 %v7669
        %v8096 = vunpack.c.h.b16 %v7669
        %v8097 = vunpack.c.l.b16 %v7670
        %v8098 = vunpack.c.h.b16 %v7670
        %v8099 = vunpack.c.l.b16 %v7671
        %v8100 = vunpack.c.h.b16 %v7671
        %v8101 = vunpack.c.l.b16 %v7672
        %v8102 = vunpack.c.h.b16 %v7672
        %v8103 = vunpack.c.l.b16 %v7673
        %v8104 = vunpack.c.h.b16 %v7673
        %v8105 = vunpack.c.l.b16 %v7674
        %v8106 = vunpack.c.h.b16 %v7674
        %v8107 = vunpack.c.l.b16 %v7675
        %v8108 = vunpack.c.h.b16 %v7675
        %v8109 = vunpack.c.l.b16 %v7676
        %v8110 = vunpack.c.h.b16 %v7676
        %v8111 = vunpack.c.l.b16 %v7677
        %v8112 = vunpack.c.h.b16 %v7677
        %v8113 = vunpack.c.l.b16 %v7678
        %v8114 = vunpack.c.h.b16 %v7678
        %v8115 = vunpack.c.l.b16 %v7679
        %v8116 = vunpack.c.h.b16 %v7679
        %v8117 = vunpack.c.l.b16 %v7680
        %v8118 = vunpack.c.h.b16 %v7680
        %v8119 = vpack.c.b16 %v8071, %v8055
        %v8120 = vpack.c.b16 %v8072, %v8056
        %v8121 = vpack.c.b16 %v8073, %v8057
        %v8122 = vpack.c.b16 %v8074, %v8058
        %v8123 = vpack.c.b16 %v8075, %v8059
        %v8124 = vpack.c.b16 %v8076, %v8060
        %v8125 = vpack.c.b16 %v8077, %v8061
        %v8126 = vpack.c.b16 %v8078, %v8062
        %v8127 = vpack.c.b16 %v8079, %v8063
        %v8128 = vpack.c.b16 %v8080, %v8064
        %v8129 = vpack.c.b16 %v8081, %v8065
        %v8130 = vpack.c.b16 %v8082, %v8066
        %v8131 = vpack.c.b16 %v8083, %v8067
        %v8132 = vpack.c.b16 %v8084, %v8068
        %v8133 = vpack.c.b16 %v8085, %v8069
        %v8134 = vpack.c.b16 %v8086, %v8070
        %v8135 = vpack.c.b16 %v8103, %v8087
        %v8136 = vpack.c.b16 %v8104, %v8088
        %v8137 = vpack.c.b16 %v8105, %v8089
        %v8138 = vpack.c.b16 %v8106, %v8090
        %v8139 = vpack.c.b16 %v8107, %v8091
        %v8140 = vpack.c.b16 %v8108, %v8092
        %v8141 = vpack.c.b16 %v8109, %v8093
        %v8142 = vpack.c.b16 %v8110, %v8094
        %v8143 = vpack.c.b16 %v8111, %v8095
        %v8144 = vpack.c.b16 %v8112, %v8096
        %v8145 = vpack.c.b16 %v8113, %v8097
        %v8146 = vpack.c.b16 %v8114, %v8098
        %v8147 = vpack.c.b16 %v8115, %v8099
        %v8148 = vpack.c.b16 %v8116, %v8100
        %v8149 = vpack.c.b16 %v8117, %v8101
        %v8150 = vpack.c.b16 %v8118, %v8102
        %v8184 = vsel %vm5418, %v7940, 0
        %8186 = vmatprep.subr.bf16.mxu0 %v8120
        %8187 = vmatpush1.bf16.msra.mxu0 %v8119
        %8188 = vmatprep.subr.bf16.mxu0 %v8136
        %8189 = vmatpush1.bf16.msra.mxu0 %v8135
        %8190 = vmatprep.subr.bf16.mxu0 0
        %8191 = vmatpush1.bf16.msra.mxu0 0
        %8192 = vmatprep.subr.bf16.mxu0 0
        %8193 = vmatpush1.bf16.msra.mxu0 0
        %8194 = vmatprep.subr.bf16.mxu0 0
        %8195 = vmatpush1.bf16.msra.mxu0 0
        %8196 = vmatprep.subr.bf16.mxu0 0
        %8197 = vmatpush1.bf16.msra.mxu0 0
        %8198 = vmatprep.subr.bf16.mxu0 0
        %8199 = vmatpush1.bf16.msra.mxu0 0
        %8200 = vmatprep.subr.bf16.mxu0 0
        %8201 = vmatpush1.bf16.msra.mxu0 0
        %8202 = vmatprep.subr.bf16.mxu0 0
        %8203 = vmatpush1.bf16.msra.mxu0 0
        %8204 = vmatprep.subr.bf16.mxu0 0
        %8205 = vmatpush1.bf16.msra.mxu0 0
        %8206 = vmatprep.subr.bf16.mxu0 0
        %8207 = vmatpush1.bf16.msra.mxu0 0
        %8208 = vmatprep.subr.bf16.mxu0 0
        %8209 = vmatpush1.bf16.msra.mxu0 0
        %8210 = vmatprep.subr.bf16.mxu0 0
        %8211 = vmatpush1.bf16.msra.mxu0 0
        %8212 = vmatprep.subr.bf16.mxu0 0
        %8213 = vmatpush1.bf16.msra.mxu0 0
        %8214 = vmatprep.subr.bf16.mxu0 0
        %8215 = vmatpush1.bf16.msra.mxu0 0
        %8216 = vmatprep.subr.bf16.mxu0 0
        %8217 = vmatpush1.bf16.msra.mxu0 0
        %8218 = vmatprep.mubr.bf16.mxu0 0
        %8219 = vmatmul.mubr.bf16.gmra.mrb[0].mxu0 %v8184
        %v8220 = vpop.f32.mrb[0].mxu0
        %v8221 = vadd.f32 %v7946, %v8220
        %v8222 = vpop.f32.mrb[0].mxu0
        %v8223 = vadd.f32 %v7950, %v8222
        %v8224 = vpop.f32.mrb[0].mxu0
        %v8225 = vadd.f32 %v7946, %v8224
        %v8226 = vpop.f32.mrb[0].mxu0
        %v8227 = vadd.f32 %v7950, %v8226
        %8228 = vdwg.mxu0
        %8229 = vmatprep.subr.bf16.mxu0 %v8122
        %8230 = vmatpush1.bf16.msra.mxu0 %v8121
        %8231 = vmatprep.subr.bf16.mxu0 %v8138
        %8232 = vmatpush1.bf16.msra.mxu0 %v8137
        %8233 = vmatprep.subr.bf16.mxu0 0
        %8234 = vmatpush1.bf16.msra.mxu0 0
        %8235 = vmatprep.subr.bf16.mxu0 0
        %8236 = vmatpush1.bf16.msra.mxu0 0
        %8237 = vmatprep.subr.bf16.mxu0 0
        %8238 = vmatpush1.bf16.msra.mxu0 0
        %8239 = vmatprep.subr.bf16.mxu0 0
        %8240 = vmatpush1.bf16.msra.mxu0 0
        %8241 = vmatprep.subr.bf16.mxu0 0
        %8242 = vmatpush1.bf16.msra.mxu0 0
        %8243 = vmatprep.subr.bf16.mxu0 0
        %8244 = vmatpush1.bf16.msra.mxu0 0
        %8245 = vmatprep.subr.bf16.mxu0 0
        %8246 = vmatpush1.bf16.msra.mxu0 0
        %8247 = vmatprep.subr.bf16.mxu0 0
        %8248 = vmatpush1.bf16.msra.mxu0 0
        %8249 = vmatprep.subr.bf16.mxu0 0
        %8250 = vmatpush1.bf16.msra.mxu0 0
        %8251 = vmatprep.subr.bf16.mxu0 0
        %8252 = vmatpush1.bf16.msra.mxu0 0
        %8253 = vmatprep.subr.bf16.mxu0 0
        %8254 = vmatpush1.bf16.msra.mxu0 0
        %8255 = vmatprep.subr.bf16.mxu0 0
        %8256 = vmatpush1.bf16.msra.mxu0 0
        %8257 = vmatprep.subr.bf16.mxu0 0
        %8258 = vmatpush1.bf16.msra.mxu0 0
        %8259 = vmatprep.subr.bf16.mxu0 0
        %8260 = vmatpush1.bf16.msra.mxu0 0
        %8261 = vmatprep.mubr.bf16.mxu0 0
        %8262 = vmatmul.mubr.bf16.gmra.mrb[0].mxu0 %v8184
        %v8263 = vpop.f32.mrb[0].mxu0
        %v8264 = vadd.f32 %v7954, %v8263
        %v8265 = vpop.f32.mrb[0].mxu0
        %v8266 = vadd.f32 %v7958, %v8265
        %v8267 = vpop.f32.mrb[0].mxu0
        %v8268 = vadd.f32 %v7954, %v8267
        %v8269 = vpop.f32.mrb[0].mxu0
        %v8270 = vadd.f32 %v7958, %v8269
        %8271 = vdwg.mxu0
        %8272 = vmatprep.subr.bf16.mxu0 %v8124
        %8273 = vmatpush1.bf16.msra.mxu0 %v8123
        %8274 = vmatprep.subr.bf16.mxu0 %v8140
        %8275 = vmatpush1.bf16.msra.mxu0 %v8139
        %8276 = vmatprep.subr.bf16.mxu0 0
        %8277 = vmatpush1.bf16.msra.mxu0 0
        %8278 = vmatprep.subr.bf16.mxu0 0
        %8279 = vmatpush1.bf16.msra.mxu0 0
        %8280 = vmatprep.subr.bf16.mxu0 0
        %8281 = vmatpush1.bf16.msra.mxu0 0
        %8282 = vmatprep.subr.bf16.mxu0 0
        %8283 = vmatpush1.bf16.msra.mxu0 0
        %8284 = vmatprep.subr.bf16.mxu0 0
        %8285 = vmatpush1.bf16.msra.mxu0 0
        %8286 = vmatprep.subr.bf16.mxu0 0
        %8287 = vmatpush1.bf16.msra.mxu0 0
        %8288 = vmatprep.subr.bf16.mxu0 0
        %8289 = vmatpush1.bf16.msra.mxu0 0
        %8290 = vmatprep.subr.bf16.mxu0 0
        %8291 = vmatpush1.bf16.msra.mxu0 0
        %8292 = vmatprep.subr.bf16.mxu0 0
        %8293 = vmatpush1.bf16.msra.mxu0 0
        %8294 = vmatprep.subr.bf16.mxu0 0
        %8295 = vmatpush1.bf16.msra.mxu0 0
        %8296 = vmatprep.subr.bf16.mxu0 0
        %8297 = vmatpush1.bf16.msra.mxu0 0
        %8298 = vmatprep.subr.bf16.mxu0 0
        %8299 = vmatpush1.bf16.msra.mxu0 0
        %8300 = vmatprep.subr.bf16.mxu0 0
        %8301 = vmatpush1.bf16.msra.mxu0 0
        %8302 = vmatprep.subr.bf16.mxu0 0
        %8303 = vmatpush1.bf16.msra.mxu0 0
        %8304 = vmatprep.mubr.bf16.mxu0 0
        %8305 = vmatmul.mubr.bf16.gmra.mrb[0].mxu0 %v8184
        %v8306 = vpop.f32.mrb[0].mxu0
        %v8307 = vadd.f32 %v7962, %v8306
        %v8308 = vpop.f32.mrb[0].mxu0
        %v8309 = vadd.f32 %v7966, %v8308
        %v8310 = vpop.f32.mrb[0].mxu0
        %v8311 = vadd.f32 %v7962, %v8310
        %v8312 = vpop.f32.mrb[0].mxu0
        %v8313 = vadd.f32 %v7966, %v8312
        %8314 = vdwg.mxu0
        %8315 = vmatprep.subr.bf16.mxu0 %v8126
        %8316 = vmatpush1.bf16.msra.mxu0 %v8125
        %8317 = vmatprep.subr.bf16.mxu0 %v8142
        %8318 = vmatpush1.bf16.msra.mxu0 %v8141
        %8319 = vmatprep.subr.bf16.mxu0 0
        %8320 = vmatpush1.bf16.msra.mxu0 0
        %8321 = vmatprep.subr.bf16.mxu0 0
        %8322 = vmatpush1.bf16.msra.mxu0 0
        %8323 = vmatprep.subr.bf16.mxu0 0
        %8324 = vmatpush1.bf16.msra.mxu0 0
        %8325 = vmatprep.subr.bf16.mxu0 0
        %8326 = vmatpush1.bf16.msra.mxu0 0
        %8327 = vmatprep.subr.bf16.mxu0 0
        %8328 = vmatpush1.bf16.msra.mxu0 0
        %8329 = vmatprep.subr.bf16.mxu0 0
        %8330 = vmatpush1.bf16.msra.mxu0 0
        %8331 = vmatprep.subr.bf16.mxu0 0
        %8332 = vmatpush1.bf16.msra.mxu0 0
        %8333 = vmatprep.subr.bf16.mxu0 0
        %8334 = vmatpush1.bf16.msra.mxu0 0
        %8335 = vmatprep.subr.bf16.mxu0 0
        %8336 = vmatpush1.bf16.msra.mxu0 0
        %8337 = vmatprep.subr.bf16.mxu0 0
        %8338 = vmatpush1.bf16.msra.mxu0 0
        %8339 = vmatprep.subr.bf16.mxu0 0
        %8340 = vmatpush1.bf16.msra.mxu0 0
        %8341 = vmatprep.subr.bf16.mxu0 0
        %8342 = vmatpush1.bf16.msra.mxu0 0
        %8343 = vmatprep.subr.bf16.mxu0 0
        %8344 = vmatpush1.bf16.msra.mxu0 0
        %8345 = vmatprep.subr.bf16.mxu0 0
        %8346 = vmatpush1.bf16.msra.mxu0 0
        %8347 = vmatprep.mubr.bf16.mxu0 0
        %8348 = vmatmul.mubr.bf16.gmra.mrb[0].mxu0 %v8184
        %v8349 = vpop.f32.mrb[0].mxu0
        %v8350 = vadd.f32 %v7970, %v8349
        %v8351 = vpop.f32.mrb[0].mxu0
        %v8352 = vadd.f32 %v7974, %v8351
        %v8353 = vpop.f32.mrb[0].mxu0
        %v8354 = vadd.f32 %v7970, %v8353
        %v8355 = vpop.f32.mrb[0].mxu0
        %v8356 = vadd.f32 %v7974, %v8355
        %8357 = vdwg.mxu0
        %8358 = vmatprep.subr.bf16.mxu0 %v8128
        %8359 = vmatpush1.bf16.msra.mxu0 %v8127
        %8360 = vmatprep.subr.bf16.mxu0 %v8144
        %8361 = vmatpush1.bf16.msra.mxu0 %v8143
        %8362 = vmatprep.subr.bf16.mxu0 0
        %8363 = vmatpush1.bf16.msra.mxu0 0
        %8364 = vmatprep.subr.bf16.mxu0 0
        %8365 = vmatpush1.bf16.msra.mxu0 0
        %8366 = vmatprep.subr.bf16.mxu0 0
        %8367 = vmatpush1.bf16.msra.mxu0 0
        %8368 = vmatprep.subr.bf16.mxu0 0
        %8369 = vmatpush1.bf16.msra.mxu0 0
        %8370 = vmatprep.subr.bf16.mxu0 0
        %8371 = vmatpush1.bf16.msra.mxu0 0
        %8372 = vmatprep.subr.bf16.mxu0 0
        %8373 = vmatpush1.bf16.msra.mxu0 0
        %8374 = vmatprep.subr.bf16.mxu0 0
        %8375 = vmatpush1.bf16.msra.mxu0 0
        %8376 = vmatprep.subr.bf16.mxu0 0
        %8377 = vmatpush1.bf16.msra.mxu0 0
        %8378 = vmatprep.subr.bf16.mxu0 0
        %8379 = vmatpush1.bf16.msra.mxu0 0
        %8380 = vmatprep.subr.bf16.mxu0 0
        %8381 = vmatpush1.bf16.msra.mxu0 0
        %8382 = vmatprep.subr.bf16.mxu0 0
        %8383 = vmatpush1.bf16.msra.mxu0 0
        %8384 = vmatprep.subr.bf16.mxu0 0
        %8385 = vmatpush1.bf16.msra.mxu0 0
        %8386 = vmatprep.subr.bf16.mxu0 0
        %8387 = vmatpush1.bf16.msra.mxu0 0
        %8388 = vmatprep.subr.bf16.mxu0 0
        %8389 = vmatpush1.bf16.msra.mxu0 0
        %8390 = vmatprep.mubr.bf16.mxu0 0
        %8391 = vmatmul.mubr.bf16.gmra.mrb[0].mxu0 %v8184
        %v8392 = vpop.f32.mrb[0].mxu0
        %v8393 = vadd.f32 %v7978, %v8392
        %v8394 = vpop.f32.mrb[0].mxu0
        %v8395 = vadd.f32 %v7982, %v8394
        %v8396 = vpop.f32.mrb[0].mxu0
        %v8397 = vadd.f32 %v7978, %v8396
        %v8398 = vpop.f32.mrb[0].mxu0
        %v8399 = vadd.f32 %v7982, %v8398
        %8400 = vdwg.mxu0
        %8401 = vmatprep.subr.bf16.mxu0 %v8130
        %8402 = vmatpush1.bf16.msra.mxu0 %v8129
        %8403 = vmatprep.subr.bf16.mxu0 %v8146
        %8404 = vmatpush1.bf16.msra.mxu0 %v8145
        %8405 = vmatprep.subr.bf16.mxu0 0
        %8406 = vmatpush1.bf16.msra.mxu0 0
        %8407 = vmatprep.subr.bf16.mxu0 0
        %8408 = vmatpush1.bf16.msra.mxu0 0
        %8409 = vmatprep.subr.bf16.mxu0 0
        %8410 = vmatpush1.bf16.msra.mxu0 0
        %8411 = vmatprep.subr.bf16.mxu0 0
        %8412 = vmatpush1.bf16.msra.mxu0 0
        %8413 = vmatprep.subr.bf16.mxu0 0
        %8414 = vmatpush1.bf16.msra.mxu0 0
        %8415 = vmatprep.subr.bf16.mxu0 0
        %8416 = vmatpush1.bf16.msra.mxu0 0
        %8417 = vmatprep.subr.bf16.mxu0 0
        %8418 = vmatpush1.bf16.msra.mxu0 0
        %8419 = vmatprep.subr.bf16.mxu0 0
        %8420 = vmatpush1.bf16.msra.mxu0 0
        %8421 = vmatprep.subr.bf16.mxu0 0
        %8422 = vmatpush1.bf16.msra.mxu0 0
        %8423 = vmatprep.subr.bf16.mxu0 0
        %8424 = vmatpush1.bf16.msra.mxu0 0
        %8425 = vmatprep.subr.bf16.mxu0 0
        %8426 = vmatpush1.bf16.msra.mxu0 0
        %8427 = vmatprep.subr.bf16.mxu0 0
        %8428 = vmatpush1.bf16.msra.mxu0 0
        %8429 = vmatprep.subr.bf16.mxu0 0
        %8430 = vmatpush1.bf16.msra.mxu0 0
        %8431 = vmatprep.subr.bf16.mxu0 0
        %8432 = vmatpush1.bf16.msra.mxu0 0
        %8433 = vmatprep.mubr.bf16.mxu0 0
        %8434 = vmatmul.mubr.bf16.gmra.mrb[0].mxu0 %v8184
        %v8435 = vpop.f32.mrb[0].mxu0
        %v8436 = vadd.f32 %v7986, %v8435
        %v8437 = vpop.f32.mrb[0].mxu0
        %v8438 = vadd.f32 %v7990, %v8437
        %v8439 = vpop.f32.mrb[0].mxu0
        %v8440 = vadd.f32 %v7986, %v8439
        %v8441 = vpop.f32.mrb[0].mxu0
        %v8442 = vadd.f32 %v7990, %v8441
        %8443 = vdwg.mxu0
        %8444 = vmatprep.subr.bf16.mxu0 %v8132
        %8445 = vmatpush1.bf16.msra.mxu0 %v8131
        %8446 = vmatprep.subr.bf16.mxu0 %v8148
        %8447 = vmatpush1.bf16.msra.mxu0 %v8147
        %8448 = vmatprep.subr.bf16.mxu0 0
        %8449 = vmatpush1.bf16.msra.mxu0 0
        %8450 = vmatprep.subr.bf16.mxu0 0
        %8451 = vmatpush1.bf16.msra.mxu0 0
        %8452 = vmatprep.subr.bf16.mxu0 0
        %8453 = vmatpush1.bf16.msra.mxu0 0
        %8454 = vmatprep.subr.bf16.mxu0 0
        %8455 = vmatpush1.bf16.msra.mxu0 0
        %8456 = vmatprep.subr.bf16.mxu0 0
        %8457 = vmatpush1.bf16.msra.mxu0 0
        %8458 = vmatprep.subr.bf16.mxu0 0
        %8459 = vmatpush1.bf16.msra.mxu0 0
        %8460 = vmatprep.subr.bf16.mxu0 0
        %8461 = vmatpush1.bf16.msra.mxu0 0
        %8462 = vmatprep.subr.bf16.mxu0 0
        %8463 = vmatpush1.bf16.msra.mxu0 0
        %8464 = vmatprep.subr.bf16.mxu0 0
        %8465 = vmatpush1.bf16.msra.mxu0 0
        %8466 = vmatprep.subr.bf16.mxu0 0
        %8467 = vmatpush1.bf16.msra.mxu0 0
        %8468 = vmatprep.subr.bf16.mxu0 0
        %8469 = vmatpush1.bf16.msra.mxu0 0
        %8470 = vmatprep.subr.bf16.mxu0 0
        %8471 = vmatpush1.bf16.msra.mxu0 0
        %8472 = vmatprep.subr.bf16.mxu0 0
        %8473 = vmatpush1.bf16.msra.mxu0 0
        %8474 = vmatprep.subr.bf16.mxu0 0
        %8475 = vmatpush1.bf16.msra.mxu0 0
        %8476 = vmatprep.mubr.bf16.mxu0 0
        %8477 = vmatmul.mubr.bf16.gmra.mrb[0].mxu0 %v8184
        %v8478 = vpop.f32.mrb[0].mxu0
        %v8479 = vadd.f32 %v7994, %v8478
        %v8480 = vpop.f32.mrb[0].mxu0
        %v8481 = vadd.f32 %v7998, %v8480
        %v8482 = vpop.f32.mrb[0].mxu0
        %v8483 = vadd.f32 %v7994, %v8482
        %v8484 = vpop.f32.mrb[0].mxu0
        %v8485 = vadd.f32 %v7998, %v8484
        %8486 = vdwg.mxu0
        %8487 = vmatprep.subr.bf16.mxu0 %v8134
        %8488 = vmatpush1.bf16.msra.mxu0 %v8133
        %8489 = vmatprep.subr.bf16.mxu0 %v8150
        %8490 = vmatpush1.bf16.msra.mxu0 %v8149
        %8491 = vmatprep.subr.bf16.mxu0 0
        %8492 = vmatpush1.bf16.msra.mxu0 0
        %8493 = vmatprep.subr.bf16.mxu0 0
        %8494 = vmatpush1.bf16.msra.mxu0 0
        %8495 = vmatprep.subr.bf16.mxu0 0
        %8496 = vmatpush1.bf16.msra.mxu0 0
        %8497 = vmatprep.subr.bf16.mxu0 0
        %8498 = vmatpush1.bf16.msra.mxu0 0
        %8499 = vmatprep.subr.bf16.mxu0 0
        %8500 = vmatpush1.bf16.msra.mxu0 0
        %8501 = vmatprep.subr.bf16.mxu0 0
        %8502 = vmatpush1.bf16.msra.mxu0 0
        %8503 = vmatprep.subr.bf16.mxu0 0
        %8504 = vmatpush1.bf16.msra.mxu0 0
        %8505 = vmatprep.subr.bf16.mxu0 0
        %8506 = vmatpush1.bf16.msra.mxu0 0
        %8507 = vmatprep.subr.bf16.mxu0 0
        %8508 = vmatpush1.bf16.msra.mxu0 0
        %8509 = vmatprep.subr.bf16.mxu0 0
        %8510 = vmatpush1.bf16.msra.mxu0 0
        %8511 = vmatprep.subr.bf16.mxu0 0
        %8512 = vmatpush1.bf16.msra.mxu0 0
        %8513 = vmatprep.subr.bf16.mxu0 0
        %8514 = vmatpush1.bf16.msra.mxu0 0
        %8515 = vmatprep.subr.bf16.mxu0 0
        %8516 = vmatpush1.bf16.msra.mxu0 0
        %8517 = vmatprep.subr.bf16.mxu0 0
        %8518 = vmatpush1.bf16.msra.mxu0 0
        %8519 = vmatprep.mubr.bf16.mxu0 0
        %8520 = vmatmul.mubr.bf16.gmra.mrb[0].mxu0 %v8184
        %v8521 = vpop.f32.mrb[0].mxu0
        %v8522 = vadd.f32 %v8002, %v8521
        %v8523 = vpop.f32.mrb[0].mxu0
        %v8524 = vadd.f32 %v8006, %v8523
        %v8525 = vpop.f32.mrb[0].mxu0
        %v8526 = vadd.f32 %v8002, %v8525
        %v8527 = vpop.f32.mrb[0].mxu0
        %v8528 = vadd.f32 %v8006, %v8527
        %8529 = vdwg.mxu0
        %v8530 = vmax.f32 %v8221, 0.0
        %v8531 = vmax.f32 %v8223, 0.0
        %v8532 = vmax.f32 %v8264, 0.0
        %v8533 = vmax.f32 %v8266, 0.0
        %v8534 = vmax.f32 %v8307, 0.0
        %v8535 = vmax.f32 %v8309, 0.0
        %v8536 = vmax.f32 %v8350, 0.0
        %v8537 = vmax.f32 %v8352, 0.0
        %v8538 = vmax.f32 %v8393, 0.0
        %v8539 = vmax.f32 %v8395, 0.0
        %v8540 = vmax.f32 %v8436, 0.0
        %v8541 = vmax.f32 %v8438, 0.0
        %v8542 = vmax.f32 %v8479, 0.0
        %v8543 = vmax.f32 %v8481, 0.0
        %v8544 = vmax.f32 %v8522, 0.0
        %v8545 = vmax.f32 %v8524, 0.0
        %v8546 = vmax.f32 %v8225, 0.0
        %v8547 = vmax.f32 %v8227, 0.0
        %v8548 = vmax.f32 %v8268, 0.0
        %v8549 = vmax.f32 %v8270, 0.0
        %v8550 = vmax.f32 %v8311, 0.0
        %v8551 = vmax.f32 %v8313, 0.0
        %v8552 = vmax.f32 %v8354, 0.0
        %v8553 = vmax.f32 %v8356, 0.0
        %v8554 = vmax.f32 %v8397, 0.0
        %v8555 = vmax.f32 %v8399, 0.0
        %v8556 = vmax.f32 %v8440, 0.0
        %v8557 = vmax.f32 %v8442, 0.0
        %v8558 = vmax.f32 %v8483, 0.0
        %v8559 = vmax.f32 %v8485, 0.0
        %v8560 = vmax.f32 %v8526, 0.0
        %v8561 = vmax.f32 %v8528, 0.0
        %v8562 = vpack.c.bf16 %v8546, %v8530
        %v8563 = vpack.c.bf16 %v8547, %v8531
        %v8564 = vpack.c.bf16 %v8548, %v8532
        %v8565 = vpack.c.bf16 %v8549, %v8533
        %v8566 = vpack.c.bf16 %v8550, %v8534
        %v8567 = vpack.c.bf16 %v8551, %v8535
        %v8568 = vpack.c.bf16 %v8552, %v8536
        %v8569 = vpack.c.bf16 %v8553, %v8537
        %v8570 = vpack.c.bf16 %v8554, %v8538
        %v8571 = vpack.c.bf16 %v8555, %v8539
        %v8572 = vpack.c.bf16 %v8556, %v8540
        %v8573 = vpack.c.bf16 %v8557, %v8541
        %v8574 = vpack.c.bf16 %v8558, %v8542
        %v8575 = vpack.c.bf16 %v8559, %v8543
        %v8576 = vpack.c.bf16 %v8560, %v8544
        %v8577 = vpack.c.bf16 %v8561, %v8545
        %v8579 = vlaneseq
        %v8580 = vshrl.u32 %v8579, 7
        %v8581 = vsub.s32 0, %v8580
        %v8582 = vrot.slane %v7939, %v8581
        %v8840 = vunpack.c.l.b16 %v7683
        %v8841 = vunpack.c.l.b16 %v7684
        %v8842 = vunpack.c.l.b16 %v7685
        %v8843 = vunpack.c.l.b16 %v7686
        %v8844 = vunpack.c.l.b16 %v7687
        %v8845 = vunpack.c.l.b16 %v7688
        %v8846 = vunpack.c.l.b16 %v7689
        %v8847 = vunpack.c.l.b16 %v7690
        %v8848 = vunpack.c.l.b16 %v7691
        %v8849 = vunpack.c.l.b16 %v7692
        %v8850 = vunpack.c.l.b16 %v7693
        %v8851 = vunpack.c.l.b16 %v7694
        %v8852 = vunpack.c.l.b16 %v7695
        %v8853 = vunpack.c.l.b16 %v7696
        %v8854 = vunpack.c.l.b16 %v7697
        %v8855 = vunpack.c.l.b16 %v7698
        %v8856 = vunpack.c.l.b16 %v7699
        %v8857 = vunpack.c.l.b16 %v7700
        %v8858 = vunpack.c.l.b16 %v7701
        %v8859 = vunpack.c.l.b16 %v7702
        %v8860 = vunpack.c.l.b16 %v7703
        %v8861 = vunpack.c.l.b16 %v7704
        %v8862 = vunpack.c.l.b16 %v7705
        %v8863 = vunpack.c.l.b16 %v7706
        %v8864 = vunpack.c.l.b16 %v7707
        %v8865 = vunpack.c.l.b16 %v7708
        %v8866 = vunpack.c.l.b16 %v7709
        %v8867 = vunpack.c.l.b16 %v7710
        %v8868 = vunpack.c.l.b16 %v7711
        %v8869 = vunpack.c.l.b16 %v7712
        %v8870 = vunpack.c.l.b16 %v7713
        %v8871 = vunpack.c.l.b16 %v7714
        %v8872 = vunpack.c.l.b16 %v7715
        %v8873 = vunpack.c.l.b16 %v7716
        %v8874 = vunpack.c.l.b16 %v7717
        %v8875 = vunpack.c.l.b16 %v7718
        %v8876 = vunpack.c.l.b16 %v7719
        %v8877 = vunpack.c.l.b16 %v7720
        %v8878 = vunpack.c.l.b16 %v7721
        %v8879 = vunpack.c.l.b16 %v7722
        %v8880 = vunpack.c.l.b16 %v7723
        %v8881 = vunpack.c.l.b16 %v7724
        %v8882 = vunpack.c.l.b16 %v7725
        %v8883 = vunpack.c.l.b16 %v7726
        %v8884 = vunpack.c.l.b16 %v7727
        %v8885 = vunpack.c.l.b16 %v7728
        %v8886 = vunpack.c.l.b16 %v7729
        %v8887 = vunpack.c.l.b16 %v7730
        %v8888 = vunpack.c.l.b16 %v7731
        %v8889 = vunpack.c.l.b16 %v7732
        %v8890 = vunpack.c.l.b16 %v7733
        %v8891 = vunpack.c.l.b16 %v7734
        %v8892 = vunpack.c.l.b16 %v7735
        %v8893 = vunpack.c.l.b16 %v7736
        %v8894 = vunpack.c.l.b16 %v7737
        %v8895 = vunpack.c.l.b16 %v7738
        %v8896 = vunpack.c.l.b16 %v7739
        %v8897 = vunpack.c.l.b16 %v7740
        %v8898 = vunpack.c.l.b16 %v7741
        %v8899 = vunpack.c.l.b16 %v7742
        %v8900 = vunpack.c.l.b16 %v7743
        %v8901 = vunpack.c.l.b16 %v7744
        %v8902 = vunpack.c.l.b16 %v7745
        %v8903 = vunpack.c.l.b16 %v7746
        %v8904 = vunpack.c.l.b16 %v7747
        %v8905 = vunpack.c.l.b16 %v7748
        %v8906 = vunpack.c.l.b16 %v7749
        %v8907 = vunpack.c.l.b16 %v7750
        %v8908 = vunpack.c.l.b16 %v7751
        %v8909 = vunpack.c.l.b16 %v7752
        %v8910 = vunpack.c.l.b16 %v7753
        %v8911 = vunpack.c.l.b16 %v7754
        %v8912 = vunpack.c.l.b16 %v7755
        %v8913 = vunpack.c.l.b16 %v7756
        %v8914 = vunpack.c.l.b16 %v7757
        %v8915 = vunpack.c.l.b16 %v7758
        %v8916 = vunpack.c.l.b16 %v7759
        %v8917 = vunpack.c.l.b16 %v7760
        %v8918 = vunpack.c.l.b16 %v7761
        %v8919 = vunpack.c.l.b16 %v7762
        %v8920 = vunpack.c.l.b16 %v7763
        %v8921 = vunpack.c.l.b16 %v7764
        %v8922 = vunpack.c.l.b16 %v7765
        %v8923 = vunpack.c.l.b16 %v7766
        %v8924 = vunpack.c.l.b16 %v7767
        %v8925 = vunpack.c.l.b16 %v7768
        %v8926 = vunpack.c.l.b16 %v7769
        %v8927 = vunpack.c.l.b16 %v7770
        %v8928 = vunpack.c.l.b16 %v7771
        %v8929 = vunpack.c.l.b16 %v7772
        %v8930 = vunpack.c.l.b16 %v7773
        %v8931 = vunpack.c.l.b16 %v7774
        %v8932 = vunpack.c.l.b16 %v7775
        %v8933 = vunpack.c.l.b16 %v7776
        %v8934 = vunpack.c.l.b16 %v7777
        %v8935 = vunpack.c.l.b16 %v7778
        %v8936 = vunpack.c.l.b16 %v7779
        %v8937 = vunpack.c.l.b16 %v7780
        %v8938 = vunpack.c.l.b16 %v7781
        %v8939 = vunpack.c.l.b16 %v7782
        %v8940 = vunpack.c.l.b16 %v7783
        %v8941 = vunpack.c.l.b16 %v7784
        %v8942 = vunpack.c.l.b16 %v7785
        %v8943 = vunpack.c.l.b16 %v7786
        %v8944 = vunpack.c.l.b16 %v7787
        %v8945 = vunpack.c.l.b16 %v7788
        %v8946 = vunpack.c.l.b16 %v7789
        %v8947 = vunpack.c.l.b16 %v7790
        %v8948 = vunpack.c.l.b16 %v7791
        %v8949 = vunpack.c.l.b16 %v7792
        %v8950 = vunpack.c.l.b16 %v7793
        %v8951 = vunpack.c.l.b16 %v7794
        %v8952 = vunpack.c.l.b16 %v7795
        %v8953 = vunpack.c.l.b16 %v7796
        %v8954 = vunpack.c.l.b16 %v7797
        %v8955 = vunpack.c.l.b16 %v7798
        %v8956 = vunpack.c.l.b16 %v7799
        %v8957 = vunpack.c.l.b16 %v7800
        %v8958 = vunpack.c.l.b16 %v7801
        %v8959 = vunpack.c.l.b16 %v7802
        %v8960 = vunpack.c.l.b16 %v7803
        %v8961 = vunpack.c.l.b16 %v7804
        %v8962 = vunpack.c.l.b16 %v7805
        %v8963 = vunpack.c.l.b16 %v7806
        %v8964 = vunpack.c.l.b16 %v7807
        %v8965 = vunpack.c.l.b16 %v7808
        %v8966 = vunpack.c.l.b16 %v7809
        %v8967 = vunpack.c.l.b16 %v7810
        %v8968 = vunpack.c.l.b16 %v7811
        %v8969 = vunpack.c.l.b16 %v7812
        %v8970 = vunpack.c.l.b16 %v7813
        %v8971 = vunpack.c.l.b16 %v7814
        %v8972 = vunpack.c.l.b16 %v7815
        %v8973 = vunpack.c.l.b16 %v7816
        %v8974 = vunpack.c.l.b16 %v7817
        %v8975 = vunpack.c.l.b16 %v7818
        %v8976 = vunpack.c.l.b16 %v7819
        %v8977 = vunpack.c.l.b16 %v7820
        %v8978 = vunpack.c.l.b16 %v7821
        %v8979 = vunpack.c.l.b16 %v7822
        %v8980 = vunpack.c.l.b16 %v7823
        %v8981 = vunpack.c.l.b16 %v7824
        %v8982 = vunpack.c.l.b16 %v7825
        %v8983 = vunpack.c.l.b16 %v7826
        %v8984 = vunpack.c.l.b16 %v7827
        %v8985 = vunpack.c.l.b16 %v7828
        %v8986 = vunpack.c.l.b16 %v7829
        %v8987 = vunpack.c.l.b16 %v7830
        %v8988 = vunpack.c.l.b16 %v7831
        %v8989 = vunpack.c.l.b16 %v7832
        %v8990 = vunpack.c.l.b16 %v7833
        %v8991 = vunpack.c.l.b16 %v7834
        %v8992 = vunpack.c.l.b16 %v7835
        %v8993 = vunpack.c.l.b16 %v7836
        %v8994 = vunpack.c.l.b16 %v7837
        %v8995 = vunpack.c.l.b16 %v7838
        %v8996 = vunpack.c.l.b16 %v7839
        %v8997 = vunpack.c.l.b16 %v7840
        %v8998 = vunpack.c.l.b16 %v7841
        %v8999 = vunpack.c.l.b16 %v7842
        %v9000 = vunpack.c.l.b16 %v7843
        %v9001 = vunpack.c.l.b16 %v7844
        %v9002 = vunpack.c.l.b16 %v7845
        %v9003 = vunpack.c.l.b16 %v7846
        %v9004 = vunpack.c.l.b16 %v7847
        %v9005 = vunpack.c.l.b16 %v7848
        %v9006 = vunpack.c.l.b16 %v7849
        %v9007 = vunpack.c.l.b16 %v7850
        %v9008 = vunpack.c.l.b16 %v7851
        %v9009 = vunpack.c.l.b16 %v7852
        %v9010 = vunpack.c.l.b16 %v7853
        %v9011 = vunpack.c.l.b16 %v7854
        %v9012 = vunpack.c.l.b16 %v7855
        %v9013 = vunpack.c.l.b16 %v7856
        %v9014 = vunpack.c.l.b16 %v7857
        %v9015 = vunpack.c.l.b16 %v7858
        %v9016 = vunpack.c.l.b16 %v7859
        %v9017 = vunpack.c.l.b16 %v7860
        %v9018 = vunpack.c.l.b16 %v7861
        %v9019 = vunpack.c.l.b16 %v7862
        %v9020 = vunpack.c.l.b16 %v7863
        %v9021 = vunpack.c.l.b16 %v7864
        %v9022 = vunpack.c.l.b16 %v7865
        %v9023 = vunpack.c.l.b16 %v7866
        %v9024 = vunpack.c.l.b16 %v7867
        %v9025 = vunpack.c.l.b16 %v7868
        %v9026 = vunpack.c.l.b16 %v7869
        %v9027 = vunpack.c.l.b16 %v7870
        %v9028 = vunpack.c.l.b16 %v7871
        %v9029 = vunpack.c.l.b16 %v7872
        %v9030 = vunpack.c.l.b16 %v7873
        %v9031 = vunpack.c.l.b16 %v7874
        %v9032 = vunpack.c.l.b16 %v7875
        %v9033 = vunpack.c.l.b16 %v7876
        %v9034 = vunpack.c.l.b16 %v7877
        %v9035 = vunpack.c.l.b16 %v7878
        %v9036 = vunpack.c.l.b16 %v7879
        %v9037 = vunpack.c.l.b16 %v7880
        %v9038 = vunpack.c.l.b16 %v7881
        %v9039 = vunpack.c.l.b16 %v7882
        %v9040 = vunpack.c.l.b16 %v7883
        %v9041 = vunpack.c.l.b16 %v7884
        %v9042 = vunpack.c.l.b16 %v7885
        %v9043 = vunpack.c.l.b16 %v7886
        %v9044 = vunpack.c.l.b16 %v7887
        %v9045 = vunpack.c.l.b16 %v7888
        %v9046 = vunpack.c.l.b16 %v7889
        %v9047 = vunpack.c.l.b16 %v7890
        %v9048 = vunpack.c.l.b16 %v7891
        %v9049 = vunpack.c.l.b16 %v7892
        %v9050 = vunpack.c.l.b16 %v7893
        %v9051 = vunpack.c.l.b16 %v7894
        %v9052 = vunpack.c.l.b16 %v7895
        %v9053 = vunpack.c.l.b16 %v7896
        %v9054 = vunpack.c.l.b16 %v7897
        %v9055 = vunpack.c.l.b16 %v7898
        %v9056 = vunpack.c.l.b16 %v7899
        %v9057 = vunpack.c.l.b16 %v7900
        %v9058 = vunpack.c.l.b16 %v7901
        %v9059 = vunpack.c.l.b16 %v7902
        %v9060 = vunpack.c.l.b16 %v7903
        %v9061 = vunpack.c.l.b16 %v7904
        %v9062 = vunpack.c.l.b16 %v7905
        %v9063 = vunpack.c.l.b16 %v7906
        %v9064 = vunpack.c.l.b16 %v7907
        %v9065 = vunpack.c.l.b16 %v7908
        %v9066 = vunpack.c.l.b16 %v7909
        %v9067 = vunpack.c.l.b16 %v7910
        %v9068 = vunpack.c.l.b16 %v7911
        %v9069 = vunpack.c.l.b16 %v7912
        %v9070 = vunpack.c.l.b16 %v7913
        %v9071 = vunpack.c.l.b16 %v7914
        %v9072 = vunpack.c.l.b16 %v7915
        %v9073 = vunpack.c.l.b16 %v7916
        %v9074 = vunpack.c.l.b16 %v7917
        %v9075 = vunpack.c.l.b16 %v7918
        %v9076 = vunpack.c.l.b16 %v7919
        %v9077 = vunpack.c.l.b16 %v7920
        %v9078 = vunpack.c.l.b16 %v7921
        %v9079 = vunpack.c.l.b16 %v7922
        %v9080 = vunpack.c.l.b16 %v7923
        %v9081 = vunpack.c.l.b16 %v7924
        %v9082 = vunpack.c.l.b16 %v7925
        %v9083 = vunpack.c.l.b16 %v7926
        %v9084 = vunpack.c.l.b16 %v7927
        %v9085 = vunpack.c.l.b16 %v7928
        %v9086 = vunpack.c.l.b16 %v7929
        %v9087 = vunpack.c.l.b16 %v7930
        %v9088 = vunpack.c.l.b16 %v7931
        %v9089 = vunpack.c.l.b16 %v7932
        %v9090 = vunpack.c.l.b16 %v7933
        %v9091 = vunpack.c.l.b16 %v7934
        %v9092 = vunpack.c.l.b16 %v7935
        %v9093 = vunpack.c.l.b16 %v7936
        %v9094 = vunpack.c.l.b16 %v7937
        %v9095 = vunpack.c.l.b16 %v7938
        %v9096 = vpack.c.b16 %v8841, %v8840
        %v9097 = vpack.c.b16 %v8843, %v8842
        %v9098 = vpack.c.b16 %v8845, %v8844
        %v9099 = vpack.c.b16 %v8847, %v8846
        %v9100 = vpack.c.b16 %v8849, %v8848
        %v9101 = vpack.c.b16 %v8851, %v8850
        %v9102 = vpack.c.b16 %v8853, %v8852
        %v9103 = vpack.c.b16 %v8855, %v8854
        %v9104 = vpack.c.b16 %v8857, %v8856
        %v9105 = vpack.c.b16 %v8859, %v8858
        %v9106 = vpack.c.b16 %v8861, %v8860
        %v9107 = vpack.c.b16 %v8863, %v8862
        %v9108 = vpack.c.b16 %v8865, %v8864
        %v9109 = vpack.c.b16 %v8867, %v8866
        %v9110 = vpack.c.b16 %v8869, %v8868
        %v9111 = vpack.c.b16 %v8871, %v8870
        %v9112 = vpack.c.b16 %v8873, %v8872
        %v9113 = vpack.c.b16 %v8875, %v8874
        %v9114 = vpack.c.b16 %v8877, %v8876
        %v9115 = vpack.c.b16 %v8879, %v8878
        %v9116 = vpack.c.b16 %v8881, %v8880
        %v9117 = vpack.c.b16 %v8883, %v8882
        %v9118 = vpack.c.b16 %v8885, %v8884
        %v9119 = vpack.c.b16 %v8887, %v8886
        %v9120 = vpack.c.b16 %v8889, %v8888
        %v9121 = vpack.c.b16 %v8891, %v8890
        %v9122 = vpack.c.b16 %v8893, %v8892
        %v9123 = vpack.c.b16 %v8895, %v8894
        %v9124 = vpack.c.b16 %v8897, %v8896
        %v9125 = vpack.c.b16 %v8899, %v8898
        %v9126 = vpack.c.b16 %v8901, %v8900
        %v9127 = vpack.c.b16 %v8903, %v8902
        %v9128 = vpack.c.b16 %v8905, %v8904
        %v9129 = vpack.c.b16 %v8907, %v8906
        %v9130 = vpack.c.b16 %v8909, %v8908
        %v9131 = vpack.c.b16 %v8911, %v8910
        %v9132 = vpack.c.b16 %v8913, %v8912
        %v9133 = vpack.c.b16 %v8915, %v8914
        %v9134 = vpack.c.b16 %v8917, %v8916
        %v9135 = vpack.c.b16 %v8919, %v8918
        %v9136 = vpack.c.b16 %v8921, %v8920
        %v9137 = vpack.c.b16 %v8923, %v8922
        %v9138 = vpack.c.b16 %v8925, %v8924
        %v9139 = vpack.c.b16 %v8927, %v8926
        %v9140 = vpack.c.b16 %v8929, %v8928
        %v9141 = vpack.c.b16 %v8931, %v8930
        %v9142 = vpack.c.b16 %v8933, %v8932
        %v9143 = vpack.c.b16 %v8935, %v8934
        %v9144 = vpack.c.b16 %v8937, %v8936
        %v9145 = vpack.c.b16 %v8939, %v8938
        %v9146 = vpack.c.b16 %v8941, %v8940
        %v9147 = vpack.c.b16 %v8943, %v8942
        %v9148 = vpack.c.b16 %v8945, %v8944
        %v9149 = vpack.c.b16 %v8947, %v8946
        %v9150 = vpack.c.b16 %v8949, %v8948
        %v9151 = vpack.c.b16 %v8951, %v8950
        %v9152 = vpack.c.b16 %v8953, %v8952
        %v9153 = vpack.c.b16 %v8955, %v8954
        %v9154 = vpack.c.b16 %v8957, %v8956
        %v9155 = vpack.c.b16 %v8959, %v8958
        %v9156 = vpack.c.b16 %v8961, %v8960
        %v9157 = vpack.c.b16 %v8963, %v8962
        %v9158 = vpack.c.b16 %v8965, %v8964
        %v9159 = vpack.c.b16 %v8967, %v8966
        %v9160 = vpack.c.b16 %v8969, %v8968
        %v9161 = vpack.c.b16 %v8971, %v8970
        %v9162 = vpack.c.b16 %v8973, %v8972
        %v9163 = vpack.c.b16 %v8975, %v8974
        %v9164 = vpack.c.b16 %v8977, %v8976
        %v9165 = vpack.c.b16 %v8979, %v8978
        %v9166 = vpack.c.b16 %v8981, %v8980
        %v9167 = vpack.c.b16 %v8983, %v8982
        %v9168 = vpack.c.b16 %v8985, %v8984
        %v9169 = vpack.c.b16 %v8987, %v8986
        %v9170 = vpack.c.b16 %v8989, %v8988
        %v9171 = vpack.c.b16 %v8991, %v8990
        %v9172 = vpack.c.b16 %v8993, %v8992
        %v9173 = vpack.c.b16 %v8995, %v8994
        %v9174 = vpack.c.b16 %v8997, %v8996
        %v9175 = vpack.c.b16 %v8999, %v8998
        %v9176 = vpack.c.b16 %v9001, %v9000
        %v9177 = vpack.c.b16 %v9003, %v9002
        %v9178 = vpack.c.b16 %v9005, %v9004
        %v9179 = vpack.c.b16 %v9007, %v9006
        %v9180 = vpack.c.b16 %v9009, %v9008
        %v9181 = vpack.c.b16 %v9011, %v9010
        %v9182 = vpack.c.b16 %v9013, %v9012
        %v9183 = vpack.c.b16 %v9015, %v9014
        %v9184 = vpack.c.b16 %v9017, %v9016
        %v9185 = vpack.c.b16 %v9019, %v9018
        %v9186 = vpack.c.b16 %v9021, %v9020
        %v9187 = vpack.c.b16 %v9023, %v9022
        %v9188 = vpack.c.b16 %v9025, %v9024
        %v9189 = vpack.c.b16 %v9027, %v9026
        %v9190 = vpack.c.b16 %v9029, %v9028
        %v9191 = vpack.c.b16 %v9031, %v9030
        %v9192 = vpack.c.b16 %v9033, %v9032
        %v9193 = vpack.c.b16 %v9035, %v9034
        %v9194 = vpack.c.b16 %v9037, %v9036
        %v9195 = vpack.c.b16 %v9039, %v9038
        %v9196 = vpack.c.b16 %v9041, %v9040
        %v9197 = vpack.c.b16 %v9043, %v9042
        %v9198 = vpack.c.b16 %v9045, %v9044
        %v9199 = vpack.c.b16 %v9047, %v9046
        %v9200 = vpack.c.b16 %v9049, %v9048
        %v9201 = vpack.c.b16 %v9051, %v9050
        %v9202 = vpack.c.b16 %v9053, %v9052
        %v9203 = vpack.c.b16 %v9055, %v9054
        %v9204 = vpack.c.b16 %v9057, %v9056
        %v9205 = vpack.c.b16 %v9059, %v9058
        %v9206 = vpack.c.b16 %v9061, %v9060
        %v9207 = vpack.c.b16 %v9063, %v9062
        %v9208 = vpack.c.b16 %v9065, %v9064
        %v9209 = vpack.c.b16 %v9067, %v9066
        %v9210 = vpack.c.b16 %v9069, %v9068
        %v9211 = vpack.c.b16 %v9071, %v9070
        %v9212 = vpack.c.b16 %v9073, %v9072
        %v9213 = vpack.c.b16 %v9075, %v9074
        %v9214 = vpack.c.b16 %v9077, %v9076
        %v9215 = vpack.c.b16 %v9079, %v9078
        %v9216 = vpack.c.b16 %v9081, %v9080
        %v9217 = vpack.c.b16 %v9083, %v9082
        %v9218 = vpack.c.b16 %v9085, %v9084
        %v9219 = vpack.c.b16 %v9087, %v9086
        %v9220 = vpack.c.b16 %v9089, %v9088
        %v9221 = vpack.c.b16 %v9091, %v9090
        %v9222 = vpack.c.b16 %v9093, %v9092
        %v9223 = vpack.c.b16 %v9095, %v9094
        %9352 = vmatprep.subr.bf16.mxu0 0
        %9353 = vmatpush1.bf16.msra.mxu0 %v9096
        %9354 = vmatprep.subr.bf16.mxu0 0
        %9355 = vmatpush1.bf16.msra.mxu0 %v9097
        %9356 = vmatprep.subr.bf16.mxu0 0
        %9357 = vmatpush1.bf16.msra.mxu0 %v9098
        %9358 = vmatprep.subr.bf16.mxu0 0
        %9359 = vmatpush1.bf16.msra.mxu0 %v9099
        %9360 = vmatprep.subr.bf16.mxu0 0
        %9361 = vmatpush1.bf16.msra.mxu0 %v9100
        %9362 = vmatprep.subr.bf16.mxu0 0
        %9363 = vmatpush1.bf16.msra.mxu0 %v9101
        %9364 = vmatprep.subr.bf16.mxu0 0
        %9365 = vmatpush1.bf16.msra.mxu0 %v9102
        %9366 = vmatprep.subr.bf16.mxu0 0
        %9367 = vmatpush1.bf16.msra.mxu0 %v9103
        %9368 = vmatprep.subr.bf16.mxu0 0
        %9369 = vmatpush1.bf16.msra.mxu0 %v9104
        %9370 = vmatprep.subr.bf16.mxu0 0
        %9371 = vmatpush1.bf16.msra.mxu0 %v9105
        %9372 = vmatprep.subr.bf16.mxu0 0
        %9373 = vmatpush1.bf16.msra.mxu0 %v9106
        %9374 = vmatprep.subr.bf16.mxu0 0
        %9375 = vmatpush1.bf16.msra.mxu0 %v9107
        %9376 = vmatprep.subr.bf16.mxu0 0
        %9377 = vmatpush1.bf16.msra.mxu0 %v9108
        %9378 = vmatprep.subr.bf16.mxu0 0
        %9379 = vmatpush1.bf16.msra.mxu0 %v9109
        %9380 = vmatprep.subr.bf16.mxu0 0
        %9381 = vmatpush1.bf16.msra.mxu0 %v9110
        %9382 = vmatprep.subr.bf16.mxu0 0
        %9383 = vmatpush1.bf16.msra.mxu0 %v9111
        %9384 = vmatprep.mubr.bf16.mxu0 %v8563
        %9385 = vmatmul.mubr.bf16.gmra.mrb[0].mxu0 %v8562
        %v9386 = vpop.f32.mrb[0].mxu0
        %v9387 = vadd.f32 %v8582, %v9386
        %v9388 = vpop.f32.mrb[0].mxu0
        %v9389 = vpop.f32.mrb[0].mxu0
        %v9390 = vadd.f32 %v8582, %v9389
        %v9391 = vpop.f32.mrb[0].mxu0
        %9392 = vdwg.mxu0
        %9393 = vmatprep.subr.bf16.mxu0 0
        %9394 = vmatpush1.bf16.msra.mxu0 %v9112
        %9395 = vmatprep.subr.bf16.mxu0 0
        %9396 = vmatpush1.bf16.msra.mxu0 %v9113
        %9397 = vmatprep.subr.bf16.mxu0 0
        %9398 = vmatpush1.bf16.msra.mxu0 %v9114
        %9399 = vmatprep.subr.bf16.mxu0 0
        %9400 = vmatpush1.bf16.msra.mxu0 %v9115
        %9401 = vmatprep.subr.bf16.mxu0 0
        %9402 = vmatpush1.bf16.msra.mxu0 %v9116
        %9403 = vmatprep.subr.bf16.mxu0 0
        %9404 = vmatpush1.bf16.msra.mxu0 %v9117
        %9405 = vmatprep.subr.bf16.mxu0 0
        %9406 = vmatpush1.bf16.msra.mxu0 %v9118
        %9407 = vmatprep.subr.bf16.mxu0 0
        %9408 = vmatpush1.bf16.msra.mxu0 %v9119
        %9409 = vmatprep.subr.bf16.mxu0 0
        %9410 = vmatpush1.bf16.msra.mxu0 %v9120
        %9411 = vmatprep.subr.bf16.mxu0 0
        %9412 = vmatpush1.bf16.msra.mxu0 %v9121
        %9413 = vmatprep.subr.bf16.mxu0 0
        %9414 = vmatpush1.bf16.msra.mxu0 %v9122
        %9415 = vmatprep.subr.bf16.mxu0 0
        %9416 = vmatpush1.bf16.msra.mxu0 %v9123
        %9417 = vmatprep.subr.bf16.mxu0 0
        %9418 = vmatpush1.bf16.msra.mxu0 %v9124
        %9419 = vmatprep.subr.bf16.mxu0 0
        %9420 = vmatpush1.bf16.msra.mxu0 %v9125
        %9421 = vmatprep.subr.bf16.mxu0 0
        %9422 = vmatpush1.bf16.msra.mxu0 %v9126
        %9423 = vmatprep.subr.bf16.mxu0 0
        %9424 = vmatpush1.bf16.msra.mxu0 %v9127
        %9425 = vmatprep.mubr.bf16.mxu0 %v8565
        %9426 = vmatmul.mubr.bf16.gmra.mrb[0].mxu0 %v8564
        %v9427 = vpop.f32.mrb[0].mxu0
        %v9428 = vadd.f32 %v9387, %v9427
        %v9429 = vpop.f32.mrb[0].mxu0
        %v9430 = vpop.f32.mrb[0].mxu0
        %v9431 = vadd.f32 %v9390, %v9430
        %v9432 = vpop.f32.mrb[0].mxu0
        %9433 = vdwg.mxu0
        %9434 = vmatprep.subr.bf16.mxu0 0
        %9435 = vmatpush1.bf16.msra.mxu0 %v9128
        %9436 = vmatprep.subr.bf16.mxu0 0
        %9437 = vmatpush1.bf16.msra.mxu0 %v9129
        %9438 = vmatprep.subr.bf16.mxu0 0
        %9439 = vmatpush1.bf16.msra.mxu0 %v9130
        %9440 = vmatprep.subr.bf16.mxu0 0
        %9441 = vmatpush1.bf16.msra.mxu0 %v9131
        %9442 = vmatprep.subr.bf16.mxu0 0
        %9443 = vmatpush1.bf16.msra.mxu0 %v9132
        %9444 = vmatprep.subr.bf16.mxu0 0
        %9445 = vmatpush1.bf16.msra.mxu0 %v9133
        %9446 = vmatprep.subr.bf16.mxu0 0
        %9447 = vmatpush1.bf16.msra.mxu0 %v9134
        %9448 = vmatprep.subr.bf16.mxu0 0
        %9449 = vmatpush1.bf16.msra.mxu0 %v9135
        %9450 = vmatprep.subr.bf16.mxu0 0
        %9451 = vmatpush1.bf16.msra.mxu0 %v9136
        %9452 = vmatprep.subr.bf16.mxu0 0
        %9453 = vmatpush1.bf16.msra.mxu0 %v9137
        %9454 = vmatprep.subr.bf16.mxu0 0
        %9455 = vmatpush1.bf16.msra.mxu0 %v9138
        %9456 = vmatprep.subr.bf16.mxu0 0
        %9457 = vmatpush1.bf16.msra.mxu0 %v9139
        %9458 = vmatprep.subr.bf16.mxu0 0
        %9459 = vmatpush1.bf16.msra.mxu0 %v9140
        %9460 = vmatprep.subr.bf16.mxu0 0
        %9461 = vmatpush1.bf16.msra.mxu0 %v9141
        %9462 = vmatprep.subr.bf16.mxu0 0
        %9463 = vmatpush1.bf16.msra.mxu0 %v9142
        %9464 = vmatprep.subr.bf16.mxu0 0
        %9465 = vmatpush1.bf16.msra.mxu0 %v9143
        %9466 = vmatprep.mubr.bf16.mxu0 %v8567
        %9467 = vmatmul.mubr.bf16.gmra.mrb[0].mxu0 %v8566
        %v9468 = vpop.f32.mrb[0].mxu0
        %v9469 = vadd.f32 %v9428, %v9468
        %v9470 = vpop.f32.mrb[0].mxu0
        %v9471 = vpop.f32.mrb[0].mxu0
        %v9472 = vadd.f32 %v9431, %v9471
        %v9473 = vpop.f32.mrb[0].mxu0
        %9474 = vdwg.mxu0
        %9475 = vmatprep.subr.bf16.mxu0 0
        %9476 = vmatpush1.bf16.msra.mxu0 %v9144
        %9477 = vmatprep.subr.bf16.mxu0 0
        %9478 = vmatpush1.bf16.msra.mxu0 %v9145
        %9479 = vmatprep.subr.bf16.mxu0 0
        %9480 = vmatpush1.bf16.msra.mxu0 %v9146
        %9481 = vmatprep.subr.bf16.mxu0 0
        %9482 = vmatpush1.bf16.msra.mxu0 %v9147
        %9483 = vmatprep.subr.bf16.mxu0 0
        %9484 = vmatpush1.bf16.msra.mxu0 %v9148
        %9485 = vmatprep.subr.bf16.mxu0 0
        %9486 = vmatpush1.bf16.msra.mxu0 %v9149
        %9487 = vmatprep.subr.bf16.mxu0 0
        %9488 = vmatpush1.bf16.msra.mxu0 %v9150
        %9489 = vmatprep.subr.bf16.mxu0 0
        %9490 = vmatpush1.bf16.msra.mxu0 %v9151
        %9491 = vmatprep.subr.bf16.mxu0 0
        %9492 = vmatpush1.bf16.msra.mxu0 %v9152
        %9493 = vmatprep.subr.bf16.mxu0 0
        %9494 = vmatpush1.bf16.msra.mxu0 %v9153
        %9495 = vmatprep.subr.bf16.mxu0 0
        %9496 = vmatpush1.bf16.msra.mxu0 %v9154
        %9497 = vmatprep.subr.bf16.mxu0 0
        %9498 = vmatpush1.bf16.msra.mxu0 %v9155
        %9499 = vmatprep.subr.bf16.mxu0 0
        %9500 = vmatpush1.bf16.msra.mxu0 %v9156
        %9501 = vmatprep.subr.bf16.mxu0 0
        %9502 = vmatpush1.bf16.msra.mxu0 %v9157
        %9503 = vmatprep.subr.bf16.mxu0 0
        %9504 = vmatpush1.bf16.msra.mxu0 %v9158
        %9505 = vmatprep.subr.bf16.mxu0 0
        %9506 = vmatpush1.bf16.msra.mxu0 %v9159
        %9507 = vmatprep.mubr.bf16.mxu0 %v8569
        %9508 = vmatmul.mubr.bf16.gmra.mrb[0].mxu0 %v8568
        %v9509 = vpop.f32.mrb[0].mxu0
        %v9510 = vadd.f32 %v9469, %v9509
        %v9511 = vpop.f32.mrb[0].mxu0
        %v9512 = vpop.f32.mrb[0].mxu0
        %v9513 = vadd.f32 %v9472, %v9512
        %v9514 = vpop.f32.mrb[0].mxu0
        %9515 = vdwg.mxu0
        %9516 = vmatprep.subr.bf16.mxu0 0
        %9517 = vmatpush1.bf16.msra.mxu0 %v9160
        %9518 = vmatprep.subr.bf16.mxu0 0
        %9519 = vmatpush1.bf16.msra.mxu0 %v9161
        %9520 = vmatprep.subr.bf16.mxu0 0
        %9521 = vmatpush1.bf16.msra.mxu0 %v9162
        %9522 = vmatprep.subr.bf16.mxu0 0
        %9523 = vmatpush1.bf16.msra.mxu0 %v9163
        %9524 = vmatprep.subr.bf16.mxu0 0
        %9525 = vmatpush1.bf16.msra.mxu0 %v9164
        %9526 = vmatprep.subr.bf16.mxu0 0
        %9527 = vmatpush1.bf16.msra.mxu0 %v9165
        %9528 = vmatprep.subr.bf16.mxu0 0
        %9529 = vmatpush1.bf16.msra.mxu0 %v9166
        %9530 = vmatprep.subr.bf16.mxu0 0
        %9531 = vmatpush1.bf16.msra.mxu0 %v9167
        %9532 = vmatprep.subr.bf16.mxu0 0
        %9533 = vmatpush1.bf16.msra.mxu0 %v9168
        %9534 = vmatprep.subr.bf16.mxu0 0
        %9535 = vmatpush1.bf16.msra.mxu0 %v9169
        %9536 = vmatprep.subr.bf16.mxu0 0
        %9537 = vmatpush1.bf16.msra.mxu0 %v9170
        %9538 = vmatprep.subr.bf16.mxu0 0
        %9539 = vmatpush1.bf16.msra.mxu0 %v9171
        %9540 = vmatprep.subr.bf16.mxu0 0
        %9541 = vmatpush1.bf16.msra.mxu0 %v9172
        %9542 = vmatprep.subr.bf16.mxu0 0
        %9543 = vmatpush1.bf16.msra.mxu0 %v9173
        %9544 = vmatprep.subr.bf16.mxu0 0
        %9545 = vmatpush1.bf16.msra.mxu0 %v9174
        %9546 = vmatprep.subr.bf16.mxu0 0
        %9547 = vmatpush1.bf16.msra.mxu0 %v9175
        %9548 = vmatprep.mubr.bf16.mxu0 %v8571
        %9549 = vmatmul.mubr.bf16.gmra.mrb[0].mxu0 %v8570
        %v9550 = vpop.f32.mrb[0].mxu0
        %v9551 = vadd.f32 %v9510, %v9550
        %v9552 = vpop.f32.mrb[0].mxu0
        %v9553 = vpop.f32.mrb[0].mxu0
        %v9554 = vadd.f32 %v9513, %v9553
        %v9555 = vpop.f32.mrb[0].mxu0
        %9556 = vdwg.mxu0
        %9557 = vmatprep.subr.bf16.mxu0 0
        %9558 = vmatpush1.bf16.msra.mxu0 %v9176
        %9559 = vmatprep.subr.bf16.mxu0 0
        %9560 = vmatpush1.bf16.msra.mxu0 %v9177
        %9561 = vmatprep.subr.bf16.mxu0 0
        %9562 = vmatpush1.bf16.msra.mxu0 %v9178
        %9563 = vmatprep.subr.bf16.mxu0 0
        %9564 = vmatpush1.bf16.msra.mxu0 %v9179
        %9565 = vmatprep.subr.bf16.mxu0 0
        %9566 = vmatpush1.bf16.msra.mxu0 %v9180
        %9567 = vmatprep.subr.bf16.mxu0 0
        %9568 = vmatpush1.bf16.msra.mxu0 %v9181
        %9569 = vmatprep.subr.bf16.mxu0 0
        %9570 = vmatpush1.bf16.msra.mxu0 %v9182
        %9571 = vmatprep.subr.bf16.mxu0 0
        %9572 = vmatpush1.bf16.msra.mxu0 %v9183
        %9573 = vmatprep.subr.bf16.mxu0 0
        %9574 = vmatpush1.bf16.msra.mxu0 %v9184
        %9575 = vmatprep.subr.bf16.mxu0 0
        %9576 = vmatpush1.bf16.msra.mxu0 %v9185
        %9577 = vmatprep.subr.bf16.mxu0 0
        %9578 = vmatpush1.bf16.msra.mxu0 %v9186
        %9579 = vmatprep.subr.bf16.mxu0 0
        %9580 = vmatpush1.bf16.msra.mxu0 %v9187
        %9581 = vmatprep.subr.bf16.mxu0 0
        %9582 = vmatpush1.bf16.msra.mxu0 %v9188
        %9583 = vmatprep.subr.bf16.mxu0 0
        %9584 = vmatpush1.bf16.msra.mxu0 %v9189
        %9585 = vmatprep.subr.bf16.mxu0 0
        %9586 = vmatpush1.bf16.msra.mxu0 %v9190
        %9587 = vmatprep.subr.bf16.mxu0 0
        %9588 = vmatpush1.bf16.msra.mxu0 %v9191
        %9589 = vmatprep.mubr.bf16.mxu0 %v8573
        %9590 = vmatmul.mubr.bf16.gmra.mrb[0].mxu0 %v8572
        %v9591 = vpop.f32.mrb[0].mxu0
        %v9592 = vadd.f32 %v9551, %v9591
        %v9593 = vpop.f32.mrb[0].mxu0
        %v9594 = vpop.f32.mrb[0].mxu0
        %v9595 = vadd.f32 %v9554, %v9594
        %v9596 = vpop.f32.mrb[0].mxu0
        %9597 = vdwg.mxu0
        %9598 = vmatprep.subr.bf16.mxu0 0
        %9599 = vmatpush1.bf16.msra.mxu0 %v9192
        %9600 = vmatprep.subr.bf16.mxu0 0
        %9601 = vmatpush1.bf16.msra.mxu0 %v9193
        %9602 = vmatprep.subr.bf16.mxu0 0
        %9603 = vmatpush1.bf16.msra.mxu0 %v9194
        %9604 = vmatprep.subr.bf16.mxu0 0
        %9605 = vmatpush1.bf16.msra.mxu0 %v9195
        %9606 = vmatprep.subr.bf16.mxu0 0
        %9607 = vmatpush1.bf16.msra.mxu0 %v9196
        %9608 = vmatprep.subr.bf16.mxu0 0
        %9609 = vmatpush1.bf16.msra.mxu0 %v9197
        %9610 = vmatprep.subr.bf16.mxu0 0
        %9611 = vmatpush1.bf16.msra.mxu0 %v9198
        %9612 = vmatprep.subr.bf16.mxu0 0
        %9613 = vmatpush1.bf16.msra.mxu0 %v9199
        %9614 = vmatprep.subr.bf16.mxu0 0
        %9615 = vmatpush1.bf16.msra.mxu0 %v9200
        %9616 = vmatprep.subr.bf16.mxu0 0
        %9617 = vmatpush1.bf16.msra.mxu0 %v9201
        %9618 = vmatprep.subr.bf16.mxu0 0
        %9619 = vmatpush1.bf16.msra.mxu0 %v9202
        %9620 = vmatprep.subr.bf16.mxu0 0
        %9621 = vmatpush1.bf16.msra.mxu0 %v9203
        %9622 = vmatprep.subr.bf16.mxu0 0
        %9623 = vmatpush1.bf16.msra.mxu0 %v9204
        %9624 = vmatprep.subr.bf16.mxu0 0
        %9625 = vmatpush1.bf16.msra.mxu0 %v9205
        %9626 = vmatprep.subr.bf16.mxu0 0
        %9627 = vmatpush1.bf16.msra.mxu0 %v9206
        %9628 = vmatprep.subr.bf16.mxu0 0
        %9629 = vmatpush1.bf16.msra.mxu0 %v9207
        %9630 = vmatprep.mubr.bf16.mxu0 %v8575
        %9631 = vmatmul.mubr.bf16.gmra.mrb[0].mxu0 %v8574
        %v9632 = vpop.f32.mrb[0].mxu0
        %v9633 = vadd.f32 %v9592, %v9632
        %v9634 = vpop.f32.mrb[0].mxu0
        %v9635 = vpop.f32.mrb[0].mxu0
        %v9636 = vadd.f32 %v9595, %v9635
        %v9637 = vpop.f32.mrb[0].mxu0
        %9638 = vdwg.mxu0
        %9639 = vmatprep.subr.bf16.mxu0 0
        %9640 = vmatpush1.bf16.msra.mxu0 %v9208
        %9641 = vmatprep.subr.bf16.mxu0 0
        %9642 = vmatpush1.bf16.msra.mxu0 %v9209
        %9643 = vmatprep.subr.bf16.mxu0 0
        %9644 = vmatpush1.bf16.msra.mxu0 %v9210
        %9645 = vmatprep.subr.bf16.mxu0 0
        %9646 = vmatpush1.bf16.msra.mxu0 %v9211
        %9647 = vmatprep.subr.bf16.mxu0 0
        %9648 = vmatpush1.bf16.msra.mxu0 %v9212
        %9649 = vmatprep.subr.bf16.mxu0 0
        %9650 = vmatpush1.bf16.msra.mxu0 %v9213
        %9651 = vmatprep.subr.bf16.mxu0 0
        %9652 = vmatpush1.bf16.msra.mxu0 %v9214
        %9653 = vmatprep.subr.bf16.mxu0 0
        %9654 = vmatpush1.bf16.msra.mxu0 %v9215
        %9655 = vmatprep.subr.bf16.mxu0 0
        %9656 = vmatpush1.bf16.msra.mxu0 %v9216
        %9657 = vmatprep.subr.bf16.mxu0 0
        %9658 = vmatpush1.bf16.msra.mxu0 %v9217
        %9659 = vmatprep.subr.bf16.mxu0 0
        %9660 = vmatpush1.bf16.msra.mxu0 %v9218
        %9661 = vmatprep.subr.bf16.mxu0 0
        %9662 = vmatpush1.bf16.msra.mxu0 %v9219
        %9663 = vmatprep.subr.bf16.mxu0 0
        %9664 = vmatpush1.bf16.msra.mxu0 %v9220
        %9665 = vmatprep.subr.bf16.mxu0 0
        %9666 = vmatpush1.bf16.msra.mxu0 %v9221
        %9667 = vmatprep.subr.bf16.mxu0 0
        %9668 = vmatpush1.bf16.msra.mxu0 %v9222
        %9669 = vmatprep.subr.bf16.mxu0 0
        %9670 = vmatpush1.bf16.msra.mxu0 %v9223
        %9671 = vmatprep.mubr.bf16.mxu0 %v8577
        %9672 = vmatmul.mubr.bf16.gmra.mrb[0].mxu0 %v8576
        %v9673 = vpop.f32.mrb[0].mxu0
        %v9674 = vadd.f32 %v9633, %v9673
        %v9675 = vpop.f32.mrb[0].mxu0
        %v9676 = vpop.f32.mrb[0].mxu0
        %v9677 = vadd.f32 %v9636, %v9676
        %v9678 = vpop.f32.mrb[0].mxu0
        %9679 = vdwg.mxu0
        %v9680 = vadd.f32 %v7647, %v9674
        %v9681 = vadd.f32 %v7648, %v9677
        %v9682 = vld [vmem:[%s2111] sm:$0x1]
        %v9683 = vld [vmem:[%s2120] sm:$0x1]
        %v9684 = vsel %vm5418, %v9680, 0.0
        %9685 = vadd.xlane.f32.xlu0 %v9684
        %v9686 = vpop.xlane.xlu0 %9685
        %v9687 = vsel %vm5418, %v9681, 0.0
        %9688 = vadd.xlane.f32.xlu0 %v9687
        %v9689 = vpop.xlane.xlu0 %9688
        %v9690 = vmul.f32 %v9686, %v6460
        %v9691 = vmul.f32 %v9689, %v6460
        %v9692 = vsub.f32 %v9680, %v9690
        %v9693 = vsub.f32 %v9681, %v9691
        %v9694 = vmul.f32 %v9692, %v9692
        %v9695 = vmul.f32 %v9693, %v9693
        %v9696 = vsel %vm5418, %v9694, 0.0
        %9697 = vadd.xlane.f32.xlu0 %v9696
        %v9698 = vpop.xlane.xlu0 %9697
        %v9699 = vsel %vm5418, %v9695, 0.0
        %9700 = vadd.xlane.f32.xlu0 %v9699
        %v9701 = vpop.xlane.xlu0 %9700
        %v9702 = vmul.f32 %v9698, %v6460
        %v9703 = vmul.f32 %v9701, %v6460
        %v9704 = vadd.f32 %v9702, 1e-05
        %v9705 = vadd.f32 %v9703, 1e-05
        %v9706 = vrsqrt.pop %v9704
        %v9707 = vrsqrt.pop %v9705
        %v9708 = vmul.f32 %v9692, %v9706
        %v9709 = vmul.f32 %v9693, %v9707
        %v9711 = vlaneseq
        %v9712 = vshrl.u32 %v9711, 7
        %v9713 = vsub.s32 0, %v9712
        %v9714 = vrot.slane %v9682, %v9713
        %v9716 = vmul.f32 %v9708, %v9714
        %v9717 = vmul.f32 %v9709, %v9714
        %v9719 = vlaneseq
        %v9720 = vshrl.u32 %v9719, 7
        %v9721 = vsub.s32 0, %v9720
        %v9722 = vrot.slane %v9683, %v9721
        %v9724 = vadd.f32 %v9716, %v9722
        %v9725 = vadd.f32 %v9717, %v9722
        %p9726 = scmp.lt.s32.totalorder %s86, 7
        // Predicated region
        $region189: #{transformer_model_forward.1} parent=187 // pred_check
          %p9727 = pneg %p9726
        $region190: #{transformer_model_forward.1} parent=187 // pred_check_branch
          %9729 = sbr.rel (%p9727) target = $region192
        $region191: #{transformer_model_forward.1} parent=187 // pred_region
          %9730 = vst.msk [vmem:[#allocation2] sm:$0xff] %vm5418, %v9724
          %9731 = vst.msk [vmem:[#allocation2 + $0x8] sm:$0xff] %vm5418, %v9725
        $region192: #{transformer_model_forward.1} parent=187 // pred_fallthru
          _
        %p9732 = scmp.eq.s32.totalorder %s86, 7
        // Predicated region
        $region193: #{transformer_model_forward.1} parent=187 // pred_check
          %p9733 = pneg %p9732
        $region194: #{transformer_model_forward.1} parent=187 // pred_check_branch
          %9735 = sbr.rel (%p9733) target = $region196
        $region195: #{transformer_model_forward.1} parent=187 // pred_region
          %v9736 = vld [vmem:[%s67] sm:$0x1]
          %v9737 = vld [vmem:[%s69] sm:$0x1]
          %v9738 = vsel %vm5418, %v9724, 0.0
          %9739 = vadd.xlane.f32.xlu0 %v9738
          %v9740 = vpop.xlane.xlu0 %9739
          %v9741 = vsel %vm5418, %v9725, 0.0
          %9742 = vadd.xlane.f32.xlu0 %v9741
          %v9743 = vpop.xlane.xlu0 %9742
          %v9744 = vmul.f32 %v9740, %v6460
          %v9745 = vmul.f32 %v9743, %v6460
          %v9746 = vsub.f32 %v9724, %v9744
          %v9747 = vsub.f32 %v9725, %v9745
          %v9748 = vmul.f32 %v9746, %v9746
          %v9749 = vmul.f32 %v9747, %v9747
          %v9750 = vsel %vm5418, %v9748, 0.0
          %9751 = vadd.xlane.f32.xlu0 %v9750
          %v9752 = vpop.xlane.xlu0 %9751
          %v9753 = vsel %vm5418, %v9749, 0.0
          %9754 = vadd.xlane.f32.xlu0 %v9753
          %v9755 = vpop.xlane.xlu0 %9754
          %v9756 = vmul.f32 %v9752, %v6460
          %v9757 = vmul.f32 %v9755, %v6460
          %v9758 = vadd.f32 %v9756, 1e-05
          %v9759 = vadd.f32 %v9757, 1e-05
          %v9760 = vrsqrt.pop %v9758
          %v9761 = vrsqrt.pop %v9759
          %v9762 = vmul.f32 %v9746, %v9760
          %v9763 = vmul.f32 %v9747, %v9761
          %v9765 = vlaneseq
          %v9766 = vshrl.u32 %v9765, 7
          %v9767 = vsub.s32 0, %v9766
          %v9768 = vrot.slane %v9736, %v9767
          %v9770 = vmul.f32 %v9762, %v9768
          %v9771 = vmul.f32 %v9763, %v9768
          %v9773 = vlaneseq
          %v9774 = vshrl.u32 %v9773, 7
          %v9775 = vsub.s32 0, %v9774
          %v9776 = vrot.slane %v9737, %v9775
          %v9778 = vadd.f32 %v9770, %v9776
          %v9779 = vadd.f32 %v9771, %v9776
          %v9780 = vld [vmem:[%s71] sm:$0xf]
          %v9781 = vld [vmem:[%s71 + $0x4] sm:$0xf]
          %v9782 = vld [vmem:[%s71 + $0x8] sm:$0xf]
          %v9783 = vld [vmem:[%s71 + $0xc] sm:$0xf]
          %v9784 = vld [vmem:[%s73] sm:$0x1]
          %v9785 = vpack.c.bf16 %v9779, %v9778
          %v9787 = vlaneseq
          %v9788 = vshrl.u32 %v9787, 7
          %v9789 = vsub.s32 0, %v9788
          %v9790 = vrot.slane %v9784, %v9789
          %v9796 = vunpack.c.l.b16 %v9780
          %v9797 = vunpack.c.l.b16 %v9781
          %v9798 = vunpack.c.l.b16 %v9782
          %v9799 = vunpack.c.l.b16 %v9783
          %v9800 = vpack.c.b16 %v9797, %v9796
          %v9801 = vpack.c.b16 %v9799, %v9798
          %v9805 = vsel %vm5418, %v9785, 0
          %9807 = vmatprep.subr.bf16.mxu0 0
          %9808 = vmatpush1.bf16.msra.mxu0 %v9800
          %9809 = vmatprep.subr.bf16.mxu0 0
          %9810 = vmatpush1.bf16.msra.mxu0 %v9801
          %9811 = vmatprep.subr.bf16.mxu0 0
          %9812 = vmatpush1.bf16.msra.mxu0 0
          %9813 = vmatprep.subr.bf16.mxu0 0
          %9814 = vmatpush1.bf16.msra.mxu0 0
          %9815 = vmatprep.subr.bf16.mxu0 0
          %9816 = vmatpush1.bf16.msra.mxu0 0
          %9817 = vmatprep.subr.bf16.mxu0 0
          %9818 = vmatpush1.bf16.msra.mxu0 0
          %9819 = vmatprep.subr.bf16.mxu0 0
          %9820 = vmatpush1.bf16.msra.mxu0 0
          %9821 = vmatprep.subr.bf16.mxu0 0
          %9822 = vmatpush1.bf16.msra.mxu0 0
          %9823 = vmatprep.subr.bf16.mxu0 0
          %9824 = vmatpush1.bf16.msra.mxu0 0
          %9825 = vmatprep.subr.bf16.mxu0 0
          %9826 = vmatpush1.bf16.msra.mxu0 0
          %9827 = vmatprep.subr.bf16.mxu0 0
          %9828 = vmatpush1.bf16.msra.mxu0 0
          %9829 = vmatprep.subr.bf16.mxu0 0
          %9830 = vmatpush1.bf16.msra.mxu0 0
          %9831 = vmatprep.subr.bf16.mxu0 0
          %9832 = vmatpush1.bf16.msra.mxu0 0
          %9833 = vmatprep.subr.bf16.mxu0 0
          %9834 = vmatpush1.bf16.msra.mxu0 0
          %9835 = vmatprep.subr.bf16.mxu0 0
          %9836 = vmatpush1.bf16.msra.mxu0 0
          %9837 = vmatprep.subr.bf16.mxu0 0
          %9838 = vmatpush1.bf16.msra.mxu0 0
          %9839 = vmatprep.mubr.bf16.mxu0 0
          %9840 = vmatmul.mubr.bf16.gmra.mrb[0].mxu0 %v9805
          %v9841 = vpop.f32.mrb[0].mxu0
          %v9842 = vadd.f32 %v9790, %v9841
          %v9843 = vpop.f32.mrb[0].mxu0
          %v9844 = vpop.f32.mrb[0].mxu0
          %v9845 = vadd.f32 %v9790, %v9844
          %v9846 = vpop.f32.mrb[0].mxu0
          %9847 = vdwg.mxu0
          %9848 = vst [vmem:[%s75] sm:$0xff] %v9842
          %9849 = vst [vmem:[%s75 + $0x8] sm:$0xff] %v9845
        $region196: #{transformer_model_forward.1} parent=187 // pred_fallthru
          _
      $region188: #{transformer_model_forward.1} parent=167 // pred_fallthru
        _
      // Predicated region
      $region197: #{transformer_model_forward.1} parent=167 // pred_check
        %p9850 = pneg %p1182
      $region198: #{transformer_model_forward.1} parent=167 // pred_check_branch
        %9852 = sbr.rel (%p9850) target = $region200
      $region199: #{transformer_model_forward.1} parent=167 // pred_region
        _
      $region200: #{transformer_model_forward.1} parent=167 // pred_fallthru
        _
      // Predicated region
      $region201: #{transformer_model_forward.1} parent=167 // pred_check
        %p9853 = pneg %p1182
      $region202: #{transformer_model_forward.1} parent=167 // pred_check_branch
        %9855 = sbr.rel (%p9853) target = $region204
      $region203: #{transformer_model_forward.1} parent=167 // pred_region
        _
      $region204: #{transformer_model_forward.1} parent=167 // pred_fallthru
        _
    $region168: #{transformer_model_forward.1} parent=5 // pred_fallthru
      _
    %p9856 = scmp.le.s32.totalorder 2, %s81
    // Predicated region
    $region205: #{transformer_model_forward.1} parent=5 // pred_check
      %p9857 = pneg %p9856
    $region206: #{transformer_model_forward.1} parent=5 // pred_check_branch
      %9859 = sbr.rel (%p9857) target = $region208
    $region207: #{transformer_model_forward.1} parent=5 // pred_region
      %s9860 = ssub.s32 %s81, 2
    $region208: #{transformer_model_forward.1} parent=5 // pred_fallthru
      _
  $region6: #{transformer_model_forward.1} parent=0 // loop_footer
    %s85 = sadd.s32 1, %s81
  $region7: #{transformer_model_forward.1} parent=0 // loop_footer_branch
    %80 = sbr.rel target = $region3
  $region8: #{transformer_model_forward.1} parent=0 // loop_exit
    _

</llo_original>
